<compile_context>
chip_gen: v6e
topology: v6e:2x2x1
jax: 0.10.0
libtpu: 0.0.40
codegen_flags: <defaults>
</compile_context>

<pallas_src>
import functools

import jax
import jax.numpy as jnp
from jax.experimental import pallas as pl
from jax.experimental.pallas import tpu as pltpu


def _round_up(v, m):
    return ((v + m - 1) // m) * m


# ---------------------------------------------------------------------------
# In-kernel building blocks (operate on (C, H*W) f32 slabs)
# ---------------------------------------------------------------------------

def _getp(p_ref, off):
    """Static slice of the packed parameter buffer.  off = (row0, rows, width)."""
    r0, r, w = off
    return p_ref[r0:r0 + r, 0:w]


def _pointwise_bn(y, w, b):
    """1x1 conv (BN scale pre-folded into weight) + BN bias, on the MXU.

    y: (Ci, HW); w: (Co, Ci); b: (Co, 1)."""
    return jnp.dot(w, y, preferred_element_type=jnp.float32) + b


def _masked_roll(v, mask_ref, oy, ox, W):
    """v shifted by (oy, ox) with zero fill: lane roll (XLU) + border mask (VPU)."""
    hw = v.shape[1]
    shift = (-(oy * W + ox)) % hw              # tap[l] = v[l + oy*W + ox]
    rolled = pltpu.roll(v, shift, axis=1) if shift else v
    idx = (oy + 2) * 5 + (ox + 2)              # mask table covers |oy|,|ox| <= 2
    return rolled * mask_ref[idx:idx + 1, :]


def _depthwise(v, dw, mask_ref, K, W, apply_relu):
    """Depthwise KxK conv, stride 1, zero padding K//2.  dw: (C, K*K).

    Two partial accumulators shorten the serial add chain for the VALU slots."""
    pad = K // 2
    if apply_relu:
        v = jnp.maximum(v, 0.0)                # relu(pad0(x)) == pad0(relu(x))
    acc0 = jnp.zeros(v.shape, jnp.float32)
    acc1 = jnp.zeros(v.shape, jnp.float32)
    for t in range(K * K):
        dy, dx = t // K, t % K
        tap = _masked_roll(v, mask_ref, dy - pad, dx - pad, W)
        contrib = tap * dw[:, t:t + 1]
        if t % 2 == 0:
            acc0 = acc0 + contrib
        else:
            acc1 = acc1 + contrib
    return acc0 + acc1


# ---------------------------------------------------------------------------
# Fused NormalCell kernel (B images per grid step, unrolled)
# ---------------------------------------------------------------------------

def _normal_cell_kernel(x_ref, h_ref, mask_ref, p_ref, o_ref, *, offs, C, W, B):
    HW = x_ref.shape[-1]

    for b in range(B):
        x_in = x_ref[b]                        # (Cxp, HW), zero-padded channels
        h_in = h_ref[b]                        # (Chp, HW)

        # adjust (ResizeCell1): relu -> 1x1 conv -> BN (folded), both branches.
        x = _pointwise_bn(jnp.maximum(x_in, 0.0),
                          _getp(p_ref, offs['adj_wl']), _getp(p_ref, offs['adj_bl']))
        h = _pointwise_bn(jnp.maximum(h_in, 0.0),
                          _getp(p_ref, offs['adj_wr']), _getp(p_ref, offs['adj_br']))

        # Store the passthrough slab immediately (drain the vst slot early).
        o_ref[b, 0 * C:1 * C, :] = x

        zeros = jnp.zeros((C, HW), jnp.float32)

        # ---- shared first-stage taps over x: one masked roll per (oy,ox) feeds
        #      comb0's 3x3 dw0 (relu'd), comb1_right's 5x5 dw0 (relu'd) and
        #      avgpool(x) (raw).  mask*roll(relu(v)) == relu(mask*roll(v)).
        dw_ts0 = _getp(p_ref, offs['ts0_dw0'])     # (C, 9)
        dw_ts2 = _getp(p_ref, offs['ts2_dw0'])     # (C, 25)
        acc_ts0 = zeros
        acc_ts2a = zeros
        acc_ts2b = zeros
        acc_px = zeros
        for oy in range(-2, 3):
            for ox in range(-2, 3):
                tap = _masked_roll(x, mask_ref, oy, ox, W)
                tap_r = jnp.maximum(tap, 0.0)
                t5 = (oy + 2) * 5 + (ox + 2)
                c5 = tap_r * dw_ts2[:, t5:t5 + 1]
                if t5 % 2 == 0:
                    acc_ts2a = acc_ts2a + c5
                else:
                    acc_ts2b = acc_ts2b + c5
                if -1 <= oy <= 1 and -1 <= ox <= 1:
                    t3 = (oy + 1) * 3 + (ox + 1)
                    acc_ts0 = acc_ts0 + tap_r * dw_ts0[:, t3:t3 + 1]
                    acc_px = acc_px + tap

        # ---- shared first-stage taps over h: comb1_left 3x3, comb4_left 5x5,
        #      comb4_right 3x3 (all relu'd) and avgpool(h) (raw).
        dw_ts1 = _getp(p_ref, offs['ts1_dw0'])
        dw_ts3 = _getp(p_ref, offs['ts3_dw0'])
        dw_ts4 = _getp(p_ref, offs['ts4_dw0'])
        acc_ts1 = zeros
        acc_ts3a = zeros
        acc_ts3b = zeros
        acc_ts4 = zeros
        acc_ph = zeros
        for oy in range(-2, 3):
            for ox in range(-2, 3):
                tap = _masked_roll(h, mask_ref, oy, ox, W)
                tap_r = jnp.maximum(tap, 0.0)
                t5 = (oy + 2) * 5 + (ox + 2)
                c5 = tap_r * dw_ts3[:, t5:t5 + 1]
                if t5 % 2 == 0:
                    acc_ts3a = acc_ts3a + c5
                else:
                    acc_ts3b = acc_ts3b + c5
                if -1 <= oy <= 1 and -1 <= ox <= 1:
                    t3 = (oy + 1) * 3 + (ox + 1)
                    acc_ts1 = acc_ts1 + tap_r * dw_ts1[:, t3:t3 + 1]
                    acc_ts4 = acc_ts4 + tap_r * dw_ts4[:, t3:t3 + 1]
                    acc_ph = acc_ph + tap

        # Pool-only combiners finish first -> store early.
        o_ref[b, 3 * C:4 * C, :] = acc_px * (1.0 / 9.0) + h      # comb_iter_2
        o_ref[b, 4 * C:5 * C, :] = acc_ph * (2.0 / 9.0)          # comb_iter_3

        # ---- finish each TwoSeparables: pw0+BN -> relu -> dw1 -> pw1+BN ----
        def second_stage(acc, name, K):
            y = _pointwise_bn(acc, _getp(p_ref, offs[name + '_pw0']),
                              _getp(p_ref, offs[name + '_b0']))
            y = _depthwise(y, _getp(p_ref, offs[name + '_dw1']), mask_ref, K, W,
                           apply_relu=True)
            return _pointwise_bn(y, _getp(p_ref, offs[name + '_pw1']),
                                 _getp(p_ref, offs[name + '_b1']))

        ts0 = second_stage(acc_ts0, 'ts0', 3)
        o_ref[b, 1 * C:2 * C, :] = ts0 + x                       # comb_iter_0

        ts1 = second_stage(acc_ts1, 'ts1', 3)
        ts2 = second_stage(acc_ts2a + acc_ts2b, 'ts2', 5)
        o_ref[b, 2 * C:3 * C, :] = ts1 + ts2                     # comb_iter_1

        ts3 = second_stage(acc_ts3a + acc_ts3b, 'ts3', 5)
        ts4 = second_stage(acc_ts4, 'ts4', 3)
        o_ref[b, 5 * C:6 * C, :] = ts3 + ts4                     # comb_iter_4


# ---------------------------------------------------------------------------
# Wrapper
# ---------------------------------------------------------------------------

def _build_tap_masks(H, W):
    """(32, H*W) f32 table: rows 0..24 are validity masks for offsets |oy|,|ox|<=2."""
    HW = H * W
    idx = jnp.arange(HW, dtype=jnp.int32)
    row = idx // W
    col = idx % W
    rows = []
    for oy in range(-2, 3):
        for ox in range(-2, 3):
            valid = ((row + oy >= 0) & (row + oy < H) &
                     (col + ox >= 0) & (col + ox < W))
            rows.append(valid.astype(jnp.float32))
    while len(rows) % 8:                       # pad sublanes to a multiple of 8
        rows.append(jnp.zeros((HW,), jnp.float32))
    return jnp.stack(rows, axis=0)


_PARAM_NAMES = (['adj_wl', 'adj_bl', 'adj_wr', 'adj_br'] +
                [f'ts{i}_{f}' for i in range(5)
                 for f in ('dw0', 'pw0', 'b0', 'dw1', 'pw1', 'b1')])


def _pack_params(flat_params):
    """Pack all 34 tiny parameter arrays into ONE lane-dense (rows, 128) f32
    buffer (single DMA / single BlockSpec) plus static slot offsets."""
    assert len(flat_params) == len(_PARAM_NAMES)
    rp = _round_up(max(p.shape[0] for p in flat_params), 8)
    buf = jnp.zeros((rp * len(flat_params), 128), jnp.float32)
    offs = {}
    for i, (name, p) in enumerate(zip(_PARAM_NAMES, flat_params)):
        r, w = p.shape
        assert w <= 128 and r <= rp
        buf = buf.at[i * rp:i * rp + r, :w].set(p.astype(jnp.float32))
        offs[name] = (i * rp, r, w)
    return buf, offs


def _pick_images_per_block(N):
    """Amortize fixed per-grid-step overhead, while keeping grid length >= 2 so
    both v7x TensorCores get work (v5e/v6e just see a serial loop)."""
    best = 1
    for b in range(1, min(8, N) + 1):
        if N % b == 0 and (N // b >= 2 or N == 1):
            best = b
    return best


def normal_cell_forward(x_nchw, h_nchw, flat_params):
    prev = x_nchw
    N, Cx, H, W = x_nchw.shape
    Ch = h_nchw.shape[1]
    HW = H * W
    C = flat_params[0].shape[0]                # out_channels

    # Pad input-channel dims to multiples of 8: sublane-aligned slabs and clean
    # (C, 8k) x (8k, HW) MXU shapes for the adjust 1x1 convs (zero channels
    # contribute exactly 0).
    Cxp, Chp = _round_up(Cx, 8), _round_up(Ch, 8)
    x = jnp.pad(x_nchw.reshape(N, Cx, HW).astype(jnp.float32),
                ((0, 0), (0, Cxp - Cx), (0, 0)))
    h = jnp.pad(h_nchw.reshape(N, Ch, HW).astype(jnp.float32),
                ((0, 0), (0, Chp - Ch), (0, 0)))

    fp = list(flat_params)
    fp[0] = jnp.pad(fp[0], ((0, 0), (0, Cxp - Cx)))   # adj_wl: (C, Cx) -> (C, Cxp)
    fp[2] = jnp.pad(fp[2], ((0, 0), (0, Chp - Ch)))   # adj_wr: (C, Ch) -> (C, Chp)
    pbuf, offs = _pack_params(fp)
    masks = _build_tap_masks(H, W)

    B = _pick_images_per_block(N)

    out = pl.pallas_call(
        functools.partial(_normal_cell_kernel, offs=offs, C=C, W=W, B=B),
        out_shape=jax.ShapeDtypeStruct((N, 6 * C, HW), jnp.float32),
        grid=(N // B,),
        in_specs=[
            pl.BlockSpec((B, Cxp, HW), lambda n: (n, 0, 0)),
            pl.BlockSpec((B, Chp, HW), lambda n: (n, 0, 0)),
            pl.BlockSpec(masks.shape, lambda n: (0, 0)),
            pl.BlockSpec(pbuf.shape, lambda n: (0, 0)),
        ],
        out_specs=pl.BlockSpec((B, 6 * C, HW), lambda n: (n, 0, 0)),
        compiler_params=pltpu.CompilerParams(dimension_semantics=("parallel",)),
    )(x, h, masks, pbuf)

    return out.reshape(N, 6 * C, H, W), prev


# ---------------------------------------------------------------------------
# Parameter construction (deterministic; PyTorch shapes -> kernel layouts)
# ---------------------------------------------------------------------------

def _bn_fold(gamma, beta, mean, var, eps=1e-3):
    scale = gamma / jnp.sqrt(var + eps)
    bias = beta - mean * scale
    return scale.astype(jnp.float32), bias.astype(jnp.float32)


def _init_bn(key, C):
    k = jax.random.split(key, 4)
    gamma = 1.0 + 0.1 * jax.random.normal(k[0], (C,), jnp.float32)
    beta = 0.1 * jax.random.normal(k[1], (C,), jnp.float32)
    mean = 0.1 * jax.random.normal(k[2], (C,), jnp.float32)
    var = 1.0 + 0.1 * jnp.abs(jax.random.normal(k[3], (C,), jnp.float32))
    return _bn_fold(gamma, beta, mean, var)


def _init_pw(key, Cin, Cout):
    # torch 1x1 conv weight (Cout, Cin, 1, 1) -> (Cout, Cin)
    return 0.1 * jax.random.normal(key, (Cout, Cin), jnp.float32)


def _init_dw(key, C, K):
    # torch depthwise weight (C, 1, K, K) -> (C, K*K)
    return 0.1 * jax.random.normal(key, (C, K * K), jnp.float32)


def _fold_pw_bn(pw, bn):
    # BN(conv1x1(z))_co = sum_ci (scale_co * W[co,ci]) z_ci + bias_co
    scale, bias = bn
    return pw * scale[:, None], bias[:, None]


def _init_two_separables(key, C, K):
    k = jax.random.split(key, 6)
    pw0, b0 = _fold_pw_bn(_init_pw(k[1], C, C), _init_bn(k[2], C))
    pw1, b1 = _fold_pw_bn(_init_pw(k[4], C, C), _init_bn(k[5], C))
    return [_init_dw(k[0], C, K), pw0, b0, _init_dw(k[3], C, K), pw1, b1]


def init_normal_cell(key, cin_x, cin_h, cout):
    k = jax.random.split(key, 9)
    adj_wl, adj_bl = _fold_pw_bn(_init_pw(k[0], cin_x, cout), _init_bn(k[1], cout))
    adj_wr, adj_br = _fold_pw_bn(_init_pw(k[2], cin_h, cout), _init_bn(k[3], cout))
    flat = [adj_wl, adj_bl, adj_wr, adj_br]
    flat += _init_two_separables(k[4], cout, 3)   # comb_iter_0_left  (3x3, on x)
    flat += _init_two_separables(k[5], cout, 3)   # comb_iter_1_left  (3x3, on h)
    flat += _init_two_separables(k[6], cout, 5)   # comb_iter_1_right (5x5, on x)
    flat += _init_two_separables(k[7], cout, 5)   # comb_iter_4_left  (5x5, on h)
    flat += _init_two_separables(k[8], cout, 3)   # comb_iter_4_right (3x3, on h)
    return flat


# ---------------------------------------------------------------------------
# Main
# ---------------------------------------------------------------------------

if __name__ == "__main__":
    key = jax.random.PRNGKey(0)
    k_param, k_x, k_h = jax.random.split(key, 3)

    N, H, W = 2, 16, 16
    in_channels_x, in_channels_h, out_channels = 6, 4, 8

    params = init_normal_cell(k_param, in_channels_x, in_channels_h, out_channels)

    x = jax.random.normal(k_x, (N, in_channels_x, H, W), jnp.float32)
    h = jax.random.normal(k_h, (N, in_channels_h, H, W), jnp.float32)

    fwd = jax.jit(normal_cell_forward)
    out, prev = fwd(x, h, params)
    jax.block_until_ready(out)
    jax.block_until_ready(prev)

    assert out.shape == (N, 6 * out_channels, H, W), out.shape
    assert prev.shape == x.shape
    print("KERNEL_OK")
</pallas_src>

<mosaic_0001>
module attributes {stable_mosaic.version = 11 : i64} {
  func.func @_normal_cell_kernel(%arg0: i32, %arg1: memref<1x8x256xf32, #tpu.memory_space<vmem>>, %arg2: memref<1x8x256xf32, #tpu.memory_space<vmem>>, %arg3: memref<32x256xf32, #tpu.memory_space<vmem>>, %arg4: memref<272x128xf32, #tpu.memory_space<vmem>>, %arg5: memref<1x48x256xf32, #tpu.memory_space<vmem>>) attributes {dimension_semantics = [#tpu.dimension_semantics<parallel>], iteration_bounds = array<i64: 2>, scalar_prefetch = 0 : i64, scratch_operands = 0 : i64, tpu.core_type = #tpu.core_type<tc>, window_params = [{transform_indices = @transform_0, window_bounds = array<i64: 1, 8, 256>}, {transform_indices = @transform_1, window_bounds = array<i64: 1, 8, 256>}, {pipeline_mode = #tpu.pipeline_mode<synchronous>, transform_indices = @transform_2, window_bounds = array<i64: 32, 256>}, {pipeline_mode = #tpu.pipeline_mode<synchronous>, transform_indices = @transform_3, window_bounds = array<i64: 272, 128>}, {transform_indices = @transform_4, window_bounds = array<i64: 1, 48, 256>}]} {
    %c0 = arith.constant 0 : index
    %c0_0 = arith.constant 0 : index
    %c0_1 = arith.constant 0 : index
    %0 = vector.load %arg1[%c0, %c0_0, %c0_1] : memref<1x8x256xf32, #tpu.memory_space<vmem>>, vector<1x8x256xf32>
    %1 = vector.shape_cast %0 : vector<1x8x256xf32> to vector<8x256xf32>
    %c0_2 = arith.constant 0 : index
    %c0_3 = arith.constant 0 : index
    %c0_4 = arith.constant 0 : index
    %2 = vector.load %arg2[%c0_2, %c0_3, %c0_4] : memref<1x8x256xf32, #tpu.memory_space<vmem>>, vector<1x8x256xf32>
    %3 = vector.shape_cast %2 : vector<1x8x256xf32> to vector<8x256xf32>
    %cst = arith.constant 0.000000e+00 : f32
    %4 = vector.broadcast %cst : f32 to vector<8x256xf32>
    %5 = arith.maximumf %1, %4 : vector<8x256xf32>
    %c0_5 = arith.constant 0 : index
    %c0_6 = arith.constant 0 : index
    %6 = vector.load %arg4[%c0_5, %c0_6] : memref<272x128xf32, #tpu.memory_space<vmem>>, vector<8x8xf32>
    %c8 = arith.constant 8 : index
    %c0_7 = arith.constant 0 : index
    %7 = vector.load %arg4[%c8, %c0_7] : memref<272x128xf32, #tpu.memory_space<vmem>>, vector<8x1xf32>
    %cst_8 = arith.constant dense<0.000000e+00> : vector<8x256xf32>
    %8 = tpu.matmul %6, %5, %cst_8 {dimension_numbers = #tpu.dot_dimension_numbers<[1], [0], [0], [1], [0, 0, 1, 1], [], []>} : vector<8x8xf32>, vector<8x256xf32>, vector<8x256xf32> -> vector<8x256xf32>
    %9 = vector.broadcast %7 : vector<8x1xf32> to vector<8x256xf32>
    %10 = arith.addf %8, %9 : vector<8x256xf32>
    %cst_9 = arith.constant 0.000000e+00 : f32
    %11 = vector.broadcast %cst_9 : f32 to vector<8x256xf32>
    %12 = arith.maximumf %3, %11 : vector<8x256xf32>
    %c16 = arith.constant 16 : index
    %c0_10 = arith.constant 0 : index
    %13 = vector.load %arg4[%c16, %c0_10] : memref<272x128xf32, #tpu.memory_space<vmem>>, vector<8x8xf32>
    %c24 = arith.constant 24 : index
    %c0_11 = arith.constant 0 : index
    %14 = vector.load %arg4[%c24, %c0_11] : memref<272x128xf32, #tpu.memory_space<vmem>>, vector<8x1xf32>
    %cst_12 = arith.constant dense<0.000000e+00> : vector<8x256xf32>
    %15 = tpu.matmul %13, %12, %cst_12 {dimension_numbers = #tpu.dot_dimension_numbers<[1], [0], [0], [1], [0, 0, 1, 1], [], []>} : vector<8x8xf32>, vector<8x256xf32>, vector<8x256xf32> -> vector<8x256xf32>
    %16 = vector.broadcast %14 : vector<8x1xf32> to vector<8x256xf32>
    %17 = arith.addf %15, %16 : vector<8x256xf32>
    %c0_13 = arith.constant 0 : index
    %c0_14 = arith.constant 0 : index
    %c0_15 = arith.constant 0 : index
    %18 = vector.load %arg5[%c0_13, %c0_14, %c0_15] : memref<1x48x256xf32, #tpu.memory_space<vmem>>, vector<1x8x256xf32>
    %19 = vector.shape_cast %18 : vector<1x8x256xf32> to vector<8x256xf32>
    %20 = vector.shape_cast %10 : vector<8x256xf32> to vector<1x8x256xf32>
    tpu.vector_store %arg5[%c0_13, %c0_14, %c0_15], %20 {strides = array<i32>} : memref<1x48x256xf32, #tpu.memory_space<vmem>>, vector<1x8x256xf32>,
    %cst_16 = arith.constant 0.000000e+00 : f32
    %21 = vector.broadcast %cst_16 : f32 to vector<8x256xf32>
    %c32 = arith.constant 32 : index
    %c0_17 = arith.constant 0 : index
    %22 = vector.load %arg4[%c32, %c0_17] : memref<272x128xf32, #tpu.memory_space<vmem>>, vector<8x9xf32>
    %c128 = arith.constant 128 : index
    %c0_18 = arith.constant 0 : index
    %23 = vector.load %arg4[%c128, %c0_18] : memref<272x128xf32, #tpu.memory_space<vmem>>, vector<8x25xf32>
    %c34_i32 = arith.constant 34 : i32
    %24 = tpu.dynamic_rotate %10 by %c34_i32 dim 1 : vector<8x256xf32>, i32 -> vector<8x256xf32>
    %c0_19 = arith.constant 0 : index
    %c0_20 = arith.constant 0 : index
    %25 = vector.load %arg3[%c0_19, %c0_20] : memref<32x256xf32, #tpu.memory_space<vmem>>, vector<1x256xf32>
    %26 = vector.broadcast %25 : vector<1x256xf32> to vector<8x256xf32>
    %27 = arith.mulf %24, %26 : vector<8x256xf32>
    %cst_21 = arith.constant 0.000000e+00 : f32
    %28 = vector.broadcast %cst_21 : f32 to vector<8x256xf32>
    %29 = arith.maximumf %27, %28 : vector<8x256xf32>
    %30 = vector.extract_strided_slice %23 {offsets = [0, 0], sizes = [8, 1], strides = [1, 1]} : vector<8x25xf32> to vector<8x1xf32>
    %31 = vector.broadcast %30 : vector<8x1xf32> to vector<8x256xf32>
    %32 = arith.mulf %29, %31 : vector<8x256xf32>
    %33 = arith.addf %21, %32 : vector<8x256xf32>
    %c33_i32 = arith.constant 33 : i32
    %34 = tpu.dynamic_rotate %10 by %c33_i32 dim 1 : vector<8x256xf32>, i32 -> vector<8x256xf32>
    %c1 = arith.constant 1 : index
    %c0_22 = arith.constant 0 : index
    %35 = vector.load %arg3[%c1, %c0_22] : memref<32x256xf32, #tpu.memory_space<vmem>>, vector<1x256xf32>
    %36 = vector.broadcast %35 : vector<1x256xf32> to vector<8x256xf32>
    %37 = arith.mulf %34, %36 : vector<8x256xf32>
    %cst_23 = arith.constant 0.000000e+00 : f32
    %38 = vector.broadcast %cst_23 : f32 to vector<8x256xf32>
    %39 = arith.maximumf %37, %38 : vector<8x256xf32>
    %40 = vector.extract_strided_slice %23 {offsets = [0, 1], sizes = [8, 1], strides = [1, 1]} : vector<8x25xf32> to vector<8x1xf32>
    %41 = vector.broadcast %40 : vector<8x1xf32> to vector<8x256xf32>
    %42 = arith.mulf %39, %41 : vector<8x256xf32>
    %43 = arith.addf %21, %42 : vector<8x256xf32>
    %c32_i32 = arith.constant 32 : i32
    %44 = tpu.dynamic_rotate %10 by %c32_i32 dim 1 : vector<8x256xf32>, i32 -> vector<8x256xf32>
    %c2 = arith.constant 2 : index
    %c0_24 = arith.constant 0 : index
    %45 = vector.load %arg3[%c2, %c0_24] : memref<32x256xf32, #tpu.memory_space<vmem>>, vector<1x256xf32>
    %46 = vector.broadcast %45 : vector<1x256xf32> to vector<8x256xf32>
    %47 = arith.mulf %44, %46 : vector<8x256xf32>
    %cst_25 = arith.constant 0.000000e+00 : f32
    %48 = vector.broadcast %cst_25 : f32 to vector<8x256xf32>
    %49 = arith.maximumf %47, %48 : vector<8x256xf32>
    %50 = vector.extract_strided_slice %23 {offsets = [0, 2], sizes = [8, 1], strides = [1, 1]} : vector<8x25xf32> to vector<8x1xf32>
    %51 = vector.broadcast %50 : vector<8x1xf32> to vector<8x256xf32>
    %52 = arith.mulf %49, %51 : vector<8x256xf32>
    %53 = arith.addf %33, %52 : vector<8x256xf32>
    %c31_i32 = arith.constant 31 : i32
    %54 = tpu.dynamic_rotate %10 by %c31_i32 dim 1 : vector<8x256xf32>, i32 -> vector<8x256xf32>
    %c3 = arith.constant 3 : index
    %c0_26 = arith.constant 0 : index
    %55 = vector.load %arg3[%c3, %c0_26] : memref<32x256xf32, #tpu.memory_space<vmem>>, vector<1x256xf32>
    %56 = vector.broadcast %55 : vector<1x256xf32> to vector<8x256xf32>
    %57 = arith.mulf %54, %56 : vector<8x256xf32>
    %cst_27 = arith.constant 0.000000e+00 : f32
    %58 = vector.broadcast %cst_27 : f32 to vector<8x256xf32>
    %59 = arith.maximumf %57, %58 : vector<8x256xf32>
    %60 = vector.extract_strided_slice %23 {offsets = [0, 3], sizes = [8, 1], strides = [1, 1]} : vector<8x25xf32> to vector<8x1xf32>
    %61 = vector.broadcast %60 : vector<8x1xf32> to vector<8x256xf32>
    %62 = arith.mulf %59, %61 : vector<8x256xf32>
    %63 = arith.addf %43, %62 : vector<8x256xf32>
    %c30_i32 = arith.constant 30 : i32
    %64 = tpu.dynamic_rotate %10 by %c30_i32 dim 1 : vector<8x256xf32>, i32 -> vector<8x256xf32>
    %c4 = arith.constant 4 : index
    %c0_28 = arith.constant 0 : index
    %65 = vector.load %arg3[%c4, %c0_28] : memref<32x256xf32, #tpu.memory_space<vmem>>, vector<1x256xf32>
    %66 = vector.broadcast %65 : vector<1x256xf32> to vector<8x256xf32>
    %67 = arith.mulf %64, %66 : vector<8x256xf32>
    %cst_29 = arith.constant 0.000000e+00 : f32
    %68 = vector.broadcast %cst_29 : f32 to vector<8x256xf32>
    %69 = arith.maximumf %67, %68 : vector<8x256xf32>
    %70 = vector.extract_strided_slice %23 {offsets = [0, 4], sizes = [8, 1], strides = [1, 1]} : vector<8x25xf32> to vector<8x1xf32>
    %71 = vector.broadcast %70 : vector<8x1xf32> to vector<8x256xf32>
    %72 = arith.mulf %69, %71 : vector<8x256xf32>
    %73 = arith.addf %53, %72 : vector<8x256xf32>
    %c18_i32 = arith.constant 18 : i32
    %74 = tpu.dynamic_rotate %10 by %c18_i32 dim 1 : vector<8x256xf32>, i32 -> vector<8x256xf32>
    %c5 = arith.constant 5 : index
    %c0_30 = arith.constant 0 : index
    %75 = vector.load %arg3[%c5, %c0_30] : memref<32x256xf32, #tpu.memory_space<vmem>>, vector<1x256xf32>
    %76 = vector.broadcast %75 : vector<1x256xf32> to vector<8x256xf32>
    %77 = arith.mulf %74, %76 : vector<8x256xf32>
    %cst_31 = arith.constant 0.000000e+00 : f32
    %78 = vector.broadcast %cst_31 : f32 to vector<8x256xf32>
    %79 = arith.maximumf %77, %78 : vector<8x256xf32>
    %80 = vector.extract_strided_slice %23 {offsets = [0, 5], sizes = [8, 1], strides = [1, 1]} : vector<8x25xf32> to vector<8x1xf32>
    %81 = vector.broadcast %80 : vector<8x1xf32> to vector<8x256xf32>
    %82 = arith.mulf %79, %81 : vector<8x256xf32>
    %83 = arith.addf %63, %82 : vector<8x256xf32>
    %c17_i32 = arith.constant 17 : i32
    %84 = tpu.dynamic_rotate %10 by %c17_i32 dim 1 : vector<8x256xf32>, i32 -> vector<8x256xf32>
    %c6 = arith.constant 6 : index
    %c0_32 = arith.constant 0 : index
    %85 = vector.load %arg3[%c6, %c0_32] : memref<32x256xf32, #tpu.memory_space<vmem>>, vector<1x256xf32>
    %86 = vector.broadcast %85 : vector<1x256xf32> to vector<8x256xf32>
    %87 = arith.mulf %84, %86 : vector<8x256xf32>
    %cst_33 = arith.constant 0.000000e+00 : f32
    %88 = vector.broadcast %cst_33 : f32 to vector<8x256xf32>
    %89 = arith.maximumf %87, %88 : vector<8x256xf32>
    %90 = vector.extract_strided_slice %23 {offsets = [0, 6], sizes = [8, 1], strides = [1, 1]} : vector<8x25xf32> to vector<8x1xf32>
    %91 = vector.broadcast %90 : vector<8x1xf32> to vector<8x256xf32>
    %92 = arith.mulf %89, %91 : vector<8x256xf32>
    %93 = arith.addf %73, %92 : vector<8x256xf32>
    %94 = vector.extract_strided_slice %22 {offsets = [0, 0], sizes = [8, 1], strides = [1, 1]} : vector<8x9xf32> to vector<8x1xf32>
    %95 = vector.broadcast %94 : vector<8x1xf32> to vector<8x256xf32>
    %96 = arith.mulf %89, %95 : vector<8x256xf32>
    %97 = arith.addf %21, %96 : vector<8x256xf32>
    %98 = arith.addf %21, %87 : vector<8x256xf32>
    %c16_i32 = arith.constant 16 : i32
    %99 = tpu.dynamic_rotate %10 by %c16_i32 dim 1 : vector<8x256xf32>, i32 -> vector<8x256xf32>
    %c7 = arith.constant 7 : index
    %c0_34 = arith.constant 0 : index
    %100 = vector.load %arg3[%c7, %c0_34] : memref<32x256xf32, #tpu.memory_space<vmem>>, vector<1x256xf32>
    %101 = vector.broadcast %100 : vector<1x256xf32> to vector<8x256xf32>
    %102 = arith.mulf %99, %101 : vector<8x256xf32>
    %cst_35 = arith.constant 0.000000e+00 : f32
    %103 = vector.broadcast %cst_35 : f32 to vector<8x256xf32>
    %104 = arith.maximumf %102, %103 : vector<8x256xf32>
    %105 = vector.extract_strided_slice %23 {offsets = [0, 7], sizes = [8, 1], strides = [1, 1]} : vector<8x25xf32> to vector<8x1xf32>
    %106 = vector.broadcast %105 : vector<8x1xf32> to vector<8x256xf32>
    %107 = arith.mulf %104, %106 : vector<8x256xf32>
    %108 = arith.addf %83, %107 : vector<8x256xf32>
    %109 = vector.extract_strided_slice %22 {offsets = [0, 1], sizes = [8, 1], strides = [1, 1]} : vector<8x9xf32> to vector<8x1xf32>
    %110 = vector.broadcast %109 : vector<8x1xf32> to vector<8x256xf32>
    %111 = arith.mulf %104, %110 : vector<8x256xf32>
    %112 = arith.addf %97, %111 : vector<8x256xf32>
    %113 = arith.addf %98, %102 : vector<8x256xf32>
    %c15_i32 = arith.constant 15 : i32
    %114 = tpu.dynamic_rotate %10 by %c15_i32 dim 1 : vector<8x256xf32>, i32 -> vector<8x256xf32>
    %c8_36 = arith.constant 8 : index
    %c0_37 = arith.constant 0 : index
    %115 = vector.load %arg3[%c8_36, %c0_37] : memref<32x256xf32, #tpu.memory_space<vmem>>, vector<1x256xf32>
    %116 = vector.broadcast %115 : vector<1x256xf32> to vector<8x256xf32>
    %117 = arith.mulf %114, %116 : vector<8x256xf32>
    %cst_38 = arith.constant 0.000000e+00 : f32
    %118 = vector.broadcast %cst_38 : f32 to vector<8x256xf32>
    %119 = arith.maximumf %117, %118 : vector<8x256xf32>
    %120 = vector.extract_strided_slice %23 {offsets = [0, 8], sizes = [8, 1], strides = [1, 1]} : vector<8x25xf32> to vector<8x1xf32>
    %121 = vector.broadcast %120 : vector<8x1xf32> to vector<8x256xf32>
    %122 = arith.mulf %119, %121 : vector<8x256xf32>
    %123 = arith.addf %93, %122 : vector<8x256xf32>
    %124 = vector.extract_strided_slice %22 {offsets = [0, 2], sizes = [8, 1], strides = [1, 1]} : vector<8x9xf32> to vector<8x1xf32>
    %125 = vector.broadcast %124 : vector<8x1xf32> to vector<8x256xf32>
    %126 = arith.mulf %119, %125 : vector<8x256xf32>
    %127 = arith.addf %112, %126 : vector<8x256xf32>
    %128 = arith.addf %113, %117 : vector<8x256xf32>
    %c14_i32 = arith.constant 14 : i32
    %129 = tpu.dynamic_rotate %10 by %c14_i32 dim 1 : vector<8x256xf32>, i32 -> vector<8x256xf32>
    %c9 = arith.constant 9 : index
    %c0_39 = arith.constant 0 : index
    %130 = vector.load %arg3[%c9, %c0_39] : memref<32x256xf32, #tpu.memory_space<vmem>>, vector<1x256xf32>
    %131 = vector.broadcast %130 : vector<1x256xf32> to vector<8x256xf32>
    %132 = arith.mulf %129, %131 : vector<8x256xf32>
    %cst_40 = arith.constant 0.000000e+00 : f32
    %133 = vector.broadcast %cst_40 : f32 to vector<8x256xf32>
    %134 = arith.maximumf %132, %133 : vector<8x256xf32>
    %135 = vector.extract_strided_slice %23 {offsets = [0, 9], sizes = [8, 1], strides = [1, 1]} : vector<8x25xf32> to vector<8x1xf32>
    %136 = vector.broadcast %135 : vector<8x1xf32> to vector<8x256xf32>
    %137 = arith.mulf %134, %136 : vector<8x256xf32>
    %138 = arith.addf %108, %137 : vector<8x256xf32>
    %c2_i32 = arith.constant 2 : i32
    %139 = tpu.dynamic_rotate %10 by %c2_i32 dim 1 : vector<8x256xf32>, i32 -> vector<8x256xf32>
    %c10 = arith.constant 10 : index
    %c0_41 = arith.constant 0 : index
    %140 = vector.load %arg3[%c10, %c0_41] : memref<32x256xf32, #tpu.memory_space<vmem>>, vector<1x256xf32>
    %141 = vector.broadcast %140 : vector<1x256xf32> to vector<8x256xf32>
    %142 = arith.mulf %139, %141 : vector<8x256xf32>
    %cst_42 = arith.constant 0.000000e+00 : f32
    %143 = vector.broadcast %cst_42 : f32 to vector<8x256xf32>
    %144 = arith.maximumf %142, %143 : vector<8x256xf32>
    %145 = vector.extract_strided_slice %23 {offsets = [0, 10], sizes = [8, 1], strides = [1, 1]} : vector<8x25xf32> to vector<8x1xf32>
    %146 = vector.broadcast %145 : vector<8x1xf32> to vector<8x256xf32>
    %147 = arith.mulf %144, %146 : vector<8x256xf32>
    %148 = arith.addf %123, %147 : vector<8x256xf32>
    %c1_i32 = arith.constant 1 : i32
    %149 = tpu.dynamic_rotate %10 by %c1_i32 dim 1 : vector<8x256xf32>, i32 -> vector<8x256xf32>
    %c11 = arith.constant 11 : index
    %c0_43 = arith.constant 0 : index
    %150 = vector.load %arg3[%c11, %c0_43] : memref<32x256xf32, #tpu.memory_space<vmem>>, vector<1x256xf32>
    %151 = vector.broadcast %150 : vector<1x256xf32> to vector<8x256xf32>
    %152 = arith.mulf %149, %151 : vector<8x256xf32>
    %cst_44 = arith.constant 0.000000e+00 : f32
    %153 = vector.broadcast %cst_44 : f32 to vector<8x256xf32>
    %154 = arith.maximumf %152, %153 : vector<8x256xf32>
    %155 = vector.extract_strided_slice %23 {offsets = [0, 11], sizes = [8, 1], strides = [1, 1]} : vector<8x25xf32> to vector<8x1xf32>
    %156 = vector.broadcast %155 : vector<8x1xf32> to vector<8x256xf32>
    %157 = arith.mulf %154, %156 : vector<8x256xf32>
    %158 = arith.addf %138, %157 : vector<8x256xf32>
    %159 = vector.extract_strided_slice %22 {offsets = [0, 3], sizes = [8, 1], strides = [1, 1]} : vector<8x9xf32> to vector<8x1xf32>
    %160 = vector.broadcast %159 : vector<8x1xf32> to vector<8x256xf32>
    %161 = arith.mulf %154, %160 : vector<8x256xf32>
    %162 = arith.addf %127, %161 : vector<8x256xf32>
    %163 = arith.addf %128, %152 : vector<8x256xf32>
    %c12 = arith.constant 12 : index
    %c0_45 = arith.constant 0 : index
    %164 = vector.load %arg3[%c12, %c0_45] : memref<32x256xf32, #tpu.memory_space<vmem>>, vector<1x256xf32>
    %165 = vector.broadcast %164 : vector<1x256xf32> to vector<8x256xf32>
    %166 = arith.mulf %10, %165 : vector<8x256xf32>
    %cst_46 = arith.constant 0.000000e+00 : f32
    %167 = vector.broadcast %cst_46 : f32 to vector<8x256xf32>
    %168 = arith.maximumf %166, %167 : vector<8x256xf32>
    %169 = vector.extract_strided_slice %23 {offsets = [0, 12], sizes = [8, 1], strides = [1, 1]} : vector<8x25xf32> to vector<8x1xf32>
    %170 = vector.broadcast %169 : vector<8x1xf32> to vector<8x256xf32>
    %171 = arith.mulf %168, %170 : vector<8x256xf32>
    %172 = arith.addf %148, %171 : vector<8x256xf32>
    %173 = vector.extract_strided_slice %22 {offsets = [0, 4], sizes = [8, 1], strides = [1, 1]} : vector<8x9xf32> to vector<8x1xf32>
    %174 = vector.broadcast %173 : vector<8x1xf32> to vector<8x256xf32>
    %175 = arith.mulf %168, %174 : vector<8x256xf32>
    %176 = arith.addf %162, %175 : vector<8x256xf32>
    %177 = arith.addf %163, %166 : vector<8x256xf32>
    %c255_i32 = arith.constant 255 : i32
    %178 = tpu.dynamic_rotate %10 by %c255_i32 dim 1 : vector<8x256xf32>, i32 -> vector<8x256xf32>
    %c13 = arith.constant 13 : index
    %c0_47 = arith.constant 0 : index
    %179 = vector.load %arg3[%c13, %c0_47] : memref<32x256xf32, #tpu.memory_space<vmem>>, vector<1x256xf32>
    %180 = vector.broadcast %179 : vector<1x256xf32> to vector<8x256xf32>
    %181 = arith.mulf %178, %180 : vector<8x256xf32>
    %cst_48 = arith.constant 0.000000e+00 : f32
    %182 = vector.broadcast %cst_48 : f32 to vector<8x256xf32>
    %183 = arith.maximumf %181, %182 : vector<8x256xf32>
    %184 = vector.extract_strided_slice %23 {offsets = [0, 13], sizes = [8, 1], strides = [1, 1]} : vector<8x25xf32> to vector<8x1xf32>
    %185 = vector.broadcast %184 : vector<8x1xf32> to vector<8x256xf32>
    %186 = arith.mulf %183, %185 : vector<8x256xf32>
    %187 = arith.addf %158, %186 : vector<8x256xf32>
    %188 = vector.extract_strided_slice %22 {offsets = [0, 5], sizes = [8, 1], strides = [1, 1]} : vector<8x9xf32> to vector<8x1xf32>
    %189 = vector.broadcast %188 : vector<8x1xf32> to vector<8x256xf32>
    %190 = arith.mulf %183, %189 : vector<8x256xf32>
    %191 = arith.addf %176, %190 : vector<8x256xf32>
    %192 = arith.addf %177, %181 : vector<8x256xf32>
    %c254_i32 = arith.constant 254 : i32
    %193 = tpu.dynamic_rotate %10 by %c254_i32 dim 1 : vector<8x256xf32>, i32 -> vector<8x256xf32>
    %c14 = arith.constant 14 : index
    %c0_49 = arith.constant 0 : index
    %194 = vector.load %arg3[%c14, %c0_49] : memref<32x256xf32, #tpu.memory_space<vmem>>, vector<1x256xf32>
    %195 = vector.broadcast %194 : vector<1x256xf32> to vector<8x256xf32>
    %196 = arith.mulf %193, %195 : vector<8x256xf32>
    %cst_50 = arith.constant 0.000000e+00 : f32
    %197 = vector.broadcast %cst_50 : f32 to vector<8x256xf32>
    %198 = arith.maximumf %196, %197 : vector<8x256xf32>
    %199 = vector.extract_strided_slice %23 {offsets = [0, 14], sizes = [8, 1], strides = [1, 1]} : vector<8x25xf32> to vector<8x1xf32>
    %200 = vector.broadcast %199 : vector<8x1xf32> to vector<8x256xf32>
    %201 = arith.mulf %198, %200 : vector<8x256xf32>
    %202 = arith.addf %172, %201 : vector<8x256xf32>
    %c242_i32 = arith.constant 242 : i32
    %203 = tpu.dynamic_rotate %10 by %c242_i32 dim 1 : vector<8x256xf32>, i32 -> vector<8x256xf32>
    %c15 = arith.constant 15 : index
    %c0_51 = arith.constant 0 : index
    %204 = vector.load %arg3[%c15, %c0_51] : memref<32x256xf32, #tpu.memory_space<vmem>>, vector<1x256xf32>
    %205 = vector.broadcast %204 : vector<1x256xf32> to vector<8x256xf32>
    %206 = arith.mulf %203, %205 : vector<8x256xf32>
    %cst_52 = arith.constant 0.000000e+00 : f32
    %207 = vector.broadcast %cst_52 : f32 to vector<8x256xf32>
    %208 = arith.maximumf %206, %207 : vector<8x256xf32>
    %209 = vector.extract_strided_slice %23 {offsets = [0, 15], sizes = [8, 1], strides = [1, 1]} : vector<8x25xf32> to vector<8x1xf32>
    %210 = vector.broadcast %209 : vector<8x1xf32> to vector<8x256xf32>
    %211 = arith.mulf %208, %210 : vector<8x256xf32>
    %212 = arith.addf %187, %211 : vector<8x256xf32>
    %c241_i32 = arith.constant 241 : i32
    %213 = tpu.dynamic_rotate %10 by %c241_i32 dim 1 : vector<8x256xf32>, i32 -> vector<8x256xf32>
    %c16_53 = arith.constant 16 : index
    %c0_54 = arith.constant 0 : index
    %214 = vector.load %arg3[%c16_53, %c0_54] : memref<32x256xf32, #tpu.memory_space<vmem>>, vector<1x256xf32>
    %215 = vector.broadcast %214 : vector<1x256xf32> to vector<8x256xf32>
    %216 = arith.mulf %213, %215 : vector<8x256xf32>
    %cst_55 = arith.constant 0.000000e+00 : f32
    %217 = vector.broadcast %cst_55 : f32 to vector<8x256xf32>
    %218 = arith.maximumf %216, %217 : vector<8x256xf32>
    %219 = vector.extract_strided_slice %23 {offsets = [0, 16], sizes = [8, 1], strides = [1, 1]} : vector<8x25xf32> to vector<8x1xf32>
    %220 = vector.broadcast %219 : vector<8x1xf32> to vector<8x256xf32>
    %221 = arith.mulf %218, %220 : vector<8x256xf32>
    %222 = arith.addf %202, %221 : vector<8x256xf32>
    %223 = vector.extract_strided_slice %22 {offsets = [0, 6], sizes = [8, 1], strides = [1, 1]} : vector<8x9xf32> to vector<8x1xf32>
    %224 = vector.broadcast %223 : vector<8x1xf32> to vector<8x256xf32>
    %225 = arith.mulf %218, %224 : vector<8x256xf32>
    %226 = arith.addf %191, %225 : vector<8x256xf32>
    %227 = arith.addf %192, %216 : vector<8x256xf32>
    %c240_i32 = arith.constant 240 : i32
    %228 = tpu.dynamic_rotate %10 by %c240_i32 dim 1 : vector<8x256xf32>, i32 -> vector<8x256xf32>
    %c17 = arith.constant 17 : index
    %c0_56 = arith.constant 0 : index
    %229 = vector.load %arg3[%c17, %c0_56] : memref<32x256xf32, #tpu.memory_space<vmem>>, vector<1x256xf32>
    %230 = vector.broadcast %229 : vector<1x256xf32> to vector<8x256xf32>
    %231 = arith.mulf %228, %230 : vector<8x256xf32>
    %cst_57 = arith.constant 0.000000e+00 : f32
    %232 = vector.broadcast %cst_57 : f32 to vector<8x256xf32>
    %233 = arith.maximumf %231, %232 : vector<8x256xf32>
    %234 = vector.extract_strided_slice %23 {offsets = [0, 17], sizes = [8, 1], strides = [1, 1]} : vector<8x25xf32> to vector<8x1xf32>
    %235 = vector.broadcast %234 : vector<8x1xf32> to vector<8x256xf32>
    %236 = arith.mulf %233, %235 : vector<8x256xf32>
    %237 = arith.addf %212, %236 : vector<8x256xf32>
    %238 = vector.extract_strided_slice %22 {offsets = [0, 7], sizes = [8, 1], strides = [1, 1]} : vector<8x9xf32> to vector<8x1xf32>
    %239 = vector.broadcast %238 : vector<8x1xf32> to vector<8x256xf32>
    %240 = arith.mulf %233, %239 : vector<8x256xf32>
    %241 = arith.addf %226, %240 : vector<8x256xf32>
    %242 = arith.addf %227, %231 : vector<8x256xf32>
    %c239_i32 = arith.constant 239 : i32
    %243 = tpu.dynamic_rotate %10 by %c239_i32 dim 1 : vector<8x256xf32>, i32 -> vector<8x256xf32>
    %c18 = arith.constant 18 : index
    %c0_58 = arith.constant 0 : index
    %244 = vector.load %arg3[%c18, %c0_58] : memref<32x256xf32, #tpu.memory_space<vmem>>, vector<1x256xf32>
    %245 = vector.broadcast %244 : vector<1x256xf32> to vector<8x256xf32>
    %246 = arith.mulf %243, %245 : vector<8x256xf32>
    %cst_59 = arith.constant 0.000000e+00 : f32
    %247 = vector.broadcast %cst_59 : f32 to vector<8x256xf32>
    %248 = arith.maximumf %246, %247 : vector<8x256xf32>
    %249 = vector.extract_strided_slice %23 {offsets = [0, 18], sizes = [8, 1], strides = [1, 1]} : vector<8x25xf32> to vector<8x1xf32>
    %250 = vector.broadcast %249 : vector<8x1xf32> to vector<8x256xf32>
    %251 = arith.mulf %248, %250 : vector<8x256xf32>
    %252 = arith.addf %222, %251 : vector<8x256xf32>
    %253 = vector.extract_strided_slice %22 {offsets = [0, 8], sizes = [8, 1], strides = [1, 1]} : vector<8x9xf32> to vector<8x1xf32>
    %254 = vector.broadcast %253 : vector<8x1xf32> to vector<8x256xf32>
    %255 = arith.mulf %248, %254 : vector<8x256xf32>
    %256 = arith.addf %241, %255 : vector<8x256xf32>
    %257 = arith.addf %242, %246 : vector<8x256xf32>
    %c238_i32 = arith.constant 238 : i32
    %258 = tpu.dynamic_rotate %10 by %c238_i32 dim 1 : vector<8x256xf32>, i32 -> vector<8x256xf32>
    %c19 = arith.constant 19 : index
    %c0_60 = arith.constant 0 : index
    %259 = vector.load %arg3[%c19, %c0_60] : memref<32x256xf32, #tpu.memory_space<vmem>>, vector<1x256xf32>
    %260 = vector.broadcast %259 : vector<1x256xf32> to vector<8x256xf32>
    %261 = arith.mulf %258, %260 : vector<8x256xf32>
    %cst_61 = arith.constant 0.000000e+00 : f32
    %262 = vector.broadcast %cst_61 : f32 to vector<8x256xf32>
    %263 = arith.maximumf %261, %262 : vector<8x256xf32>
    %264 = vector.extract_strided_slice %23 {offsets = [0, 19], sizes = [8, 1], strides = [1, 1]} : vector<8x25xf32> to vector<8x1xf32>
    %265 = vector.broadcast %264 : vector<8x1xf32> to vector<8x256xf32>
    %266 = arith.mulf %263, %265 : vector<8x256xf32>
    %267 = arith.addf %237, %266 : vector<8x256xf32>
    %c226_i32 = arith.constant 226 : i32
    %268 = tpu.dynamic_rotate %10 by %c226_i32 dim 1 : vector<8x256xf32>, i32 -> vector<8x256xf32>
    %c20 = arith.constant 20 : index
    %c0_62 = arith.constant 0 : index
    %269 = vector.load %arg3[%c20, %c0_62] : memref<32x256xf32, #tpu.memory_space<vmem>>, vector<1x256xf32>
    %270 = vector.broadcast %269 : vector<1x256xf32> to vector<8x256xf32>
    %271 = arith.mulf %268, %270 : vector<8x256xf32>
    %cst_63 = arith.constant 0.000000e+00 : f32
    %272 = vector.broadcast %cst_63 : f32 to vector<8x256xf32>
    %273 = arith.maximumf %271, %272 : vector<8x256xf32>
    %274 = vector.extract_strided_slice %23 {offsets = [0, 20], sizes = [8, 1], strides = [1, 1]} : vector<8x25xf32> to vector<8x1xf32>
    %275 = vector.broadcast %274 : vector<8x1xf32> to vector<8x256xf32>
    %276 = arith.mulf %273, %275 : vector<8x256xf32>
    %277 = arith.addf %252, %276 : vector<8x256xf32>
    %c225_i32 = arith.constant 225 : i32
    %278 = tpu.dynamic_rotate %10 by %c225_i32 dim 1 : vector<8x256xf32>, i32 -> vector<8x256xf32>
    %c21 = arith.constant 21 : index
    %c0_64 = arith.constant 0 : index
    %279 = vector.load %arg3[%c21, %c0_64] : memref<32x256xf32, #tpu.memory_space<vmem>>, vector<1x256xf32>
    %280 = vector.broadcast %279 : vector<1x256xf32> to vector<8x256xf32>
    %281 = arith.mulf %278, %280 : vector<8x256xf32>
    %cst_65 = arith.constant 0.000000e+00 : f32
    %282 = vector.broadcast %cst_65 : f32 to vector<8x256xf32>
    %283 = arith.maximumf %281, %282 : vector<8x256xf32>
    %284 = vector.extract_strided_slice %23 {offsets = [0, 21], sizes = [8, 1], strides = [1, 1]} : vector<8x25xf32> to vector<8x1xf32>
    %285 = vector.broadcast %284 : vector<8x1xf32> to vector<8x256xf32>
    %286 = arith.mulf %283, %285 : vector<8x256xf32>
    %287 = arith.addf %267, %286 : vector<8x256xf32>
    %c224_i32 = arith.constant 224 : i32
    %288 = tpu.dynamic_rotate %10 by %c224_i32 dim 1 : vector<8x256xf32>, i32 -> vector<8x256xf32>
    %c22 = arith.constant 22 : index
    %c0_66 = arith.constant 0 : index
    %289 = vector.load %arg3[%c22, %c0_66] : memref<32x256xf32, #tpu.memory_space<vmem>>, vector<1x256xf32>
    %290 = vector.broadcast %289 : vector<1x256xf32> to vector<8x256xf32>
    %291 = arith.mulf %288, %290 : vector<8x256xf32>
    %cst_67 = arith.constant 0.000000e+00 : f32
    %292 = vector.broadcast %cst_67 : f32 to vector<8x256xf32>
    %293 = arith.maximumf %291, %292 : vector<8x256xf32>
    %294 = vector.extract_strided_slice %23 {offsets = [0, 22], sizes = [8, 1], strides = [1, 1]} : vector<8x25xf32> to vector<8x1xf32>
    %295 = vector.broadcast %294 : vector<8x1xf32> to vector<8x256xf32>
    %296 = arith.mulf %293, %295 : vector<8x256xf32>
    %297 = arith.addf %277, %296 : vector<8x256xf32>
    %c223_i32 = arith.constant 223 : i32
    %298 = tpu.dynamic_rotate %10 by %c223_i32 dim 1 : vector<8x256xf32>, i32 -> vector<8x256xf32>
    %c23 = arith.constant 23 : index
    %c0_68 = arith.constant 0 : index
    %299 = vector.load %arg3[%c23, %c0_68] : memref<32x256xf32, #tpu.memory_space<vmem>>, vector<1x256xf32>
    %300 = vector.broadcast %299 : vector<1x256xf32> to vector<8x256xf32>
    %301 = arith.mulf %298, %300 : vector<8x256xf32>
    %cst_69 = arith.constant 0.000000e+00 : f32
    %302 = vector.broadcast %cst_69 : f32 to vector<8x256xf32>
    %303 = arith.maximumf %301, %302 : vector<8x256xf32>
    %304 = vector.extract_strided_slice %23 {offsets = [0, 23], sizes = [8, 1], strides = [1, 1]} : vector<8x25xf32> to vector<8x1xf32>
    %305 = vector.broadcast %304 : vector<8x1xf32> to vector<8x256xf32>
    %306 = arith.mulf %303, %305 : vector<8x256xf32>
    %307 = arith.addf %287, %306 : vector<8x256xf32>
    %c222_i32 = arith.constant 222 : i32
    %308 = tpu.dynamic_rotate %10 by %c222_i32 dim 1 : vector<8x256xf32>, i32 -> vector<8x256xf32>
    %c24_70 = arith.constant 24 : index
    %c0_71 = arith.constant 0 : index
    %309 = vector.load %arg3[%c24_70, %c0_71] : memref<32x256xf32, #tpu.memory_space<vmem>>, vector<1x256xf32>
    %310 = vector.broadcast %309 : vector<1x256xf32> to vector<8x256xf32>
    %311 = arith.mulf %308, %310 : vector<8x256xf32>
    %cst_72 = arith.constant 0.000000e+00 : f32
    %312 = vector.broadcast %cst_72 : f32 to vector<8x256xf32>
    %313 = arith.maximumf %311, %312 : vector<8x256xf32>
    %314 = vector.extract_strided_slice %23 {offsets = [0, 24], sizes = [8, 1], strides = [1, 1]} : vector<8x25xf32> to vector<8x1xf32>
    %315 = vector.broadcast %314 : vector<8x1xf32> to vector<8x256xf32>
    %316 = arith.mulf %313, %315 : vector<8x256xf32>
    %317 = arith.addf %297, %316 : vector<8x256xf32>
    %c80 = arith.constant 80 : index
    %c0_73 = arith.constant 0 : index
    %318 = vector.load %arg4[%c80, %c0_73] : memref<272x128xf32, #tpu.memory_space<vmem>>, vector<8x9xf32>
    %c176 = arith.constant 176 : index
    %c0_74 = arith.constant 0 : index
    %319 = vector.load %arg4[%c176, %c0_74] : memref<272x128xf32, #tpu.memory_space<vmem>>, vector<8x25xf32>
    %c224 = arith.constant 224 : index
    %c0_75 = arith.constant 0 : index
    %320 = vector.load %arg4[%c224, %c0_75] : memref<272x128xf32, #tpu.memory_space<vmem>>, vector<8x9xf32>
    %c34_i32_76 = arith.constant 34 : i32
    %321 = tpu.dynamic_rotate %17 by %c34_i32_76 dim 1 : vector<8x256xf32>, i32 -> vector<8x256xf32>
    %c0_77 = arith.constant 0 : index
    %c0_78 = arith.constant 0 : index
    %322 = vector.load %arg3[%c0_77, %c0_78] : memref<32x256xf32, #tpu.memory_space<vmem>>, vector<1x256xf32>
    %323 = vector.broadcast %322 : vector<1x256xf32> to vector<8x256xf32>
    %324 = arith.mulf %321, %323 : vector<8x256xf32>
    %cst_79 = arith.constant 0.000000e+00 : f32
    %325 = vector.broadcast %cst_79 : f32 to vector<8x256xf32>
    %326 = arith.maximumf %324, %325 : vector<8x256xf32>
    %327 = vector.extract_strided_slice %319 {offsets = [0, 0], sizes = [8, 1], strides = [1, 1]} : vector<8x25xf32> to vector<8x1xf32>
    %328 = vector.broadcast %327 : vector<8x1xf32> to vector<8x256xf32>
    %329 = arith.mulf %326, %328 : vector<8x256xf32>
    %330 = arith.addf %21, %329 : vector<8x256xf32>
    %c33_i32_80 = arith.constant 33 : i32
    %331 = tpu.dynamic_rotate %17 by %c33_i32_80 dim 1 : vector<8x256xf32>, i32 -> vector<8x256xf32>
    %c1_81 = arith.constant 1 : index
    %c0_82 = arith.constant 0 : index
    %332 = vector.load %arg3[%c1_81, %c0_82] : memref<32x256xf32, #tpu.memory_space<vmem>>, vector<1x256xf32>
    %333 = vector.broadcast %332 : vector<1x256xf32> to vector<8x256xf32>
    %334 = arith.mulf %331, %333 : vector<8x256xf32>
    %cst_83 = arith.constant 0.000000e+00 : f32
    %335 = vector.broadcast %cst_83 : f32 to vector<8x256xf32>
    %336 = arith.maximumf %334, %335 : vector<8x256xf32>
    %337 = vector.extract_strided_slice %319 {offsets = [0, 1], sizes = [8, 1], strides = [1, 1]} : vector<8x25xf32> to vector<8x1xf32>
    %338 = vector.broadcast %337 : vector<8x1xf32> to vector<8x256xf32>
    %339 = arith.mulf %336, %338 : vector<8x256xf32>
    %340 = arith.addf %21, %339 : vector<8x256xf32>
    %c32_i32_84 = arith.constant 32 : i32
    %341 = tpu.dynamic_rotate %17 by %c32_i32_84 dim 1 : vector<8x256xf32>, i32 -> vector<8x256xf32>
    %c2_85 = arith.constant 2 : index
    %c0_86 = arith.constant 0 : index
    %342 = vector.load %arg3[%c2_85, %c0_86] : memref<32x256xf32, #tpu.memory_space<vmem>>, vector<1x256xf32>
    %343 = vector.broadcast %342 : vector<1x256xf32> to vector<8x256xf32>
    %344 = arith.mulf %341, %343 : vector<8x256xf32>
    %cst_87 = arith.constant 0.000000e+00 : f32
    %345 = vector.broadcast %cst_87 : f32 to vector<8x256xf32>
    %346 = arith.maximumf %344, %345 : vector<8x256xf32>
    %347 = vector.extract_strided_slice %319 {offsets = [0, 2], sizes = [8, 1], strides = [1, 1]} : vector<8x25xf32> to vector<8x1xf32>
    %348 = vector.broadcast %347 : vector<8x1xf32> to vector<8x256xf32>
    %349 = arith.mulf %346, %348 : vector<8x256xf32>
    %350 = arith.addf %330, %349 : vector<8x256xf32>
    %c31_i32_88 = arith.constant 31 : i32
    %351 = tpu.dynamic_rotate %17 by %c31_i32_88 dim 1 : vector<8x256xf32>, i32 -> vector<8x256xf32>
    %c3_89 = arith.constant 3 : index
    %c0_90 = arith.constant 0 : index
    %352 = vector.load %arg3[%c3_89, %c0_90] : memref<32x256xf32, #tpu.memory_space<vmem>>, vector<1x256xf32>
    %353 = vector.broadcast %352 : vector<1x256xf32> to vector<8x256xf32>
    %354 = arith.mulf %351, %353 : vector<8x256xf32>
    %cst_91 = arith.constant 0.000000e+00 : f32
    %355 = vector.broadcast %cst_91 : f32 to vector<8x256xf32>
    %356 = arith.maximumf %354, %355 : vector<8x256xf32>
    %357 = vector.extract_strided_slice %319 {offsets = [0, 3], sizes = [8, 1], strides = [1, 1]} : vector<8x25xf32> to vector<8x1xf32>
    %358 = vector.broadcast %357 : vector<8x1xf32> to vector<8x256xf32>
    %359 = arith.mulf %356, %358 : vector<8x256xf32>
    %360 = arith.addf %340, %359 : vector<8x256xf32>
    %c30_i32_92 = arith.constant 30 : i32
    %361 = tpu.dynamic_rotate %17 by %c30_i32_92 dim 1 : vector<8x256xf32>, i32 -> vector<8x256xf32>
    %c4_93 = arith.constant 4 : index
    %c0_94 = arith.constant 0 : index
    %362 = vector.load %arg3[%c4_93, %c0_94] : memref<32x256xf32, #tpu.memory_space<vmem>>, vector<1x256xf32>
    %363 = vector.broadcast %362 : vector<1x256xf32> to vector<8x256xf32>
    %364 = arith.mulf %361, %363 : vector<8x256xf32>
    %cst_95 = arith.constant 0.000000e+00 : f32
    %365 = vector.broadcast %cst_95 : f32 to vector<8x256xf32>
    %366 = arith.maximumf %364, %365 : vector<8x256xf32>
    %367 = vector.extract_strided_slice %319 {offsets = [0, 4], sizes = [8, 1], strides = [1, 1]} : vector<8x25xf32> to vector<8x1xf32>
    %368 = vector.broadcast %367 : vector<8x1xf32> to vector<8x256xf32>
    %369 = arith.mulf %366, %368 : vector<8x256xf32>
    %370 = arith.addf %350, %369 : vector<8x256xf32>
    %c18_i32_96 = arith.constant 18 : i32
    %371 = tpu.dynamic_rotate %17 by %c18_i32_96 dim 1 : vector<8x256xf32>, i32 -> vector<8x256xf32>
    %c5_97 = arith.constant 5 : index
    %c0_98 = arith.constant 0 : index
    %372 = vector.load %arg3[%c5_97, %c0_98] : memref<32x256xf32, #tpu.memory_space<vmem>>, vector<1x256xf32>
    %373 = vector.broadcast %372 : vector<1x256xf32> to vector<8x256xf32>
    %374 = arith.mulf %371, %373 : vector<8x256xf32>
    %cst_99 = arith.constant 0.000000e+00 : f32
    %375 = vector.broadcast %cst_99 : f32 to vector<8x256xf32>
    %376 = arith.maximumf %374, %375 : vector<8x256xf32>
    %377 = vector.extract_strided_slice %319 {offsets = [0, 5], sizes = [8, 1], strides = [1, 1]} : vector<8x25xf32> to vector<8x1xf32>
    %378 = vector.broadcast %377 : vector<8x1xf32> to vector<8x256xf32>
    %379 = arith.mulf %376, %378 : vector<8x256xf32>
    %380 = arith.addf %360, %379 : vector<8x256xf32>
    %c17_i32_100 = arith.constant 17 : i32
    %381 = tpu.dynamic_rotate %17 by %c17_i32_100 dim 1 : vector<8x256xf32>, i32 -> vector<8x256xf32>
    %c6_101 = arith.constant 6 : index
    %c0_102 = arith.constant 0 : index
    %382 = vector.load %arg3[%c6_101, %c0_102] : memref<32x256xf32, #tpu.memory_space<vmem>>, vector<1x256xf32>
    %383 = vector.broadcast %382 : vector<1x256xf32> to vector<8x256xf32>
    %384 = arith.mulf %381, %383 : vector<8x256xf32>
    %cst_103 = arith.constant 0.000000e+00 : f32
    %385 = vector.broadcast %cst_103 : f32 to vector<8x256xf32>
    %386 = arith.maximumf %384, %385 : vector<8x256xf32>
    %387 = vector.extract_strided_slice %319 {offsets = [0, 6], sizes = [8, 1], strides = [1, 1]} : vector<8x25xf32> to vector<8x1xf32>
    %388 = vector.broadcast %387 : vector<8x1xf32> to vector<8x256xf32>
    %389 = arith.mulf %386, %388 : vector<8x256xf32>
    %390 = arith.addf %370, %389 : vector<8x256xf32>
    %391 = vector.extract_strided_slice %318 {offsets = [0, 0], sizes = [8, 1], strides = [1, 1]} : vector<8x9xf32> to vector<8x1xf32>
    %392 = vector.broadcast %391 : vector<8x1xf32> to vector<8x256xf32>
    %393 = arith.mulf %386, %392 : vector<8x256xf32>
    %394 = arith.addf %21, %393 : vector<8x256xf32>
    %395 = vector.extract_strided_slice %320 {offsets = [0, 0], sizes = [8, 1], strides = [1, 1]} : vector<8x9xf32> to vector<8x1xf32>
    %396 = vector.broadcast %395 : vector<8x1xf32> to vector<8x256xf32>
    %397 = arith.mulf %386, %396 : vector<8x256xf32>
    %398 = arith.addf %21, %397 : vector<8x256xf32>
    %399 = arith.addf %21, %384 : vector<8x256xf32>
    %c16_i32_104 = arith.constant 16 : i32
    %400 = tpu.dynamic_rotate %17 by %c16_i32_104 dim 1 : vector<8x256xf32>, i32 -> vector<8x256xf32>
    %c7_105 = arith.constant 7 : index
    %c0_106 = arith.constant 0 : index
    %401 = vector.load %arg3[%c7_105, %c0_106] : memref<32x256xf32, #tpu.memory_space<vmem>>, vector<1x256xf32>
    %402 = vector.broadcast %401 : vector<1x256xf32> to vector<8x256xf32>
    %403 = arith.mulf %400, %402 : vector<8x256xf32>
    %cst_107 = arith.constant 0.000000e+00 : f32
    %404 = vector.broadcast %cst_107 : f32 to vector<8x256xf32>
    %405 = arith.maximumf %403, %404 : vector<8x256xf32>
    %406 = vector.extract_strided_slice %319 {offsets = [0, 7], sizes = [8, 1], strides = [1, 1]} : vector<8x25xf32> to vector<8x1xf32>
    %407 = vector.broadcast %406 : vector<8x1xf32> to vector<8x256xf32>
    %408 = arith.mulf %405, %407 : vector<8x256xf32>
    %409 = arith.addf %380, %408 : vector<8x256xf32>
    %410 = vector.extract_strided_slice %318 {offsets = [0, 1], sizes = [8, 1], strides = [1, 1]} : vector<8x9xf32> to vector<8x1xf32>
    %411 = vector.broadcast %410 : vector<8x1xf32> to vector<8x256xf32>
    %412 = arith.mulf %405, %411 : vector<8x256xf32>
    %413 = arith.addf %394, %412 : vector<8x256xf32>
    %414 = vector.extract_strided_slice %320 {offsets = [0, 1], sizes = [8, 1], strides = [1, 1]} : vector<8x9xf32> to vector<8x1xf32>
    %415 = vector.broadcast %414 : vector<8x1xf32> to vector<8x256xf32>
    %416 = arith.mulf %405, %415 : vector<8x256xf32>
    %417 = arith.addf %398, %416 : vector<8x256xf32>
    %418 = arith.addf %399, %403 : vector<8x256xf32>
    %c15_i32_108 = arith.constant 15 : i32
    %419 = tpu.dynamic_rotate %17 by %c15_i32_108 dim 1 : vector<8x256xf32>, i32 -> vector<8x256xf32>
    %c8_109 = arith.constant 8 : index
    %c0_110 = arith.constant 0 : index
    %420 = vector.load %arg3[%c8_109, %c0_110] : memref<32x256xf32, #tpu.memory_space<vmem>>, vector<1x256xf32>
    %421 = vector.broadcast %420 : vector<1x256xf32> to vector<8x256xf32>
    %422 = arith.mulf %419, %421 : vector<8x256xf32>
    %cst_111 = arith.constant 0.000000e+00 : f32
    %423 = vector.broadcast %cst_111 : f32 to vector<8x256xf32>
    %424 = arith.maximumf %422, %423 : vector<8x256xf32>
    %425 = vector.extract_strided_slice %319 {offsets = [0, 8], sizes = [8, 1], strides = [1, 1]} : vector<8x25xf32> to vector<8x1xf32>
    %426 = vector.broadcast %425 : vector<8x1xf32> to vector<8x256xf32>
    %427 = arith.mulf %424, %426 : vector<8x256xf32>
    %428 = arith.addf %390, %427 : vector<8x256xf32>
    %429 = vector.extract_strided_slice %318 {offsets = [0, 2], sizes = [8, 1], strides = [1, 1]} : vector<8x9xf32> to vector<8x1xf32>
    %430 = vector.broadcast %429 : vector<8x1xf32> to vector<8x256xf32>
    %431 = arith.mulf %424, %430 : vector<8x256xf32>
    %432 = arith.addf %413, %431 : vector<8x256xf32>
    %433 = vector.extract_strided_slice %320 {offsets = [0, 2], sizes = [8, 1], strides = [1, 1]} : vector<8x9xf32> to vector<8x1xf32>
    %434 = vector.broadcast %433 : vector<8x1xf32> to vector<8x256xf32>
    %435 = arith.mulf %424, %434 : vector<8x256xf32>
    %436 = arith.addf %417, %435 : vector<8x256xf32>
    %437 = arith.addf %418, %422 : vector<8x256xf32>
    %c14_i32_112 = arith.constant 14 : i32
    %438 = tpu.dynamic_rotate %17 by %c14_i32_112 dim 1 : vector<8x256xf32>, i32 -> vector<8x256xf32>
    %c9_113 = arith.constant 9 : index
    %c0_114 = arith.constant 0 : index
    %439 = vector.load %arg3[%c9_113, %c0_114] : memref<32x256xf32, #tpu.memory_space<vmem>>, vector<1x256xf32>
    %440 = vector.broadcast %439 : vector<1x256xf32> to vector<8x256xf32>
    %441 = arith.mulf %438, %440 : vector<8x256xf32>
    %cst_115 = arith.constant 0.000000e+00 : f32
    %442 = vector.broadcast %cst_115 : f32 to vector<8x256xf32>
    %443 = arith.maximumf %441, %442 : vector<8x256xf32>
    %444 = vector.extract_strided_slice %319 {offsets = [0, 9], sizes = [8, 1], strides = [1, 1]} : vector<8x25xf32> to vector<8x1xf32>
    %445 = vector.broadcast %444 : vector<8x1xf32> to vector<8x256xf32>
    %446 = arith.mulf %443, %445 : vector<8x256xf32>
    %447 = arith.addf %409, %446 : vector<8x256xf32>
    %c2_i32_116 = arith.constant 2 : i32
    %448 = tpu.dynamic_rotate %17 by %c2_i32_116 dim 1 : vector<8x256xf32>, i32 -> vector<8x256xf32>
    %c10_117 = arith.constant 10 : index
    %c0_118 = arith.constant 0 : index
    %449 = vector.load %arg3[%c10_117, %c0_118] : memref<32x256xf32, #tpu.memory_space<vmem>>, vector<1x256xf32>
    %450 = vector.broadcast %449 : vector<1x256xf32> to vector<8x256xf32>
    %451 = arith.mulf %448, %450 : vector<8x256xf32>
    %cst_119 = arith.constant 0.000000e+00 : f32
    %452 = vector.broadcast %cst_119 : f32 to vector<8x256xf32>
    %453 = arith.maximumf %451, %452 : vector<8x256xf32>
    %454 = vector.extract_strided_slice %319 {offsets = [0, 10], sizes = [8, 1], strides = [1, 1]} : vector<8x25xf32> to vector<8x1xf32>
    %455 = vector.broadcast %454 : vector<8x1xf32> to vector<8x256xf32>
    %456 = arith.mulf %453, %455 : vector<8x256xf32>
    %457 = arith.addf %428, %456 : vector<8x256xf32>
    %c1_i32_120 = arith.constant 1 : i32
    %458 = tpu.dynamic_rotate %17 by %c1_i32_120 dim 1 : vector<8x256xf32>, i32 -> vector<8x256xf32>
    %c11_121 = arith.constant 11 : index
    %c0_122 = arith.constant 0 : index
    %459 = vector.load %arg3[%c11_121, %c0_122] : memref<32x256xf32, #tpu.memory_space<vmem>>, vector<1x256xf32>
    %460 = vector.broadcast %459 : vector<1x256xf32> to vector<8x256xf32>
    %461 = arith.mulf %458, %460 : vector<8x256xf32>
    %cst_123 = arith.constant 0.000000e+00 : f32
    %462 = vector.broadcast %cst_123 : f32 to vector<8x256xf32>
    %463 = arith.maximumf %461, %462 : vector<8x256xf32>
    %464 = vector.extract_strided_slice %319 {offsets = [0, 11], sizes = [8, 1], strides = [1, 1]} : vector<8x25xf32> to vector<8x1xf32>
    %465 = vector.broadcast %464 : vector<8x1xf32> to vector<8x256xf32>
    %466 = arith.mulf %463, %465 : vector<8x256xf32>
    %467 = arith.addf %447, %466 : vector<8x256xf32>
    %468 = vector.extract_strided_slice %318 {offsets = [0, 3], sizes = [8, 1], strides = [1, 1]} : vector<8x9xf32> to vector<8x1xf32>
    %469 = vector.broadcast %468 : vector<8x1xf32> to vector<8x256xf32>
    %470 = arith.mulf %463, %469 : vector<8x256xf32>
    %471 = arith.addf %432, %470 : vector<8x256xf32>
    %472 = vector.extract_strided_slice %320 {offsets = [0, 3], sizes = [8, 1], strides = [1, 1]} : vector<8x9xf32> to vector<8x1xf32>
    %473 = vector.broadcast %472 : vector<8x1xf32> to vector<8x256xf32>
    %474 = arith.mulf %463, %473 : vector<8x256xf32>
    %475 = arith.addf %436, %474 : vector<8x256xf32>
    %476 = arith.addf %437, %461 : vector<8x256xf32>
    %c12_124 = arith.constant 12 : index
    %c0_125 = arith.constant 0 : index
    %477 = vector.load %arg3[%c12_124, %c0_125] : memref<32x256xf32, #tpu.memory_space<vmem>>, vector<1x256xf32>
    %478 = vector.broadcast %477 : vector<1x256xf32> to vector<8x256xf32>
    %479 = arith.mulf %17, %478 : vector<8x256xf32>
    %cst_126 = arith.constant 0.000000e+00 : f32
    %480 = vector.broadcast %cst_126 : f32 to vector<8x256xf32>
    %481 = arith.maximumf %479, %480 : vector<8x256xf32>
    %482 = vector.extract_strided_slice %319 {offsets = [0, 12], sizes = [8, 1], strides = [1, 1]} : vector<8x25xf32> to vector<8x1xf32>
    %483 = vector.broadcast %482 : vector<8x1xf32> to vector<8x256xf32>
    %484 = arith.mulf %481, %483 : vector<8x256xf32>
    %485 = arith.addf %457, %484 : vector<8x256xf32>
    %486 = vector.extract_strided_slice %318 {offsets = [0, 4], sizes = [8, 1], strides = [1, 1]} : vector<8x9xf32> to vector<8x1xf32>
    %487 = vector.broadcast %486 : vector<8x1xf32> to vector<8x256xf32>
    %488 = arith.mulf %481, %487 : vector<8x256xf32>
    %489 = arith.addf %471, %488 : vector<8x256xf32>
    %490 = vector.extract_strided_slice %320 {offsets = [0, 4], sizes = [8, 1], strides = [1, 1]} : vector<8x9xf32> to vector<8x1xf32>
    %491 = vector.broadcast %490 : vector<8x1xf32> to vector<8x256xf32>
    %492 = arith.mulf %481, %491 : vector<8x256xf32>
    %493 = arith.addf %475, %492 : vector<8x256xf32>
    %494 = arith.addf %476, %479 : vector<8x256xf32>
    %c255_i32_127 = arith.constant 255 : i32
    %495 = tpu.dynamic_rotate %17 by %c255_i32_127 dim 1 : vector<8x256xf32>, i32 -> vector<8x256xf32>
    %c13_128 = arith.constant 13 : index
    %c0_129 = arith.constant 0 : index
    %496 = vector.load %arg3[%c13_128, %c0_129] : memref<32x256xf32, #tpu.memory_space<vmem>>, vector<1x256xf32>
    %497 = vector.broadcast %496 : vector<1x256xf32> to vector<8x256xf32>
    %498 = arith.mulf %495, %497 : vector<8x256xf32>
    %cst_130 = arith.constant 0.000000e+00 : f32
    %499 = vector.broadcast %cst_130 : f32 to vector<8x256xf32>
    %500 = arith.maximumf %498, %499 : vector<8x256xf32>
    %501 = vector.extract_strided_slice %319 {offsets = [0, 13], sizes = [8, 1], strides = [1, 1]} : vector<8x25xf32> to vector<8x1xf32>
    %502 = vector.broadcast %501 : vector<8x1xf32> to vector<8x256xf32>
    %503 = arith.mulf %500, %502 : vector<8x256xf32>
    %504 = arith.addf %467, %503 : vector<8x256xf32>
    %505 = vector.extract_strided_slice %318 {offsets = [0, 5], sizes = [8, 1], strides = [1, 1]} : vector<8x9xf32> to vector<8x1xf32>
    %506 = vector.broadcast %505 : vector<8x1xf32> to vector<8x256xf32>
    %507 = arith.mulf %500, %506 : vector<8x256xf32>
    %508 = arith.addf %489, %507 : vector<8x256xf32>
    %509 = vector.extract_strided_slice %320 {offsets = [0, 5], sizes = [8, 1], strides = [1, 1]} : vector<8x9xf32> to vector<8x1xf32>
    %510 = vector.broadcast %509 : vector<8x1xf32> to vector<8x256xf32>
    %511 = arith.mulf %500, %510 : vector<8x256xf32>
    %512 = arith.addf %493, %511 : vector<8x256xf32>
    %513 = arith.addf %494, %498 : vector<8x256xf32>
    %c254_i32_131 = arith.constant 254 : i32
    %514 = tpu.dynamic_rotate %17 by %c254_i32_131 dim 1 : vector<8x256xf32>, i32 -> vector<8x256xf32>
    %c14_132 = arith.constant 14 : index
    %c0_133 = arith.constant 0 : index
    %515 = vector.load %arg3[%c14_132, %c0_133] : memref<32x256xf32, #tpu.memory_space<vmem>>, vector<1x256xf32>
    %516 = vector.broadcast %515 : vector<1x256xf32> to vector<8x256xf32>
    %517 = arith.mulf %514, %516 : vector<8x256xf32>
    %cst_134 = arith.constant 0.000000e+00 : f32
    %518 = vector.broadcast %cst_134 : f32 to vector<8x256xf32>
    %519 = arith.maximumf %517, %518 : vector<8x256xf32>
    %520 = vector.extract_strided_slice %319 {offsets = [0, 14], sizes = [8, 1], strides = [1, 1]} : vector<8x25xf32> to vector<8x1xf32>
    %521 = vector.broadcast %520 : vector<8x1xf32> to vector<8x256xf32>
    %522 = arith.mulf %519, %521 : vector<8x256xf32>
    %523 = arith.addf %485, %522 : vector<8x256xf32>
    %c242_i32_135 = arith.constant 242 : i32
    %524 = tpu.dynamic_rotate %17 by %c242_i32_135 dim 1 : vector<8x256xf32>, i32 -> vector<8x256xf32>
    %c15_136 = arith.constant 15 : index
    %c0_137 = arith.constant 0 : index
    %525 = vector.load %arg3[%c15_136, %c0_137] : memref<32x256xf32, #tpu.memory_space<vmem>>, vector<1x256xf32>
    %526 = vector.broadcast %525 : vector<1x256xf32> to vector<8x256xf32>
    %527 = arith.mulf %524, %526 : vector<8x256xf32>
    %cst_138 = arith.constant 0.000000e+00 : f32
    %528 = vector.broadcast %cst_138 : f32 to vector<8x256xf32>
    %529 = arith.maximumf %527, %528 : vector<8x256xf32>
    %530 = vector.extract_strided_slice %319 {offsets = [0, 15], sizes = [8, 1], strides = [1, 1]} : vector<8x25xf32> to vector<8x1xf32>
    %531 = vector.broadcast %530 : vector<8x1xf32> to vector<8x256xf32>
    %532 = arith.mulf %529, %531 : vector<8x256xf32>
    %533 = arith.addf %504, %532 : vector<8x256xf32>
    %c241_i32_139 = arith.constant 241 : i32
    %534 = tpu.dynamic_rotate %17 by %c241_i32_139 dim 1 : vector<8x256xf32>, i32 -> vector<8x256xf32>
    %c16_140 = arith.constant 16 : index
    %c0_141 = arith.constant 0 : index
    %535 = vector.load %arg3[%c16_140, %c0_141] : memref<32x256xf32, #tpu.memory_space<vmem>>, vector<1x256xf32>
    %536 = vector.broadcast %535 : vector<1x256xf32> to vector<8x256xf32>
    %537 = arith.mulf %534, %536 : vector<8x256xf32>
    %cst_142 = arith.constant 0.000000e+00 : f32
    %538 = vector.broadcast %cst_142 : f32 to vector<8x256xf32>
    %539 = arith.maximumf %537, %538 : vector<8x256xf32>
    %540 = vector.extract_strided_slice %319 {offsets = [0, 16], sizes = [8, 1], strides = [1, 1]} : vector<8x25xf32> to vector<8x1xf32>
    %541 = vector.broadcast %540 : vector<8x1xf32> to vector<8x256xf32>
    %542 = arith.mulf %539, %541 : vector<8x256xf32>
    %543 = arith.addf %523, %542 : vector<8x256xf32>
    %544 = vector.extract_strided_slice %318 {offsets = [0, 6], sizes = [8, 1], strides = [1, 1]} : vector<8x9xf32> to vector<8x1xf32>
    %545 = vector.broadcast %544 : vector<8x1xf32> to vector<8x256xf32>
    %546 = arith.mulf %539, %545 : vector<8x256xf32>
    %547 = arith.addf %508, %546 : vector<8x256xf32>
    %548 = vector.extract_strided_slice %320 {offsets = [0, 6], sizes = [8, 1], strides = [1, 1]} : vector<8x9xf32> to vector<8x1xf32>
    %549 = vector.broadcast %548 : vector<8x1xf32> to vector<8x256xf32>
    %550 = arith.mulf %539, %549 : vector<8x256xf32>
    %551 = arith.addf %512, %550 : vector<8x256xf32>
    %552 = arith.addf %513, %537 : vector<8x256xf32>
    %c240_i32_143 = arith.constant 240 : i32
    %553 = tpu.dynamic_rotate %17 by %c240_i32_143 dim 1 : vector<8x256xf32>, i32 -> vector<8x256xf32>
    %c17_144 = arith.constant 17 : index
    %c0_145 = arith.constant 0 : index
    %554 = vector.load %arg3[%c17_144, %c0_145] : memref<32x256xf32, #tpu.memory_space<vmem>>, vector<1x256xf32>
    %555 = vector.broadcast %554 : vector<1x256xf32> to vector<8x256xf32>
    %556 = arith.mulf %553, %555 : vector<8x256xf32>
    %cst_146 = arith.constant 0.000000e+00 : f32
    %557 = vector.broadcast %cst_146 : f32 to vector<8x256xf32>
    %558 = arith.maximumf %556, %557 : vector<8x256xf32>
    %559 = vector.extract_strided_slice %319 {offsets = [0, 17], sizes = [8, 1], strides = [1, 1]} : vector<8x25xf32> to vector<8x1xf32>
    %560 = vector.broadcast %559 : vector<8x1xf32> to vector<8x256xf32>
    %561 = arith.mulf %558, %560 : vector<8x256xf32>
    %562 = arith.addf %533, %561 : vector<8x256xf32>
    %563 = vector.extract_strided_slice %318 {offsets = [0, 7], sizes = [8, 1], strides = [1, 1]} : vector<8x9xf32> to vector<8x1xf32>
    %564 = vector.broadcast %563 : vector<8x1xf32> to vector<8x256xf32>
    %565 = arith.mulf %558, %564 : vector<8x256xf32>
    %566 = arith.addf %547, %565 : vector<8x256xf32>
    %567 = vector.extract_strided_slice %320 {offsets = [0, 7], sizes = [8, 1], strides = [1, 1]} : vector<8x9xf32> to vector<8x1xf32>
    %568 = vector.broadcast %567 : vector<8x1xf32> to vector<8x256xf32>
    %569 = arith.mulf %558, %568 : vector<8x256xf32>
    %570 = arith.addf %551, %569 : vector<8x256xf32>
    %571 = arith.addf %552, %556 : vector<8x256xf32>
    %c239_i32_147 = arith.constant 239 : i32
    %572 = tpu.dynamic_rotate %17 by %c239_i32_147 dim 1 : vector<8x256xf32>, i32 -> vector<8x256xf32>
    %c18_148 = arith.constant 18 : index
    %c0_149 = arith.constant 0 : index
    %573 = vector.load %arg3[%c18_148, %c0_149] : memref<32x256xf32, #tpu.memory_space<vmem>>, vector<1x256xf32>
    %574 = vector.broadcast %573 : vector<1x256xf32> to vector<8x256xf32>
    %575 = arith.mulf %572, %574 : vector<8x256xf32>
    %cst_150 = arith.constant 0.000000e+00 : f32
    %576 = vector.broadcast %cst_150 : f32 to vector<8x256xf32>
    %577 = arith.maximumf %575, %576 : vector<8x256xf32>
    %578 = vector.extract_strided_slice %319 {offsets = [0, 18], sizes = [8, 1], strides = [1, 1]} : vector<8x25xf32> to vector<8x1xf32>
    %579 = vector.broadcast %578 : vector<8x1xf32> to vector<8x256xf32>
    %580 = arith.mulf %577, %579 : vector<8x256xf32>
    %581 = arith.addf %543, %580 : vector<8x256xf32>
    %582 = vector.extract_strided_slice %318 {offsets = [0, 8], sizes = [8, 1], strides = [1, 1]} : vector<8x9xf32> to vector<8x1xf32>
    %583 = vector.broadcast %582 : vector<8x1xf32> to vector<8x256xf32>
    %584 = arith.mulf %577, %583 : vector<8x256xf32>
    %585 = arith.addf %566, %584 : vector<8x256xf32>
    %586 = vector.extract_strided_slice %320 {offsets = [0, 8], sizes = [8, 1], strides = [1, 1]} : vector<8x9xf32> to vector<8x1xf32>
    %587 = vector.broadcast %586 : vector<8x1xf32> to vector<8x256xf32>
    %588 = arith.mulf %577, %587 : vector<8x256xf32>
    %589 = arith.addf %570, %588 : vector<8x256xf32>
    %590 = arith.addf %571, %575 : vector<8x256xf32>
    %c238_i32_151 = arith.constant 238 : i32
    %591 = tpu.dynamic_rotate %17 by %c238_i32_151 dim 1 : vector<8x256xf32>, i32 -> vector<8x256xf32>
    %c19_152 = arith.constant 19 : index
    %c0_153 = arith.constant 0 : index
    %592 = vector.load %arg3[%c19_152, %c0_153] : memref<32x256xf32, #tpu.memory_space<vmem>>, vector<1x256xf32>
    %593 = vector.broadcast %592 : vector<1x256xf32> to vector<8x256xf32>
    %594 = arith.mulf %591, %593 : vector<8x256xf32>
    %cst_154 = arith.constant 0.000000e+00 : f32
    %595 = vector.broadcast %cst_154 : f32 to vector<8x256xf32>
    %596 = arith.maximumf %594, %595 : vector<8x256xf32>
    %597 = vector.extract_strided_slice %319 {offsets = [0, 19], sizes = [8, 1], strides = [1, 1]} : vector<8x25xf32> to vector<8x1xf32>
    %598 = vector.broadcast %597 : vector<8x1xf32> to vector<8x256xf32>
    %599 = arith.mulf %596, %598 : vector<8x256xf32>
    %600 = arith.addf %562, %599 : vector<8x256xf32>
    %c226_i32_155 = arith.constant 226 : i32
    %601 = tpu.dynamic_rotate %17 by %c226_i32_155 dim 1 : vector<8x256xf32>, i32 -> vector<8x256xf32>
    %c20_156 = arith.constant 20 : index
    %c0_157 = arith.constant 0 : index
    %602 = vector.load %arg3[%c20_156, %c0_157] : memref<32x256xf32, #tpu.memory_space<vmem>>, vector<1x256xf32>
    %603 = vector.broadcast %602 : vector<1x256xf32> to vector<8x256xf32>
    %604 = arith.mulf %601, %603 : vector<8x256xf32>
    %cst_158 = arith.constant 0.000000e+00 : f32
    %605 = vector.broadcast %cst_158 : f32 to vector<8x256xf32>
    %606 = arith.maximumf %604, %605 : vector<8x256xf32>
    %607 = vector.extract_strided_slice %319 {offsets = [0, 20], sizes = [8, 1], strides = [1, 1]} : vector<8x25xf32> to vector<8x1xf32>
    %608 = vector.broadcast %607 : vector<8x1xf32> to vector<8x256xf32>
    %609 = arith.mulf %606, %608 : vector<8x256xf32>
    %610 = arith.addf %581, %609 : vector<8x256xf32>
    %c225_i32_159 = arith.constant 225 : i32
    %611 = tpu.dynamic_rotate %17 by %c225_i32_159 dim 1 : vector<8x256xf32>, i32 -> vector<8x256xf32>
    %c21_160 = arith.constant 21 : index
    %c0_161 = arith.constant 0 : index
    %612 = vector.load %arg3[%c21_160, %c0_161] : memref<32x256xf32, #tpu.memory_space<vmem>>, vector<1x256xf32>
    %613 = vector.broadcast %612 : vector<1x256xf32> to vector<8x256xf32>
    %614 = arith.mulf %611, %613 : vector<8x256xf32>
    %cst_162 = arith.constant 0.000000e+00 : f32
    %615 = vector.broadcast %cst_162 : f32 to vector<8x256xf32>
    %616 = arith.maximumf %614, %615 : vector<8x256xf32>
    %617 = vector.extract_strided_slice %319 {offsets = [0, 21], sizes = [8, 1], strides = [1, 1]} : vector<8x25xf32> to vector<8x1xf32>
    %618 = vector.broadcast %617 : vector<8x1xf32> to vector<8x256xf32>
    %619 = arith.mulf %616, %618 : vector<8x256xf32>
    %620 = arith.addf %600, %619 : vector<8x256xf32>
    %c224_i32_163 = arith.constant 224 : i32
    %621 = tpu.dynamic_rotate %17 by %c224_i32_163 dim 1 : vector<8x256xf32>, i32 -> vector<8x256xf32>
    %c22_164 = arith.constant 22 : index
    %c0_165 = arith.constant 0 : index
    %622 = vector.load %arg3[%c22_164, %c0_165] : memref<32x256xf32, #tpu.memory_space<vmem>>, vector<1x256xf32>
    %623 = vector.broadcast %622 : vector<1x256xf32> to vector<8x256xf32>
    %624 = arith.mulf %621, %623 : vector<8x256xf32>
    %cst_166 = arith.constant 0.000000e+00 : f32
    %625 = vector.broadcast %cst_166 : f32 to vector<8x256xf32>
    %626 = arith.maximumf %624, %625 : vector<8x256xf32>
    %627 = vector.extract_strided_slice %319 {offsets = [0, 22], sizes = [8, 1], strides = [1, 1]} : vector<8x25xf32> to vector<8x1xf32>
    %628 = vector.broadcast %627 : vector<8x1xf32> to vector<8x256xf32>
    %629 = arith.mulf %626, %628 : vector<8x256xf32>
    %630 = arith.addf %610, %629 : vector<8x256xf32>
    %c223_i32_167 = arith.constant 223 : i32
    %631 = tpu.dynamic_rotate %17 by %c223_i32_167 dim 1 : vector<8x256xf32>, i32 -> vector<8x256xf32>
    %c23_168 = arith.constant 23 : index
    %c0_169 = arith.constant 0 : index
    %632 = vector.load %arg3[%c23_168, %c0_169] : memref<32x256xf32, #tpu.memory_space<vmem>>, vector<1x256xf32>
    %633 = vector.broadcast %632 : vector<1x256xf32> to vector<8x256xf32>
    %634 = arith.mulf %631, %633 : vector<8x256xf32>
    %cst_170 = arith.constant 0.000000e+00 : f32
    %635 = vector.broadcast %cst_170 : f32 to vector<8x256xf32>
    %636 = arith.maximumf %634, %635 : vector<8x256xf32>
    %637 = vector.extract_strided_slice %319 {offsets = [0, 23], sizes = [8, 1], strides = [1, 1]} : vector<8x25xf32> to vector<8x1xf32>
    %638 = vector.broadcast %637 : vector<8x1xf32> to vector<8x256xf32>
    %639 = arith.mulf %636, %638 : vector<8x256xf32>
    %640 = arith.addf %620, %639 : vector<8x256xf32>
    %c222_i32_171 = arith.constant 222 : i32
    %641 = tpu.dynamic_rotate %17 by %c222_i32_171 dim 1 : vector<8x256xf32>, i32 -> vector<8x256xf32>
    %c24_172 = arith.constant 24 : index
    %c0_173 = arith.constant 0 : index
    %642 = vector.load %arg3[%c24_172, %c0_173] : memref<32x256xf32, #tpu.memory_space<vmem>>, vector<1x256xf32>
    %643 = vector.broadcast %642 : vector<1x256xf32> to vector<8x256xf32>
    %644 = arith.mulf %641, %643 : vector<8x256xf32>
    %cst_174 = arith.constant 0.000000e+00 : f32
    %645 = vector.broadcast %cst_174 : f32 to vector<8x256xf32>
    %646 = arith.maximumf %644, %645 : vector<8x256xf32>
    %647 = vector.extract_strided_slice %319 {offsets = [0, 24], sizes = [8, 1], strides = [1, 1]} : vector<8x25xf32> to vector<8x1xf32>
    %648 = vector.broadcast %647 : vector<8x1xf32> to vector<8x256xf32>
    %649 = arith.mulf %646, %648 : vector<8x256xf32>
    %650 = arith.addf %630, %649 : vector<8x256xf32>
    %cst_175 = arith.constant 0.111111112 : f32
    %651 = vector.broadcast %cst_175 : f32 to vector<8x256xf32>
    %652 = arith.mulf %257, %651 : vector<8x256xf32>
    %653 = arith.addf %652, %17 : vector<8x256xf32>
    %c0_176 = arith.constant 0 : index
    %c24_177 = arith.constant 24 : index
    %c0_178 = arith.constant 0 : index
    %654 = vector.load %arg5[%c0_176, %c24_177, %c0_178] : memref<1x48x256xf32, #tpu.memory_space<vmem>>, vector<1x8x256xf32>
    %655 = vector.shape_cast %654 : vector<1x8x256xf32> to vector<8x256xf32>
    %656 = vector.shape_cast %653 : vector<8x256xf32> to vector<1x8x256xf32>
    tpu.vector_store %arg5[%c0_176, %c24_177, %c0_178], %656 {strides = array<i32>} : memref<1x48x256xf32, #tpu.memory_space<vmem>>, vector<1x8x256xf32>,
    %cst_179 = arith.constant 0.222222224 : f32
    %657 = vector.broadcast %cst_179 : f32 to vector<8x256xf32>
    %658 = arith.mulf %590, %657 : vector<8x256xf32>
    %c0_180 = arith.constant 0 : index
    %c32_181 = arith.constant 32 : index
    %c0_182 = arith.constant 0 : index
    %659 = vector.load %arg5[%c0_180, %c32_181, %c0_182] : memref<1x48x256xf32, #tpu.memory_space<vmem>>, vector<1x8x256xf32>
    %660 = vector.shape_cast %659 : vector<1x8x256xf32> to vector<8x256xf32>
    %661 = vector.shape_cast %658 : vector<8x256xf32> to vector<1x8x256xf32>
    tpu.vector_store %arg5[%c0_180, %c32_181, %c0_182], %661 {strides = array<i32>} : memref<1x48x256xf32, #tpu.memory_space<vmem>>, vector<1x8x256xf32>,
    %c40 = arith.constant 40 : index
    %c0_183 = arith.constant 0 : index
    %662 = vector.load %arg4[%c40, %c0_183] : memref<272x128xf32, #tpu.memory_space<vmem>>, vector<8x8xf32>
    %c48 = arith.constant 48 : index
    %c0_184 = arith.constant 0 : index
    %663 = vector.load %arg4[%c48, %c0_184] : memref<272x128xf32, #tpu.memory_space<vmem>>, vector<8x1xf32>
    %cst_185 = arith.constant dense<0.000000e+00> : vector<8x256xf32>
    %664 = tpu.matmul %662, %256, %cst_185 {dimension_numbers = #tpu.dot_dimension_numbers<[1], [0], [0], [1], [0, 0, 1, 1], [], []>} : vector<8x8xf32>, vector<8x256xf32>, vector<8x256xf32> -> vector<8x256xf32>
    %665 = vector.broadcast %663 : vector<8x1xf32> to vector<8x256xf32>
    %666 = arith.addf %664, %665 : vector<8x256xf32>
    %c56 = arith.constant 56 : index
    %c0_186 = arith.constant 0 : index
    %667 = vector.load %arg4[%c56, %c0_186] : memref<272x128xf32, #tpu.memory_space<vmem>>, vector<8x9xf32>
    %cst_187 = arith.constant 0.000000e+00 : f32
    %668 = vector.broadcast %cst_187 : f32 to vector<8x256xf32>
    %669 = arith.maximumf %666, %668 : vector<8x256xf32>
    %cst_188 = arith.constant 0.000000e+00 : f32
    %670 = vector.broadcast %cst_188 : f32 to vector<8x256xf32>
    %cst_189 = arith.constant 0.000000e+00 : f32
    %671 = vector.broadcast %cst_189 : f32 to vector<8x256xf32>
    %c17_i32_190 = arith.constant 17 : i32
    %672 = tpu.dynamic_rotate %669 by %c17_i32_190 dim 1 : vector<8x256xf32>, i32 -> vector<8x256xf32>
    %c6_191 = arith.constant 6 : index
    %c0_192 = arith.constant 0 : index
    %673 = vector.load %arg3[%c6_191, %c0_192] : memref<32x256xf32, #tpu.memory_space<vmem>>, vector<1x256xf32>
    %674 = vector.broadcast %673 : vector<1x256xf32> to vector<8x256xf32>
    %675 = arith.mulf %672, %674 : vector<8x256xf32>
    %676 = vector.extract_strided_slice %667 {offsets = [0, 0], sizes = [8, 1], strides = [1, 1]} : vector<8x9xf32> to vector<8x1xf32>
    %677 = vector.broadcast %676 : vector<8x1xf32> to vector<8x256xf32>
    %678 = arith.mulf %675, %677 : vector<8x256xf32>
    %679 = arith.addf %670, %678 : vector<8x256xf32>
    %c16_i32_193 = arith.constant 16 : i32
    %680 = tpu.dynamic_rotate %669 by %c16_i32_193 dim 1 : vector<8x256xf32>, i32 -> vector<8x256xf32>
    %c7_194 = arith.constant 7 : index
    %c0_195 = arith.constant 0 : index
    %681 = vector.load %arg3[%c7_194, %c0_195] : memref<32x256xf32, #tpu.memory_space<vmem>>, vector<1x256xf32>
    %682 = vector.broadcast %681 : vector<1x256xf32> to vector<8x256xf32>
    %683 = arith.mulf %680, %682 : vector<8x256xf32>
    %684 = vector.extract_strided_slice %667 {offsets = [0, 1], sizes = [8, 1], strides = [1, 1]} : vector<8x9xf32> to vector<8x1xf32>
    %685 = vector.broadcast %684 : vector<8x1xf32> to vector<8x256xf32>
    %686 = arith.mulf %683, %685 : vector<8x256xf32>
    %687 = arith.addf %671, %686 : vector<8x256xf32>
    %c15_i32_196 = arith.constant 15 : i32
    %688 = tpu.dynamic_rotate %669 by %c15_i32_196 dim 1 : vector<8x256xf32>, i32 -> vector<8x256xf32>
    %c8_197 = arith.constant 8 : index
    %c0_198 = arith.constant 0 : index
    %689 = vector.load %arg3[%c8_197, %c0_198] : memref<32x256xf32, #tpu.memory_space<vmem>>, vector<1x256xf32>
    %690 = vector.broadcast %689 : vector<1x256xf32> to vector<8x256xf32>
    %691 = arith.mulf %688, %690 : vector<8x256xf32>
    %692 = vector.extract_strided_slice %667 {offsets = [0, 2], sizes = [8, 1], strides = [1, 1]} : vector<8x9xf32> to vector<8x1xf32>
    %693 = vector.broadcast %692 : vector<8x1xf32> to vector<8x256xf32>
    %694 = arith.mulf %691, %693 : vector<8x256xf32>
    %695 = arith.addf %679, %694 : vector<8x256xf32>
    %c1_i32_199 = arith.constant 1 : i32
    %696 = tpu.dynamic_rotate %669 by %c1_i32_199 dim 1 : vector<8x256xf32>, i32 -> vector<8x256xf32>
    %c11_200 = arith.constant 11 : index
    %c0_201 = arith.constant 0 : index
    %697 = vector.load %arg3[%c11_200, %c0_201] : memref<32x256xf32, #tpu.memory_space<vmem>>, vector<1x256xf32>
    %698 = vector.broadcast %697 : vector<1x256xf32> to vector<8x256xf32>
    %699 = arith.mulf %696, %698 : vector<8x256xf32>
    %700 = vector.extract_strided_slice %667 {offsets = [0, 3], sizes = [8, 1], strides = [1, 1]} : vector<8x9xf32> to vector<8x1xf32>
    %701 = vector.broadcast %700 : vector<8x1xf32> to vector<8x256xf32>
    %702 = arith.mulf %699, %701 : vector<8x256xf32>
    %703 = arith.addf %687, %702 : vector<8x256xf32>
    %c12_202 = arith.constant 12 : index
    %c0_203 = arith.constant 0 : index
    %704 = vector.load %arg3[%c12_202, %c0_203] : memref<32x256xf32, #tpu.memory_space<vmem>>, vector<1x256xf32>
    %705 = vector.broadcast %704 : vector<1x256xf32> to vector<8x256xf32>
    %706 = arith.mulf %669, %705 : vector<8x256xf32>
    %707 = vector.extract_strided_slice %667 {offsets = [0, 4], sizes = [8, 1], strides = [1, 1]} : vector<8x9xf32> to vector<8x1xf32>
    %708 = vector.broadcast %707 : vector<8x1xf32> to vector<8x256xf32>
    %709 = arith.mulf %706, %708 : vector<8x256xf32>
    %710 = arith.addf %695, %709 : vector<8x256xf32>
    %c255_i32_204 = arith.constant 255 : i32
    %711 = tpu.dynamic_rotate %669 by %c255_i32_204 dim 1 : vector<8x256xf32>, i32 -> vector<8x256xf32>
    %c13_205 = arith.constant 13 : index
    %c0_206 = arith.constant 0 : index
    %712 = vector.load %arg3[%c13_205, %c0_206] : memref<32x256xf32, #tpu.memory_space<vmem>>, vector<1x256xf32>
    %713 = vector.broadcast %712 : vector<1x256xf32> to vector<8x256xf32>
    %714 = arith.mulf %711, %713 : vector<8x256xf32>
    %715 = vector.extract_strided_slice %667 {offsets = [0, 5], sizes = [8, 1], strides = [1, 1]} : vector<8x9xf32> to vector<8x1xf32>
    %716 = vector.broadcast %715 : vector<8x1xf32> to vector<8x256xf32>
    %717 = arith.mulf %714, %716 : vector<8x256xf32>
    %718 = arith.addf %703, %717 : vector<8x256xf32>
    %c241_i32_207 = arith.constant 241 : i32
    %719 = tpu.dynamic_rotate %669 by %c241_i32_207 dim 1 : vector<8x256xf32>, i32 -> vector<8x256xf32>
    %c16_208 = arith.constant 16 : index
    %c0_209 = arith.constant 0 : index
    %720 = vector.load %arg3[%c16_208, %c0_209] : memref<32x256xf32, #tpu.memory_space<vmem>>, vector<1x256xf32>
    %721 = vector.broadcast %720 : vector<1x256xf32> to vector<8x256xf32>
    %722 = arith.mulf %719, %721 : vector<8x256xf32>
    %723 = vector.extract_strided_slice %667 {offsets = [0, 6], sizes = [8, 1], strides = [1, 1]} : vector<8x9xf32> to vector<8x1xf32>
    %724 = vector.broadcast %723 : vector<8x1xf32> to vector<8x256xf32>
    %725 = arith.mulf %722, %724 : vector<8x256xf32>
    %726 = arith.addf %710, %725 : vector<8x256xf32>
    %c240_i32_210 = arith.constant 240 : i32
    %727 = tpu.dynamic_rotate %669 by %c240_i32_210 dim 1 : vector<8x256xf32>, i32 -> vector<8x256xf32>
    %c17_211 = arith.constant 17 : index
    %c0_212 = arith.constant 0 : index
    %728 = vector.load %arg3[%c17_211, %c0_212] : memref<32x256xf32, #tpu.memory_space<vmem>>, vector<1x256xf32>
    %729 = vector.broadcast %728 : vector<1x256xf32> to vector<8x256xf32>
    %730 = arith.mulf %727, %729 : vector<8x256xf32>
    %731 = vector.extract_strided_slice %667 {offsets = [0, 7], sizes = [8, 1], strides = [1, 1]} : vector<8x9xf32> to vector<8x1xf32>
    %732 = vector.broadcast %731 : vector<8x1xf32> to vector<8x256xf32>
    %733 = arith.mulf %730, %732 : vector<8x256xf32>
    %734 = arith.addf %718, %733 : vector<8x256xf32>
    %c239_i32_213 = arith.constant 239 : i32
    %735 = tpu.dynamic_rotate %669 by %c239_i32_213 dim 1 : vector<8x256xf32>, i32 -> vector<8x256xf32>
    %c18_214 = arith.constant 18 : index
    %c0_215 = arith.constant 0 : index
    %736 = vector.load %arg3[%c18_214, %c0_215] : memref<32x256xf32, #tpu.memory_space<vmem>>, vector<1x256xf32>
    %737 = vector.broadcast %736 : vector<1x256xf32> to vector<8x256xf32>
    %738 = arith.mulf %735, %737 : vector<8x256xf32>
    %739 = vector.extract_strided_slice %667 {offsets = [0, 8], sizes = [8, 1], strides = [1, 1]} : vector<8x9xf32> to vector<8x1xf32>
    %740 = vector.broadcast %739 : vector<8x1xf32> to vector<8x256xf32>
    %741 = arith.mulf %738, %740 : vector<8x256xf32>
    %742 = arith.addf %726, %741 : vector<8x256xf32>
    %743 = arith.addf %742, %734 : vector<8x256xf32>
    %c64 = arith.constant 64 : index
    %c0_216 = arith.constant 0 : index
    %744 = vector.load %arg4[%c64, %c0_216] : memref<272x128xf32, #tpu.memory_space<vmem>>, vector<8x8xf32>
    %c72 = arith.constant 72 : index
    %c0_217 = arith.constant 0 : index
    %745 = vector.load %arg4[%c72, %c0_217] : memref<272x128xf32, #tpu.memory_space<vmem>>, vector<8x1xf32>
    %cst_218 = arith.constant dense<0.000000e+00> : vector<8x256xf32>
    %746 = tpu.matmul %744, %743, %cst_218 {dimension_numbers = #tpu.dot_dimension_numbers<[1], [0], [0], [1], [0, 0, 1, 1], [], []>} : vector<8x8xf32>, vector<8x256xf32>, vector<8x256xf32> -> vector<8x256xf32>
    %747 = vector.broadcast %745 : vector<8x1xf32> to vector<8x256xf32>
    %748 = arith.addf %746, %747 : vector<8x256xf32>
    %749 = arith.addf %748, %10 : vector<8x256xf32>
    %c0_219 = arith.constant 0 : index
    %c8_220 = arith.constant 8 : index
    %c0_221 = arith.constant 0 : index
    %750 = vector.load %arg5[%c0_219, %c8_220, %c0_221] : memref<1x48x256xf32, #tpu.memory_space<vmem>>, vector<1x8x256xf32>
    %751 = vector.shape_cast %750 : vector<1x8x256xf32> to vector<8x256xf32>
    %752 = vector.shape_cast %749 : vector<8x256xf32> to vector<1x8x256xf32>
    tpu.vector_store %arg5[%c0_219, %c8_220, %c0_221], %752 {strides = array<i32>} : memref<1x48x256xf32, #tpu.memory_space<vmem>>, vector<1x8x256xf32>,
    %c88 = arith.constant 88 : index
    %c0_222 = arith.constant 0 : index
    %753 = vector.load %arg4[%c88, %c0_222] : memref<272x128xf32, #tpu.memory_space<vmem>>, vector<8x8xf32>
    %c96 = arith.constant 96 : index
    %c0_223 = arith.constant 0 : index
    %754 = vector.load %arg4[%c96, %c0_223] : memref<272x128xf32, #tpu.memory_space<vmem>>, vector<8x1xf32>
    %cst_224 = arith.constant dense<0.000000e+00> : vector<8x256xf32>
    %755 = tpu.matmul %753, %585, %cst_224 {dimension_numbers = #tpu.dot_dimension_numbers<[1], [0], [0], [1], [0, 0, 1, 1], [], []>} : vector<8x8xf32>, vector<8x256xf32>, vector<8x256xf32> -> vector<8x256xf32>
    %756 = vector.broadcast %754 : vector<8x1xf32> to vector<8x256xf32>
    %757 = arith.addf %755, %756 : vector<8x256xf32>
    %c104 = arith.constant 104 : index
    %c0_225 = arith.constant 0 : index
    %758 = vector.load %arg4[%c104, %c0_225] : memref<272x128xf32, #tpu.memory_space<vmem>>, vector<8x9xf32>
    %cst_226 = arith.constant 0.000000e+00 : f32
    %759 = vector.broadcast %cst_226 : f32 to vector<8x256xf32>
    %760 = arith.maximumf %757, %759 : vector<8x256xf32>
    %cst_227 = arith.constant 0.000000e+00 : f32
    %761 = vector.broadcast %cst_227 : f32 to vector<8x256xf32>
    %cst_228 = arith.constant 0.000000e+00 : f32
    %762 = vector.broadcast %cst_228 : f32 to vector<8x256xf32>
    %c17_i32_229 = arith.constant 17 : i32
    %763 = tpu.dynamic_rotate %760 by %c17_i32_229 dim 1 : vector<8x256xf32>, i32 -> vector<8x256xf32>
    %c6_230 = arith.constant 6 : index
    %c0_231 = arith.constant 0 : index
    %764 = vector.load %arg3[%c6_230, %c0_231] : memref<32x256xf32, #tpu.memory_space<vmem>>, vector<1x256xf32>
    %765 = vector.broadcast %764 : vector<1x256xf32> to vector<8x256xf32>
    %766 = arith.mulf %763, %765 : vector<8x256xf32>
    %767 = vector.extract_strided_slice %758 {offsets = [0, 0], sizes = [8, 1], strides = [1, 1]} : vector<8x9xf32> to vector<8x1xf32>
    %768 = vector.broadcast %767 : vector<8x1xf32> to vector<8x256xf32>
    %769 = arith.mulf %766, %768 : vector<8x256xf32>
    %770 = arith.addf %761, %769 : vector<8x256xf32>
    %c16_i32_232 = arith.constant 16 : i32
    %771 = tpu.dynamic_rotate %760 by %c16_i32_232 dim 1 : vector<8x256xf32>, i32 -> vector<8x256xf32>
    %c7_233 = arith.constant 7 : index
    %c0_234 = arith.constant 0 : index
    %772 = vector.load %arg3[%c7_233, %c0_234] : memref<32x256xf32, #tpu.memory_space<vmem>>, vector<1x256xf32>
    %773 = vector.broadcast %772 : vector<1x256xf32> to vector<8x256xf32>
    %774 = arith.mulf %771, %773 : vector<8x256xf32>
    %775 = vector.extract_strided_slice %758 {offsets = [0, 1], sizes = [8, 1], strides = [1, 1]} : vector<8x9xf32> to vector<8x1xf32>
    %776 = vector.broadcast %775 : vector<8x1xf32> to vector<8x256xf32>
    %777 = arith.mulf %774, %776 : vector<8x256xf32>
    %778 = arith.addf %762, %777 : vector<8x256xf32>
    %c15_i32_235 = arith.constant 15 : i32
    %779 = tpu.dynamic_rotate %760 by %c15_i32_235 dim 1 : vector<8x256xf32>, i32 -> vector<8x256xf32>
    %c8_236 = arith.constant 8 : index
    %c0_237 = arith.constant 0 : index
    %780 = vector.load %arg3[%c8_236, %c0_237] : memref<32x256xf32, #tpu.memory_space<vmem>>, vector<1x256xf32>
    %781 = vector.broadcast %780 : vector<1x256xf32> to vector<8x256xf32>
    %782 = arith.mulf %779, %781 : vector<8x256xf32>
    %783 = vector.extract_strided_slice %758 {offsets = [0, 2], sizes = [8, 1], strides = [1, 1]} : vector<8x9xf32> to vector<8x1xf32>
    %784 = vector.broadcast %783 : vector<8x1xf32> to vector<8x256xf32>
    %785 = arith.mulf %782, %784 : vector<8x256xf32>
    %786 = arith.addf %770, %785 : vector<8x256xf32>
    %c1_i32_238 = arith.constant 1 : i32
    %787 = tpu.dynamic_rotate %760 by %c1_i32_238 dim 1 : vector<8x256xf32>, i32 -> vector<8x256xf32>
    %c11_239 = arith.constant 11 : index
    %c0_240 = arith.constant 0 : index
    %788 = vector.load %arg3[%c11_239, %c0_240] : memref<32x256xf32, #tpu.memory_space<vmem>>, vector<1x256xf32>
    %789 = vector.broadcast %788 : vector<1x256xf32> to vector<8x256xf32>
    %790 = arith.mulf %787, %789 : vector<8x256xf32>
    %791 = vector.extract_strided_slice %758 {offsets = [0, 3], sizes = [8, 1], strides = [1, 1]} : vector<8x9xf32> to vector<8x1xf32>
    %792 = vector.broadcast %791 : vector<8x1xf32> to vector<8x256xf32>
    %793 = arith.mulf %790, %792 : vector<8x256xf32>
    %794 = arith.addf %778, %793 : vector<8x256xf32>
    %c12_241 = arith.constant 12 : index
    %c0_242 = arith.constant 0 : index
    %795 = vector.load %arg3[%c12_241, %c0_242] : memref<32x256xf32, #tpu.memory_space<vmem>>, vector<1x256xf32>
    %796 = vector.broadcast %795 : vector<1x256xf32> to vector<8x256xf32>
    %797 = arith.mulf %760, %796 : vector<8x256xf32>
    %798 = vector.extract_strided_slice %758 {offsets = [0, 4], sizes = [8, 1], strides = [1, 1]} : vector<8x9xf32> to vector<8x1xf32>
    %799 = vector.broadcast %798 : vector<8x1xf32> to vector<8x256xf32>
    %800 = arith.mulf %797, %799 : vector<8x256xf32>
    %801 = arith.addf %786, %800 : vector<8x256xf32>
    %c255_i32_243 = arith.constant 255 : i32
    %802 = tpu.dynamic_rotate %760 by %c255_i32_243 dim 1 : vector<8x256xf32>, i32 -> vector<8x256xf32>
    %c13_244 = arith.constant 13 : index
    %c0_245 = arith.constant 0 : index
    %803 = vector.load %arg3[%c13_244, %c0_245] : memref<32x256xf32, #tpu.memory_space<vmem>>, vector<1x256xf32>
    %804 = vector.broadcast %803 : vector<1x256xf32> to vector<8x256xf32>
    %805 = arith.mulf %802, %804 : vector<8x256xf32>
    %806 = vector.extract_strided_slice %758 {offsets = [0, 5], sizes = [8, 1], strides = [1, 1]} : vector<8x9xf32> to vector<8x1xf32>
    %807 = vector.broadcast %806 : vector<8x1xf32> to vector<8x256xf32>
    %808 = arith.mulf %805, %807 : vector<8x256xf32>
    %809 = arith.addf %794, %808 : vector<8x256xf32>
    %c241_i32_246 = arith.constant 241 : i32
    %810 = tpu.dynamic_rotate %760 by %c241_i32_246 dim 1 : vector<8x256xf32>, i32 -> vector<8x256xf32>
    %c16_247 = arith.constant 16 : index
    %c0_248 = arith.constant 0 : index
    %811 = vector.load %arg3[%c16_247, %c0_248] : memref<32x256xf32, #tpu.memory_space<vmem>>, vector<1x256xf32>
    %812 = vector.broadcast %811 : vector<1x256xf32> to vector<8x256xf32>
    %813 = arith.mulf %810, %812 : vector<8x256xf32>
    %814 = vector.extract_strided_slice %758 {offsets = [0, 6], sizes = [8, 1], strides = [1, 1]} : vector<8x9xf32> to vector<8x1xf32>
    %815 = vector.broadcast %814 : vector<8x1xf32> to vector<8x256xf32>
    %816 = arith.mulf %813, %815 : vector<8x256xf32>
    %817 = arith.addf %801, %816 : vector<8x256xf32>
    %c240_i32_249 = arith.constant 240 : i32
    %818 = tpu.dynamic_rotate %760 by %c240_i32_249 dim 1 : vector<8x256xf32>, i32 -> vector<8x256xf32>
    %c17_250 = arith.constant 17 : index
    %c0_251 = arith.constant 0 : index
    %819 = vector.load %arg3[%c17_250, %c0_251] : memref<32x256xf32, #tpu.memory_space<vmem>>, vector<1x256xf32>
    %820 = vector.broadcast %819 : vector<1x256xf32> to vector<8x256xf32>
    %821 = arith.mulf %818, %820 : vector<8x256xf32>
    %822 = vector.extract_strided_slice %758 {offsets = [0, 7], sizes = [8, 1], strides = [1, 1]} : vector<8x9xf32> to vector<8x1xf32>
    %823 = vector.broadcast %822 : vector<8x1xf32> to vector<8x256xf32>
    %824 = arith.mulf %821, %823 : vector<8x256xf32>
    %825 = arith.addf %809, %824 : vector<8x256xf32>
    %c239_i32_252 = arith.constant 239 : i32
    %826 = tpu.dynamic_rotate %760 by %c239_i32_252 dim 1 : vector<8x256xf32>, i32 -> vector<8x256xf32>
    %c18_253 = arith.constant 18 : index
    %c0_254 = arith.constant 0 : index
    %827 = vector.load %arg3[%c18_253, %c0_254] : memref<32x256xf32, #tpu.memory_space<vmem>>, vector<1x256xf32>
    %828 = vector.broadcast %827 : vector<1x256xf32> to vector<8x256xf32>
    %829 = arith.mulf %826, %828 : vector<8x256xf32>
    %830 = vector.extract_strided_slice %758 {offsets = [0, 8], sizes = [8, 1], strides = [1, 1]} : vector<8x9xf32> to vector<8x1xf32>
    %831 = vector.broadcast %830 : vector<8x1xf32> to vector<8x256xf32>
    %832 = arith.mulf %829, %831 : vector<8x256xf32>
    %833 = arith.addf %817, %832 : vector<8x256xf32>
    %834 = arith.addf %833, %825 : vector<8x256xf32>
    %c112 = arith.constant 112 : index
    %c0_255 = arith.constant 0 : index
    %835 = vector.load %arg4[%c112, %c0_255] : memref<272x128xf32, #tpu.memory_space<vmem>>, vector<8x8xf32>
    %c120 = arith.constant 120 : index
    %c0_256 = arith.constant 0 : index
    %836 = vector.load %arg4[%c120, %c0_256] : memref<272x128xf32, #tpu.memory_space<vmem>>, vector<8x1xf32>
    %cst_257 = arith.constant dense<0.000000e+00> : vector<8x256xf32>
    %837 = tpu.matmul %835, %834, %cst_257 {dimension_numbers = #tpu.dot_dimension_numbers<[1], [0], [0], [1], [0, 0, 1, 1], [], []>} : vector<8x8xf32>, vector<8x256xf32>, vector<8x256xf32> -> vector<8x256xf32>
    %838 = vector.broadcast %836 : vector<8x1xf32> to vector<8x256xf32>
    %839 = arith.addf %837, %838 : vector<8x256xf32>
    %840 = arith.addf %317, %307 : vector<8x256xf32>
    %c136 = arith.constant 136 : index
    %c0_258 = arith.constant 0 : index
    %841 = vector.load %arg4[%c136, %c0_258] : memref<272x128xf32, #tpu.memory_space<vmem>>, vector<8x8xf32>
    %c144 = arith.constant 144 : index
    %c0_259 = arith.constant 0 : index
    %842 = vector.load %arg4[%c144, %c0_259] : memref<272x128xf32, #tpu.memory_space<vmem>>, vector<8x1xf32>
    %cst_260 = arith.constant dense<0.000000e+00> : vector<8x256xf32>
    %843 = tpu.matmul %841, %840, %cst_260 {dimension_numbers = #tpu.dot_dimension_numbers<[1], [0], [0], [1], [0, 0, 1, 1], [], []>} : vector<8x8xf32>, vector<8x256xf32>, vector<8x256xf32> -> vector<8x256xf32>
    %844 = vector.broadcast %842 : vector<8x1xf32> to vector<8x256xf32>
    %845 = arith.addf %843, %844 : vector<8x256xf32>
    %c152 = arith.constant 152 : index
    %c0_261 = arith.constant 0 : index
    %846 = vector.load %arg4[%c152, %c0_261] : memref<272x128xf32, #tpu.memory_space<vmem>>, vector<8x25xf32>
    %cst_262 = arith.constant 0.000000e+00 : f32
    %847 = vector.broadcast %cst_262 : f32 to vector<8x256xf32>
    %848 = arith.maximumf %845, %847 : vector<8x256xf32>
    %cst_263 = arith.constant 0.000000e+00 : f32
    %849 = vector.broadcast %cst_263 : f32 to vector<8x256xf32>
    %cst_264 = arith.constant 0.000000e+00 : f32
    %850 = vector.broadcast %cst_264 : f32 to vector<8x256xf32>
    %c34_i32_265 = arith.constant 34 : i32
    %851 = tpu.dynamic_rotate %848 by %c34_i32_265 dim 1 : vector<8x256xf32>, i32 -> vector<8x256xf32>
    %c0_266 = arith.constant 0 : index
    %c0_267 = arith.constant 0 : index
    %852 = vector.load %arg3[%c0_266, %c0_267] : memref<32x256xf32, #tpu.memory_space<vmem>>, vector<1x256xf32>
    %853 = vector.broadcast %852 : vector<1x256xf32> to vector<8x256xf32>
    %854 = arith.mulf %851, %853 : vector<8x256xf32>
    %855 = vector.extract_strided_slice %846 {offsets = [0, 0], sizes = [8, 1], strides = [1, 1]} : vector<8x25xf32> to vector<8x1xf32>
    %856 = vector.broadcast %855 : vector<8x1xf32> to vector<8x256xf32>
    %857 = arith.mulf %854, %856 : vector<8x256xf32>
    %858 = arith.addf %849, %857 : vector<8x256xf32>
    %c33_i32_268 = arith.constant 33 : i32
    %859 = tpu.dynamic_rotate %848 by %c33_i32_268 dim 1 : vector<8x256xf32>, i32 -> vector<8x256xf32>
    %c1_269 = arith.constant 1 : index
    %c0_270 = arith.constant 0 : index
    %860 = vector.load %arg3[%c1_269, %c0_270] : memref<32x256xf32, #tpu.memory_space<vmem>>, vector<1x256xf32>
    %861 = vector.broadcast %860 : vector<1x256xf32> to vector<8x256xf32>
    %862 = arith.mulf %859, %861 : vector<8x256xf32>
    %863 = vector.extract_strided_slice %846 {offsets = [0, 1], sizes = [8, 1], strides = [1, 1]} : vector<8x25xf32> to vector<8x1xf32>
    %864 = vector.broadcast %863 : vector<8x1xf32> to vector<8x256xf32>
    %865 = arith.mulf %862, %864 : vector<8x256xf32>
    %866 = arith.addf %850, %865 : vector<8x256xf32>
    %c32_i32_271 = arith.constant 32 : i32
    %867 = tpu.dynamic_rotate %848 by %c32_i32_271 dim 1 : vector<8x256xf32>, i32 -> vector<8x256xf32>
    %c2_272 = arith.constant 2 : index
    %c0_273 = arith.constant 0 : index
    %868 = vector.load %arg3[%c2_272, %c0_273] : memref<32x256xf32, #tpu.memory_space<vmem>>, vector<1x256xf32>
    %869 = vector.broadcast %868 : vector<1x256xf32> to vector<8x256xf32>
    %870 = arith.mulf %867, %869 : vector<8x256xf32>
    %871 = vector.extract_strided_slice %846 {offsets = [0, 2], sizes = [8, 1], strides = [1, 1]} : vector<8x25xf32> to vector<8x1xf32>
    %872 = vector.broadcast %871 : vector<8x1xf32> to vector<8x256xf32>
    %873 = arith.mulf %870, %872 : vector<8x256xf32>
    %874 = arith.addf %858, %873 : vector<8x256xf32>
    %c31_i32_274 = arith.constant 31 : i32
    %875 = tpu.dynamic_rotate %848 by %c31_i32_274 dim 1 : vector<8x256xf32>, i32 -> vector<8x256xf32>
    %c3_275 = arith.constant 3 : index
    %c0_276 = arith.constant 0 : index
    %876 = vector.load %arg3[%c3_275, %c0_276] : memref<32x256xf32, #tpu.memory_space<vmem>>, vector<1x256xf32>
    %877 = vector.broadcast %876 : vector<1x256xf32> to vector<8x256xf32>
    %878 = arith.mulf %875, %877 : vector<8x256xf32>
    %879 = vector.extract_strided_slice %846 {offsets = [0, 3], sizes = [8, 1], strides = [1, 1]} : vector<8x25xf32> to vector<8x1xf32>
    %880 = vector.broadcast %879 : vector<8x1xf32> to vector<8x256xf32>
    %881 = arith.mulf %878, %880 : vector<8x256xf32>
    %882 = arith.addf %866, %881 : vector<8x256xf32>
    %c30_i32_277 = arith.constant 30 : i32
    %883 = tpu.dynamic_rotate %848 by %c30_i32_277 dim 1 : vector<8x256xf32>, i32 -> vector<8x256xf32>
    %c4_278 = arith.constant 4 : index
    %c0_279 = arith.constant 0 : index
    %884 = vector.load %arg3[%c4_278, %c0_279] : memref<32x256xf32, #tpu.memory_space<vmem>>, vector<1x256xf32>
    %885 = vector.broadcast %884 : vector<1x256xf32> to vector<8x256xf32>
    %886 = arith.mulf %883, %885 : vector<8x256xf32>
    %887 = vector.extract_strided_slice %846 {offsets = [0, 4], sizes = [8, 1], strides = [1, 1]} : vector<8x25xf32> to vector<8x1xf32>
    %888 = vector.broadcast %887 : vector<8x1xf32> to vector<8x256xf32>
    %889 = arith.mulf %886, %888 : vector<8x256xf32>
    %890 = arith.addf %874, %889 : vector<8x256xf32>
    %c18_i32_280 = arith.constant 18 : i32
    %891 = tpu.dynamic_rotate %848 by %c18_i32_280 dim 1 : vector<8x256xf32>, i32 -> vector<8x256xf32>
    %c5_281 = arith.constant 5 : index
    %c0_282 = arith.constant 0 : index
    %892 = vector.load %arg3[%c5_281, %c0_282] : memref<32x256xf32, #tpu.memory_space<vmem>>, vector<1x256xf32>
    %893 = vector.broadcast %892 : vector<1x256xf32> to vector<8x256xf32>
    %894 = arith.mulf %891, %893 : vector<8x256xf32>
    %895 = vector.extract_strided_slice %846 {offsets = [0, 5], sizes = [8, 1], strides = [1, 1]} : vector<8x25xf32> to vector<8x1xf32>
    %896 = vector.broadcast %895 : vector<8x1xf32> to vector<8x256xf32>
    %897 = arith.mulf %894, %896 : vector<8x256xf32>
    %898 = arith.addf %882, %897 : vector<8x256xf32>
    %c17_i32_283 = arith.constant 17 : i32
    %899 = tpu.dynamic_rotate %848 by %c17_i32_283 dim 1 : vector<8x256xf32>, i32 -> vector<8x256xf32>
    %c6_284 = arith.constant 6 : index
    %c0_285 = arith.constant 0 : index
    %900 = vector.load %arg3[%c6_284, %c0_285] : memref<32x256xf32, #tpu.memory_space<vmem>>, vector<1x256xf32>
    %901 = vector.broadcast %900 : vector<1x256xf32> to vector<8x256xf32>
    %902 = arith.mulf %899, %901 : vector<8x256xf32>
    %903 = vector.extract_strided_slice %846 {offsets = [0, 6], sizes = [8, 1], strides = [1, 1]} : vector<8x25xf32> to vector<8x1xf32>
    %904 = vector.broadcast %903 : vector<8x1xf32> to vector<8x256xf32>
    %905 = arith.mulf %902, %904 : vector<8x256xf32>
    %906 = arith.addf %890, %905 : vector<8x256xf32>
    %c16_i32_286 = arith.constant 16 : i32
    %907 = tpu.dynamic_rotate %848 by %c16_i32_286 dim 1 : vector<8x256xf32>, i32 -> vector<8x256xf32>
    %c7_287 = arith.constant 7 : index
    %c0_288 = arith.constant 0 : index
    %908 = vector.load %arg3[%c7_287, %c0_288] : memref<32x256xf32, #tpu.memory_space<vmem>>, vector<1x256xf32>
    %909 = vector.broadcast %908 : vector<1x256xf32> to vector<8x256xf32>
    %910 = arith.mulf %907, %909 : vector<8x256xf32>
    %911 = vector.extract_strided_slice %846 {offsets = [0, 7], sizes = [8, 1], strides = [1, 1]} : vector<8x25xf32> to vector<8x1xf32>
    %912 = vector.broadcast %911 : vector<8x1xf32> to vector<8x256xf32>
    %913 = arith.mulf %910, %912 : vector<8x256xf32>
    %914 = arith.addf %898, %913 : vector<8x256xf32>
    %c15_i32_289 = arith.constant 15 : i32
    %915 = tpu.dynamic_rotate %848 by %c15_i32_289 dim 1 : vector<8x256xf32>, i32 -> vector<8x256xf32>
    %c8_290 = arith.constant 8 : index
    %c0_291 = arith.constant 0 : index
    %916 = vector.load %arg3[%c8_290, %c0_291] : memref<32x256xf32, #tpu.memory_space<vmem>>, vector<1x256xf32>
    %917 = vector.broadcast %916 : vector<1x256xf32> to vector<8x256xf32>
    %918 = arith.mulf %915, %917 : vector<8x256xf32>
    %919 = vector.extract_strided_slice %846 {offsets = [0, 8], sizes = [8, 1], strides = [1, 1]} : vector<8x25xf32> to vector<8x1xf32>
    %920 = vector.broadcast %919 : vector<8x1xf32> to vector<8x256xf32>
    %921 = arith.mulf %918, %920 : vector<8x256xf32>
    %922 = arith.addf %906, %921 : vector<8x256xf32>
    %c14_i32_292 = arith.constant 14 : i32
    %923 = tpu.dynamic_rotate %848 by %c14_i32_292 dim 1 : vector<8x256xf32>, i32 -> vector<8x256xf32>
    %c9_293 = arith.constant 9 : index
    %c0_294 = arith.constant 0 : index
    %924 = vector.load %arg3[%c9_293, %c0_294] : memref<32x256xf32, #tpu.memory_space<vmem>>, vector<1x256xf32>
    %925 = vector.broadcast %924 : vector<1x256xf32> to vector<8x256xf32>
    %926 = arith.mulf %923, %925 : vector<8x256xf32>
    %927 = vector.extract_strided_slice %846 {offsets = [0, 9], sizes = [8, 1], strides = [1, 1]} : vector<8x25xf32> to vector<8x1xf32>
    %928 = vector.broadcast %927 : vector<8x1xf32> to vector<8x256xf32>
    %929 = arith.mulf %926, %928 : vector<8x256xf32>
    %930 = arith.addf %914, %929 : vector<8x256xf32>
    %c2_i32_295 = arith.constant 2 : i32
    %931 = tpu.dynamic_rotate %848 by %c2_i32_295 dim 1 : vector<8x256xf32>, i32 -> vector<8x256xf32>
    %c10_296 = arith.constant 10 : index
    %c0_297 = arith.constant 0 : index
    %932 = vector.load %arg3[%c10_296, %c0_297] : memref<32x256xf32, #tpu.memory_space<vmem>>, vector<1x256xf32>
    %933 = vector.broadcast %932 : vector<1x256xf32> to vector<8x256xf32>
    %934 = arith.mulf %931, %933 : vector<8x256xf32>
    %935 = vector.extract_strided_slice %846 {offsets = [0, 10], sizes = [8, 1], strides = [1, 1]} : vector<8x25xf32> to vector<8x1xf32>
    %936 = vector.broadcast %935 : vector<8x1xf32> to vector<8x256xf32>
    %937 = arith.mulf %934, %936 : vector<8x256xf32>
    %938 = arith.addf %922, %937 : vector<8x256xf32>
    %c1_i32_298 = arith.constant 1 : i32
    %939 = tpu.dynamic_rotate %848 by %c1_i32_298 dim 1 : vector<8x256xf32>, i32 -> vector<8x256xf32>
    %c11_299 = arith.constant 11 : index
    %c0_300 = arith.constant 0 : index
    %940 = vector.load %arg3[%c11_299, %c0_300] : memref<32x256xf32, #tpu.memory_space<vmem>>, vector<1x256xf32>
    %941 = vector.broadcast %940 : vector<1x256xf32> to vector<8x256xf32>
    %942 = arith.mulf %939, %941 : vector<8x256xf32>
    %943 = vector.extract_strided_slice %846 {offsets = [0, 11], sizes = [8, 1], strides = [1, 1]} : vector<8x25xf32> to vector<8x1xf32>
    %944 = vector.broadcast %943 : vector<8x1xf32> to vector<8x256xf32>
    %945 = arith.mulf %942, %944 : vector<8x256xf32>
    %946 = arith.addf %930, %945 : vector<8x256xf32>
    %c12_301 = arith.constant 12 : index
    %c0_302 = arith.constant 0 : index
    %947 = vector.load %arg3[%c12_301, %c0_302] : memref<32x256xf32, #tpu.memory_space<vmem>>, vector<1x256xf32>
    %948 = vector.broadcast %947 : vector<1x256xf32> to vector<8x256xf32>
    %949 = arith.mulf %848, %948 : vector<8x256xf32>
    %950 = vector.extract_strided_slice %846 {offsets = [0, 12], sizes = [8, 1], strides = [1, 1]} : vector<8x25xf32> to vector<8x1xf32>
    %951 = vector.broadcast %950 : vector<8x1xf32> to vector<8x256xf32>
    %952 = arith.mulf %949, %951 : vector<8x256xf32>
    %953 = arith.addf %938, %952 : vector<8x256xf32>
    %c255_i32_303 = arith.constant 255 : i32
    %954 = tpu.dynamic_rotate %848 by %c255_i32_303 dim 1 : vector<8x256xf32>, i32 -> vector<8x256xf32>
    %c13_304 = arith.constant 13 : index
    %c0_305 = arith.constant 0 : index
    %955 = vector.load %arg3[%c13_304, %c0_305] : memref<32x256xf32, #tpu.memory_space<vmem>>, vector<1x256xf32>
    %956 = vector.broadcast %955 : vector<1x256xf32> to vector<8x256xf32>
    %957 = arith.mulf %954, %956 : vector<8x256xf32>
    %958 = vector.extract_strided_slice %846 {offsets = [0, 13], sizes = [8, 1], strides = [1, 1]} : vector<8x25xf32> to vector<8x1xf32>
    %959 = vector.broadcast %958 : vector<8x1xf32> to vector<8x256xf32>
    %960 = arith.mulf %957, %959 : vector<8x256xf32>
    %961 = arith.addf %946, %960 : vector<8x256xf32>
    %c254_i32_306 = arith.constant 254 : i32
    %962 = tpu.dynamic_rotate %848 by %c254_i32_306 dim 1 : vector<8x256xf32>, i32 -> vector<8x256xf32>
    %c14_307 = arith.constant 14 : index
    %c0_308 = arith.constant 0 : index
    %963 = vector.load %arg3[%c14_307, %c0_308] : memref<32x256xf32, #tpu.memory_space<vmem>>, vector<1x256xf32>
    %964 = vector.broadcast %963 : vector<1x256xf32> to vector<8x256xf32>
    %965 = arith.mulf %962, %964 : vector<8x256xf32>
    %966 = vector.extract_strided_slice %846 {offsets = [0, 14], sizes = [8, 1], strides = [1, 1]} : vector<8x25xf32> to vector<8x1xf32>
    %967 = vector.broadcast %966 : vector<8x1xf32> to vector<8x256xf32>
    %968 = arith.mulf %965, %967 : vector<8x256xf32>
    %969 = arith.addf %953, %968 : vector<8x256xf32>
    %c242_i32_309 = arith.constant 242 : i32
    %970 = tpu.dynamic_rotate %848 by %c242_i32_309 dim 1 : vector<8x256xf32>, i32 -> vector<8x256xf32>
    %c15_310 = arith.constant 15 : index
    %c0_311 = arith.constant 0 : index
    %971 = vector.load %arg3[%c15_310, %c0_311] : memref<32x256xf32, #tpu.memory_space<vmem>>, vector<1x256xf32>
    %972 = vector.broadcast %971 : vector<1x256xf32> to vector<8x256xf32>
    %973 = arith.mulf %970, %972 : vector<8x256xf32>
    %974 = vector.extract_strided_slice %846 {offsets = [0, 15], sizes = [8, 1], strides = [1, 1]} : vector<8x25xf32> to vector<8x1xf32>
    %975 = vector.broadcast %974 : vector<8x1xf32> to vector<8x256xf32>
    %976 = arith.mulf %973, %975 : vector<8x256xf32>
    %977 = arith.addf %961, %976 : vector<8x256xf32>
    %c241_i32_312 = arith.constant 241 : i32
    %978 = tpu.dynamic_rotate %848 by %c241_i32_312 dim 1 : vector<8x256xf32>, i32 -> vector<8x256xf32>
    %c16_313 = arith.constant 16 : index
    %c0_314 = arith.constant 0 : index
    %979 = vector.load %arg3[%c16_313, %c0_314] : memref<32x256xf32, #tpu.memory_space<vmem>>, vector<1x256xf32>
    %980 = vector.broadcast %979 : vector<1x256xf32> to vector<8x256xf32>
    %981 = arith.mulf %978, %980 : vector<8x256xf32>
    %982 = vector.extract_strided_slice %846 {offsets = [0, 16], sizes = [8, 1], strides = [1, 1]} : vector<8x25xf32> to vector<8x1xf32>
    %983 = vector.broadcast %982 : vector<8x1xf32> to vector<8x256xf32>
    %984 = arith.mulf %981, %983 : vector<8x256xf32>
    %985 = arith.addf %969, %984 : vector<8x256xf32>
    %c240_i32_315 = arith.constant 240 : i32
    %986 = tpu.dynamic_rotate %848 by %c240_i32_315 dim 1 : vector<8x256xf32>, i32 -> vector<8x256xf32>
    %c17_316 = arith.constant 17 : index
    %c0_317 = arith.constant 0 : index
    %987 = vector.load %arg3[%c17_316, %c0_317] : memref<32x256xf32, #tpu.memory_space<vmem>>, vector<1x256xf32>
    %988 = vector.broadcast %987 : vector<1x256xf32> to vector<8x256xf32>
    %989 = arith.mulf %986, %988 : vector<8x256xf32>
    %990 = vector.extract_strided_slice %846 {offsets = [0, 17], sizes = [8, 1], strides = [1, 1]} : vector<8x25xf32> to vector<8x1xf32>
    %991 = vector.broadcast %990 : vector<8x1xf32> to vector<8x256xf32>
    %992 = arith.mulf %989, %991 : vector<8x256xf32>
    %993 = arith.addf %977, %992 : vector<8x256xf32>
    %c239_i32_318 = arith.constant 239 : i32
    %994 = tpu.dynamic_rotate %848 by %c239_i32_318 dim 1 : vector<8x256xf32>, i32 -> vector<8x256xf32>
    %c18_319 = arith.constant 18 : index
    %c0_320 = arith.constant 0 : index
    %995 = vector.load %arg3[%c18_319, %c0_320] : memref<32x256xf32, #tpu.memory_space<vmem>>, vector<1x256xf32>
    %996 = vector.broadcast %995 : vector<1x256xf32> to vector<8x256xf32>
    %997 = arith.mulf %994, %996 : vector<8x256xf32>
    %998 = vector.extract_strided_slice %846 {offsets = [0, 18], sizes = [8, 1], strides = [1, 1]} : vector<8x25xf32> to vector<8x1xf32>
    %999 = vector.broadcast %998 : vector<8x1xf32> to vector<8x256xf32>
    %1000 = arith.mulf %997, %999 : vector<8x256xf32>
    %1001 = arith.addf %985, %1000 : vector<8x256xf32>
    %c238_i32_321 = arith.constant 238 : i32
    %1002 = tpu.dynamic_rotate %848 by %c238_i32_321 dim 1 : vector<8x256xf32>, i32 -> vector<8x256xf32>
    %c19_322 = arith.constant 19 : index
    %c0_323 = arith.constant 0 : index
    %1003 = vector.load %arg3[%c19_322, %c0_323] : memref<32x256xf32, #tpu.memory_space<vmem>>, vector<1x256xf32>
    %1004 = vector.broadcast %1003 : vector<1x256xf32> to vector<8x256xf32>
    %1005 = arith.mulf %1002, %1004 : vector<8x256xf32>
    %1006 = vector.extract_strided_slice %846 {offsets = [0, 19], sizes = [8, 1], strides = [1, 1]} : vector<8x25xf32> to vector<8x1xf32>
    %1007 = vector.broadcast %1006 : vector<8x1xf32> to vector<8x256xf32>
    %1008 = arith.mulf %1005, %1007 : vector<8x256xf32>
    %1009 = arith.addf %993, %1008 : vector<8x256xf32>
    %c226_i32_324 = arith.constant 226 : i32
    %1010 = tpu.dynamic_rotate %848 by %c226_i32_324 dim 1 : vector<8x256xf32>, i32 -> vector<8x256xf32>
    %c20_325 = arith.constant 20 : index
    %c0_326 = arith.constant 0 : index
    %1011 = vector.load %arg3[%c20_325, %c0_326] : memref<32x256xf32, #tpu.memory_space<vmem>>, vector<1x256xf32>
    %1012 = vector.broadcast %1011 : vector<1x256xf32> to vector<8x256xf32>
    %1013 = arith.mulf %1010, %1012 : vector<8x256xf32>
    %1014 = vector.extract_strided_slice %846 {offsets = [0, 20], sizes = [8, 1], strides = [1, 1]} : vector<8x25xf32> to vector<8x1xf32>
    %1015 = vector.broadcast %1014 : vector<8x1xf32> to vector<8x256xf32>
    %1016 = arith.mulf %1013, %1015 : vector<8x256xf32>
    %1017 = arith.addf %1001, %1016 : vector<8x256xf32>
    %c225_i32_327 = arith.constant 225 : i32
    %1018 = tpu.dynamic_rotate %848 by %c225_i32_327 dim 1 : vector<8x256xf32>, i32 -> vector<8x256xf32>
    %c21_328 = arith.constant 21 : index
    %c0_329 = arith.constant 0 : index
    %1019 = vector.load %arg3[%c21_328, %c0_329] : memref<32x256xf32, #tpu.memory_space<vmem>>, vector<1x256xf32>
    %1020 = vector.broadcast %1019 : vector<1x256xf32> to vector<8x256xf32>
    %1021 = arith.mulf %1018, %1020 : vector<8x256xf32>
    %1022 = vector.extract_strided_slice %846 {offsets = [0, 21], sizes = [8, 1], strides = [1, 1]} : vector<8x25xf32> to vector<8x1xf32>
    %1023 = vector.broadcast %1022 : vector<8x1xf32> to vector<8x256xf32>
    %1024 = arith.mulf %1021, %1023 : vector<8x256xf32>
    %1025 = arith.addf %1009, %1024 : vector<8x256xf32>
    %c224_i32_330 = arith.constant 224 : i32
    %1026 = tpu.dynamic_rotate %848 by %c224_i32_330 dim 1 : vector<8x256xf32>, i32 -> vector<8x256xf32>
    %c22_331 = arith.constant 22 : index
    %c0_332 = arith.constant 0 : index
    %1027 = vector.load %arg3[%c22_331, %c0_332] : memref<32x256xf32, #tpu.memory_space<vmem>>, vector<1x256xf32>
    %1028 = vector.broadcast %1027 : vector<1x256xf32> to vector<8x256xf32>
    %1029 = arith.mulf %1026, %1028 : vector<8x256xf32>
    %1030 = vector.extract_strided_slice %846 {offsets = [0, 22], sizes = [8, 1], strides = [1, 1]} : vector<8x25xf32> to vector<8x1xf32>
    %1031 = vector.broadcast %1030 : vector<8x1xf32> to vector<8x256xf32>
    %1032 = arith.mulf %1029, %1031 : vector<8x256xf32>
    %1033 = arith.addf %1017, %1032 : vector<8x256xf32>
    %c223_i32_333 = arith.constant 223 : i32
    %1034 = tpu.dynamic_rotate %848 by %c223_i32_333 dim 1 : vector<8x256xf32>, i32 -> vector<8x256xf32>
    %c23_334 = arith.constant 23 : index
    %c0_335 = arith.constant 0 : index
    %1035 = vector.load %arg3[%c23_334, %c0_335] : memref<32x256xf32, #tpu.memory_space<vmem>>, vector<1x256xf32>
    %1036 = vector.broadcast %1035 : vector<1x256xf32> to vector<8x256xf32>
    %1037 = arith.mulf %1034, %1036 : vector<8x256xf32>
    %1038 = vector.extract_strided_slice %846 {offsets = [0, 23], sizes = [8, 1], strides = [1, 1]} : vector<8x25xf32> to vector<8x1xf32>
    %1039 = vector.broadcast %1038 : vector<8x1xf32> to vector<8x256xf32>
    %1040 = arith.mulf %1037, %1039 : vector<8x256xf32>
    %1041 = arith.addf %1025, %1040 : vector<8x256xf32>
    %c222_i32_336 = arith.constant 222 : i32
    %1042 = tpu.dynamic_rotate %848 by %c222_i32_336 dim 1 : vector<8x256xf32>, i32 -> vector<8x256xf32>
    %c24_337 = arith.constant 24 : index
    %c0_338 = arith.constant 0 : index
    %1043 = vector.load %arg3[%c24_337, %c0_338] : memref<32x256xf32, #tpu.memory_space<vmem>>, vector<1x256xf32>
    %1044 = vector.broadcast %1043 : vector<1x256xf32> to vector<8x256xf32>
    %1045 = arith.mulf %1042, %1044 : vector<8x256xf32>
    %1046 = vector.extract_strided_slice %846 {offsets = [0, 24], sizes = [8, 1], strides = [1, 1]} : vector<8x25xf32> to vector<8x1xf32>
    %1047 = vector.broadcast %1046 : vector<8x1xf32> to vector<8x256xf32>
    %1048 = arith.mulf %1045, %1047 : vector<8x256xf32>
    %1049 = arith.addf %1033, %1048 : vector<8x256xf32>
    %1050 = arith.addf %1049, %1041 : vector<8x256xf32>
    %c160 = arith.constant 160 : index
    %c0_339 = arith.constant 0 : index
    %1051 = vector.load %arg4[%c160, %c0_339] : memref<272x128xf32, #tpu.memory_space<vmem>>, vector<8x8xf32>
    %c168 = arith.constant 168 : index
    %c0_340 = arith.constant 0 : index
    %1052 = vector.load %arg4[%c168, %c0_340] : memref<272x128xf32, #tpu.memory_space<vmem>>, vector<8x1xf32>
    %cst_341 = arith.constant dense<0.000000e+00> : vector<8x256xf32>
    %1053 = tpu.matmul %1051, %1050, %cst_341 {dimension_numbers = #tpu.dot_dimension_numbers<[1], [0], [0], [1], [0, 0, 1, 1], [], []>} : vector<8x8xf32>, vector<8x256xf32>, vector<8x256xf32> -> vector<8x256xf32>
    %1054 = vector.broadcast %1052 : vector<8x1xf32> to vector<8x256xf32>
    %1055 = arith.addf %1053, %1054 : vector<8x256xf32>
    %1056 = arith.addf %839, %1055 : vector<8x256xf32>
    %c0_342 = arith.constant 0 : index
    %c16_343 = arith.constant 16 : index
    %c0_344 = arith.constant 0 : index
    %1057 = vector.load %arg5[%c0_342, %c16_343, %c0_344] : memref<1x48x256xf32, #tpu.memory_space<vmem>>, vector<1x8x256xf32>
    %1058 = vector.shape_cast %1057 : vector<1x8x256xf32> to vector<8x256xf32>
    %1059 = vector.shape_cast %1056 : vector<8x256xf32> to vector<1x8x256xf32>
    tpu.vector_store %arg5[%c0_342, %c16_343, %c0_344], %1059 {strides = array<i32>} : memref<1x48x256xf32, #tpu.memory_space<vmem>>, vector<1x8x256xf32>,
    %1060 = arith.addf %650, %640 : vector<8x256xf32>
    %c184 = arith.constant 184 : index
    %c0_345 = arith.constant 0 : index
    %1061 = vector.load %arg4[%c184, %c0_345] : memref<272x128xf32, #tpu.memory_space<vmem>>, vector<8x8xf32>
    %c192 = arith.constant 192 : index
    %c0_346 = arith.constant 0 : index
    %1062 = vector.load %arg4[%c192, %c0_346] : memref<272x128xf32, #tpu.memory_space<vmem>>, vector<8x1xf32>
    %cst_347 = arith.constant dense<0.000000e+00> : vector<8x256xf32>
    %1063 = tpu.matmul %1061, %1060, %cst_347 {dimension_numbers = #tpu.dot_dimension_numbers<[1], [0], [0], [1], [0, 0, 1, 1], [], []>} : vector<8x8xf32>, vector<8x256xf32>, vector<8x256xf32> -> vector<8x256xf32>
    %1064 = vector.broadcast %1062 : vector<8x1xf32> to vector<8x256xf32>
    %1065 = arith.addf %1063, %1064 : vector<8x256xf32>
    %c200 = arith.constant 200 : index
    %c0_348 = arith.constant 0 : index
    %1066 = vector.load %arg4[%c200, %c0_348] : memref<272x128xf32, #tpu.memory_space<vmem>>, vector<8x25xf32>
    %cst_349 = arith.constant 0.000000e+00 : f32
    %1067 = vector.broadcast %cst_349 : f32 to vector<8x256xf32>
    %1068 = arith.maximumf %1065, %1067 : vector<8x256xf32>
    %cst_350 = arith.constant 0.000000e+00 : f32
    %1069 = vector.broadcast %cst_350 : f32 to vector<8x256xf32>
    %cst_351 = arith.constant 0.000000e+00 : f32
    %1070 = vector.broadcast %cst_351 : f32 to vector<8x256xf32>
    %c34_i32_352 = arith.constant 34 : i32
    %1071 = tpu.dynamic_rotate %1068 by %c34_i32_352 dim 1 : vector<8x256xf32>, i32 -> vector<8x256xf32>
    %c0_353 = arith.constant 0 : index
    %c0_354 = arith.constant 0 : index
    %1072 = vector.load %arg3[%c0_353, %c0_354] : memref<32x256xf32, #tpu.memory_space<vmem>>, vector<1x256xf32>
    %1073 = vector.broadcast %1072 : vector<1x256xf32> to vector<8x256xf32>
    %1074 = arith.mulf %1071, %1073 : vector<8x256xf32>
    %1075 = vector.extract_strided_slice %1066 {offsets = [0, 0], sizes = [8, 1], strides = [1, 1]} : vector<8x25xf32> to vector<8x1xf32>
    %1076 = vector.broadcast %1075 : vector<8x1xf32> to vector<8x256xf32>
    %1077 = arith.mulf %1074, %1076 : vector<8x256xf32>
    %1078 = arith.addf %1069, %1077 : vector<8x256xf32>
    %c33_i32_355 = arith.constant 33 : i32
    %1079 = tpu.dynamic_rotate %1068 by %c33_i32_355 dim 1 : vector<8x256xf32>, i32 -> vector<8x256xf32>
    %c1_356 = arith.constant 1 : index
    %c0_357 = arith.constant 0 : index
    %1080 = vector.load %arg3[%c1_356, %c0_357] : memref<32x256xf32, #tpu.memory_space<vmem>>, vector<1x256xf32>
    %1081 = vector.broadcast %1080 : vector<1x256xf32> to vector<8x256xf32>
    %1082 = arith.mulf %1079, %1081 : vector<8x256xf32>
    %1083 = vector.extract_strided_slice %1066 {offsets = [0, 1], sizes = [8, 1], strides = [1, 1]} : vector<8x25xf32> to vector<8x1xf32>
    %1084 = vector.broadcast %1083 : vector<8x1xf32> to vector<8x256xf32>
    %1085 = arith.mulf %1082, %1084 : vector<8x256xf32>
    %1086 = arith.addf %1070, %1085 : vector<8x256xf32>
    %c32_i32_358 = arith.constant 32 : i32
    %1087 = tpu.dynamic_rotate %1068 by %c32_i32_358 dim 1 : vector<8x256xf32>, i32 -> vector<8x256xf32>
    %c2_359 = arith.constant 2 : index
    %c0_360 = arith.constant 0 : index
    %1088 = vector.load %arg3[%c2_359, %c0_360] : memref<32x256xf32, #tpu.memory_space<vmem>>, vector<1x256xf32>
    %1089 = vector.broadcast %1088 : vector<1x256xf32> to vector<8x256xf32>
    %1090 = arith.mulf %1087, %1089 : vector<8x256xf32>
    %1091 = vector.extract_strided_slice %1066 {offsets = [0, 2], sizes = [8, 1], strides = [1, 1]} : vector<8x25xf32> to vector<8x1xf32>
    %1092 = vector.broadcast %1091 : vector<8x1xf32> to vector<8x256xf32>
    %1093 = arith.mulf %1090, %1092 : vector<8x256xf32>
    %1094 = arith.addf %1078, %1093 : vector<8x256xf32>
    %c31_i32_361 = arith.constant 31 : i32
    %1095 = tpu.dynamic_rotate %1068 by %c31_i32_361 dim 1 : vector<8x256xf32>, i32 -> vector<8x256xf32>
    %c3_362 = arith.constant 3 : index
    %c0_363 = arith.constant 0 : index
    %1096 = vector.load %arg3[%c3_362, %c0_363] : memref<32x256xf32, #tpu.memory_space<vmem>>, vector<1x256xf32>
    %1097 = vector.broadcast %1096 : vector<1x256xf32> to vector<8x256xf32>
    %1098 = arith.mulf %1095, %1097 : vector<8x256xf32>
    %1099 = vector.extract_strided_slice %1066 {offsets = [0, 3], sizes = [8, 1], strides = [1, 1]} : vector<8x25xf32> to vector<8x1xf32>
    %1100 = vector.broadcast %1099 : vector<8x1xf32> to vector<8x256xf32>
    %1101 = arith.mulf %1098, %1100 : vector<8x256xf32>
    %1102 = arith.addf %1086, %1101 : vector<8x256xf32>
    %c30_i32_364 = arith.constant 30 : i32
    %1103 = tpu.dynamic_rotate %1068 by %c30_i32_364 dim 1 : vector<8x256xf32>, i32 -> vector<8x256xf32>
    %c4_365 = arith.constant 4 : index
    %c0_366 = arith.constant 0 : index
    %1104 = vector.load %arg3[%c4_365, %c0_366] : memref<32x256xf32, #tpu.memory_space<vmem>>, vector<1x256xf32>
    %1105 = vector.broadcast %1104 : vector<1x256xf32> to vector<8x256xf32>
    %1106 = arith.mulf %1103, %1105 : vector<8x256xf32>
    %1107 = vector.extract_strided_slice %1066 {offsets = [0, 4], sizes = [8, 1], strides = [1, 1]} : vector<8x25xf32> to vector<8x1xf32>
    %1108 = vector.broadcast %1107 : vector<8x1xf32> to vector<8x256xf32>
    %1109 = arith.mulf %1106, %1108 : vector<8x256xf32>
    %1110 = arith.addf %1094, %1109 : vector<8x256xf32>
    %c18_i32_367 = arith.constant 18 : i32
    %1111 = tpu.dynamic_rotate %1068 by %c18_i32_367 dim 1 : vector<8x256xf32>, i32 -> vector<8x256xf32>
    %c5_368 = arith.constant 5 : index
    %c0_369 = arith.constant 0 : index
    %1112 = vector.load %arg3[%c5_368, %c0_369] : memref<32x256xf32, #tpu.memory_space<vmem>>, vector<1x256xf32>
    %1113 = vector.broadcast %1112 : vector<1x256xf32> to vector<8x256xf32>
    %1114 = arith.mulf %1111, %1113 : vector<8x256xf32>
    %1115 = vector.extract_strided_slice %1066 {offsets = [0, 5], sizes = [8, 1], strides = [1, 1]} : vector<8x25xf32> to vector<8x1xf32>
    %1116 = vector.broadcast %1115 : vector<8x1xf32> to vector<8x256xf32>
    %1117 = arith.mulf %1114, %1116 : vector<8x256xf32>
    %1118 = arith.addf %1102, %1117 : vector<8x256xf32>
    %c17_i32_370 = arith.constant 17 : i32
    %1119 = tpu.dynamic_rotate %1068 by %c17_i32_370 dim 1 : vector<8x256xf32>, i32 -> vector<8x256xf32>
    %c6_371 = arith.constant 6 : index
    %c0_372 = arith.constant 0 : index
    %1120 = vector.load %arg3[%c6_371, %c0_372] : memref<32x256xf32, #tpu.memory_space<vmem>>, vector<1x256xf32>
    %1121 = vector.broadcast %1120 : vector<1x256xf32> to vector<8x256xf32>
    %1122 = arith.mulf %1119, %1121 : vector<8x256xf32>
    %1123 = vector.extract_strided_slice %1066 {offsets = [0, 6], sizes = [8, 1], strides = [1, 1]} : vector<8x25xf32> to vector<8x1xf32>
    %1124 = vector.broadcast %1123 : vector<8x1xf32> to vector<8x256xf32>
    %1125 = arith.mulf %1122, %1124 : vector<8x256xf32>
    %1126 = arith.addf %1110, %1125 : vector<8x256xf32>
    %c16_i32_373 = arith.constant 16 : i32
    %1127 = tpu.dynamic_rotate %1068 by %c16_i32_373 dim 1 : vector<8x256xf32>, i32 -> vector<8x256xf32>
    %c7_374 = arith.constant 7 : index
    %c0_375 = arith.constant 0 : index
    %1128 = vector.load %arg3[%c7_374, %c0_375] : memref<32x256xf32, #tpu.memory_space<vmem>>, vector<1x256xf32>
    %1129 = vector.broadcast %1128 : vector<1x256xf32> to vector<8x256xf32>
    %1130 = arith.mulf %1127, %1129 : vector<8x256xf32>
    %1131 = vector.extract_strided_slice %1066 {offsets = [0, 7], sizes = [8, 1], strides = [1, 1]} : vector<8x25xf32> to vector<8x1xf32>
    %1132 = vector.broadcast %1131 : vector<8x1xf32> to vector<8x256xf32>
    %1133 = arith.mulf %1130, %1132 : vector<8x256xf32>
    %1134 = arith.addf %1118, %1133 : vector<8x256xf32>
    %c15_i32_376 = arith.constant 15 : i32
    %1135 = tpu.dynamic_rotate %1068 by %c15_i32_376 dim 1 : vector<8x256xf32>, i32 -> vector<8x256xf32>
    %c8_377 = arith.constant 8 : index
    %c0_378 = arith.constant 0 : index
    %1136 = vector.load %arg3[%c8_377, %c0_378] : memref<32x256xf32, #tpu.memory_space<vmem>>, vector<1x256xf32>
    %1137 = vector.broadcast %1136 : vector<1x256xf32> to vector<8x256xf32>
    %1138 = arith.mulf %1135, %1137 : vector<8x256xf32>
    %1139 = vector.extract_strided_slice %1066 {offsets = [0, 8], sizes = [8, 1], strides = [1, 1]} : vector<8x25xf32> to vector<8x1xf32>
    %1140 = vector.broadcast %1139 : vector<8x1xf32> to vector<8x256xf32>
    %1141 = arith.mulf %1138, %1140 : vector<8x256xf32>
    %1142 = arith.addf %1126, %1141 : vector<8x256xf32>
    %c14_i32_379 = arith.constant 14 : i32
    %1143 = tpu.dynamic_rotate %1068 by %c14_i32_379 dim 1 : vector<8x256xf32>, i32 -> vector<8x256xf32>
    %c9_380 = arith.constant 9 : index
    %c0_381 = arith.constant 0 : index
    %1144 = vector.load %arg3[%c9_380, %c0_381] : memref<32x256xf32, #tpu.memory_space<vmem>>, vector<1x256xf32>
    %1145 = vector.broadcast %1144 : vector<1x256xf32> to vector<8x256xf32>
    %1146 = arith.mulf %1143, %1145 : vector<8x256xf32>
    %1147 = vector.extract_strided_slice %1066 {offsets = [0, 9], sizes = [8, 1], strides = [1, 1]} : vector<8x25xf32> to vector<8x1xf32>
    %1148 = vector.broadcast %1147 : vector<8x1xf32> to vector<8x256xf32>
    %1149 = arith.mulf %1146, %1148 : vector<8x256xf32>
    %1150 = arith.addf %1134, %1149 : vector<8x256xf32>
    %c2_i32_382 = arith.constant 2 : i32
    %1151 = tpu.dynamic_rotate %1068 by %c2_i32_382 dim 1 : vector<8x256xf32>, i32 -> vector<8x256xf32>
    %c10_383 = arith.constant 10 : index
    %c0_384 = arith.constant 0 : index
    %1152 = vector.load %arg3[%c10_383, %c0_384] : memref<32x256xf32, #tpu.memory_space<vmem>>, vector<1x256xf32>
    %1153 = vector.broadcast %1152 : vector<1x256xf32> to vector<8x256xf32>
    %1154 = arith.mulf %1151, %1153 : vector<8x256xf32>
    %1155 = vector.extract_strided_slice %1066 {offsets = [0, 10], sizes = [8, 1], strides = [1, 1]} : vector<8x25xf32> to vector<8x1xf32>
    %1156 = vector.broadcast %1155 : vector<8x1xf32> to vector<8x256xf32>
    %1157 = arith.mulf %1154, %1156 : vector<8x256xf32>
    %1158 = arith.addf %1142, %1157 : vector<8x256xf32>
    %c1_i32_385 = arith.constant 1 : i32
    %1159 = tpu.dynamic_rotate %1068 by %c1_i32_385 dim 1 : vector<8x256xf32>, i32 -> vector<8x256xf32>
    %c11_386 = arith.constant 11 : index
    %c0_387 = arith.constant 0 : index
    %1160 = vector.load %arg3[%c11_386, %c0_387] : memref<32x256xf32, #tpu.memory_space<vmem>>, vector<1x256xf32>
    %1161 = vector.broadcast %1160 : vector<1x256xf32> to vector<8x256xf32>
    %1162 = arith.mulf %1159, %1161 : vector<8x256xf32>
    %1163 = vector.extract_strided_slice %1066 {offsets = [0, 11], sizes = [8, 1], strides = [1, 1]} : vector<8x25xf32> to vector<8x1xf32>
    %1164 = vector.broadcast %1163 : vector<8x1xf32> to vector<8x256xf32>
    %1165 = arith.mulf %1162, %1164 : vector<8x256xf32>
    %1166 = arith.addf %1150, %1165 : vector<8x256xf32>
    %c12_388 = arith.constant 12 : index
    %c0_389 = arith.constant 0 : index
    %1167 = vector.load %arg3[%c12_388, %c0_389] : memref<32x256xf32, #tpu.memory_space<vmem>>, vector<1x256xf32>
    %1168 = vector.broadcast %1167 : vector<1x256xf32> to vector<8x256xf32>
    %1169 = arith.mulf %1068, %1168 : vector<8x256xf32>
    %1170 = vector.extract_strided_slice %1066 {offsets = [0, 12], sizes = [8, 1], strides = [1, 1]} : vector<8x25xf32> to vector<8x1xf32>
    %1171 = vector.broadcast %1170 : vector<8x1xf32> to vector<8x256xf32>
    %1172 = arith.mulf %1169, %1171 : vector<8x256xf32>
    %1173 = arith.addf %1158, %1172 : vector<8x256xf32>
    %c255_i32_390 = arith.constant 255 : i32
    %1174 = tpu.dynamic_rotate %1068 by %c255_i32_390 dim 1 : vector<8x256xf32>, i32 -> vector<8x256xf32>
    %c13_391 = arith.constant 13 : index
    %c0_392 = arith.constant 0 : index
    %1175 = vector.load %arg3[%c13_391, %c0_392] : memref<32x256xf32, #tpu.memory_space<vmem>>, vector<1x256xf32>
    %1176 = vector.broadcast %1175 : vector<1x256xf32> to vector<8x256xf32>
    %1177 = arith.mulf %1174, %1176 : vector<8x256xf32>
    %1178 = vector.extract_strided_slice %1066 {offsets = [0, 13], sizes = [8, 1], strides = [1, 1]} : vector<8x25xf32> to vector<8x1xf32>
    %1179 = vector.broadcast %1178 : vector<8x1xf32> to vector<8x256xf32>
    %1180 = arith.mulf %1177, %1179 : vector<8x256xf32>
    %1181 = arith.addf %1166, %1180 : vector<8x256xf32>
    %c254_i32_393 = arith.constant 254 : i32
    %1182 = tpu.dynamic_rotate %1068 by %c254_i32_393 dim 1 : vector<8x256xf32>, i32 -> vector<8x256xf32>
    %c14_394 = arith.constant 14 : index
    %c0_395 = arith.constant 0 : index
    %1183 = vector.load %arg3[%c14_394, %c0_395] : memref<32x256xf32, #tpu.memory_space<vmem>>, vector<1x256xf32>
    %1184 = vector.broadcast %1183 : vector<1x256xf32> to vector<8x256xf32>
    %1185 = arith.mulf %1182, %1184 : vector<8x256xf32>
    %1186 = vector.extract_strided_slice %1066 {offsets = [0, 14], sizes = [8, 1], strides = [1, 1]} : vector<8x25xf32> to vector<8x1xf32>
    %1187 = vector.broadcast %1186 : vector<8x1xf32> to vector<8x256xf32>
    %1188 = arith.mulf %1185, %1187 : vector<8x256xf32>
    %1189 = arith.addf %1173, %1188 : vector<8x256xf32>
    %c242_i32_396 = arith.constant 242 : i32
    %1190 = tpu.dynamic_rotate %1068 by %c242_i32_396 dim 1 : vector<8x256xf32>, i32 -> vector<8x256xf32>
    %c15_397 = arith.constant 15 : index
    %c0_398 = arith.constant 0 : index
    %1191 = vector.load %arg3[%c15_397, %c0_398] : memref<32x256xf32, #tpu.memory_space<vmem>>, vector<1x256xf32>
    %1192 = vector.broadcast %1191 : vector<1x256xf32> to vector<8x256xf32>
    %1193 = arith.mulf %1190, %1192 : vector<8x256xf32>
    %1194 = vector.extract_strided_slice %1066 {offsets = [0, 15], sizes = [8, 1], strides = [1, 1]} : vector<8x25xf32> to vector<8x1xf32>
    %1195 = vector.broadcast %1194 : vector<8x1xf32> to vector<8x256xf32>
    %1196 = arith.mulf %1193, %1195 : vector<8x256xf32>
    %1197 = arith.addf %1181, %1196 : vector<8x256xf32>
    %c241_i32_399 = arith.constant 241 : i32
    %1198 = tpu.dynamic_rotate %1068 by %c241_i32_399 dim 1 : vector<8x256xf32>, i32 -> vector<8x256xf32>
    %c16_400 = arith.constant 16 : index
    %c0_401 = arith.constant 0 : index
    %1199 = vector.load %arg3[%c16_400, %c0_401] : memref<32x256xf32, #tpu.memory_space<vmem>>, vector<1x256xf32>
    %1200 = vector.broadcast %1199 : vector<1x256xf32> to vector<8x256xf32>
    %1201 = arith.mulf %1198, %1200 : vector<8x256xf32>
    %1202 = vector.extract_strided_slice %1066 {offsets = [0, 16], sizes = [8, 1], strides = [1, 1]} : vector<8x25xf32> to vector<8x1xf32>
    %1203 = vector.broadcast %1202 : vector<8x1xf32> to vector<8x256xf32>
    %1204 = arith.mulf %1201, %1203 : vector<8x256xf32>
    %1205 = arith.addf %1189, %1204 : vector<8x256xf32>
    %c240_i32_402 = arith.constant 240 : i32
    %1206 = tpu.dynamic_rotate %1068 by %c240_i32_402 dim 1 : vector<8x256xf32>, i32 -> vector<8x256xf32>
    %c17_403 = arith.constant 17 : index
    %c0_404 = arith.constant 0 : index
    %1207 = vector.load %arg3[%c17_403, %c0_404] : memref<32x256xf32, #tpu.memory_space<vmem>>, vector<1x256xf32>
    %1208 = vector.broadcast %1207 : vector<1x256xf32> to vector<8x256xf32>
    %1209 = arith.mulf %1206, %1208 : vector<8x256xf32>
    %1210 = vector.extract_strided_slice %1066 {offsets = [0, 17], sizes = [8, 1], strides = [1, 1]} : vector<8x25xf32> to vector<8x1xf32>
    %1211 = vector.broadcast %1210 : vector<8x1xf32> to vector<8x256xf32>
    %1212 = arith.mulf %1209, %1211 : vector<8x256xf32>
    %1213 = arith.addf %1197, %1212 : vector<8x256xf32>
    %c239_i32_405 = arith.constant 239 : i32
    %1214 = tpu.dynamic_rotate %1068 by %c239_i32_405 dim 1 : vector<8x256xf32>, i32 -> vector<8x256xf32>
    %c18_406 = arith.constant 18 : index
    %c0_407 = arith.constant 0 : index
    %1215 = vector.load %arg3[%c18_406, %c0_407] : memref<32x256xf32, #tpu.memory_space<vmem>>, vector<1x256xf32>
    %1216 = vector.broadcast %1215 : vector<1x256xf32> to vector<8x256xf32>
    %1217 = arith.mulf %1214, %1216 : vector<8x256xf32>
    %1218 = vector.extract_strided_slice %1066 {offsets = [0, 18], sizes = [8, 1], strides = [1, 1]} : vector<8x25xf32> to vector<8x1xf32>
    %1219 = vector.broadcast %1218 : vector<8x1xf32> to vector<8x256xf32>
    %1220 = arith.mulf %1217, %1219 : vector<8x256xf32>
    %1221 = arith.addf %1205, %1220 : vector<8x256xf32>
    %c238_i32_408 = arith.constant 238 : i32
    %1222 = tpu.dynamic_rotate %1068 by %c238_i32_408 dim 1 : vector<8x256xf32>, i32 -> vector<8x256xf32>
    %c19_409 = arith.constant 19 : index
    %c0_410 = arith.constant 0 : index
    %1223 = vector.load %arg3[%c19_409, %c0_410] : memref<32x256xf32, #tpu.memory_space<vmem>>, vector<1x256xf32>
    %1224 = vector.broadcast %1223 : vector<1x256xf32> to vector<8x256xf32>
    %1225 = arith.mulf %1222, %1224 : vector<8x256xf32>
    %1226 = vector.extract_strided_slice %1066 {offsets = [0, 19], sizes = [8, 1], strides = [1, 1]} : vector<8x25xf32> to vector<8x1xf32>
    %1227 = vector.broadcast %1226 : vector<8x1xf32> to vector<8x256xf32>
    %1228 = arith.mulf %1225, %1227 : vector<8x256xf32>
    %1229 = arith.addf %1213, %1228 : vector<8x256xf32>
    %c226_i32_411 = arith.constant 226 : i32
    %1230 = tpu.dynamic_rotate %1068 by %c226_i32_411 dim 1 : vector<8x256xf32>, i32 -> vector<8x256xf32>
    %c20_412 = arith.constant 20 : index
    %c0_413 = arith.constant 0 : index
    %1231 = vector.load %arg3[%c20_412, %c0_413] : memref<32x256xf32, #tpu.memory_space<vmem>>, vector<1x256xf32>
    %1232 = vector.broadcast %1231 : vector<1x256xf32> to vector<8x256xf32>
    %1233 = arith.mulf %1230, %1232 : vector<8x256xf32>
    %1234 = vector.extract_strided_slice %1066 {offsets = [0, 20], sizes = [8, 1], strides = [1, 1]} : vector<8x25xf32> to vector<8x1xf32>
    %1235 = vector.broadcast %1234 : vector<8x1xf32> to vector<8x256xf32>
    %1236 = arith.mulf %1233, %1235 : vector<8x256xf32>
    %1237 = arith.addf %1221, %1236 : vector<8x256xf32>
    %c225_i32_414 = arith.constant 225 : i32
    %1238 = tpu.dynamic_rotate %1068 by %c225_i32_414 dim 1 : vector<8x256xf32>, i32 -> vector<8x256xf32>
    %c21_415 = arith.constant 21 : index
    %c0_416 = arith.constant 0 : index
    %1239 = vector.load %arg3[%c21_415, %c0_416] : memref<32x256xf32, #tpu.memory_space<vmem>>, vector<1x256xf32>
    %1240 = vector.broadcast %1239 : vector<1x256xf32> to vector<8x256xf32>
    %1241 = arith.mulf %1238, %1240 : vector<8x256xf32>
    %1242 = vector.extract_strided_slice %1066 {offsets = [0, 21], sizes = [8, 1], strides = [1, 1]} : vector<8x25xf32> to vector<8x1xf32>
    %1243 = vector.broadcast %1242 : vector<8x1xf32> to vector<8x256xf32>
    %1244 = arith.mulf %1241, %1243 : vector<8x256xf32>
    %1245 = arith.addf %1229, %1244 : vector<8x256xf32>
    %c224_i32_417 = arith.constant 224 : i32
    %1246 = tpu.dynamic_rotate %1068 by %c224_i32_417 dim 1 : vector<8x256xf32>, i32 -> vector<8x256xf32>
    %c22_418 = arith.constant 22 : index
    %c0_419 = arith.constant 0 : index
    %1247 = vector.load %arg3[%c22_418, %c0_419] : memref<32x256xf32, #tpu.memory_space<vmem>>, vector<1x256xf32>
    %1248 = vector.broadcast %1247 : vector<1x256xf32> to vector<8x256xf32>
    %1249 = arith.mulf %1246, %1248 : vector<8x256xf32>
    %1250 = vector.extract_strided_slice %1066 {offsets = [0, 22], sizes = [8, 1], strides = [1, 1]} : vector<8x25xf32> to vector<8x1xf32>
    %1251 = vector.broadcast %1250 : vector<8x1xf32> to vector<8x256xf32>
    %1252 = arith.mulf %1249, %1251 : vector<8x256xf32>
    %1253 = arith.addf %1237, %1252 : vector<8x256xf32>
    %c223_i32_420 = arith.constant 223 : i32
    %1254 = tpu.dynamic_rotate %1068 by %c223_i32_420 dim 1 : vector<8x256xf32>, i32 -> vector<8x256xf32>
    %c23_421 = arith.constant 23 : index
    %c0_422 = arith.constant 0 : index
    %1255 = vector.load %arg3[%c23_421, %c0_422] : memref<32x256xf32, #tpu.memory_space<vmem>>, vector<1x256xf32>
    %1256 = vector.broadcast %1255 : vector<1x256xf32> to vector<8x256xf32>
    %1257 = arith.mulf %1254, %1256 : vector<8x256xf32>
    %1258 = vector.extract_strided_slice %1066 {offsets = [0, 23], sizes = [8, 1], strides = [1, 1]} : vector<8x25xf32> to vector<8x1xf32>
    %1259 = vector.broadcast %1258 : vector<8x1xf32> to vector<8x256xf32>
    %1260 = arith.mulf %1257, %1259 : vector<8x256xf32>
    %1261 = arith.addf %1245, %1260 : vector<8x256xf32>
    %c222_i32_423 = arith.constant 222 : i32
    %1262 = tpu.dynamic_rotate %1068 by %c222_i32_423 dim 1 : vector<8x256xf32>, i32 -> vector<8x256xf32>
    %c24_424 = arith.constant 24 : index
    %c0_425 = arith.constant 0 : index
    %1263 = vector.load %arg3[%c24_424, %c0_425] : memref<32x256xf32, #tpu.memory_space<vmem>>, vector<1x256xf32>
    %1264 = vector.broadcast %1263 : vector<1x256xf32> to vector<8x256xf32>
    %1265 = arith.mulf %1262, %1264 : vector<8x256xf32>
    %1266 = vector.extract_strided_slice %1066 {offsets = [0, 24], sizes = [8, 1], strides = [1, 1]} : vector<8x25xf32> to vector<8x1xf32>
    %1267 = vector.broadcast %1266 : vector<8x1xf32> to vector<8x256xf32>
    %1268 = arith.mulf %1265, %1267 : vector<8x256xf32>
    %1269 = arith.addf %1253, %1268 : vector<8x256xf32>
    %1270 = arith.addf %1269, %1261 : vector<8x256xf32>
    %c208 = arith.constant 208 : index
    %c0_426 = arith.constant 0 : index
    %1271 = vector.load %arg4[%c208, %c0_426] : memref<272x128xf32, #tpu.memory_space<vmem>>, vector<8x8xf32>
    %c216 = arith.constant 216 : index
    %c0_427 = arith.constant 0 : index
    %1272 = vector.load %arg4[%c216, %c0_427] : memref<272x128xf32, #tpu.memory_space<vmem>>, vector<8x1xf32>
    %cst_428 = arith.constant dense<0.000000e+00> : vector<8x256xf32>
    %1273 = tpu.matmul %1271, %1270, %cst_428 {dimension_numbers = #tpu.dot_dimension_numbers<[1], [0], [0], [1], [0, 0, 1, 1], [], []>} : vector<8x8xf32>, vector<8x256xf32>, vector<8x256xf32> -> vector<8x256xf32>
    %1274 = vector.broadcast %1272 : vector<8x1xf32> to vector<8x256xf32>
    %1275 = arith.addf %1273, %1274 : vector<8x256xf32>
    %c232 = arith.constant 232 : index
    %c0_429 = arith.constant 0 : index
    %1276 = vector.load %arg4[%c232, %c0_429] : memref<272x128xf32, #tpu.memory_space<vmem>>, vector<8x8xf32>
    %c240 = arith.constant 240 : index
    %c0_430 = arith.constant 0 : index
    %1277 = vector.load %arg4[%c240, %c0_430] : memref<272x128xf32, #tpu.memory_space<vmem>>, vector<8x1xf32>
    %cst_431 = arith.constant dense<0.000000e+00> : vector<8x256xf32>
    %1278 = tpu.matmul %1276, %589, %cst_431 {dimension_numbers = #tpu.dot_dimension_numbers<[1], [0], [0], [1], [0, 0, 1, 1], [], []>} : vector<8x8xf32>, vector<8x256xf32>, vector<8x256xf32> -> vector<8x256xf32>
    %1279 = vector.broadcast %1277 : vector<8x1xf32> to vector<8x256xf32>
    %1280 = arith.addf %1278, %1279 : vector<8x256xf32>
    %c248 = arith.constant 248 : index
    %c0_432 = arith.constant 0 : index
    %1281 = vector.load %arg4[%c248, %c0_432] : memref<272x128xf32, #tpu.memory_space<vmem>>, vector<8x9xf32>
    %cst_433 = arith.constant 0.000000e+00 : f32
    %1282 = vector.broadcast %cst_433 : f32 to vector<8x256xf32>
    %1283 = arith.maximumf %1280, %1282 : vector<8x256xf32>
    %cst_434 = arith.constant 0.000000e+00 : f32
    %1284 = vector.broadcast %cst_434 : f32 to vector<8x256xf32>
    %cst_435 = arith.constant 0.000000e+00 : f32
    %1285 = vector.broadcast %cst_435 : f32 to vector<8x256xf32>
    %c17_i32_436 = arith.constant 17 : i32
    %1286 = tpu.dynamic_rotate %1283 by %c17_i32_436 dim 1 : vector<8x256xf32>, i32 -> vector<8x256xf32>
    %c6_437 = arith.constant 6 : index
    %c0_438 = arith.constant 0 : index
    %1287 = vector.load %arg3[%c6_437, %c0_438] : memref<32x256xf32, #tpu.memory_space<vmem>>, vector<1x256xf32>
    %1288 = vector.broadcast %1287 : vector<1x256xf32> to vector<8x256xf32>
    %1289 = arith.mulf %1286, %1288 : vector<8x256xf32>
    %1290 = vector.extract_strided_slice %1281 {offsets = [0, 0], sizes = [8, 1], strides = [1, 1]} : vector<8x9xf32> to vector<8x1xf32>
    %1291 = vector.broadcast %1290 : vector<8x1xf32> to vector<8x256xf32>
    %1292 = arith.mulf %1289, %1291 : vector<8x256xf32>
    %1293 = arith.addf %1284, %1292 : vector<8x256xf32>
    %c16_i32_439 = arith.constant 16 : i32
    %1294 = tpu.dynamic_rotate %1283 by %c16_i32_439 dim 1 : vector<8x256xf32>, i32 -> vector<8x256xf32>
    %c7_440 = arith.constant 7 : index
    %c0_441 = arith.constant 0 : index
    %1295 = vector.load %arg3[%c7_440, %c0_441] : memref<32x256xf32, #tpu.memory_space<vmem>>, vector<1x256xf32>
    %1296 = vector.broadcast %1295 : vector<1x256xf32> to vector<8x256xf32>
    %1297 = arith.mulf %1294, %1296 : vector<8x256xf32>
    %1298 = vector.extract_strided_slice %1281 {offsets = [0, 1], sizes = [8, 1], strides = [1, 1]} : vector<8x9xf32> to vector<8x1xf32>
    %1299 = vector.broadcast %1298 : vector<8x1xf32> to vector<8x256xf32>
    %1300 = arith.mulf %1297, %1299 : vector<8x256xf32>
    %1301 = arith.addf %1285, %1300 : vector<8x256xf32>
    %c15_i32_442 = arith.constant 15 : i32
    %1302 = tpu.dynamic_rotate %1283 by %c15_i32_442 dim 1 : vector<8x256xf32>, i32 -> vector<8x256xf32>
    %c8_443 = arith.constant 8 : index
    %c0_444 = arith.constant 0 : index
    %1303 = vector.load %arg3[%c8_443, %c0_444] : memref<32x256xf32, #tpu.memory_space<vmem>>, vector<1x256xf32>
    %1304 = vector.broadcast %1303 : vector<1x256xf32> to vector<8x256xf32>
    %1305 = arith.mulf %1302, %1304 : vector<8x256xf32>
    %1306 = vector.extract_strided_slice %1281 {offsets = [0, 2], sizes = [8, 1], strides = [1, 1]} : vector<8x9xf32> to vector<8x1xf32>
    %1307 = vector.broadcast %1306 : vector<8x1xf32> to vector<8x256xf32>
    %1308 = arith.mulf %1305, %1307 : vector<8x256xf32>
    %1309 = arith.addf %1293, %1308 : vector<8x256xf32>
    %c1_i32_445 = arith.constant 1 : i32
    %1310 = tpu.dynamic_rotate %1283 by %c1_i32_445 dim 1 : vector<8x256xf32>, i32 -> vector<8x256xf32>
    %c11_446 = arith.constant 11 : index
    %c0_447 = arith.constant 0 : index
    %1311 = vector.load %arg3[%c11_446, %c0_447] : memref<32x256xf32, #tpu.memory_space<vmem>>, vector<1x256xf32>
    %1312 = vector.broadcast %1311 : vector<1x256xf32> to vector<8x256xf32>
    %1313 = arith.mulf %1310, %1312 : vector<8x256xf32>
    %1314 = vector.extract_strided_slice %1281 {offsets = [0, 3], sizes = [8, 1], strides = [1, 1]} : vector<8x9xf32> to vector<8x1xf32>
    %1315 = vector.broadcast %1314 : vector<8x1xf32> to vector<8x256xf32>
    %1316 = arith.mulf %1313, %1315 : vector<8x256xf32>
    %1317 = arith.addf %1301, %1316 : vector<8x256xf32>
    %c12_448 = arith.constant 12 : index
    %c0_449 = arith.constant 0 : index
    %1318 = vector.load %arg3[%c12_448, %c0_449] : memref<32x256xf32, #tpu.memory_space<vmem>>, vector<1x256xf32>
    %1319 = vector.broadcast %1318 : vector<1x256xf32> to vector<8x256xf32>
    %1320 = arith.mulf %1283, %1319 : vector<8x256xf32>
    %1321 = vector.extract_strided_slice %1281 {offsets = [0, 4], sizes = [8, 1], strides = [1, 1]} : vector<8x9xf32> to vector<8x1xf32>
    %1322 = vector.broadcast %1321 : vector<8x1xf32> to vector<8x256xf32>
    %1323 = arith.mulf %1320, %1322 : vector<8x256xf32>
    %1324 = arith.addf %1309, %1323 : vector<8x256xf32>
    %c255_i32_450 = arith.constant 255 : i32
    %1325 = tpu.dynamic_rotate %1283 by %c255_i32_450 dim 1 : vector<8x256xf32>, i32 -> vector<8x256xf32>
    %c13_451 = arith.constant 13 : index
    %c0_452 = arith.constant 0 : index
    %1326 = vector.load %arg3[%c13_451, %c0_452] : memref<32x256xf32, #tpu.memory_space<vmem>>, vector<1x256xf32>
    %1327 = vector.broadcast %1326 : vector<1x256xf32> to vector<8x256xf32>
    %1328 = arith.mulf %1325, %1327 : vector<8x256xf32>
    %1329 = vector.extract_strided_slice %1281 {offsets = [0, 5], sizes = [8, 1], strides = [1, 1]} : vector<8x9xf32> to vector<8x1xf32>
    %1330 = vector.broadcast %1329 : vector<8x1xf32> to vector<8x256xf32>
    %1331 = arith.mulf %1328, %1330 : vector<8x256xf32>
    %1332 = arith.addf %1317, %1331 : vector<8x256xf32>
    %c241_i32_453 = arith.constant 241 : i32
    %1333 = tpu.dynamic_rotate %1283 by %c241_i32_453 dim 1 : vector<8x256xf32>, i32 -> vector<8x256xf32>
    %c16_454 = arith.constant 16 : index
    %c0_455 = arith.constant 0 : index
    %1334 = vector.load %arg3[%c16_454, %c0_455] : memref<32x256xf32, #tpu.memory_space<vmem>>, vector<1x256xf32>
    %1335 = vector.broadcast %1334 : vector<1x256xf32> to vector<8x256xf32>
    %1336 = arith.mulf %1333, %1335 : vector<8x256xf32>
    %1337 = vector.extract_strided_slice %1281 {offsets = [0, 6], sizes = [8, 1], strides = [1, 1]} : vector<8x9xf32> to vector<8x1xf32>
    %1338 = vector.broadcast %1337 : vector<8x1xf32> to vector<8x256xf32>
    %1339 = arith.mulf %1336, %1338 : vector<8x256xf32>
    %1340 = arith.addf %1324, %1339 : vector<8x256xf32>
    %c240_i32_456 = arith.constant 240 : i32
    %1341 = tpu.dynamic_rotate %1283 by %c240_i32_456 dim 1 : vector<8x256xf32>, i32 -> vector<8x256xf32>
    %c17_457 = arith.constant 17 : index
    %c0_458 = arith.constant 0 : index
    %1342 = vector.load %arg3[%c17_457, %c0_458] : memref<32x256xf32, #tpu.memory_space<vmem>>, vector<1x256xf32>
    %1343 = vector.broadcast %1342 : vector<1x256xf32> to vector<8x256xf32>
    %1344 = arith.mulf %1341, %1343 : vector<8x256xf32>
    %1345 = vector.extract_strided_slice %1281 {offsets = [0, 7], sizes = [8, 1], strides = [1, 1]} : vector<8x9xf32> to vector<8x1xf32>
    %1346 = vector.broadcast %1345 : vector<8x1xf32> to vector<8x256xf32>
    %1347 = arith.mulf %1344, %1346 : vector<8x256xf32>
    %1348 = arith.addf %1332, %1347 : vector<8x256xf32>
    %c239_i32_459 = arith.constant 239 : i32
    %1349 = tpu.dynamic_rotate %1283 by %c239_i32_459 dim 1 : vector<8x256xf32>, i32 -> vector<8x256xf32>
    %c18_460 = arith.constant 18 : index
    %c0_461 = arith.constant 0 : index
    %1350 = vector.load %arg3[%c18_460, %c0_461] : memref<32x256xf32, #tpu.memory_space<vmem>>, vector<1x256xf32>
    %1351 = vector.broadcast %1350 : vector<1x256xf32> to vector<8x256xf32>
    %1352 = arith.mulf %1349, %1351 : vector<8x256xf32>
    %1353 = vector.extract_strided_slice %1281 {offsets = [0, 8], sizes = [8, 1], strides = [1, 1]} : vector<8x9xf32> to vector<8x1xf32>
    %1354 = vector.broadcast %1353 : vector<8x1xf32> to vector<8x256xf32>
    %1355 = arith.mulf %1352, %1354 : vector<8x256xf32>
    %1356 = arith.addf %1340, %1355 : vector<8x256xf32>
    %1357 = arith.addf %1356, %1348 : vector<8x256xf32>
    %c256 = arith.constant 256 : index
    %c0_462 = arith.constant 0 : index
    %1358 = vector.load %arg4[%c256, %c0_462] : memref<272x128xf32, #tpu.memory_space<vmem>>, vector<8x8xf32>
    %c264 = arith.constant 264 : index
    %c0_463 = arith.constant 0 : index
    %1359 = vector.load %arg4[%c264, %c0_463] : memref<272x128xf32, #tpu.memory_space<vmem>>, vector<8x1xf32>
    %cst_464 = arith.constant dense<0.000000e+00> : vector<8x256xf32>
    %1360 = tpu.matmul %1358, %1357, %cst_464 {dimension_numbers = #tpu.dot_dimension_numbers<[1], [0], [0], [1], [0, 0, 1, 1], [], []>} : vector<8x8xf32>, vector<8x256xf32>, vector<8x256xf32> -> vector<8x256xf32>
    %1361 = vector.broadcast %1359 : vector<8x1xf32> to vector<8x256xf32>
    %1362 = arith.addf %1360, %1361 : vector<8x256xf32>
    %1363 = arith.addf %1275, %1362 : vector<8x256xf32>
    %c0_465 = arith.constant 0 : index
    %c40_466 = arith.constant 40 : index
    %c0_467 = arith.constant 0 : index
    %1364 = vector.load %arg5[%c0_465, %c40_466, %c0_467] : memref<1x48x256xf32, #tpu.memory_space<vmem>>, vector<1x8x256xf32>
    %1365 = vector.shape_cast %1364 : vector<1x8x256xf32> to vector<8x256xf32>
    %1366 = vector.shape_cast %1363 : vector<8x256xf32> to vector<1x8x256xf32>
    tpu.vector_store %arg5[%c0_465, %c40_466, %c0_467], %1366 {strides = array<i32>} : memref<1x48x256xf32, #tpu.memory_space<vmem>>, vector<1x8x256xf32>,
    return
  }
  func.func @transform_0(%arg0: i32) -> (i32, i32, i32) {
    %c0_i32 = arith.constant 0 : i32
    %c0_i32_0 = arith.constant 0 : i32
    %c0_i32_1 = arith.constant 0 : i32
    return %arg0, %c0_i32, %c0_i32_0 : i32, i32, i32
  }
  func.func @transform_1(%arg0: i32) -> (i32, i32, i32) {
    %c0_i32 = arith.constant 0 : i32
    %c0_i32_0 = arith.constant 0 : i32
    %c0_i32_1 = arith.constant 0 : i32
    return %arg0, %c0_i32, %c0_i32_0 : i32, i32, i32
  }
  func.func @transform_2(%arg0: i32) -> (i32, i32) {
    %c0_i32 = arith.constant 0 : i32
    %c0_i32_0 = arith.constant 0 : i32
    %c0_i32_1 = arith.constant 0 : i32
    return %c0_i32, %c0_i32_0 : i32, i32
  }
  func.func @transform_3(%arg0: i32) -> (i32, i32) {
    %c0_i32 = arith.constant 0 : i32
    %c0_i32_0 = arith.constant 0 : i32
    %c0_i32_1 = arith.constant 0 : i32
    return %c0_i32, %c0_i32_0 : i32, i32
  }
  func.func @transform_4(%arg0: i32) -> (i32, i32, i32) {
    %c0_i32 = arith.constant 0 : i32
    %c0_i32_0 = arith.constant 0 : i32
    %c0_i32_1 = arith.constant 0 : i32
    return %arg0, %c0_i32, %c0_i32_0 : i32, i32, i32
  }
}

</mosaic_0001>

<llo_original>
// kernel: normal_cell_forward.1
$region0: #{normal_cell_forward.1}
  #allocation0 [shape = 'u32[]', space=smem, size = 0x4, offset = 0x4, fixed_abs, tag = 'smem constant byte address 0x4 - core index']
  #allocation1 [shape = 'u32[144,128]{1,0:T(1,128)}', space=vmem, size = 0x12000, scoped, tag = 'internal scratch']
  %s0 = inlined_call_operand.vmem [shape: f32[2,8,256], index: 0, kind: input, shape index: {}]
  %s1 = inlined_call_operand.vmem [shape: f32[2,8,256], index: 1, kind: input, shape index: {}]
  %s2 = inlined_call_operand.vmem [shape: f32[32,256], index: 2, kind: input, shape index: {}]
  %s3 = inlined_call_operand.vmem [shape: f32[272,128], index: 3, kind: input, shape index: {}]
  %s4 = inlined_call_operand.vmem [shape: f32[2,48,256], index: 4, kind: output, shape index: {}]
  %s5 = sld [smem:[#allocation0]]
  $region49: #{normal_cell_forward.1} parent=0
    _
  %s7 = ssub.s32 1, %s5
  %s8 = scalar_select 0, %s7, %s5
  loop: start=0, step=1, limit=4
  $region2: #{normal_cell_forward.1} parent=0 // loop_pre_header
    _
  $region3: #{normal_cell_forward.1} parent=0 // loop_header
    %s10 = sphi 0, %s14
    %p11 = scmp.ge.s32.totalorder %s10, 4
    %s20 = sphi 0, %s22
    %s23 = sphi 0, %s20
    %s24 = sphi 0, %s23
    %s40 = sphi 0, %s24
    %s46 = sphi 0, %s48
    %s49 = sphi 0, %s46
    %s50 = sphi 0, %s49
    %s66 = sphi 0, %s50
    %s70 = sphi 0, %s70
    %s72 = sphi 0, %s70
    %s73 = sphi 0, %s72
    %s87 = sphi 0, %s73
    %s91 = sphi 0, %s91
    %s93 = sphi 0, %s91
    %s94 = sphi 0, %s93
    %s108 = sphi 0, %s94
    %s114 = sphi 0, %s116
    %s117 = sphi 0, %s114
    %s118 = sphi 0, %s117
    %s134 = sphi 0, %s118
  $region4: #{normal_cell_forward.1} parent=0 // loop_header_branch
    %13 = sbr.rel (%p11) target = $region8
  $region5: #{normal_cell_forward.1} parent=0 // loop_body
    %s15 = ssub.s32 %s10, 1
    %s16 = ssub.s32 %s10, 2
    %s17 = sadd.s32 %s10, 1
    %s18 = ssub.s32 %s10, %s17
    %p19 = scmp.eq.s32.totalorder %s18, 0
    %s21 = sadd.s32 %s20, 1
    %s22 = scalar_select %p19, %s20, %s21
    %p25 = pneg %p19
    %p26 = scmp.eq.s32.totalorder %s10, 1
    %p27 = por %p25, %p26
    %p28 = scmp.ne.s32.totalorder %s20, %s23
    %p29 = scmp.eq.s32.totalorder %s10, 0
    %p30 = por %p28, %p29
    %p31 = scmp.ne.s32.totalorder %s20, %s23
    %p32 = scmp.eq.s32.totalorder %s15, 1
    %p33 = por %p31, %p32
    %p34 = scmp.ne.s32.totalorder %s23, %s24
    %p35 = scmp.eq.s32.totalorder %s15, 0
    %p36 = por %p34, %p35
    %p37 = scmp.ne.s32.totalorder %s23, %s24
    %p38 = scmp.eq.s32.totalorder %s16, 1
    %p39 = por %p37, %p38
    %p41 = scmp.ne.s32.totalorder %s24, %s40
    %p42 = scmp.eq.s32.totalorder %s16, 0
    %p43 = por %p41, %p42
    %s44 = ssub.s32 %s10, %s17
    %p45 = scmp.eq.s32.totalorder %s44, 0
    %s47 = sadd.s32 %s46, 1
    %s48 = scalar_select %p45, %s46, %s47
    %p51 = pneg %p45
    %p52 = scmp.eq.s32.totalorder %s10, 1
    %p53 = por %p51, %p52
    %p54 = scmp.ne.s32.totalorder %s46, %s49
    %p55 = scmp.eq.s32.totalorder %s10, 0
    %p56 = por %p54, %p55
    %p57 = scmp.ne.s32.totalorder %s46, %s49
    %p58 = scmp.eq.s32.totalorder %s15, 1
    %p59 = por %p57, %p58
    %p60 = scmp.ne.s32.totalorder %s49, %s50
    %p61 = scmp.eq.s32.totalorder %s15, 0
    %p62 = por %p60, %p61
    %p63 = scmp.ne.s32.totalorder %s49, %s50
    %p64 = scmp.eq.s32.totalorder %s16, 1
    %p65 = por %p63, %p64
    %p67 = scmp.ne.s32.totalorder %s50, %s66
    %p68 = scmp.eq.s32.totalorder %s16, 0
    %p69 = por %p67, %p68
    %s71 = sadd.s32 %s70, 1
    %p74 = scmp.eq.s32.totalorder %s10, 1
    %p75 = scmp.ne.s32.totalorder %s70, %s72
    %p76 = scmp.eq.s32.totalorder %s10, 0
    %p77 = por %p75, %p76
    %p78 = scmp.ne.s32.totalorder %s70, %s72
    %p79 = scmp.eq.s32.totalorder %s15, 1
    %p80 = por %p78, %p79
    %p81 = scmp.ne.s32.totalorder %s72, %s73
    %p82 = scmp.eq.s32.totalorder %s15, 0
    %p83 = por %p81, %p82
    %p84 = scmp.ne.s32.totalorder %s72, %s73
    %p85 = scmp.eq.s32.totalorder %s16, 1
    %p86 = por %p84, %p85
    %p88 = scmp.ne.s32.totalorder %s73, %s87
    %p89 = scmp.eq.s32.totalorder %s16, 0
    %p90 = por %p88, %p89
    %s92 = sadd.s32 %s91, 1
    %p95 = scmp.eq.s32.totalorder %s10, 1
    %p96 = scmp.ne.s32.totalorder %s91, %s93
    %p97 = scmp.eq.s32.totalorder %s10, 0
    %p98 = por %p96, %p97
    %p99 = scmp.ne.s32.totalorder %s91, %s93
    %p100 = scmp.eq.s32.totalorder %s15, 1
    %p101 = por %p99, %p100
    %p102 = scmp.ne.s32.totalorder %s93, %s94
    %p103 = scmp.eq.s32.totalorder %s15, 0
    %p104 = por %p102, %p103
    %p105 = scmp.ne.s32.totalorder %s93, %s94
    %p106 = scmp.eq.s32.totalorder %s16, 1
    %p107 = por %p105, %p106
    %p109 = scmp.ne.s32.totalorder %s94, %s108
    %p110 = scmp.eq.s32.totalorder %s16, 0
    %p111 = por %p109, %p110
    %s112 = ssub.s32 %s10, %s17
    %p113 = scmp.eq.s32.totalorder %s112, 0
    %s115 = sadd.s32 %s114, 1
    %s116 = scalar_select %p113, %s114, %s115
    %p119 = pneg %p113
    %p120 = scmp.eq.s32.totalorder %s10, 1
    %p121 = por %p119, %p120
    %p122 = scmp.ne.s32.totalorder %s114, %s117
    %p123 = scmp.eq.s32.totalorder %s10, 0
    %p124 = por %p122, %p123
    %p125 = scmp.ne.s32.totalorder %s114, %s117
    %p126 = scmp.eq.s32.totalorder %s15, 1
    %p127 = por %p125, %p126
    %p128 = scmp.ne.s32.totalorder %s117, %s118
    %p129 = scmp.eq.s32.totalorder %s15, 0
    %p130 = por %p128, %p129
    %p131 = scmp.ne.s32.totalorder %s117, %s118
    %p132 = scmp.eq.s32.totalorder %s16, 1
    %p133 = por %p131, %p132
    %p135 = scmp.ne.s32.totalorder %s118, %s134
    %p136 = scmp.eq.s32.totalorder %s16, 0
    %p137 = por %p135, %p136
    %p138 = scmp.le.s32.totalorder 1, %s10
    %p139 = scmp.lt.s32.totalorder %s10, 3
    %p140 = pnand %p138, %p139
    %p141 = pneg %p140
    // Predicated region
    $region9: #{normal_cell_forward.1} parent=5 // pred_check
      _
    $region10: #{normal_cell_forward.1} parent=5 // pred_check_branch
      %143 = sbr.rel (%p140) target = $region12
    $region11: #{normal_cell_forward.1} parent=5 // pred_region
      %s144 = ssub.s32 %s10, 1
      // Predicated region
      $region13: #{normal_cell_forward.1} parent=11 // pred_check
        %p145 = pneg %p83
      $region14: #{normal_cell_forward.1} parent=11 // pred_check_branch
        %147 = sbr.rel (%p145) target = $region16
      $region15: #{normal_cell_forward.1} parent=11 // pred_region
        _
      $region16: #{normal_cell_forward.1} parent=11 // pred_fallthru
        _
      // Predicated region
      $region17: #{normal_cell_forward.1} parent=11 // pred_check
        %p148 = pneg %p104
      $region18: #{normal_cell_forward.1} parent=11 // pred_check_branch
        %150 = sbr.rel (%p148) target = $region20
      $region19: #{normal_cell_forward.1} parent=11 // pred_region
        _
      $region20: #{normal_cell_forward.1} parent=11 // pred_fallthru
        _
    $region12: #{normal_cell_forward.1} parent=5 // pred_fallthru
      _
    %p151 = scmp.lt.s32.totalorder %s10, 2
    // Predicated region
    $region21: #{normal_cell_forward.1} parent=5 // pred_check
      %p152 = pneg %p151
    $region22: #{normal_cell_forward.1} parent=5 // pred_check_branch
      %154 = sbr.rel (%p152) target = $region24
    $region23: #{normal_cell_forward.1} parent=5 // pred_region
      // Predicated region
      $region25: #{normal_cell_forward.1} parent=23 // pred_check
        %p155 = pneg %p30
      $region26: #{normal_cell_forward.1} parent=23 // pred_check_branch
        %157 = sbr.rel (%p155) target = $region28
      $region27: #{normal_cell_forward.1} parent=23 // pred_region
        %p158 = scmp.lt.s32.totalorder %s10, 1
        %s159 = scalar_select %p158, %s10, 1
        %s160 = smul.addr %s159, 2
        %s161 = smul.addr %s160, 8
        %s162 = scalar_lea.vmem %s0, %s161
      $region28: #{normal_cell_forward.1} parent=23 // pred_fallthru
        _
      // Predicated region
      $region29: #{normal_cell_forward.1} parent=23 // pred_check
        %p163 = pneg %p56
      $region30: #{normal_cell_forward.1} parent=23 // pred_check_branch
        %165 = sbr.rel (%p163) target = $region32
      $region31: #{normal_cell_forward.1} parent=23 // pred_region
        %p166 = scmp.lt.s32.totalorder %s10, 1
        %s167 = scalar_select %p166, %s10, 1
        %s168 = smul.addr %s167, 2
        %s169 = smul.addr %s168, 8
        %s170 = scalar_lea.vmem %s1, %s169
      $region32: #{normal_cell_forward.1} parent=23 // pred_fallthru
        _
    $region24: #{normal_cell_forward.1} parent=5 // pred_fallthru
      _
    %p171 = scmp.le.s32.totalorder 1, %s10
    %p172 = scmp.lt.s32.totalorder %s10, 3
    %p173 = pnand %p171, %p172
    %p174 = pneg %p173
    // Predicated region
    $region33: #{normal_cell_forward.1} parent=5 // pred_check
      _
    $region34: #{normal_cell_forward.1} parent=5 // pred_check_branch
      %176 = sbr.rel (%p173) target = $region36
    $region35: #{normal_cell_forward.1} parent=5 // pred_region
      %s177 = ssub.s32 %s10, 1
      %p178 = scmp.lt.s32.totalorder %s15, 1
      %s179 = scalar_select %p178, %s15, 1
      %s180 = smul.addr %s179, 2
      %s181 = smul.addr %s180, 8
      %s182 = scalar_lea.vmem %s0, %s181
      %p183 = pneg %p36
      %p184 = pneg %p33
      %p185 = scmp.lt.s32.totalorder %s15, 1
      %s186 = scalar_select %p185, %s15, 1
      %s187 = smul.addr %s186, 2
      %s188 = smul.addr %s187, 8
      %s189 = scalar_lea.vmem %s1, %s188
      %p190 = pneg %p62
      %p191 = pneg %p59
      %p192 = pneg %p83
      %p193 = pneg %p80
      %p194 = pneg %p104
      %p195 = pneg %p101
      %p196 = pneg %p130
      %p197 = pneg %p127
      %p198 = scmp.lt.s32.totalorder %s15, 1
      %s199 = scalar_select %p198, %s15, 1
      %s200 = smul.addr %s199, 12
      %s201 = smul.addr %s200, 8
      %s202 = scalar_lea.vmem %s4, %s201
      %p203 = scmp.lt.s32.totalorder %s15, 1
      %s204 = scalar_select %p203, %s15, 1
      %s205 = smul.addr %s204, 2
      %s206 = smul.addr %s205, 8
      %s207 = scalar_lea.vmem %s0, %s206
      %p208 = scmp.lt.s32.totalorder %s15, 1
      %s209 = scalar_select %p208, %s15, 1
      %s210 = smul.addr %s209, 2
      %s211 = smul.addr %s210, 8
      %s212 = scalar_lea.vmem %s1, %s211
      %p213 = scmp.lt.s32.totalorder %s15, 1
      %s214 = scalar_select %p213, %s15, 1
      %s215 = smul.addr %s214, 12
      %s216 = smul.addr %s215, 8
      %s217 = scalar_lea.vmem %s4, %s216
      %v218 = vld [vmem:[%s207] sm:$0xff]
      %v219 = vld [vmem:[%s207 + $0x8] sm:$0xff]
      %v220 = vld [vmem:[%s212] sm:$0xff]
      %v221 = vld [vmem:[%s212 + $0x8] sm:$0xff]
      %v222 = vmax.f32 %v218, 0.0
      %v223 = vmax.f32 %v219, 0.0
      %v224 = vld [vmem:[%s3] sm:$0xff]
      %v225 = vld [vmem:[%s3 + $0x8] sm:$0xff]
      %227 = vset.pattern.permute.xlu0 0
      %228 = vperm.xlu0 %227, %v225
      %v229 = vpop.permute.xlu0 %228
      %vm231 = vcmask 64512
      %v233 = vsel %vm231, %v224, 0
      %235 = vmatprep.subr.mxu0 0.0
      %236 = vmatpush1.msra.mxu0 0.0
      %237 = vmatprep.subr.mxu0 0.0
      %238 = vmatpush1.msra.mxu0 0.0
      %239 = vmatprep.subr.mxu0 0.0
      %240 = vmatpush1.msra.mxu0 0.0
      %241 = vmatprep.subr.mxu0 0.0
      %242 = vmatpush1.msra.mxu0 0.0
      %243 = vmatprep.subr.mxu0 0.0
      %244 = vmatpush1.msra.mxu0 0.0
      %245 = vmatprep.subr.mxu0 0.0
      %246 = vmatpush1.msra.mxu0 0.0
      %247 = vmatprep.subr.mxu0 0.0
      %248 = vmatpush1.msra.mxu0 0.0
      %249 = vmatprep.subr.mxu0 0.0
      %250 = vmatpush1.msra.mxu0 0.0
      %251 = vmatprep.subr.mxu0 0.0
      %252 = vmatpush1.msra.mxu0 0.0
      %253 = vmatprep.subr.mxu0 0.0
      %254 = vmatpush1.msra.mxu0 0.0
      %255 = vmatprep.subr.mxu0 0.0
      %256 = vmatpush1.msra.mxu0 0.0
      %257 = vmatprep.subr.mxu0 0.0
      %258 = vmatpush1.msra.mxu0 0.0
      %259 = vmatprep.subr.mxu0 0.0
      %260 = vmatpush1.msra.mxu0 0.0
      %261 = vmatprep.subr.mxu0 0.0
      %262 = vmatpush1.msra.mxu0 0.0
      %263 = vmatprep.subr.mxu0 0.0
      %264 = vmatpush1.msra.mxu0 0.0
      %265 = vmatprep.subr.mxu0 %v223
      %266 = vmatpush1.msra.mxu0 %v222
      %267 = vmatprep.subr.mxu0 0.0
      %268 = vmatpush2.msra.mxu0 0.0
      %269 = vmatprep.subr.mxu0 0.0
      %270 = vmatpush2.msra.mxu0 0.0
      %271 = vmatprep.subr.mxu0 0.0
      %272 = vmatpush2.msra.mxu0 0.0
      %273 = vmatprep.subr.mxu0 0.0
      %274 = vmatpush2.msra.mxu0 0.0
      %275 = vmatprep.subr.mxu0 0.0
      %276 = vmatpush2.msra.mxu0 0.0
      %277 = vmatprep.subr.mxu0 0.0
      %278 = vmatpush2.msra.mxu0 0.0
      %279 = vmatprep.subr.mxu0 0.0
      %280 = vmatpush2.msra.mxu0 0.0
      %281 = vmatprep.subr.mxu0 0.0
      %282 = vmatpush2.msra.mxu0 0.0
      %283 = vmatprep.subr.mxu0 0.0
      %284 = vmatpush2.msra.mxu0 0.0
      %285 = vmatprep.subr.mxu0 0.0
      %286 = vmatpush2.msra.mxu0 0.0
      %287 = vmatprep.subr.mxu0 0.0
      %288 = vmatpush2.msra.mxu0 0.0
      %289 = vmatprep.subr.mxu0 0.0
      %290 = vmatpush2.msra.mxu0 0.0
      %291 = vmatprep.subr.mxu0 0.0
      %292 = vmatpush2.msra.mxu0 0.0
      %293 = vmatprep.subr.mxu0 0.0
      %294 = vmatpush2.msra.mxu0 0.0
      %295 = vmatprep.subr.mxu0 0.0
      %296 = vmatpush2.msra.mxu0 0.0
      %297 = vmatprep.subr.mxu0 0.0
      %298 = vmatpush2.msra.mxu0 0.0
      %299 = vmatprep.mubr.f32.mxu0 0.0
      %300 = vmatmul.mubr.f32.gmra.mxu0 %v233
      %v301 = vpop.f32.mrf.mxu0
      %v302 = vadd.f32 %v229, %v301
      %v303 = vpop.f32.mrf.mxu0
      %v304 = vadd.f32 %v229, %v303
      %305 = vdwg.mxu0
      %v306 = vmax.f32 %v220, 0.0
      %v307 = vmax.f32 %v221, 0.0
      %v308 = vld [vmem:[%s3 + $0x10] sm:$0xff]
      %v309 = vld [vmem:[%s3 + $0x18] sm:$0xff]
      %311 = vset.pattern.permute.xlu0 0
      %312 = vperm.xlu0 %311, %v309
      %v313 = vpop.permute.xlu0 %312
      %v316 = vsel %vm231, %v308, 0
      %318 = vmatprep.subr.mxu0 0.0
      %319 = vmatpush1.msra.mxu0 0.0
      %320 = vmatprep.subr.mxu0 0.0
      %321 = vmatpush1.msra.mxu0 0.0
      %322 = vmatprep.subr.mxu0 0.0
      %323 = vmatpush1.msra.mxu0 0.0
      %324 = vmatprep.subr.mxu0 0.0
      %325 = vmatpush1.msra.mxu0 0.0
      %326 = vmatprep.subr.mxu0 0.0
      %327 = vmatpush1.msra.mxu0 0.0
      %328 = vmatprep.subr.mxu0 0.0
      %329 = vmatpush1.msra.mxu0 0.0
      %330 = vmatprep.subr.mxu0 0.0
      %331 = vmatpush1.msra.mxu0 0.0
      %332 = vmatprep.subr.mxu0 0.0
      %333 = vmatpush1.msra.mxu0 0.0
      %334 = vmatprep.subr.mxu0 0.0
      %335 = vmatpush1.msra.mxu0 0.0
      %336 = vmatprep.subr.mxu0 0.0
      %337 = vmatpush1.msra.mxu0 0.0
      %338 = vmatprep.subr.mxu0 0.0
      %339 = vmatpush1.msra.mxu0 0.0
      %340 = vmatprep.subr.mxu0 0.0
      %341 = vmatpush1.msra.mxu0 0.0
      %342 = vmatprep.subr.mxu0 0.0
      %343 = vmatpush1.msra.mxu0 0.0
      %344 = vmatprep.subr.mxu0 0.0
      %345 = vmatpush1.msra.mxu0 0.0
      %346 = vmatprep.subr.mxu0 0.0
      %347 = vmatpush1.msra.mxu0 0.0
      %348 = vmatprep.subr.mxu0 %v307
      %349 = vmatpush1.msra.mxu0 %v306
      %350 = vmatprep.subr.mxu0 0.0
      %351 = vmatpush2.msra.mxu0 0.0
      %352 = vmatprep.subr.mxu0 0.0
      %353 = vmatpush2.msra.mxu0 0.0
      %354 = vmatprep.subr.mxu0 0.0
      %355 = vmatpush2.msra.mxu0 0.0
      %356 = vmatprep.subr.mxu0 0.0
      %357 = vmatpush2.msra.mxu0 0.0
      %358 = vmatprep.subr.mxu0 0.0
      %359 = vmatpush2.msra.mxu0 0.0
      %360 = vmatprep.subr.mxu0 0.0
      %361 = vmatpush2.msra.mxu0 0.0
      %362 = vmatprep.subr.mxu0 0.0
      %363 = vmatpush2.msra.mxu0 0.0
      %364 = vmatprep.subr.mxu0 0.0
      %365 = vmatpush2.msra.mxu0 0.0
      %366 = vmatprep.subr.mxu0 0.0
      %367 = vmatpush2.msra.mxu0 0.0
      %368 = vmatprep.subr.mxu0 0.0
      %369 = vmatpush2.msra.mxu0 0.0
      %370 = vmatprep.subr.mxu0 0.0
      %371 = vmatpush2.msra.mxu0 0.0
      %372 = vmatprep.subr.mxu0 0.0
      %373 = vmatpush2.msra.mxu0 0.0
      %374 = vmatprep.subr.mxu0 0.0
      %375 = vmatpush2.msra.mxu0 0.0
      %376 = vmatprep.subr.mxu0 0.0
      %377 = vmatpush2.msra.mxu0 0.0
      %378 = vmatprep.subr.mxu0 0.0
      %379 = vmatpush2.msra.mxu0 0.0
      %380 = vmatprep.subr.mxu0 0.0
      %381 = vmatpush2.msra.mxu0 0.0
      %382 = vmatprep.mubr.f32.mxu0 0.0
      %383 = vmatmul.mubr.f32.gmra.mxu0 %v316
      %v384 = vpop.f32.mrf.mxu0
      %v385 = vadd.f32 %v313, %v384
      %v386 = vpop.f32.mrf.mxu0
      %v387 = vadd.f32 %v313, %v386
      %388 = vdwg.mxu0
      %389 = vst [vmem:[%s217] sm:$0xff] %v302
      %390 = vst [vmem:[%s217 + $0x8] sm:$0xff] %v304
      %v391 = vld [vmem:[%s3 + $0x20] sm:$0xff]
      %v392 = vld [vmem:[%s3 + $0x80] sm:$0xff]
      %393 = vrot.lane.b32.xlu0 %v302, 34
      %v394 = vpop.permute.xlu0 %393
      %395 = vrot.lane.b32.xlu0 %v304, 34
      %v396 = vpop.permute.xlu0 %395
      %v397 = vlaneseq
      %v398 = vand.u32 %v397, 127
      %vm399 = vcmp.lt.s32.totalorder %v398, 34
      %v400 = vsel %vm399, %v394, %v396
      %v401 = vsel %vm399, %v396, %v394
      %v402 = vld [vmem:[%s2] ss:$8 sm:$0x3]
      %v404 = vlaneseq
      %v405 = vshrl.u32 %v404, 7
      %v406 = vsub.s32 0, %v405
      %v407 = vrot.slane %v402, %v406
      %v408 = vlaneseq
      %v409 = vshrl.u32 %v408, 7
      %v410 = vsub.s32 1, %v409
      %v411 = vrot.slane %v402, %v410
      %v414 = vmul.f32 %v401, %v407
      %v415 = vmul.f32 %v400, %v411
      %v416 = vmax.f32 %v414, 0.0
      %v417 = vmax.f32 %v415, 0.0
      %419 = vset.pattern.permute.xlu0 0
      %420 = vperm.xlu0 %419, %v392
      %v421 = vpop.permute.xlu0 %420
      %v423 = vmul.f32 %v416, %v421
      %v424 = vmul.f32 %v417, %v421
      %v425 = vadd.f32 %v423, 0.0
      %v426 = vadd.f32 %v424, 0.0
      %427 = vrot.lane.b32.xlu0 %v302, 33
      %v428 = vpop.permute.xlu0 %427
      %429 = vrot.lane.b32.xlu0 %v304, 33
      %v430 = vpop.permute.xlu0 %429
      %vm431 = vcmp.lt.s32.totalorder %v398, 33
      %v432 = vsel %vm431, %v428, %v430
      %v433 = vsel %vm431, %v430, %v428
      %s434 = scalar_lea.vmem %s2, 1
      %v435 = vld [vmem:[%s434] ss:$8 sm:$0x3]
      %v437 = vlaneseq
      %v438 = vshrl.u32 %v437, 7
      %v439 = vsub.s32 0, %v438
      %v440 = vrot.slane %v435, %v439
      %v441 = vlaneseq
      %v442 = vshrl.u32 %v441, 7
      %v443 = vsub.s32 1, %v442
      %v444 = vrot.slane %v435, %v443
      %v447 = vmul.f32 %v433, %v440
      %v448 = vmul.f32 %v432, %v444
      %v449 = vmax.f32 %v447, 0.0
      %v450 = vmax.f32 %v448, 0.0
      %451 = vset.pattern.permute.xlu0 1
      %452 = vperm.xlu0 %451, %v392
      %v453 = vpop.permute.xlu0 %452
      %v455 = vmul.f32 %v449, %v453
      %v456 = vmul.f32 %v450, %v453
      %v457 = vadd.f32 %v455, 0.0
      %v458 = vadd.f32 %v456, 0.0
      %459 = vrot.lane.b32.xlu0 %v302, 32
      %v460 = vpop.permute.xlu0 %459
      %461 = vrot.lane.b32.xlu0 %v304, 32
      %v462 = vpop.permute.xlu0 %461
      %vm463 = vcmp.lt.s32.totalorder %v398, 32
      %v464 = vsel %vm463, %v460, %v462
      %v465 = vsel %vm463, %v462, %v460
      %s466 = scalar_lea.vmem %s2, 2
      %v467 = vld [vmem:[%s466] ss:$8 sm:$0x3]
      %v469 = vlaneseq
      %v470 = vshrl.u32 %v469, 7
      %v471 = vsub.s32 0, %v470
      %v472 = vrot.slane %v467, %v471
      %v473 = vlaneseq
      %v474 = vshrl.u32 %v473, 7
      %v475 = vsub.s32 1, %v474
      %v476 = vrot.slane %v467, %v475
      %v479 = vmul.f32 %v465, %v472
      %v480 = vmul.f32 %v464, %v476
      %v481 = vmax.f32 %v479, 0.0
      %v482 = vmax.f32 %v480, 0.0
      %483 = vset.pattern.permute.xlu0 2
      %484 = vperm.xlu0 %483, %v392
      %v485 = vpop.permute.xlu0 %484
      %v487 = vmul.f32 %v481, %v485
      %v488 = vmul.f32 %v482, %v485
      %v489 = vadd.f32 %v425, %v487
      %v490 = vadd.f32 %v426, %v488
      %491 = vrot.lane.b32.xlu0 %v302, 31
      %v492 = vpop.permute.xlu0 %491
      %493 = vrot.lane.b32.xlu0 %v304, 31
      %v494 = vpop.permute.xlu0 %493
      %vm495 = vcmp.lt.s32.totalorder %v398, 31
      %v496 = vsel %vm495, %v492, %v494
      %v497 = vsel %vm495, %v494, %v492
      %s498 = scalar_lea.vmem %s2, 3
      %v499 = vld [vmem:[%s498] ss:$8 sm:$0x3]
      %v501 = vlaneseq
      %v502 = vshrl.u32 %v501, 7
      %v503 = vsub.s32 0, %v502
      %v504 = vrot.slane %v499, %v503
      %v505 = vlaneseq
      %v506 = vshrl.u32 %v505, 7
      %v507 = vsub.s32 1, %v506
      %v508 = vrot.slane %v499, %v507
      %v511 = vmul.f32 %v497, %v504
      %v512 = vmul.f32 %v496, %v508
      %v513 = vmax.f32 %v511, 0.0
      %v514 = vmax.f32 %v512, 0.0
      %515 = vset.pattern.permute.xlu0 3
      %516 = vperm.xlu0 %515, %v392
      %v517 = vpop.permute.xlu0 %516
      %v519 = vmul.f32 %v513, %v517
      %v520 = vmul.f32 %v514, %v517
      %v521 = vadd.f32 %v457, %v519
      %v522 = vadd.f32 %v458, %v520
      %523 = vrot.lane.b32.xlu0 %v302, 30
      %v524 = vpop.permute.xlu0 %523
      %525 = vrot.lane.b32.xlu0 %v304, 30
      %v526 = vpop.permute.xlu0 %525
      %vm527 = vcmp.lt.s32.totalorder %v398, 30
      %v528 = vsel %vm527, %v524, %v526
      %v529 = vsel %vm527, %v526, %v524
      %s530 = scalar_lea.vmem %s2, 4
      %v531 = vld [vmem:[%s530] ss:$8 sm:$0x3]
      %v533 = vlaneseq
      %v534 = vshrl.u32 %v533, 7
      %v535 = vsub.s32 0, %v534
      %v536 = vrot.slane %v531, %v535
      %v537 = vlaneseq
      %v538 = vshrl.u32 %v537, 7
      %v539 = vsub.s32 1, %v538
      %v540 = vrot.slane %v531, %v539
      %v543 = vmul.f32 %v529, %v536
      %v544 = vmul.f32 %v528, %v540
      %v545 = vmax.f32 %v543, 0.0
      %v546 = vmax.f32 %v544, 0.0
      %547 = vset.pattern.permute.xlu0 4
      %548 = vperm.xlu0 %547, %v392
      %v549 = vpop.permute.xlu0 %548
      %v551 = vmul.f32 %v545, %v549
      %v552 = vmul.f32 %v546, %v549
      %v553 = vadd.f32 %v489, %v551
      %v554 = vadd.f32 %v490, %v552
      %555 = vrot.lane.b32.xlu0 %v302, 18
      %v556 = vpop.permute.xlu0 %555
      %557 = vrot.lane.b32.xlu0 %v304, 18
      %v558 = vpop.permute.xlu0 %557
      %vm559 = vcmp.lt.s32.totalorder %v398, 18
      %v560 = vsel %vm559, %v556, %v558
      %v561 = vsel %vm559, %v558, %v556
      %s562 = scalar_lea.vmem %s2, 5
      %v563 = vld [vmem:[%s562] ss:$8 sm:$0x3]
      %v565 = vlaneseq
      %v566 = vshrl.u32 %v565, 7
      %v567 = vsub.s32 0, %v566
      %v568 = vrot.slane %v563, %v567
      %v569 = vlaneseq
      %v570 = vshrl.u32 %v569, 7
      %v571 = vsub.s32 1, %v570
      %v572 = vrot.slane %v563, %v571
      %v575 = vmul.f32 %v561, %v568
      %v576 = vmul.f32 %v560, %v572
      %v577 = vmax.f32 %v575, 0.0
      %v578 = vmax.f32 %v576, 0.0
      %579 = vset.pattern.permute.xlu0 5
      %580 = vperm.xlu0 %579, %v392
      %v581 = vpop.permute.xlu0 %580
      %v583 = vmul.f32 %v577, %v581
      %v584 = vmul.f32 %v578, %v581
      %v585 = vadd.f32 %v521, %v583
      %v586 = vadd.f32 %v522, %v584
      %587 = vrot.lane.b32.xlu0 %v302, 17
      %v588 = vpop.permute.xlu0 %587
      %589 = vrot.lane.b32.xlu0 %v304, 17
      %v590 = vpop.permute.xlu0 %589
      %vm591 = vcmp.lt.s32.totalorder %v398, 17
      %v592 = vsel %vm591, %v588, %v590
      %v593 = vsel %vm591, %v590, %v588
      %s594 = scalar_lea.vmem %s2, 6
      %v595 = vld [vmem:[%s594] ss:$8 sm:$0x3]
      %v597 = vlaneseq
      %v598 = vshrl.u32 %v597, 7
      %v599 = vsub.s32 0, %v598
      %v600 = vrot.slane %v595, %v599
      %v601 = vlaneseq
      %v602 = vshrl.u32 %v601, 7
      %v603 = vsub.s32 1, %v602
      %v604 = vrot.slane %v595, %v603
      %v607 = vmul.f32 %v593, %v600
      %v608 = vmul.f32 %v592, %v604
      %v609 = vmax.f32 %v607, 0.0
      %v610 = vmax.f32 %v608, 0.0
      %611 = vset.pattern.permute.xlu0 6
      %612 = vperm.xlu0 %611, %v392
      %v613 = vpop.permute.xlu0 %612
      %v615 = vmul.f32 %v609, %v613
      %v616 = vmul.f32 %v610, %v613
      %v617 = vadd.f32 %v553, %v615
      %v618 = vadd.f32 %v554, %v616
      %620 = vset.pattern.permute.xlu0 0
      %621 = vperm.xlu0 %620, %v391
      %v622 = vpop.permute.xlu0 %621
      %v624 = vmul.f32 %v609, %v622
      %v625 = vmul.f32 %v610, %v622
      %v626 = vadd.f32 %v624, 0.0
      %v627 = vadd.f32 %v625, 0.0
      %v628 = vadd.f32 %v607, 0.0
      %v629 = vadd.f32 %v608, 0.0
      %630 = vrot.lane.b32.xlu0 %v302, 16
      %v631 = vpop.permute.xlu0 %630
      %632 = vrot.lane.b32.xlu0 %v304, 16
      %v633 = vpop.permute.xlu0 %632
      %vm634 = vcmp.lt.s32.totalorder %v398, 16
      %v635 = vsel %vm634, %v631, %v633
      %v636 = vsel %vm634, %v633, %v631
      %s637 = scalar_lea.vmem %s2, 7
      %v638 = vld [vmem:[%s637] ss:$8 sm:$0x3]
      %v640 = vlaneseq
      %v641 = vshrl.u32 %v640, 7
      %v642 = vsub.s32 0, %v641
      %v643 = vrot.slane %v638, %v642
      %v644 = vlaneseq
      %v645 = vshrl.u32 %v644, 7
      %v646 = vsub.s32 1, %v645
      %v647 = vrot.slane %v638, %v646
      %v650 = vmul.f32 %v636, %v643
      %v651 = vmul.f32 %v635, %v647
      %v652 = vmax.f32 %v650, 0.0
      %v653 = vmax.f32 %v651, 0.0
      %654 = vset.pattern.permute.xlu0 7
      %655 = vperm.xlu0 %654, %v392
      %v656 = vpop.permute.xlu0 %655
      %v658 = vmul.f32 %v652, %v656
      %v659 = vmul.f32 %v653, %v656
      %v660 = vadd.f32 %v585, %v658
      %v661 = vadd.f32 %v586, %v659
      %662 = vset.pattern.permute.xlu0 1
      %663 = vperm.xlu0 %662, %v391
      %v664 = vpop.permute.xlu0 %663
      %v666 = vmul.f32 %v652, %v664
      %v667 = vmul.f32 %v653, %v664
      %v668 = vadd.f32 %v626, %v666
      %v669 = vadd.f32 %v627, %v667
      %v670 = vadd.f32 %v628, %v650
      %v671 = vadd.f32 %v629, %v651
      %672 = vrot.lane.b32.xlu0 %v302, 15
      %v673 = vpop.permute.xlu0 %672
      %674 = vrot.lane.b32.xlu0 %v304, 15
      %v675 = vpop.permute.xlu0 %674
      %vm676 = vcmp.lt.s32.totalorder %v398, 15
      %v677 = vsel %vm676, %v673, %v675
      %v678 = vsel %vm676, %v675, %v673
      %s679 = scalar_lea.vmem %s2, 16
      %v680 = vld [vmem:[%s679] ss:$8 sm:$0x3]
      %v682 = vlaneseq
      %v683 = vshrl.u32 %v682, 7
      %v684 = vsub.s32 0, %v683
      %v685 = vrot.slane %v680, %v684
      %v686 = vlaneseq
      %v687 = vshrl.u32 %v686, 7
      %v688 = vsub.s32 1, %v687
      %v689 = vrot.slane %v680, %v688
      %v692 = vmul.f32 %v678, %v685
      %v693 = vmul.f32 %v677, %v689
      %v694 = vmax.f32 %v692, 0.0
      %v695 = vmax.f32 %v693, 0.0
      %696 = vset.pattern.permute.xlu0 8
      %697 = vperm.xlu0 %696, %v392
      %v698 = vpop.permute.xlu0 %697
      %v700 = vmul.f32 %v694, %v698
      %v701 = vmul.f32 %v695, %v698
      %v702 = vadd.f32 %v617, %v700
      %v703 = vadd.f32 %v618, %v701
      %704 = vset.pattern.permute.xlu0 2
      %705 = vperm.xlu0 %704, %v391
      %v706 = vpop.permute.xlu0 %705
      %v708 = vmul.f32 %v694, %v706
      %v709 = vmul.f32 %v695, %v706
      %v710 = vadd.f32 %v668, %v708
      %v711 = vadd.f32 %v669, %v709
      %v712 = vadd.f32 %v670, %v692
      %v713 = vadd.f32 %v671, %v693
      %714 = vrot.lane.b32.xlu0 %v302, 14
      %v715 = vpop.permute.xlu0 %714
      %716 = vrot.lane.b32.xlu0 %v304, 14
      %v717 = vpop.permute.xlu0 %716
      %vm718 = vcmp.lt.s32.totalorder %v398, 14
      %v719 = vsel %vm718, %v715, %v717
      %v720 = vsel %vm718, %v717, %v715
      %s721 = scalar_lea.vmem %s2, 17
      %v722 = vld [vmem:[%s721] ss:$8 sm:$0x3]
      %v724 = vlaneseq
      %v725 = vshrl.u32 %v724, 7
      %v726 = vsub.s32 0, %v725
      %v727 = vrot.slane %v722, %v726
      %v728 = vlaneseq
      %v729 = vshrl.u32 %v728, 7
      %v730 = vsub.s32 1, %v729
      %v731 = vrot.slane %v722, %v730
      %v734 = vmul.f32 %v720, %v727
      %v735 = vmul.f32 %v719, %v731
      %v736 = vmax.f32 %v734, 0.0
      %v737 = vmax.f32 %v735, 0.0
      %738 = vset.pattern.permute.xlu0 9
      %739 = vperm.xlu0 %738, %v392
      %v740 = vpop.permute.xlu0 %739
      %v742 = vmul.f32 %v736, %v740
      %v743 = vmul.f32 %v737, %v740
      %v744 = vadd.f32 %v660, %v742
      %v745 = vadd.f32 %v661, %v743
      %746 = vrot.lane.b32.xlu0 %v302, 2
      %v747 = vpop.permute.xlu0 %746
      %748 = vrot.lane.b32.xlu0 %v304, 2
      %v749 = vpop.permute.xlu0 %748
      %vm750 = vcmp.lt.s32.totalorder %v398, 2
      %v751 = vsel %vm750, %v747, %v749
      %v752 = vsel %vm750, %v749, %v747
      %s753 = scalar_lea.vmem %s2, 18
      %v754 = vld [vmem:[%s753] ss:$8 sm:$0x3]
      %v756 = vlaneseq
      %v757 = vshrl.u32 %v756, 7
      %v758 = vsub.s32 0, %v757
      %v759 = vrot.slane %v754, %v758
      %v760 = vlaneseq
      %v761 = vshrl.u32 %v760, 7
      %v762 = vsub.s32 1, %v761
      %v763 = vrot.slane %v754, %v762
      %v766 = vmul.f32 %v752, %v759
      %v767 = vmul.f32 %v751, %v763
      %v768 = vmax.f32 %v766, 0.0
      %v769 = vmax.f32 %v767, 0.0
      %770 = vset.pattern.permute.xlu0 10
      %771 = vperm.xlu0 %770, %v392
      %v772 = vpop.permute.xlu0 %771
      %v774 = vmul.f32 %v768, %v772
      %v775 = vmul.f32 %v769, %v772
      %v776 = vadd.f32 %v702, %v774
      %v777 = vadd.f32 %v703, %v775
      %778 = vrot.lane.b32.xlu0 %v302, 1
      %v779 = vpop.permute.xlu0 %778
      %780 = vrot.lane.b32.xlu0 %v304, 1
      %v781 = vpop.permute.xlu0 %780
      %vm782 = vcmp.lt.s32.totalorder %v398, 1
      %v783 = vsel %vm782, %v779, %v781
      %v784 = vsel %vm782, %v781, %v779
      %s785 = scalar_lea.vmem %s2, 19
      %v786 = vld [vmem:[%s785] ss:$8 sm:$0x3]
      %v788 = vlaneseq
      %v789 = vshrl.u32 %v788, 7
      %v790 = vsub.s32 0, %v789
      %v791 = vrot.slane %v786, %v790
      %v792 = vlaneseq
      %v793 = vshrl.u32 %v792, 7
      %v794 = vsub.s32 1, %v793
      %v795 = vrot.slane %v786, %v794
      %v798 = vmul.f32 %v784, %v791
      %v799 = vmul.f32 %v783, %v795
      %v800 = vmax.f32 %v798, 0.0
      %v801 = vmax.f32 %v799, 0.0
      %802 = vset.pattern.permute.xlu0 11
      %803 = vperm.xlu0 %802, %v392
      %v804 = vpop.permute.xlu0 %803
      %v806 = vmul.f32 %v800, %v804
      %v807 = vmul.f32 %v801, %v804
      %v808 = vadd.f32 %v744, %v806
      %v809 = vadd.f32 %v745, %v807
      %810 = vset.pattern.permute.xlu0 3
      %811 = vperm.xlu0 %810, %v391
      %v812 = vpop.permute.xlu0 %811
      %v814 = vmul.f32 %v800, %v812
      %v815 = vmul.f32 %v801, %v812
      %v816 = vadd.f32 %v710, %v814
      %v817 = vadd.f32 %v711, %v815
      %v818 = vadd.f32 %v712, %v798
      %v819 = vadd.f32 %v713, %v799
      %s820 = scalar_lea.vmem %s2, 20
      %v821 = vld [vmem:[%s820] ss:$8 sm:$0x3]
      %v823 = vlaneseq
      %v824 = vshrl.u32 %v823, 7
      %v825 = vsub.s32 0, %v824
      %v826 = vrot.slane %v821, %v825
      %v827 = vlaneseq
      %v828 = vshrl.u32 %v827, 7
      %v829 = vsub.s32 1, %v828
      %v830 = vrot.slane %v821, %v829
      %v833 = vmul.f32 %v302, %v826
      %v834 = vmul.f32 %v304, %v830
      %v835 = vmax.f32 %v833, 0.0
      %v836 = vmax.f32 %v834, 0.0
      %837 = vset.pattern.permute.xlu0 12
      %838 = vperm.xlu0 %837, %v392
      %v839 = vpop.permute.xlu0 %838
      %v841 = vmul.f32 %v835, %v839
      %v842 = vmul.f32 %v836, %v839
      %v843 = vadd.f32 %v776, %v841
      %v844 = vadd.f32 %v777, %v842
      %845 = vset.pattern.permute.xlu0 4
      %846 = vperm.xlu0 %845, %v391
      %v847 = vpop.permute.xlu0 %846
      %v849 = vmul.f32 %v835, %v847
      %v850 = vmul.f32 %v836, %v847
      %v851 = vadd.f32 %v816, %v849
      %v852 = vadd.f32 %v817, %v850
      %v853 = vadd.f32 %v818, %v833
      %v854 = vadd.f32 %v819, %v834
      %855 = vrot.lane.b32.xlu0 %v302, 127
      %v856 = vpop.permute.xlu0 %855
      %857 = vrot.lane.b32.xlu0 %v304, 127
      %v858 = vpop.permute.xlu0 %857
      %vm859 = vcmp.lt.s32.totalorder %v398, 127
      %v860 = vsel %vm859, %v856, %v858
      %v861 = vsel %vm859, %v858, %v856
      %s862 = scalar_lea.vmem %s2, 21
      %v863 = vld [vmem:[%s862] ss:$8 sm:$0x3]
      %v865 = vlaneseq
      %v866 = vshrl.u32 %v865, 7
      %v867 = vsub.s32 0, %v866
      %v868 = vrot.slane %v863, %v867
      %v869 = vlaneseq
      %v870 = vshrl.u32 %v869, 7
      %v871 = vsub.s32 1, %v870
      %v872 = vrot.slane %v863, %v871
      %v875 = vmul.f32 %v860, %v868
      %v876 = vmul.f32 %v861, %v872
      %v877 = vmax.f32 %v875, 0.0
      %v878 = vmax.f32 %v876, 0.0
      %879 = vset.pattern.permute.xlu0 13
      %880 = vperm.xlu0 %879, %v392
      %v881 = vpop.permute.xlu0 %880
      %v883 = vmul.f32 %v877, %v881
      %v884 = vmul.f32 %v878, %v881
      %v885 = vadd.f32 %v808, %v883
      %v886 = vadd.f32 %v809, %v884
      %887 = vset.pattern.permute.xlu0 5
      %888 = vperm.xlu0 %887, %v391
      %v889 = vpop.permute.xlu0 %888
      %v891 = vmul.f32 %v877, %v889
      %v892 = vmul.f32 %v878, %v889
      %v893 = vadd.f32 %v851, %v891
      %v894 = vadd.f32 %v852, %v892
      %v895 = vadd.f32 %v853, %v875
      %v896 = vadd.f32 %v854, %v876
      %897 = vrot.lane.b32.xlu0 %v302, 126
      %v898 = vpop.permute.xlu0 %897
      %899 = vrot.lane.b32.xlu0 %v304, 126
      %v900 = vpop.permute.xlu0 %899
      %vm901 = vcmp.lt.s32.totalorder %v398, 126
      %v902 = vsel %vm901, %v898, %v900
      %v903 = vsel %vm901, %v900, %v898
      %s904 = scalar_lea.vmem %s2, 22
      %v905 = vld [vmem:[%s904] ss:$8 sm:$0x3]
      %v907 = vlaneseq
      %v908 = vshrl.u32 %v907, 7
      %v909 = vsub.s32 0, %v908
      %v910 = vrot.slane %v905, %v909
      %v911 = vlaneseq
      %v912 = vshrl.u32 %v911, 7
      %v913 = vsub.s32 1, %v912
      %v914 = vrot.slane %v905, %v913
      %v917 = vmul.f32 %v902, %v910
      %v918 = vmul.f32 %v903, %v914
      %v919 = vmax.f32 %v917, 0.0
      %v920 = vmax.f32 %v918, 0.0
      %921 = vset.pattern.permute.xlu0 14
      %922 = vperm.xlu0 %921, %v392
      %v923 = vpop.permute.xlu0 %922
      %v925 = vmul.f32 %v919, %v923
      %v926 = vmul.f32 %v920, %v923
      %v927 = vadd.f32 %v843, %v925
      %v928 = vadd.f32 %v844, %v926
      %929 = vrot.lane.b32.xlu0 %v302, 114
      %v930 = vpop.permute.xlu0 %929
      %931 = vrot.lane.b32.xlu0 %v304, 114
      %v932 = vpop.permute.xlu0 %931
      %vm933 = vcmp.lt.s32.totalorder %v398, 114
      %v934 = vsel %vm933, %v930, %v932
      %v935 = vsel %vm933, %v932, %v930
      %s936 = scalar_lea.vmem %s2, 23
      %v937 = vld [vmem:[%s936] ss:$8 sm:$0x3]
      %v939 = vlaneseq
      %v940 = vshrl.u32 %v939, 7
      %v941 = vsub.s32 0, %v940
      %v942 = vrot.slane %v937, %v941
      %v943 = vlaneseq
      %v944 = vshrl.u32 %v943, 7
      %v945 = vsub.s32 1, %v944
      %v946 = vrot.slane %v937, %v945
      %v949 = vmul.f32 %v934, %v942
      %v950 = vmul.f32 %v935, %v946
      %v951 = vmax.f32 %v949, 0.0
      %v952 = vmax.f32 %v950, 0.0
      %953 = vset.pattern.permute.xlu0 15
      %954 = vperm.xlu0 %953, %v392
      %v955 = vpop.permute.xlu0 %954
      %v957 = vmul.f32 %v951, %v955
      %v958 = vmul.f32 %v952, %v955
      %v959 = vadd.f32 %v885, %v957
      %v960 = vadd.f32 %v886, %v958
      %961 = vrot.lane.b32.xlu0 %v302, 113
      %v962 = vpop.permute.xlu0 %961
      %963 = vrot.lane.b32.xlu0 %v304, 113
      %v964 = vpop.permute.xlu0 %963
      %vm965 = vcmp.lt.s32.totalorder %v398, 113
      %v966 = vsel %vm965, %v962, %v964
      %v967 = vsel %vm965, %v964, %v962
      %s968 = scalar_lea.vmem %s2, 32
      %v969 = vld [vmem:[%s968] ss:$8 sm:$0x3]
      %v971 = vlaneseq
      %v972 = vshrl.u32 %v971, 7
      %v973 = vsub.s32 0, %v972
      %v974 = vrot.slane %v969, %v973
      %v975 = vlaneseq
      %v976 = vshrl.u32 %v975, 7
      %v977 = vsub.s32 1, %v976
      %v978 = vrot.slane %v969, %v977
      %v981 = vmul.f32 %v966, %v974
      %v982 = vmul.f32 %v967, %v978
      %v983 = vmax.f32 %v981, 0.0
      %v984 = vmax.f32 %v982, 0.0
      %985 = vset.pattern.permute.xlu0 16
      %986 = vperm.xlu0 %985, %v392
      %v987 = vpop.permute.xlu0 %986
      %v989 = vmul.f32 %v983, %v987
      %v990 = vmul.f32 %v984, %v987
      %v991 = vadd.f32 %v927, %v989
      %v992 = vadd.f32 %v928, %v990
      %993 = vset.pattern.permute.xlu0 6
      %994 = vperm.xlu0 %993, %v391
      %v995 = vpop.permute.xlu0 %994
      %v997 = vmul.f32 %v983, %v995
      %v998 = vmul.f32 %v984, %v995
      %v999 = vadd.f32 %v893, %v997
      %v1000 = vadd.f32 %v894, %v998
      %v1001 = vadd.f32 %v895, %v981
      %v1002 = vadd.f32 %v896, %v982
      %1003 = vrot.lane.b32.xlu0 %v302, 112
      %v1004 = vpop.permute.xlu0 %1003
      %1005 = vrot.lane.b32.xlu0 %v304, 112
      %v1006 = vpop.permute.xlu0 %1005
      %vm1007 = vcmp.lt.s32.totalorder %v398, 112
      %v1008 = vsel %vm1007, %v1004, %v1006
      %v1009 = vsel %vm1007, %v1006, %v1004
      %s1010 = scalar_lea.vmem %s2, 33
      %v1011 = vld [vmem:[%s1010] ss:$8 sm:$0x3]
      %v1013 = vlaneseq
      %v1014 = vshrl.u32 %v1013, 7
      %v1015 = vsub.s32 0, %v1014
      %v1016 = vrot.slane %v1011, %v1015
      %v1017 = vlaneseq
      %v1018 = vshrl.u32 %v1017, 7
      %v1019 = vsub.s32 1, %v1018
      %v1020 = vrot.slane %v1011, %v1019
      %v1023 = vmul.f32 %v1008, %v1016
      %v1024 = vmul.f32 %v1009, %v1020
      %v1025 = vmax.f32 %v1023, 0.0
      %v1026 = vmax.f32 %v1024, 0.0
      %1027 = vset.pattern.permute.xlu0 17
      %1028 = vperm.xlu0 %1027, %v392
      %v1029 = vpop.permute.xlu0 %1028
      %v1031 = vmul.f32 %v1025, %v1029
      %v1032 = vmul.f32 %v1026, %v1029
      %v1033 = vadd.f32 %v959, %v1031
      %v1034 = vadd.f32 %v960, %v1032
      %1035 = vset.pattern.permute.xlu0 7
      %1036 = vperm.xlu0 %1035, %v391
      %v1037 = vpop.permute.xlu0 %1036
      %v1039 = vmul.f32 %v1025, %v1037
      %v1040 = vmul.f32 %v1026, %v1037
      %v1041 = vadd.f32 %v999, %v1039
      %v1042 = vadd.f32 %v1000, %v1040
      %v1043 = vadd.f32 %v1001, %v1023
      %v1044 = vadd.f32 %v1002, %v1024
      %1045 = vrot.lane.b32.xlu0 %v302, 111
      %v1046 = vpop.permute.xlu0 %1045
      %1047 = vrot.lane.b32.xlu0 %v304, 111
      %v1048 = vpop.permute.xlu0 %1047
      %vm1049 = vcmp.lt.s32.totalorder %v398, 111
      %v1050 = vsel %vm1049, %v1046, %v1048
      %v1051 = vsel %vm1049, %v1048, %v1046
      %s1052 = scalar_lea.vmem %s2, 34
      %v1053 = vld [vmem:[%s1052] ss:$8 sm:$0x3]
      %v1055 = vlaneseq
      %v1056 = vshrl.u32 %v1055, 7
      %v1057 = vsub.s32 0, %v1056
      %v1058 = vrot.slane %v1053, %v1057
      %v1059 = vlaneseq
      %v1060 = vshrl.u32 %v1059, 7
      %v1061 = vsub.s32 1, %v1060
      %v1062 = vrot.slane %v1053, %v1061
      %v1065 = vmul.f32 %v1050, %v1058
      %v1066 = vmul.f32 %v1051, %v1062
      %v1067 = vmax.f32 %v1065, 0.0
      %v1068 = vmax.f32 %v1066, 0.0
      %1069 = vset.pattern.permute.xlu0 18
      %1070 = vperm.xlu0 %1069, %v392
      %v1071 = vpop.permute.xlu0 %1070
      %v1073 = vmul.f32 %v1067, %v1071
      %v1074 = vmul.f32 %v1068, %v1071
      %v1075 = vadd.f32 %v991, %v1073
      %v1076 = vadd.f32 %v992, %v1074
      %1077 = vset.pattern.permute.xlu0 8
      %1078 = vperm.xlu0 %1077, %v391
      %v1079 = vpop.permute.xlu0 %1078
      %v1081 = vmul.f32 %v1067, %v1079
      %v1082 = vmul.f32 %v1068, %v1079
      %v1083 = vadd.f32 %v1041, %v1081
      %v1084 = vadd.f32 %v1042, %v1082
      %v1085 = vadd.f32 %v1043, %v1065
      %v1086 = vadd.f32 %v1044, %v1066
      %1087 = vrot.lane.b32.xlu0 %v302, 110
      %v1088 = vpop.permute.xlu0 %1087
      %1089 = vrot.lane.b32.xlu0 %v304, 110
      %v1090 = vpop.permute.xlu0 %1089
      %vm1091 = vcmp.lt.s32.totalorder %v398, 110
      %v1092 = vsel %vm1091, %v1088, %v1090
      %v1093 = vsel %vm1091, %v1090, %v1088
      %s1094 = scalar_lea.vmem %s2, 35
      %v1095 = vld [vmem:[%s1094] ss:$8 sm:$0x3]
      %v1097 = vlaneseq
      %v1098 = vshrl.u32 %v1097, 7
      %v1099 = vsub.s32 0, %v1098
      %v1100 = vrot.slane %v1095, %v1099
      %v1101 = vlaneseq
      %v1102 = vshrl.u32 %v1101, 7
      %v1103 = vsub.s32 1, %v1102
      %v1104 = vrot.slane %v1095, %v1103
      %v1107 = vmul.f32 %v1092, %v1100
      %v1108 = vmul.f32 %v1093, %v1104
      %v1109 = vmax.f32 %v1107, 0.0
      %v1110 = vmax.f32 %v1108, 0.0
      %1111 = vset.pattern.permute.xlu0 19
      %1112 = vperm.xlu0 %1111, %v392
      %v1113 = vpop.permute.xlu0 %1112
      %v1115 = vmul.f32 %v1109, %v1113
      %v1116 = vmul.f32 %v1110, %v1113
      %v1117 = vadd.f32 %v1033, %v1115
      %v1118 = vadd.f32 %v1034, %v1116
      %1119 = vrot.lane.b32.xlu0 %v302, 98
      %v1120 = vpop.permute.xlu0 %1119
      %1121 = vrot.lane.b32.xlu0 %v304, 98
      %v1122 = vpop.permute.xlu0 %1121
      %vm1123 = vcmp.lt.s32.totalorder %v398, 98
      %v1124 = vsel %vm1123, %v1120, %v1122
      %v1125 = vsel %vm1123, %v1122, %v1120
      %s1126 = scalar_lea.vmem %s2, 36
      %v1127 = vld [vmem:[%s1126] ss:$8 sm:$0x3]
      %v1129 = vlaneseq
      %v1130 = vshrl.u32 %v1129, 7
      %v1131 = vsub.s32 0, %v1130
      %v1132 = vrot.slane %v1127, %v1131
      %v1133 = vlaneseq
      %v1134 = vshrl.u32 %v1133, 7
      %v1135 = vsub.s32 1, %v1134
      %v1136 = vrot.slane %v1127, %v1135
      %v1139 = vmul.f32 %v1124, %v1132
      %v1140 = vmul.f32 %v1125, %v1136
      %v1141 = vmax.f32 %v1139, 0.0
      %v1142 = vmax.f32 %v1140, 0.0
      %1143 = vset.pattern.permute.xlu0 20
      %1144 = vperm.xlu0 %1143, %v392
      %v1145 = vpop.permute.xlu0 %1144
      %v1147 = vmul.f32 %v1141, %v1145
      %v1148 = vmul.f32 %v1142, %v1145
      %v1149 = vadd.f32 %v1075, %v1147
      %v1150 = vadd.f32 %v1076, %v1148
      %1151 = vrot.lane.b32.xlu0 %v302, 97
      %v1152 = vpop.permute.xlu0 %1151
      %1153 = vrot.lane.b32.xlu0 %v304, 97
      %v1154 = vpop.permute.xlu0 %1153
      %vm1155 = vcmp.lt.s32.totalorder %v398, 97
      %v1156 = vsel %vm1155, %v1152, %v1154
      %v1157 = vsel %vm1155, %v1154, %v1152
      %s1158 = scalar_lea.vmem %s2, 37
      %v1159 = vld [vmem:[%s1158] ss:$8 sm:$0x3]
      %v1161 = vlaneseq
      %v1162 = vshrl.u32 %v1161, 7
      %v1163 = vsub.s32 0, %v1162
      %v1164 = vrot.slane %v1159, %v1163
      %v1165 = vlaneseq
      %v1166 = vshrl.u32 %v1165, 7
      %v1167 = vsub.s32 1, %v1166
      %v1168 = vrot.slane %v1159, %v1167
      %v1171 = vmul.f32 %v1156, %v1164
      %v1172 = vmul.f32 %v1157, %v1168
      %v1173 = vmax.f32 %v1171, 0.0
      %v1174 = vmax.f32 %v1172, 0.0
      %1175 = vset.pattern.permute.xlu0 21
      %1176 = vperm.xlu0 %1175, %v392
      %v1177 = vpop.permute.xlu0 %1176
      %v1179 = vmul.f32 %v1173, %v1177
      %v1180 = vmul.f32 %v1174, %v1177
      %v1181 = vadd.f32 %v1117, %v1179
      %v1182 = vadd.f32 %v1118, %v1180
      %1183 = vrot.lane.b32.xlu0 %v302, 96
      %v1184 = vpop.permute.xlu0 %1183
      %1185 = vrot.lane.b32.xlu0 %v304, 96
      %v1186 = vpop.permute.xlu0 %1185
      %vm1187 = vcmp.lt.s32.totalorder %v398, 96
      %v1188 = vsel %vm1187, %v1184, %v1186
      %v1189 = vsel %vm1187, %v1186, %v1184
      %s1190 = scalar_lea.vmem %s2, 38
      %v1191 = vld [vmem:[%s1190] ss:$8 sm:$0x3]
      %v1193 = vlaneseq
      %v1194 = vshrl.u32 %v1193, 7
      %v1195 = vsub.s32 0, %v1194
      %v1196 = vrot.slane %v1191, %v1195
      %v1197 = vlaneseq
      %v1198 = vshrl.u32 %v1197, 7
      %v1199 = vsub.s32 1, %v1198
      %v1200 = vrot.slane %v1191, %v1199
      %v1203 = vmul.f32 %v1188, %v1196
      %v1204 = vmul.f32 %v1189, %v1200
      %v1205 = vmax.f32 %v1203, 0.0
      %v1206 = vmax.f32 %v1204, 0.0
      %1207 = vset.pattern.permute.xlu0 22
      %1208 = vperm.xlu0 %1207, %v392
      %v1209 = vpop.permute.xlu0 %1208
      %v1211 = vmul.f32 %v1205, %v1209
      %v1212 = vmul.f32 %v1206, %v1209
      %v1213 = vadd.f32 %v1149, %v1211
      %v1214 = vadd.f32 %v1150, %v1212
      %1215 = vrot.lane.b32.xlu0 %v302, 95
      %v1216 = vpop.permute.xlu0 %1215
      %1217 = vrot.lane.b32.xlu0 %v304, 95
      %v1218 = vpop.permute.xlu0 %1217
      %vm1219 = vcmp.lt.s32.totalorder %v398, 95
      %v1220 = vsel %vm1219, %v1216, %v1218
      %v1221 = vsel %vm1219, %v1218, %v1216
      %s1222 = scalar_lea.vmem %s2, 39
      %v1223 = vld [vmem:[%s1222] ss:$8 sm:$0x3]
      %v1225 = vlaneseq
      %v1226 = vshrl.u32 %v1225, 7
      %v1227 = vsub.s32 0, %v1226
      %v1228 = vrot.slane %v1223, %v1227
      %v1229 = vlaneseq
      %v1230 = vshrl.u32 %v1229, 7
      %v1231 = vsub.s32 1, %v1230
      %v1232 = vrot.slane %v1223, %v1231
      %v1235 = vmul.f32 %v1220, %v1228
      %v1236 = vmul.f32 %v1221, %v1232
      %v1237 = vmax.f32 %v1235, 0.0
      %v1238 = vmax.f32 %v1236, 0.0
      %1239 = vset.pattern.permute.xlu0 23
      %1240 = vperm.xlu0 %1239, %v392
      %v1241 = vpop.permute.xlu0 %1240
      %v1243 = vmul.f32 %v1237, %v1241
      %v1244 = vmul.f32 %v1238, %v1241
      %v1245 = vadd.f32 %v1181, %v1243
      %v1246 = vadd.f32 %v1182, %v1244
      %1247 = vrot.lane.b32.xlu0 %v302, 94
      %v1248 = vpop.permute.xlu0 %1247
      %1249 = vrot.lane.b32.xlu0 %v304, 94
      %v1250 = vpop.permute.xlu0 %1249
      %vm1251 = vcmp.lt.s32.totalorder %v398, 94
      %v1252 = vsel %vm1251, %v1248, %v1250
      %v1253 = vsel %vm1251, %v1250, %v1248
      %s1254 = scalar_lea.vmem %s2, 48
      %v1255 = vld [vmem:[%s1254] ss:$8 sm:$0x3]
      %v1257 = vlaneseq
      %v1258 = vshrl.u32 %v1257, 7
      %v1259 = vsub.s32 0, %v1258
      %v1260 = vrot.slane %v1255, %v1259
      %v1261 = vlaneseq
      %v1262 = vshrl.u32 %v1261, 7
      %v1263 = vsub.s32 1, %v1262
      %v1264 = vrot.slane %v1255, %v1263
      %v1267 = vmul.f32 %v1252, %v1260
      %v1268 = vmul.f32 %v1253, %v1264
      %v1269 = vmax.f32 %v1267, 0.0
      %v1270 = vmax.f32 %v1268, 0.0
      %1271 = vset.pattern.permute.xlu0 24
      %1272 = vperm.xlu0 %1271, %v392
      %v1273 = vpop.permute.xlu0 %1272
      %v1275 = vmul.f32 %v1269, %v1273
      %v1276 = vmul.f32 %v1270, %v1273
      %v1277 = vadd.f32 %v1213, %v1275
      %v1278 = vadd.f32 %v1214, %v1276
      %v1279 = vld [vmem:[%s3 + $0x50] sm:$0xff]
      %v1280 = vld [vmem:[%s3 + $0xb0] sm:$0xff]
      %v1281 = vld [vmem:[%s3 + $0xe0] sm:$0xff]
      %1282 = vrot.lane.b32.xlu0 %v385, 34
      %v1283 = vpop.permute.xlu0 %1282
      %1284 = vrot.lane.b32.xlu0 %v387, 34
      %v1285 = vpop.permute.xlu0 %1284
      %v1286 = vsel %vm399, %v1283, %v1285
      %v1287 = vsel %vm399, %v1285, %v1283
      %v1288 = vmul.f32 %v1287, %v407
      %v1289 = vmul.f32 %v1286, %v411
      %v1290 = vmax.f32 %v1288, 0.0
      %v1291 = vmax.f32 %v1289, 0.0
      %1293 = vset.pattern.permute.xlu0 0
      %1294 = vperm.xlu0 %1293, %v1280
      %v1295 = vpop.permute.xlu0 %1294
      %v1297 = vmul.f32 %v1290, %v1295
      %v1298 = vmul.f32 %v1291, %v1295
      %v1299 = vadd.f32 %v1297, 0.0
      %v1300 = vadd.f32 %v1298, 0.0
      %1301 = vrot.lane.b32.xlu0 %v385, 33
      %v1302 = vpop.permute.xlu0 %1301
      %1303 = vrot.lane.b32.xlu0 %v387, 33
      %v1304 = vpop.permute.xlu0 %1303
      %v1305 = vsel %vm431, %v1302, %v1304
      %v1306 = vsel %vm431, %v1304, %v1302
      %v1307 = vmul.f32 %v1306, %v440
      %v1308 = vmul.f32 %v1305, %v444
      %v1309 = vmax.f32 %v1307, 0.0
      %v1310 = vmax.f32 %v1308, 0.0
      %1311 = vset.pattern.permute.xlu0 1
      %1312 = vperm.xlu0 %1311, %v1280
      %v1313 = vpop.permute.xlu0 %1312
      %v1315 = vmul.f32 %v1309, %v1313
      %v1316 = vmul.f32 %v1310, %v1313
      %v1317 = vadd.f32 %v1315, 0.0
      %v1318 = vadd.f32 %v1316, 0.0
      %1319 = vrot.lane.b32.xlu0 %v385, 32
      %v1320 = vpop.permute.xlu0 %1319
      %1321 = vrot.lane.b32.xlu0 %v387, 32
      %v1322 = vpop.permute.xlu0 %1321
      %v1323 = vsel %vm463, %v1320, %v1322
      %v1324 = vsel %vm463, %v1322, %v1320
      %v1325 = vmul.f32 %v1324, %v472
      %v1326 = vmul.f32 %v1323, %v476
      %v1327 = vmax.f32 %v1325, 0.0
      %v1328 = vmax.f32 %v1326, 0.0
      %1329 = vset.pattern.permute.xlu0 2
      %1330 = vperm.xlu0 %1329, %v1280
      %v1331 = vpop.permute.xlu0 %1330
      %v1333 = vmul.f32 %v1327, %v1331
      %v1334 = vmul.f32 %v1328, %v1331
      %v1335 = vadd.f32 %v1299, %v1333
      %v1336 = vadd.f32 %v1300, %v1334
      %1337 = vrot.lane.b32.xlu0 %v385, 31
      %v1338 = vpop.permute.xlu0 %1337
      %1339 = vrot.lane.b32.xlu0 %v387, 31
      %v1340 = vpop.permute.xlu0 %1339
      %v1341 = vsel %vm495, %v1338, %v1340
      %v1342 = vsel %vm495, %v1340, %v1338
      %v1343 = vmul.f32 %v1342, %v504
      %v1344 = vmul.f32 %v1341, %v508
      %v1345 = vmax.f32 %v1343, 0.0
      %v1346 = vmax.f32 %v1344, 0.0
      %1347 = vset.pattern.permute.xlu0 3
      %1348 = vperm.xlu0 %1347, %v1280
      %v1349 = vpop.permute.xlu0 %1348
      %v1351 = vmul.f32 %v1345, %v1349
      %v1352 = vmul.f32 %v1346, %v1349
      %v1353 = vadd.f32 %v1317, %v1351
      %v1354 = vadd.f32 %v1318, %v1352
      %1355 = vrot.lane.b32.xlu0 %v385, 30
      %v1356 = vpop.permute.xlu0 %1355
      %1357 = vrot.lane.b32.xlu0 %v387, 30
      %v1358 = vpop.permute.xlu0 %1357
      %v1359 = vsel %vm527, %v1356, %v1358
      %v1360 = vsel %vm527, %v1358, %v1356
      %v1361 = vmul.f32 %v1360, %v536
      %v1362 = vmul.f32 %v1359, %v540
      %v1363 = vmax.f32 %v1361, 0.0
      %v1364 = vmax.f32 %v1362, 0.0
      %1365 = vset.pattern.permute.xlu0 4
      %1366 = vperm.xlu0 %1365, %v1280
      %v1367 = vpop.permute.xlu0 %1366
      %v1369 = vmul.f32 %v1363, %v1367
      %v1370 = vmul.f32 %v1364, %v1367
      %v1371 = vadd.f32 %v1335, %v1369
      %v1372 = vadd.f32 %v1336, %v1370
      %1373 = vrot.lane.b32.xlu0 %v385, 18
      %v1374 = vpop.permute.xlu0 %1373
      %1375 = vrot.lane.b32.xlu0 %v387, 18
      %v1376 = vpop.permute.xlu0 %1375
      %v1377 = vsel %vm559, %v1374, %v1376
      %v1378 = vsel %vm559, %v1376, %v1374
      %v1379 = vmul.f32 %v1378, %v568
      %v1380 = vmul.f32 %v1377, %v572
      %v1381 = vmax.f32 %v1379, 0.0
      %v1382 = vmax.f32 %v1380, 0.0
      %1383 = vset.pattern.permute.xlu0 5
      %1384 = vperm.xlu0 %1383, %v1280
      %v1385 = vpop.permute.xlu0 %1384
      %v1387 = vmul.f32 %v1381, %v1385
      %v1388 = vmul.f32 %v1382, %v1385
      %v1389 = vadd.f32 %v1353, %v1387
      %v1390 = vadd.f32 %v1354, %v1388
      %1391 = vrot.lane.b32.xlu0 %v385, 17
      %v1392 = vpop.permute.xlu0 %1391
      %1393 = vrot.lane.b32.xlu0 %v387, 17
      %v1394 = vpop.permute.xlu0 %1393
      %v1395 = vsel %vm591, %v1392, %v1394
      %v1396 = vsel %vm591, %v1394, %v1392
      %v1397 = vmul.f32 %v1396, %v600
      %v1398 = vmul.f32 %v1395, %v604
      %v1399 = vmax.f32 %v1397, 0.0
      %v1400 = vmax.f32 %v1398, 0.0
      %1401 = vset.pattern.permute.xlu0 6
      %1402 = vperm.xlu0 %1401, %v1280
      %v1403 = vpop.permute.xlu0 %1402
      %v1405 = vmul.f32 %v1399, %v1403
      %v1406 = vmul.f32 %v1400, %v1403
      %v1407 = vadd.f32 %v1371, %v1405
      %v1408 = vadd.f32 %v1372, %v1406
      %1410 = vset.pattern.permute.xlu0 0
      %1411 = vperm.xlu0 %1410, %v1279
      %v1412 = vpop.permute.xlu0 %1411
      %v1414 = vmul.f32 %v1399, %v1412
      %v1415 = vmul.f32 %v1400, %v1412
      %v1416 = vadd.f32 %v1414, 0.0
      %v1417 = vadd.f32 %v1415, 0.0
      %1419 = vset.pattern.permute.xlu0 0
      %1420 = vperm.xlu0 %1419, %v1281
      %v1421 = vpop.permute.xlu0 %1420
      %v1423 = vmul.f32 %v1399, %v1421
      %v1424 = vmul.f32 %v1400, %v1421
      %v1425 = vadd.f32 %v1423, 0.0
      %v1426 = vadd.f32 %v1424, 0.0
      %v1427 = vadd.f32 %v1397, 0.0
      %v1428 = vadd.f32 %v1398, 0.0
      %1429 = vrot.lane.b32.xlu0 %v385, 16
      %v1430 = vpop.permute.xlu0 %1429
      %1431 = vrot.lane.b32.xlu0 %v387, 16
      %v1432 = vpop.permute.xlu0 %1431
      %v1433 = vsel %vm634, %v1430, %v1432
      %v1434 = vsel %vm634, %v1432, %v1430
      %v1435 = vmul.f32 %v1434, %v643
      %v1436 = vmul.f32 %v1433, %v647
      %v1437 = vmax.f32 %v1435, 0.0
      %v1438 = vmax.f32 %v1436, 0.0
      %1439 = vset.pattern.permute.xlu0 7
      %1440 = vperm.xlu0 %1439, %v1280
      %v1441 = vpop.permute.xlu0 %1440
      %v1443 = vmul.f32 %v1437, %v1441
      %v1444 = vmul.f32 %v1438, %v1441
      %v1445 = vadd.f32 %v1389, %v1443
      %v1446 = vadd.f32 %v1390, %v1444
      %1447 = vset.pattern.permute.xlu0 1
      %1448 = vperm.xlu0 %1447, %v1279
      %v1449 = vpop.permute.xlu0 %1448
      %v1451 = vmul.f32 %v1437, %v1449
      %v1452 = vmul.f32 %v1438, %v1449
      %v1453 = vadd.f32 %v1416, %v1451
      %v1454 = vadd.f32 %v1417, %v1452
      %1455 = vset.pattern.permute.xlu0 1
      %1456 = vperm.xlu0 %1455, %v1281
      %v1457 = vpop.permute.xlu0 %1456
      %v1459 = vmul.f32 %v1437, %v1457
      %v1460 = vmul.f32 %v1438, %v1457
      %v1461 = vadd.f32 %v1425, %v1459
      %v1462 = vadd.f32 %v1426, %v1460
      %v1463 = vadd.f32 %v1427, %v1435
      %v1464 = vadd.f32 %v1428, %v1436
      %1465 = vrot.lane.b32.xlu0 %v385, 15
      %v1466 = vpop.permute.xlu0 %1465
      %1467 = vrot.lane.b32.xlu0 %v387, 15
      %v1468 = vpop.permute.xlu0 %1467
      %v1469 = vsel %vm676, %v1466, %v1468
      %v1470 = vsel %vm676, %v1468, %v1466
      %v1471 = vmul.f32 %v1470, %v685
      %v1472 = vmul.f32 %v1469, %v689
      %v1473 = vmax.f32 %v1471, 0.0
      %v1474 = vmax.f32 %v1472, 0.0
      %1475 = vset.pattern.permute.xlu0 8
      %1476 = vperm.xlu0 %1475, %v1280
      %v1477 = vpop.permute.xlu0 %1476
      %v1479 = vmul.f32 %v1473, %v1477
      %v1480 = vmul.f32 %v1474, %v1477
      %v1481 = vadd.f32 %v1407, %v1479
      %v1482 = vadd.f32 %v1408, %v1480
      %1483 = vset.pattern.permute.xlu0 2
      %1484 = vperm.xlu0 %1483, %v1279
      %v1485 = vpop.permute.xlu0 %1484
      %v1487 = vmul.f32 %v1473, %v1485
      %v1488 = vmul.f32 %v1474, %v1485
      %v1489 = vadd.f32 %v1453, %v1487
      %v1490 = vadd.f32 %v1454, %v1488
      %1491 = vset.pattern.permute.xlu0 2
      %1492 = vperm.xlu0 %1491, %v1281
      %v1493 = vpop.permute.xlu0 %1492
      %v1495 = vmul.f32 %v1473, %v1493
      %v1496 = vmul.f32 %v1474, %v1493
      %v1497 = vadd.f32 %v1461, %v1495
      %v1498 = vadd.f32 %v1462, %v1496
      %v1499 = vadd.f32 %v1463, %v1471
      %v1500 = vadd.f32 %v1464, %v1472
      %1501 = vrot.lane.b32.xlu0 %v385, 14
      %v1502 = vpop.permute.xlu0 %1501
      %1503 = vrot.lane.b32.xlu0 %v387, 14
      %v1504 = vpop.permute.xlu0 %1503
      %v1505 = vsel %vm718, %v1502, %v1504
      %v1506 = vsel %vm718, %v1504, %v1502
      %v1507 = vmul.f32 %v1506, %v727
      %v1508 = vmul.f32 %v1505, %v731
      %v1509 = vmax.f32 %v1507, 0.0
      %v1510 = vmax.f32 %v1508, 0.0
      %1511 = vset.pattern.permute.xlu0 9
      %1512 = vperm.xlu0 %1511, %v1280
      %v1513 = vpop.permute.xlu0 %1512
      %v1515 = vmul.f32 %v1509, %v1513
      %v1516 = vmul.f32 %v1510, %v1513
      %v1517 = vadd.f32 %v1445, %v1515
      %v1518 = vadd.f32 %v1446, %v1516
      %1519 = vrot.lane.b32.xlu0 %v385, 2
      %v1520 = vpop.permute.xlu0 %1519
      %1521 = vrot.lane.b32.xlu0 %v387, 2
      %v1522 = vpop.permute.xlu0 %1521
      %v1523 = vsel %vm750, %v1520, %v1522
      %v1524 = vsel %vm750, %v1522, %v1520
      %v1525 = vmul.f32 %v1524, %v759
      %v1526 = vmul.f32 %v1523, %v763
      %v1527 = vmax.f32 %v1525, 0.0
      %v1528 = vmax.f32 %v1526, 0.0
      %1529 = vset.pattern.permute.xlu0 10
      %1530 = vperm.xlu0 %1529, %v1280
      %v1531 = vpop.permute.xlu0 %1530
      %v1533 = vmul.f32 %v1527, %v1531
      %v1534 = vmul.f32 %v1528, %v1531
      %v1535 = vadd.f32 %v1481, %v1533
      %v1536 = vadd.f32 %v1482, %v1534
      %1537 = vrot.lane.b32.xlu0 %v385, 1
      %v1538 = vpop.permute.xlu0 %1537
      %1539 = vrot.lane.b32.xlu0 %v387, 1
      %v1540 = vpop.permute.xlu0 %1539
      %v1541 = vsel %vm782, %v1538, %v1540
      %v1542 = vsel %vm782, %v1540, %v1538
      %v1543 = vmul.f32 %v1542, %v791
      %v1544 = vmul.f32 %v1541, %v795
      %v1545 = vmax.f32 %v1543, 0.0
      %v1546 = vmax.f32 %v1544, 0.0
      %1547 = vset.pattern.permute.xlu0 11
      %1548 = vperm.xlu0 %1547, %v1280
      %v1549 = vpop.permute.xlu0 %1548
      %v1551 = vmul.f32 %v1545, %v1549
      %v1552 = vmul.f32 %v1546, %v1549
      %v1553 = vadd.f32 %v1517, %v1551
      %v1554 = vadd.f32 %v1518, %v1552
      %1555 = vset.pattern.permute.xlu0 3
      %1556 = vperm.xlu0 %1555, %v1279
      %v1557 = vpop.permute.xlu0 %1556
      %v1559 = vmul.f32 %v1545, %v1557
      %v1560 = vmul.f32 %v1546, %v1557
      %v1561 = vadd.f32 %v1489, %v1559
      %v1562 = vadd.f32 %v1490, %v1560
      %1563 = vset.pattern.permute.xlu0 3
      %1564 = vperm.xlu0 %1563, %v1281
      %v1565 = vpop.permute.xlu0 %1564
      %v1567 = vmul.f32 %v1545, %v1565
      %v1568 = vmul.f32 %v1546, %v1565
      %v1569 = vadd.f32 %v1497, %v1567
      %v1570 = vadd.f32 %v1498, %v1568
      %v1571 = vadd.f32 %v1499, %v1543
      %v1572 = vadd.f32 %v1500, %v1544
      %v1573 = vmul.f32 %v385, %v826
      %v1574 = vmul.f32 %v387, %v830
      %v1575 = vmax.f32 %v1573, 0.0
      %v1576 = vmax.f32 %v1574, 0.0
      %1577 = vset.pattern.permute.xlu0 12
      %1578 = vperm.xlu0 %1577, %v1280
      %v1579 = vpop.permute.xlu0 %1578
      %v1581 = vmul.f32 %v1575, %v1579
      %v1582 = vmul.f32 %v1576, %v1579
      %v1583 = vadd.f32 %v1535, %v1581
      %v1584 = vadd.f32 %v1536, %v1582
      %1585 = vset.pattern.permute.xlu0 4
      %1586 = vperm.xlu0 %1585, %v1279
      %v1587 = vpop.permute.xlu0 %1586
      %v1589 = vmul.f32 %v1575, %v1587
      %v1590 = vmul.f32 %v1576, %v1587
      %v1591 = vadd.f32 %v1561, %v1589
      %v1592 = vadd.f32 %v1562, %v1590
      %1593 = vset.pattern.permute.xlu0 4
      %1594 = vperm.xlu0 %1593, %v1281
      %v1595 = vpop.permute.xlu0 %1594
      %v1597 = vmul.f32 %v1575, %v1595
      %v1598 = vmul.f32 %v1576, %v1595
      %v1599 = vadd.f32 %v1569, %v1597
      %v1600 = vadd.f32 %v1570, %v1598
      %v1601 = vadd.f32 %v1571, %v1573
      %v1602 = vadd.f32 %v1572, %v1574
      %1603 = vrot.lane.b32.xlu0 %v385, 127
      %v1604 = vpop.permute.xlu0 %1603
      %1605 = vrot.lane.b32.xlu0 %v387, 127
      %v1606 = vpop.permute.xlu0 %1605
      %v1607 = vsel %vm859, %v1604, %v1606
      %v1608 = vsel %vm859, %v1606, %v1604
      %v1609 = vmul.f32 %v1607, %v868
      %v1610 = vmul.f32 %v1608, %v872
      %v1611 = vmax.f32 %v1609, 0.0
      %v1612 = vmax.f32 %v1610, 0.0
      %1613 = vset.pattern.permute.xlu0 13
      %1614 = vperm.xlu0 %1613, %v1280
      %v1615 = vpop.permute.xlu0 %1614
      %v1617 = vmul.f32 %v1611, %v1615
      %v1618 = vmul.f32 %v1612, %v1615
      %v1619 = vadd.f32 %v1553, %v1617
      %v1620 = vadd.f32 %v1554, %v1618
      %1621 = vset.pattern.permute.xlu0 5
      %1622 = vperm.xlu0 %1621, %v1279
      %v1623 = vpop.permute.xlu0 %1622
      %v1625 = vmul.f32 %v1611, %v1623
      %v1626 = vmul.f32 %v1612, %v1623
      %v1627 = vadd.f32 %v1591, %v1625
      %v1628 = vadd.f32 %v1592, %v1626
      %1629 = vset.pattern.permute.xlu0 5
      %1630 = vperm.xlu0 %1629, %v1281
      %v1631 = vpop.permute.xlu0 %1630
      %v1633 = vmul.f32 %v1611, %v1631
      %v1634 = vmul.f32 %v1612, %v1631
      %v1635 = vadd.f32 %v1599, %v1633
      %v1636 = vadd.f32 %v1600, %v1634
      %v1637 = vadd.f32 %v1601, %v1609
      %v1638 = vadd.f32 %v1602, %v1610
      %1639 = vrot.lane.b32.xlu0 %v385, 126
      %v1640 = vpop.permute.xlu0 %1639
      %1641 = vrot.lane.b32.xlu0 %v387, 126
      %v1642 = vpop.permute.xlu0 %1641
      %v1643 = vsel %vm901, %v1640, %v1642
      %v1644 = vsel %vm901, %v1642, %v1640
      %v1645 = vmul.f32 %v1643, %v910
      %v1646 = vmul.f32 %v1644, %v914
      %v1647 = vmax.f32 %v1645, 0.0
      %v1648 = vmax.f32 %v1646, 0.0
      %1649 = vset.pattern.permute.xlu0 14
      %1650 = vperm.xlu0 %1649, %v1280
      %v1651 = vpop.permute.xlu0 %1650
      %v1653 = vmul.f32 %v1647, %v1651
      %v1654 = vmul.f32 %v1648, %v1651
      %v1655 = vadd.f32 %v1583, %v1653
      %v1656 = vadd.f32 %v1584, %v1654
      %1657 = vrot.lane.b32.xlu0 %v385, 114
      %v1658 = vpop.permute.xlu0 %1657
      %1659 = vrot.lane.b32.xlu0 %v387, 114
      %v1660 = vpop.permute.xlu0 %1659
      %v1661 = vsel %vm933, %v1658, %v1660
      %v1662 = vsel %vm933, %v1660, %v1658
      %v1663 = vmul.f32 %v1661, %v942
      %v1664 = vmul.f32 %v1662, %v946
      %v1665 = vmax.f32 %v1663, 0.0
      %v1666 = vmax.f32 %v1664, 0.0
      %1667 = vset.pattern.permute.xlu0 15
      %1668 = vperm.xlu0 %1667, %v1280
      %v1669 = vpop.permute.xlu0 %1668
      %v1671 = vmul.f32 %v1665, %v1669
      %v1672 = vmul.f32 %v1666, %v1669
      %v1673 = vadd.f32 %v1619, %v1671
      %v1674 = vadd.f32 %v1620, %v1672
      %1675 = vrot.lane.b32.xlu0 %v385, 113
      %v1676 = vpop.permute.xlu0 %1675
      %1677 = vrot.lane.b32.xlu0 %v387, 113
      %v1678 = vpop.permute.xlu0 %1677
      %v1679 = vsel %vm965, %v1676, %v1678
      %v1680 = vsel %vm965, %v1678, %v1676
      %v1681 = vmul.f32 %v1679, %v974
      %v1682 = vmul.f32 %v1680, %v978
      %v1683 = vmax.f32 %v1681, 0.0
      %v1684 = vmax.f32 %v1682, 0.0
      %1685 = vset.pattern.permute.xlu0 16
      %1686 = vperm.xlu0 %1685, %v1280
      %v1687 = vpop.permute.xlu0 %1686
      %v1689 = vmul.f32 %v1683, %v1687
      %v1690 = vmul.f32 %v1684, %v1687
      %v1691 = vadd.f32 %v1655, %v1689
      %v1692 = vadd.f32 %v1656, %v1690
      %1693 = vset.pattern.permute.xlu0 6
      %1694 = vperm.xlu0 %1693, %v1279
      %v1695 = vpop.permute.xlu0 %1694
      %v1697 = vmul.f32 %v1683, %v1695
      %v1698 = vmul.f32 %v1684, %v1695
      %v1699 = vadd.f32 %v1627, %v1697
      %v1700 = vadd.f32 %v1628, %v1698
      %1701 = vset.pattern.permute.xlu0 6
      %1702 = vperm.xlu0 %1701, %v1281
      %v1703 = vpop.permute.xlu0 %1702
      %v1705 = vmul.f32 %v1683, %v1703
      %v1706 = vmul.f32 %v1684, %v1703
      %v1707 = vadd.f32 %v1635, %v1705
      %v1708 = vadd.f32 %v1636, %v1706
      %v1709 = vadd.f32 %v1637, %v1681
      %v1710 = vadd.f32 %v1638, %v1682
      %1711 = vrot.lane.b32.xlu0 %v385, 112
      %v1712 = vpop.permute.xlu0 %1711
      %1713 = vrot.lane.b32.xlu0 %v387, 112
      %v1714 = vpop.permute.xlu0 %1713
      %v1715 = vsel %vm1007, %v1712, %v1714
      %v1716 = vsel %vm1007, %v1714, %v1712
      %v1717 = vmul.f32 %v1715, %v1016
      %v1718 = vmul.f32 %v1716, %v1020
      %v1719 = vmax.f32 %v1717, 0.0
      %v1720 = vmax.f32 %v1718, 0.0
      %1721 = vset.pattern.permute.xlu0 17
      %1722 = vperm.xlu0 %1721, %v1280
      %v1723 = vpop.permute.xlu0 %1722
      %v1725 = vmul.f32 %v1719, %v1723
      %v1726 = vmul.f32 %v1720, %v1723
      %v1727 = vadd.f32 %v1673, %v1725
      %v1728 = vadd.f32 %v1674, %v1726
      %1729 = vset.pattern.permute.xlu0 7
      %1730 = vperm.xlu0 %1729, %v1279
      %v1731 = vpop.permute.xlu0 %1730
      %v1733 = vmul.f32 %v1719, %v1731
      %v1734 = vmul.f32 %v1720, %v1731
      %v1735 = vadd.f32 %v1699, %v1733
      %v1736 = vadd.f32 %v1700, %v1734
      %1737 = vset.pattern.permute.xlu0 7
      %1738 = vperm.xlu0 %1737, %v1281
      %v1739 = vpop.permute.xlu0 %1738
      %v1741 = vmul.f32 %v1719, %v1739
      %v1742 = vmul.f32 %v1720, %v1739
      %v1743 = vadd.f32 %v1707, %v1741
      %v1744 = vadd.f32 %v1708, %v1742
      %v1745 = vadd.f32 %v1709, %v1717
      %v1746 = vadd.f32 %v1710, %v1718
      %1747 = vrot.lane.b32.xlu0 %v385, 111
      %v1748 = vpop.permute.xlu0 %1747
      %1749 = vrot.lane.b32.xlu0 %v387, 111
      %v1750 = vpop.permute.xlu0 %1749
      %v1751 = vsel %vm1049, %v1748, %v1750
      %v1752 = vsel %vm1049, %v1750, %v1748
      %v1753 = vmul.f32 %v1751, %v1058
      %v1754 = vmul.f32 %v1752, %v1062
      %v1755 = vmax.f32 %v1753, 0.0
      %v1756 = vmax.f32 %v1754, 0.0
      %1757 = vset.pattern.permute.xlu0 18
      %1758 = vperm.xlu0 %1757, %v1280
      %v1759 = vpop.permute.xlu0 %1758
      %v1761 = vmul.f32 %v1755, %v1759
      %v1762 = vmul.f32 %v1756, %v1759
      %v1763 = vadd.f32 %v1691, %v1761
      %v1764 = vadd.f32 %v1692, %v1762
      %1765 = vset.pattern.permute.xlu0 8
      %1766 = vperm.xlu0 %1765, %v1279
      %v1767 = vpop.permute.xlu0 %1766
      %v1769 = vmul.f32 %v1755, %v1767
      %v1770 = vmul.f32 %v1756, %v1767
      %v1771 = vadd.f32 %v1735, %v1769
      %v1772 = vadd.f32 %v1736, %v1770
      %1773 = vset.pattern.permute.xlu0 8
      %1774 = vperm.xlu0 %1773, %v1281
      %v1775 = vpop.permute.xlu0 %1774
      %v1777 = vmul.f32 %v1755, %v1775
      %v1778 = vmul.f32 %v1756, %v1775
      %v1779 = vadd.f32 %v1743, %v1777
      %v1780 = vadd.f32 %v1744, %v1778
      %v1781 = vadd.f32 %v1745, %v1753
      %v1782 = vadd.f32 %v1746, %v1754
      %1783 = vrot.lane.b32.xlu0 %v385, 110
      %v1784 = vpop.permute.xlu0 %1783
      %1785 = vrot.lane.b32.xlu0 %v387, 110
      %v1786 = vpop.permute.xlu0 %1785
      %v1787 = vsel %vm1091, %v1784, %v1786
      %v1788 = vsel %vm1091, %v1786, %v1784
      %v1789 = vmul.f32 %v1787, %v1100
      %v1790 = vmul.f32 %v1788, %v1104
      %v1791 = vmax.f32 %v1789, 0.0
      %v1792 = vmax.f32 %v1790, 0.0
      %1793 = vset.pattern.permute.xlu0 19
      %1794 = vperm.xlu0 %1793, %v1280
      %v1795 = vpop.permute.xlu0 %1794
      %v1797 = vmul.f32 %v1791, %v1795
      %v1798 = vmul.f32 %v1792, %v1795
      %v1799 = vadd.f32 %v1727, %v1797
      %v1800 = vadd.f32 %v1728, %v1798
      %1801 = vrot.lane.b32.xlu0 %v385, 98
      %v1802 = vpop.permute.xlu0 %1801
      %1803 = vrot.lane.b32.xlu0 %v387, 98
      %v1804 = vpop.permute.xlu0 %1803
      %v1805 = vsel %vm1123, %v1802, %v1804
      %v1806 = vsel %vm1123, %v1804, %v1802
      %v1807 = vmul.f32 %v1805, %v1132
      %v1808 = vmul.f32 %v1806, %v1136
      %v1809 = vmax.f32 %v1807, 0.0
      %v1810 = vmax.f32 %v1808, 0.0
      %1811 = vset.pattern.permute.xlu0 20
      %1812 = vperm.xlu0 %1811, %v1280
      %v1813 = vpop.permute.xlu0 %1812
      %v1815 = vmul.f32 %v1809, %v1813
      %v1816 = vmul.f32 %v1810, %v1813
      %v1817 = vadd.f32 %v1763, %v1815
      %v1818 = vadd.f32 %v1764, %v1816
      %1819 = vrot.lane.b32.xlu0 %v385, 97
      %v1820 = vpop.permute.xlu0 %1819
      %1821 = vrot.lane.b32.xlu0 %v387, 97
      %v1822 = vpop.permute.xlu0 %1821
      %v1823 = vsel %vm1155, %v1820, %v1822
      %v1824 = vsel %vm1155, %v1822, %v1820
      %v1825 = vmul.f32 %v1823, %v1164
      %v1826 = vmul.f32 %v1824, %v1168
      %v1827 = vmax.f32 %v1825, 0.0
      %v1828 = vmax.f32 %v1826, 0.0
      %1829 = vset.pattern.permute.xlu0 21
      %1830 = vperm.xlu0 %1829, %v1280
      %v1831 = vpop.permute.xlu0 %1830
      %v1833 = vmul.f32 %v1827, %v1831
      %v1834 = vmul.f32 %v1828, %v1831
      %v1835 = vadd.f32 %v1799, %v1833
      %v1836 = vadd.f32 %v1800, %v1834
      %1837 = vrot.lane.b32.xlu0 %v385, 96
      %v1838 = vpop.permute.xlu0 %1837
      %1839 = vrot.lane.b32.xlu0 %v387, 96
      %v1840 = vpop.permute.xlu0 %1839
      %v1841 = vsel %vm1187, %v1838, %v1840
      %v1842 = vsel %vm1187, %v1840, %v1838
      %v1843 = vmul.f32 %v1841, %v1196
      %v1844 = vmul.f32 %v1842, %v1200
      %v1845 = vmax.f32 %v1843, 0.0
      %v1846 = vmax.f32 %v1844, 0.0
      %1847 = vset.pattern.permute.xlu0 22
      %1848 = vperm.xlu0 %1847, %v1280
      %v1849 = vpop.permute.xlu0 %1848
      %v1851 = vmul.f32 %v1845, %v1849
      %v1852 = vmul.f32 %v1846, %v1849
      %v1853 = vadd.f32 %v1817, %v1851
      %v1854 = vadd.f32 %v1818, %v1852
      %1855 = vrot.lane.b32.xlu0 %v385, 95
      %v1856 = vpop.permute.xlu0 %1855
      %1857 = vrot.lane.b32.xlu0 %v387, 95
      %v1858 = vpop.permute.xlu0 %1857
      %v1859 = vsel %vm1219, %v1856, %v1858
      %v1860 = vsel %vm1219, %v1858, %v1856
      %v1861 = vmul.f32 %v1859, %v1228
      %v1862 = vmul.f32 %v1860, %v1232
      %v1863 = vmax.f32 %v1861, 0.0
      %v1864 = vmax.f32 %v1862, 0.0
      %1865 = vset.pattern.permute.xlu0 23
      %1866 = vperm.xlu0 %1865, %v1280
      %v1867 = vpop.permute.xlu0 %1866
      %v1869 = vmul.f32 %v1863, %v1867
      %v1870 = vmul.f32 %v1864, %v1867
      %v1871 = vadd.f32 %v1835, %v1869
      %v1872 = vadd.f32 %v1836, %v1870
      %1873 = vrot.lane.b32.xlu0 %v385, 94
      %v1874 = vpop.permute.xlu0 %1873
      %1875 = vrot.lane.b32.xlu0 %v387, 94
      %v1876 = vpop.permute.xlu0 %1875
      %v1877 = vsel %vm1251, %v1874, %v1876
      %v1878 = vsel %vm1251, %v1876, %v1874
      %v1879 = vmul.f32 %v1877, %v1260
      %v1880 = vmul.f32 %v1878, %v1264
      %v1881 = vmax.f32 %v1879, 0.0
      %v1882 = vmax.f32 %v1880, 0.0
      %1883 = vset.pattern.permute.xlu0 24
      %1884 = vperm.xlu0 %1883, %v1280
      %v1885 = vpop.permute.xlu0 %1884
      %v1887 = vmul.f32 %v1881, %v1885
      %v1888 = vmul.f32 %v1882, %v1885
      %v1889 = vadd.f32 %v1853, %v1887
      %v1890 = vadd.f32 %v1854, %v1888
      %v1891 = vmul.f32 %v1085, 0.11111111
      %v1892 = vmul.f32 %v1086, 0.11111111
      %v1893 = vadd.f32 %v1891, %v385
      %v1894 = vadd.f32 %v1892, %v387
      %1895 = vst [vmem:[%s217 + $0x30] sm:$0xff] %v1893
      %1896 = vst [vmem:[%s217 + $0x38] sm:$0xff] %v1894
      %v1897 = vmul.f32 %v1781, 0.22222222
      %v1898 = vmul.f32 %v1782, 0.22222222
      %1899 = vst [vmem:[%s217 + $0x40] sm:$0xff] %v1897
      %1900 = vst [vmem:[%s217 + $0x48] sm:$0xff] %v1898
      %v1901 = vld [vmem:[%s3 + $0x28] sm:$0xff]
      %v1902 = vld [vmem:[%s3 + $0x30] sm:$0xff]
      %1904 = vset.pattern.permute.xlu0 0
      %1905 = vperm.xlu0 %1904, %v1902
      %v1906 = vpop.permute.xlu0 %1905
      %v1909 = vsel %vm231, %v1901, 0
      %1911 = vmatprep.subr.mxu0 0.0
      %1912 = vmatpush1.msra.mxu0 0.0
      %1913 = vmatprep.subr.mxu0 0.0
      %1914 = vmatpush1.msra.mxu0 0.0
      %1915 = vmatprep.subr.mxu0 0.0
      %1916 = vmatpush1.msra.mxu0 0.0
      %1917 = vmatprep.subr.mxu0 0.0
      %1918 = vmatpush1.msra.mxu0 0.0
      %1919 = vmatprep.subr.mxu0 0.0
      %1920 = vmatpush1.msra.mxu0 0.0
      %1921 = vmatprep.subr.mxu0 0.0
      %1922 = vmatpush1.msra.mxu0 0.0
      %1923 = vmatprep.subr.mxu0 0.0
      %1924 = vmatpush1.msra.mxu0 0.0
      %1925 = vmatprep.subr.mxu0 0.0
      %1926 = vmatpush1.msra.mxu0 0.0
      %1927 = vmatprep.subr.mxu0 0.0
      %1928 = vmatpush1.msra.mxu0 0.0
      %1929 = vmatprep.subr.mxu0 0.0
      %1930 = vmatpush1.msra.mxu0 0.0
      %1931 = vmatprep.subr.mxu0 0.0
      %1932 = vmatpush1.msra.mxu0 0.0
      %1933 = vmatprep.subr.mxu0 0.0
      %1934 = vmatpush1.msra.mxu0 0.0
      %1935 = vmatprep.subr.mxu0 0.0
      %1936 = vmatpush1.msra.mxu0 0.0
      %1937 = vmatprep.subr.mxu0 0.0
      %1938 = vmatpush1.msra.mxu0 0.0
      %1939 = vmatprep.subr.mxu0 0.0
      %1940 = vmatpush1.msra.mxu0 0.0
      %1941 = vmatprep.subr.mxu0 %v1084
      %1942 = vmatpush1.msra.mxu0 %v1083
      %1943 = vmatprep.subr.mxu0 0.0
      %1944 = vmatpush2.msra.mxu0 0.0
      %1945 = vmatprep.subr.mxu0 0.0
      %1946 = vmatpush2.msra.mxu0 0.0
      %1947 = vmatprep.subr.mxu0 0.0
      %1948 = vmatpush2.msra.mxu0 0.0
      %1949 = vmatprep.subr.mxu0 0.0
      %1950 = vmatpush2.msra.mxu0 0.0
      %1951 = vmatprep.subr.mxu0 0.0
      %1952 = vmatpush2.msra.mxu0 0.0
      %1953 = vmatprep.subr.mxu0 0.0
      %1954 = vmatpush2.msra.mxu0 0.0
      %1955 = vmatprep.subr.mxu0 0.0
      %1956 = vmatpush2.msra.mxu0 0.0
      %1957 = vmatprep.subr.mxu0 0.0
      %1958 = vmatpush2.msra.mxu0 0.0
      %1959 = vmatprep.subr.mxu0 0.0
      %1960 = vmatpush2.msra.mxu0 0.0
      %1961 = vmatprep.subr.mxu0 0.0
      %1962 = vmatpush2.msra.mxu0 0.0
      %1963 = vmatprep.subr.mxu0 0.0
      %1964 = vmatpush2.msra.mxu0 0.0
      %1965 = vmatprep.subr.mxu0 0.0
      %1966 = vmatpush2.msra.mxu0 0.0
      %1967 = vmatprep.subr.mxu0 0.0
      %1968 = vmatpush2.msra.mxu0 0.0
      %1969 = vmatprep.subr.mxu0 0.0
      %1970 = vmatpush2.msra.mxu0 0.0
      %1971 = vmatprep.subr.mxu0 0.0
      %1972 = vmatpush2.msra.mxu0 0.0
      %1973 = vmatprep.subr.mxu0 0.0
      %1974 = vmatpush2.msra.mxu0 0.0
      %1975 = vmatprep.mubr.f32.mxu0 0.0
      %1976 = vmatmul.mubr.f32.gmra.mxu0 %v1909
      %v1977 = vpop.f32.mrf.mxu0
      %v1978 = vadd.f32 %v1906, %v1977
      %v1979 = vpop.f32.mrf.mxu0
      %v1980 = vadd.f32 %v1906, %v1979
      %1981 = vdwg.mxu0
      %v1982 = vld [vmem:[%s3 + $0x38] sm:$0xff]
      %v1983 = vmax.f32 %v1978, 0.0
      %v1984 = vmax.f32 %v1980, 0.0
      %1985 = vrot.lane.b32.xlu0 %v1983, 17
      %v1986 = vpop.permute.xlu0 %1985
      %1987 = vrot.lane.b32.xlu0 %v1984, 17
      %v1988 = vpop.permute.xlu0 %1987
      %v1989 = vsel %vm591, %v1986, %v1988
      %v1990 = vsel %vm591, %v1988, %v1986
      %v1991 = vld [vmem:[%s594] ss:$8 sm:$0x3]
      %v1993 = vlaneseq
      %v1994 = vshrl.u32 %v1993, 7
      %v1995 = vsub.s32 0, %v1994
      %v1996 = vrot.slane %v1991, %v1995
      %v1997 = vlaneseq
      %v1998 = vshrl.u32 %v1997, 7
      %v1999 = vsub.s32 1, %v1998
      %v2000 = vrot.slane %v1991, %v1999
      %v2003 = vmul.f32 %v1990, %v1996
      %v2004 = vmul.f32 %v1989, %v2000
      %2006 = vset.pattern.permute.xlu0 0
      %2007 = vperm.xlu0 %2006, %v1982
      %v2008 = vpop.permute.xlu0 %2007
      %v2010 = vmul.f32 %v2003, %v2008
      %v2011 = vmul.f32 %v2004, %v2008
      %v2012 = vadd.f32 %v2010, 0.0
      %v2013 = vadd.f32 %v2011, 0.0
      %2014 = vrot.lane.b32.xlu0 %v1983, 16
      %v2015 = vpop.permute.xlu0 %2014
      %2016 = vrot.lane.b32.xlu0 %v1984, 16
      %v2017 = vpop.permute.xlu0 %2016
      %v2018 = vsel %vm634, %v2015, %v2017
      %v2019 = vsel %vm634, %v2017, %v2015
      %v2020 = vld [vmem:[%s637] ss:$8 sm:$0x3]
      %v2022 = vlaneseq
      %v2023 = vshrl.u32 %v2022, 7
      %v2024 = vsub.s32 0, %v2023
      %v2025 = vrot.slane %v2020, %v2024
      %v2026 = vlaneseq
      %v2027 = vshrl.u32 %v2026, 7
      %v2028 = vsub.s32 1, %v2027
      %v2029 = vrot.slane %v2020, %v2028
      %v2032 = vmul.f32 %v2019, %v2025
      %v2033 = vmul.f32 %v2018, %v2029
      %2034 = vset.pattern.permute.xlu0 1
      %2035 = vperm.xlu0 %2034, %v1982
      %v2036 = vpop.permute.xlu0 %2035
      %v2038 = vmul.f32 %v2032, %v2036
      %v2039 = vmul.f32 %v2033, %v2036
      %v2040 = vadd.f32 %v2038, 0.0
      %v2041 = vadd.f32 %v2039, 0.0
      %2042 = vrot.lane.b32.xlu0 %v1983, 15
      %v2043 = vpop.permute.xlu0 %2042
      %2044 = vrot.lane.b32.xlu0 %v1984, 15
      %v2045 = vpop.permute.xlu0 %2044
      %v2046 = vsel %vm676, %v2043, %v2045
      %v2047 = vsel %vm676, %v2045, %v2043
      %v2048 = vld [vmem:[%s679] ss:$8 sm:$0x3]
      %v2050 = vlaneseq
      %v2051 = vshrl.u32 %v2050, 7
      %v2052 = vsub.s32 0, %v2051
      %v2053 = vrot.slane %v2048, %v2052
      %v2054 = vlaneseq
      %v2055 = vshrl.u32 %v2054, 7
      %v2056 = vsub.s32 1, %v2055
      %v2057 = vrot.slane %v2048, %v2056
      %v2060 = vmul.f32 %v2047, %v2053
      %v2061 = vmul.f32 %v2046, %v2057
      %2062 = vset.pattern.permute.xlu0 2
      %2063 = vperm.xlu0 %2062, %v1982
      %v2064 = vpop.permute.xlu0 %2063
      %v2066 = vmul.f32 %v2060, %v2064
      %v2067 = vmul.f32 %v2061, %v2064
      %v2068 = vadd.f32 %v2012, %v2066
      %v2069 = vadd.f32 %v2013, %v2067
      %2070 = vrot.lane.b32.xlu0 %v1983, 1
      %v2071 = vpop.permute.xlu0 %2070
      %2072 = vrot.lane.b32.xlu0 %v1984, 1
      %v2073 = vpop.permute.xlu0 %2072
      %v2074 = vsel %vm782, %v2071, %v2073
      %v2075 = vsel %vm782, %v2073, %v2071
      %v2076 = vld [vmem:[%s785] ss:$8 sm:$0x3]
      %v2078 = vlaneseq
      %v2079 = vshrl.u32 %v2078, 7
      %v2080 = vsub.s32 0, %v2079
      %v2081 = vrot.slane %v2076, %v2080
      %v2082 = vlaneseq
      %v2083 = vshrl.u32 %v2082, 7
      %v2084 = vsub.s32 1, %v2083
      %v2085 = vrot.slane %v2076, %v2084
      %v2088 = vmul.f32 %v2075, %v2081
      %v2089 = vmul.f32 %v2074, %v2085
      %2090 = vset.pattern.permute.xlu0 3
      %2091 = vperm.xlu0 %2090, %v1982
      %v2092 = vpop.permute.xlu0 %2091
      %v2094 = vmul.f32 %v2088, %v2092
      %v2095 = vmul.f32 %v2089, %v2092
      %v2096 = vadd.f32 %v2040, %v2094
      %v2097 = vadd.f32 %v2041, %v2095
      %v2098 = vld [vmem:[%s820] ss:$8 sm:$0x3]
      %v2100 = vlaneseq
      %v2101 = vshrl.u32 %v2100, 7
      %v2102 = vsub.s32 0, %v2101
      %v2103 = vrot.slane %v2098, %v2102
      %v2104 = vlaneseq
      %v2105 = vshrl.u32 %v2104, 7
      %v2106 = vsub.s32 1, %v2105
      %v2107 = vrot.slane %v2098, %v2106
      %v2110 = vmul.f32 %v1983, %v2103
      %v2111 = vmul.f32 %v1984, %v2107
      %2112 = vset.pattern.permute.xlu0 4
      %2113 = vperm.xlu0 %2112, %v1982
      %v2114 = vpop.permute.xlu0 %2113
      %v2116 = vmul.f32 %v2110, %v2114
      %v2117 = vmul.f32 %v2111, %v2114
      %v2118 = vadd.f32 %v2068, %v2116
      %v2119 = vadd.f32 %v2069, %v2117
      %2120 = vrot.lane.b32.xlu0 %v1983, 127
      %v2121 = vpop.permute.xlu0 %2120
      %2122 = vrot.lane.b32.xlu0 %v1984, 127
      %v2123 = vpop.permute.xlu0 %2122
      %v2124 = vsel %vm859, %v2121, %v2123
      %v2125 = vsel %vm859, %v2123, %v2121
      %v2126 = vld [vmem:[%s862] ss:$8 sm:$0x3]
      %v2128 = vlaneseq
      %v2129 = vshrl.u32 %v2128, 7
      %v2130 = vsub.s32 0, %v2129
      %v2131 = vrot.slane %v2126, %v2130
      %v2132 = vlaneseq
      %v2133 = vshrl.u32 %v2132, 7
      %v2134 = vsub.s32 1, %v2133
      %v2135 = vrot.slane %v2126, %v2134
      %v2138 = vmul.f32 %v2124, %v2131
      %v2139 = vmul.f32 %v2125, %v2135
      %2140 = vset.pattern.permute.xlu0 5
      %2141 = vperm.xlu0 %2140, %v1982
      %v2142 = vpop.permute.xlu0 %2141
      %v2144 = vmul.f32 %v2138, %v2142
      %v2145 = vmul.f32 %v2139, %v2142
      %v2146 = vadd.f32 %v2096, %v2144
      %v2147 = vadd.f32 %v2097, %v2145
      %2148 = vrot.lane.b32.xlu0 %v1983, 113
      %v2149 = vpop.permute.xlu0 %2148
      %2150 = vrot.lane.b32.xlu0 %v1984, 113
      %v2151 = vpop.permute.xlu0 %2150
      %v2152 = vsel %vm965, %v2149, %v2151
      %v2153 = vsel %vm965, %v2151, %v2149
      %v2154 = vld [vmem:[%s968] ss:$8 sm:$0x3]
      %v2156 = vlaneseq
      %v2157 = vshrl.u32 %v2156, 7
      %v2158 = vsub.s32 0, %v2157
      %v2159 = vrot.slane %v2154, %v2158
      %v2160 = vlaneseq
      %v2161 = vshrl.u32 %v2160, 7
      %v2162 = vsub.s32 1, %v2161
      %v2163 = vrot.slane %v2154, %v2162
      %v2166 = vmul.f32 %v2152, %v2159
      %v2167 = vmul.f32 %v2153, %v2163
      %2168 = vset.pattern.permute.xlu0 6
      %2169 = vperm.xlu0 %2168, %v1982
      %v2170 = vpop.permute.xlu0 %2169
      %v2172 = vmul.f32 %v2166, %v2170
      %v2173 = vmul.f32 %v2167, %v2170
      %v2174 = vadd.f32 %v2118, %v2172
      %v2175 = vadd.f32 %v2119, %v2173
      %2176 = vrot.lane.b32.xlu0 %v1983, 112
      %v2177 = vpop.permute.xlu0 %2176
      %2178 = vrot.lane.b32.xlu0 %v1984, 112
      %v2179 = vpop.permute.xlu0 %2178
      %v2180 = vsel %vm1007, %v2177, %v2179
      %v2181 = vsel %vm1007, %v2179, %v2177
      %v2182 = vld [vmem:[%s1010] ss:$8 sm:$0x3]
      %v2184 = vlaneseq
      %v2185 = vshrl.u32 %v2184, 7
      %v2186 = vsub.s32 0, %v2185
      %v2187 = vrot.slane %v2182, %v2186
      %v2188 = vlaneseq
      %v2189 = vshrl.u32 %v2188, 7
      %v2190 = vsub.s32 1, %v2189
      %v2191 = vrot.slane %v2182, %v2190
      %v2194 = vmul.f32 %v2180, %v2187
      %v2195 = vmul.f32 %v2181, %v2191
      %2196 = vset.pattern.permute.xlu0 7
      %2197 = vperm.xlu0 %2196, %v1982
      %v2198 = vpop.permute.xlu0 %2197
      %v2200 = vmul.f32 %v2194, %v2198
      %v2201 = vmul.f32 %v2195, %v2198
      %v2202 = vadd.f32 %v2146, %v2200
      %v2203 = vadd.f32 %v2147, %v2201
      %2204 = vrot.lane.b32.xlu0 %v1983, 111
      %v2205 = vpop.permute.xlu0 %2204
      %2206 = vrot.lane.b32.xlu0 %v1984, 111
      %v2207 = vpop.permute.xlu0 %2206
      %v2208 = vsel %vm1049, %v2205, %v2207
      %v2209 = vsel %vm1049, %v2207, %v2205
      %v2210 = vld [vmem:[%s1052] ss:$8 sm:$0x3]
      %v2212 = vlaneseq
      %v2213 = vshrl.u32 %v2212, 7
      %v2214 = vsub.s32 0, %v2213
      %v2215 = vrot.slane %v2210, %v2214
      %v2216 = vlaneseq
      %v2217 = vshrl.u32 %v2216, 7
      %v2218 = vsub.s32 1, %v2217
      %v2219 = vrot.slane %v2210, %v2218
      %v2222 = vmul.f32 %v2208, %v2215
      %v2223 = vmul.f32 %v2209, %v2219
      %2224 = vset.pattern.permute.xlu0 8
      %2225 = vperm.xlu0 %2224, %v1982
      %v2226 = vpop.permute.xlu0 %2225
      %v2228 = vmul.f32 %v2222, %v2226
      %v2229 = vmul.f32 %v2223, %v2226
      %v2230 = vadd.f32 %v2174, %v2228
      %v2231 = vadd.f32 %v2175, %v2229
      %v2232 = vadd.f32 %v2230, %v2202
      %v2233 = vadd.f32 %v2231, %v2203
      %v2234 = vld [vmem:[%s3 + $0x40] sm:$0xff]
      %v2235 = vld [vmem:[%s3 + $0x48] sm:$0xff]
      %2237 = vset.pattern.permute.xlu0 0
      %2238 = vperm.xlu0 %2237, %v2235
      %v2239 = vpop.permute.xlu0 %2238
      %v2242 = vsel %vm231, %v2234, 0
      %2244 = vmatprep.subr.mxu0 0.0
      %2245 = vmatpush1.msra.mxu0 0.0
      %2246 = vmatprep.subr.mxu0 0.0
      %2247 = vmatpush1.msra.mxu0 0.0
      %2248 = vmatprep.subr.mxu0 0.0
      %2249 = vmatpush1.msra.mxu0 0.0
      %2250 = vmatprep.subr.mxu0 0.0
      %2251 = vmatpush1.msra.mxu0 0.0
      %2252 = vmatprep.subr.mxu0 0.0
      %2253 = vmatpush1.msra.mxu0 0.0
      %2254 = vmatprep.subr.mxu0 0.0
      %2255 = vmatpush1.msra.mxu0 0.0
      %2256 = vmatprep.subr.mxu0 0.0
      %2257 = vmatpush1.msra.mxu0 0.0
      %2258 = vmatprep.subr.mxu0 0.0
      %2259 = vmatpush1.msra.mxu0 0.0
      %2260 = vmatprep.subr.mxu0 0.0
      %2261 = vmatpush1.msra.mxu0 0.0
      %2262 = vmatprep.subr.mxu0 0.0
      %2263 = vmatpush1.msra.mxu0 0.0
      %2264 = vmatprep.subr.mxu0 0.0
      %2265 = vmatpush1.msra.mxu0 0.0
      %2266 = vmatprep.subr.mxu0 0.0
      %2267 = vmatpush1.msra.mxu0 0.0
      %2268 = vmatprep.subr.mxu0 0.0
      %2269 = vmatpush1.msra.mxu0 0.0
      %2270 = vmatprep.subr.mxu0 0.0
      %2271 = vmatpush1.msra.mxu0 0.0
      %2272 = vmatprep.subr.mxu0 0.0
      %2273 = vmatpush1.msra.mxu0 0.0
      %2274 = vmatprep.subr.mxu0 %v2233
      %2275 = vmatpush1.msra.mxu0 %v2232
      %2276 = vmatprep.subr.mxu0 0.0
      %2277 = vmatpush2.msra.mxu0 0.0
      %2278 = vmatprep.subr.mxu0 0.0
      %2279 = vmatpush2.msra.mxu0 0.0
      %2280 = vmatprep.subr.mxu0 0.0
      %2281 = vmatpush2.msra.mxu0 0.0
      %2282 = vmatprep.subr.mxu0 0.0
      %2283 = vmatpush2.msra.mxu0 0.0
      %2284 = vmatprep.subr.mxu0 0.0
      %2285 = vmatpush2.msra.mxu0 0.0
      %2286 = vmatprep.subr.mxu0 0.0
      %2287 = vmatpush2.msra.mxu0 0.0
      %2288 = vmatprep.subr.mxu0 0.0
      %2289 = vmatpush2.msra.mxu0 0.0
      %2290 = vmatprep.subr.mxu0 0.0
      %2291 = vmatpush2.msra.mxu0 0.0
      %2292 = vmatprep.subr.mxu0 0.0
      %2293 = vmatpush2.msra.mxu0 0.0
      %2294 = vmatprep.subr.mxu0 0.0
      %2295 = vmatpush2.msra.mxu0 0.0
      %2296 = vmatprep.subr.mxu0 0.0
      %2297 = vmatpush2.msra.mxu0 0.0
      %2298 = vmatprep.subr.mxu0 0.0
      %2299 = vmatpush2.msra.mxu0 0.0
      %2300 = vmatprep.subr.mxu0 0.0
      %2301 = vmatpush2.msra.mxu0 0.0
      %2302 = vmatprep.subr.mxu0 0.0
      %2303 = vmatpush2.msra.mxu0 0.0
      %2304 = vmatprep.subr.mxu0 0.0
      %2305 = vmatpush2.msra.mxu0 0.0
      %2306 = vmatprep.subr.mxu0 0.0
      %2307 = vmatpush2.msra.mxu0 0.0
      %2308 = vmatprep.mubr.f32.mxu0 0.0
      %2309 = vmatmul.mubr.f32.gmra.mxu0 %v2242
      %v2310 = vpop.f32.mrf.mxu0
      %v2311 = vadd.f32 %v2239, %v2310
      %v2312 = vpop.f32.mrf.mxu0
      %v2313 = vadd.f32 %v2239, %v2312
      %2314 = vdwg.mxu0
      %v2315 = vadd.f32 %v2311, %v302
      %v2316 = vadd.f32 %v2313, %v304
      %2317 = vst [vmem:[%s217 + $0x10] sm:$0xff] %v2315
      %2318 = vst [vmem:[%s217 + $0x18] sm:$0xff] %v2316
      %v2319 = vld [vmem:[%s3 + $0x58] sm:$0xff]
      %v2320 = vld [vmem:[%s3 + $0x60] sm:$0xff]
      %2322 = vset.pattern.permute.xlu0 0
      %2323 = vperm.xlu0 %2322, %v2320
      %v2324 = vpop.permute.xlu0 %2323
      %v2327 = vsel %vm231, %v2319, 0
      %2329 = vmatprep.subr.mxu0 0.0
      %2330 = vmatpush1.msra.mxu0 0.0
      %2331 = vmatprep.subr.mxu0 0.0
      %2332 = vmatpush1.msra.mxu0 0.0
      %2333 = vmatprep.subr.mxu0 0.0
      %2334 = vmatpush1.msra.mxu0 0.0
      %2335 = vmatprep.subr.mxu0 0.0
      %2336 = vmatpush1.msra.mxu0 0.0
      %2337 = vmatprep.subr.mxu0 0.0
      %2338 = vmatpush1.msra.mxu0 0.0
      %2339 = vmatprep.subr.mxu0 0.0
      %2340 = vmatpush1.msra.mxu0 0.0
      %2341 = vmatprep.subr.mxu0 0.0
      %2342 = vmatpush1.msra.mxu0 0.0
      %2343 = vmatprep.subr.mxu0 0.0
      %2344 = vmatpush1.msra.mxu0 0.0
      %2345 = vmatprep.subr.mxu0 0.0
      %2346 = vmatpush1.msra.mxu0 0.0
      %2347 = vmatprep.subr.mxu0 0.0
      %2348 = vmatpush1.msra.mxu0 0.0
      %2349 = vmatprep.subr.mxu0 0.0
      %2350 = vmatpush1.msra.mxu0 0.0
      %2351 = vmatprep.subr.mxu0 0.0
      %2352 = vmatpush1.msra.mxu0 0.0
      %2353 = vmatprep.subr.mxu0 0.0
      %2354 = vmatpush1.msra.mxu0 0.0
      %2355 = vmatprep.subr.mxu0 0.0
      %2356 = vmatpush1.msra.mxu0 0.0
      %2357 = vmatprep.subr.mxu0 0.0
      %2358 = vmatpush1.msra.mxu0 0.0
      %2359 = vmatprep.subr.mxu0 %v1772
      %2360 = vmatpush1.msra.mxu0 %v1771
      %2361 = vmatprep.subr.mxu0 0.0
      %2362 = vmatpush2.msra.mxu0 0.0
      %2363 = vmatprep.subr.mxu0 0.0
      %2364 = vmatpush2.msra.mxu0 0.0
      %2365 = vmatprep.subr.mxu0 0.0
      %2366 = vmatpush2.msra.mxu0 0.0
      %2367 = vmatprep.subr.mxu0 0.0
      %2368 = vmatpush2.msra.mxu0 0.0
      %2369 = vmatprep.subr.mxu0 0.0
      %2370 = vmatpush2.msra.mxu0 0.0
      %2371 = vmatprep.subr.mxu0 0.0
      %2372 = vmatpush2.msra.mxu0 0.0
      %2373 = vmatprep.subr.mxu0 0.0
      %2374 = vmatpush2.msra.mxu0 0.0
      %2375 = vmatprep.subr.mxu0 0.0
      %2376 = vmatpush2.msra.mxu0 0.0
      %2377 = vmatprep.subr.mxu0 0.0
      %2378 = vmatpush2.msra.mxu0 0.0
      %2379 = vmatprep.subr.mxu0 0.0
      %2380 = vmatpush2.msra.mxu0 0.0
      %2381 = vmatprep.subr.mxu0 0.0
      %2382 = vmatpush2.msra.mxu0 0.0
      %2383 = vmatprep.subr.mxu0 0.0
      %2384 = vmatpush2.msra.mxu0 0.0
      %2385 = vmatprep.subr.mxu0 0.0
      %2386 = vmatpush2.msra.mxu0 0.0
      %2387 = vmatprep.subr.mxu0 0.0
      %2388 = vmatpush2.msra.mxu0 0.0
      %2389 = vmatprep.subr.mxu0 0.0
      %2390 = vmatpush2.msra.mxu0 0.0
      %2391 = vmatprep.subr.mxu0 0.0
      %2392 = vmatpush2.msra.mxu0 0.0
      %2393 = vmatprep.mubr.f32.mxu0 0.0
      %2394 = vmatmul.mubr.f32.gmra.mxu0 %v2327
      %v2395 = vpop.f32.mrf.mxu0
      %v2396 = vadd.f32 %v2324, %v2395
      %v2397 = vpop.f32.mrf.mxu0
      %v2398 = vadd.f32 %v2324, %v2397
      %2399 = vdwg.mxu0
      %v2400 = vld [vmem:[%s3 + $0x68] sm:$0xff]
      %v2401 = vmax.f32 %v2396, 0.0
      %v2402 = vmax.f32 %v2398, 0.0
      %2403 = vrot.lane.b32.xlu0 %v2401, 17
      %v2404 = vpop.permute.xlu0 %2403
      %2405 = vrot.lane.b32.xlu0 %v2402, 17
      %v2406 = vpop.permute.xlu0 %2405
      %v2407 = vsel %vm591, %v2404, %v2406
      %v2408 = vsel %vm591, %v2406, %v2404
      %v2409 = vld [vmem:[%s594] ss:$8 sm:$0x3]
      %v2411 = vlaneseq
      %v2412 = vshrl.u32 %v2411, 7
      %v2413 = vsub.s32 0, %v2412
      %v2414 = vrot.slane %v2409, %v2413
      %v2415 = vlaneseq
      %v2416 = vshrl.u32 %v2415, 7
      %v2417 = vsub.s32 1, %v2416
      %v2418 = vrot.slane %v2409, %v2417
      %v2421 = vmul.f32 %v2408, %v2414
      %v2422 = vmul.f32 %v2407, %v2418
      %2424 = vset.pattern.permute.xlu0 0
      %2425 = vperm.xlu0 %2424, %v2400
      %v2426 = vpop.permute.xlu0 %2425
      %v2428 = vmul.f32 %v2421, %v2426
      %v2429 = vmul.f32 %v2422, %v2426
      %v2430 = vadd.f32 %v2428, 0.0
      %v2431 = vadd.f32 %v2429, 0.0
      %2432 = vrot.lane.b32.xlu0 %v2401, 16
      %v2433 = vpop.permute.xlu0 %2432
      %2434 = vrot.lane.b32.xlu0 %v2402, 16
      %v2435 = vpop.permute.xlu0 %2434
      %v2436 = vsel %vm634, %v2433, %v2435
      %v2437 = vsel %vm634, %v2435, %v2433
      %v2438 = vld [vmem:[%s637] ss:$8 sm:$0x3]
      %v2440 = vlaneseq
      %v2441 = vshrl.u32 %v2440, 7
      %v2442 = vsub.s32 0, %v2441
      %v2443 = vrot.slane %v2438, %v2442
      %v2444 = vlaneseq
      %v2445 = vshrl.u32 %v2444, 7
      %v2446 = vsub.s32 1, %v2445
      %v2447 = vrot.slane %v2438, %v2446
      %v2450 = vmul.f32 %v2437, %v2443
      %v2451 = vmul.f32 %v2436, %v2447
      %2452 = vset.pattern.permute.xlu0 1
      %2453 = vperm.xlu0 %2452, %v2400
      %v2454 = vpop.permute.xlu0 %2453
      %v2456 = vmul.f32 %v2450, %v2454
      %v2457 = vmul.f32 %v2451, %v2454
      %v2458 = vadd.f32 %v2456, 0.0
      %v2459 = vadd.f32 %v2457, 0.0
      %2460 = vrot.lane.b32.xlu0 %v2401, 15
      %v2461 = vpop.permute.xlu0 %2460
      %2462 = vrot.lane.b32.xlu0 %v2402, 15
      %v2463 = vpop.permute.xlu0 %2462
      %v2464 = vsel %vm676, %v2461, %v2463
      %v2465 = vsel %vm676, %v2463, %v2461
      %v2466 = vld [vmem:[%s679] ss:$8 sm:$0x3]
      %v2468 = vlaneseq
      %v2469 = vshrl.u32 %v2468, 7
      %v2470 = vsub.s32 0, %v2469
      %v2471 = vrot.slane %v2466, %v2470
      %v2472 = vlaneseq
      %v2473 = vshrl.u32 %v2472, 7
      %v2474 = vsub.s32 1, %v2473
      %v2475 = vrot.slane %v2466, %v2474
      %v2478 = vmul.f32 %v2465, %v2471
      %v2479 = vmul.f32 %v2464, %v2475
      %2480 = vset.pattern.permute.xlu0 2
      %2481 = vperm.xlu0 %2480, %v2400
      %v2482 = vpop.permute.xlu0 %2481
      %v2484 = vmul.f32 %v2478, %v2482
      %v2485 = vmul.f32 %v2479, %v2482
      %v2486 = vadd.f32 %v2430, %v2484
      %v2487 = vadd.f32 %v2431, %v2485
      %2488 = vrot.lane.b32.xlu0 %v2401, 1
      %v2489 = vpop.permute.xlu0 %2488
      %2490 = vrot.lane.b32.xlu0 %v2402, 1
      %v2491 = vpop.permute.xlu0 %2490
      %v2492 = vsel %vm782, %v2489, %v2491
      %v2493 = vsel %vm782, %v2491, %v2489
      %v2494 = vld [vmem:[%s785] ss:$8 sm:$0x3]
      %v2496 = vlaneseq
      %v2497 = vshrl.u32 %v2496, 7
      %v2498 = vsub.s32 0, %v2497
      %v2499 = vrot.slane %v2494, %v2498
      %v2500 = vlaneseq
      %v2501 = vshrl.u32 %v2500, 7
      %v2502 = vsub.s32 1, %v2501
      %v2503 = vrot.slane %v2494, %v2502
      %v2506 = vmul.f32 %v2493, %v2499
      %v2507 = vmul.f32 %v2492, %v2503
      %2508 = vset.pattern.permute.xlu0 3
      %2509 = vperm.xlu0 %2508, %v2400
      %v2510 = vpop.permute.xlu0 %2509
      %v2512 = vmul.f32 %v2506, %v2510
      %v2513 = vmul.f32 %v2507, %v2510
      %v2514 = vadd.f32 %v2458, %v2512
      %v2515 = vadd.f32 %v2459, %v2513
      %v2516 = vld [vmem:[%s820] ss:$8 sm:$0x3]
      %v2518 = vlaneseq
      %v2519 = vshrl.u32 %v2518, 7
      %v2520 = vsub.s32 0, %v2519
      %v2521 = vrot.slane %v2516, %v2520
      %v2522 = vlaneseq
      %v2523 = vshrl.u32 %v2522, 7
      %v2524 = vsub.s32 1, %v2523
      %v2525 = vrot.slane %v2516, %v2524
      %v2528 = vmul.f32 %v2401, %v2521
      %v2529 = vmul.f32 %v2402, %v2525
      %2530 = vset.pattern.permute.xlu0 4
      %2531 = vperm.xlu0 %2530, %v2400
      %v2532 = vpop.permute.xlu0 %2531
      %v2534 = vmul.f32 %v2528, %v2532
      %v2535 = vmul.f32 %v2529, %v2532
      %v2536 = vadd.f32 %v2486, %v2534
      %v2537 = vadd.f32 %v2487, %v2535
      %2538 = vrot.lane.b32.xlu0 %v2401, 127
      %v2539 = vpop.permute.xlu0 %2538
      %2540 = vrot.lane.b32.xlu0 %v2402, 127
      %v2541 = vpop.permute.xlu0 %2540
      %v2542 = vsel %vm859, %v2539, %v2541
      %v2543 = vsel %vm859, %v2541, %v2539
      %v2544 = vld [vmem:[%s862] ss:$8 sm:$0x3]
      %v2546 = vlaneseq
      %v2547 = vshrl.u32 %v2546, 7
      %v2548 = vsub.s32 0, %v2547
      %v2549 = vrot.slane %v2544, %v2548
      %v2550 = vlaneseq
      %v2551 = vshrl.u32 %v2550, 7
      %v2552 = vsub.s32 1, %v2551
      %v2553 = vrot.slane %v2544, %v2552
      %v2556 = vmul.f32 %v2542, %v2549
      %v2557 = vmul.f32 %v2543, %v2553
      %2558 = vset.pattern.permute.xlu0 5
      %2559 = vperm.xlu0 %2558, %v2400
      %v2560 = vpop.permute.xlu0 %2559
      %v2562 = vmul.f32 %v2556, %v2560
      %v2563 = vmul.f32 %v2557, %v2560
      %v2564 = vadd.f32 %v2514, %v2562
      %v2565 = vadd.f32 %v2515, %v2563
      %2566 = vrot.lane.b32.xlu0 %v2401, 113
      %v2567 = vpop.permute.xlu0 %2566
      %2568 = vrot.lane.b32.xlu0 %v2402, 113
      %v2569 = vpop.permute.xlu0 %2568
      %v2570 = vsel %vm965, %v2567, %v2569
      %v2571 = vsel %vm965, %v2569, %v2567
      %v2572 = vld [vmem:[%s968] ss:$8 sm:$0x3]
      %v2574 = vlaneseq
      %v2575 = vshrl.u32 %v2574, 7
      %v2576 = vsub.s32 0, %v2575
      %v2577 = vrot.slane %v2572, %v2576
      %v2578 = vlaneseq
      %v2579 = vshrl.u32 %v2578, 7
      %v2580 = vsub.s32 1, %v2579
      %v2581 = vrot.slane %v2572, %v2580
      %v2584 = vmul.f32 %v2570, %v2577
      %v2585 = vmul.f32 %v2571, %v2581
      %2586 = vset.pattern.permute.xlu0 6
      %2587 = vperm.xlu0 %2586, %v2400
      %v2588 = vpop.permute.xlu0 %2587
      %v2590 = vmul.f32 %v2584, %v2588
      %v2591 = vmul.f32 %v2585, %v2588
      %v2592 = vadd.f32 %v2536, %v2590
      %v2593 = vadd.f32 %v2537, %v2591
      %2594 = vrot.lane.b32.xlu0 %v2401, 112
      %v2595 = vpop.permute.xlu0 %2594
      %2596 = vrot.lane.b32.xlu0 %v2402, 112
      %v2597 = vpop.permute.xlu0 %2596
      %v2598 = vsel %vm1007, %v2595, %v2597
      %v2599 = vsel %vm1007, %v2597, %v2595
      %v2600 = vld [vmem:[%s1010] ss:$8 sm:$0x3]
      %v2602 = vlaneseq
      %v2603 = vshrl.u32 %v2602, 7
      %v2604 = vsub.s32 0, %v2603
      %v2605 = vrot.slane %v2600, %v2604
      %v2606 = vlaneseq
      %v2607 = vshrl.u32 %v2606, 7
      %v2608 = vsub.s32 1, %v2607
      %v2609 = vrot.slane %v2600, %v2608
      %v2612 = vmul.f32 %v2598, %v2605
      %v2613 = vmul.f32 %v2599, %v2609
      %2614 = vset.pattern.permute.xlu0 7
      %2615 = vperm.xlu0 %2614, %v2400
      %v2616 = vpop.permute.xlu0 %2615
      %v2618 = vmul.f32 %v2612, %v2616
      %v2619 = vmul.f32 %v2613, %v2616
      %v2620 = vadd.f32 %v2564, %v2618
      %v2621 = vadd.f32 %v2565, %v2619
      %2622 = vrot.lane.b32.xlu0 %v2401, 111
      %v2623 = vpop.permute.xlu0 %2622
      %2624 = vrot.lane.b32.xlu0 %v2402, 111
      %v2625 = vpop.permute.xlu0 %2624
      %v2626 = vsel %vm1049, %v2623, %v2625
      %v2627 = vsel %vm1049, %v2625, %v2623
      %v2628 = vld [vmem:[%s1052] ss:$8 sm:$0x3]
      %v2630 = vlaneseq
      %v2631 = vshrl.u32 %v2630, 7
      %v2632 = vsub.s32 0, %v2631
      %v2633 = vrot.slane %v2628, %v2632
      %v2634 = vlaneseq
      %v2635 = vshrl.u32 %v2634, 7
      %v2636 = vsub.s32 1, %v2635
      %v2637 = vrot.slane %v2628, %v2636
      %v2640 = vmul.f32 %v2626, %v2633
      %v2641 = vmul.f32 %v2627, %v2637
      %2642 = vset.pattern.permute.xlu0 8
      %2643 = vperm.xlu0 %2642, %v2400
      %v2644 = vpop.permute.xlu0 %2643
      %v2646 = vmul.f32 %v2640, %v2644
      %v2647 = vmul.f32 %v2641, %v2644
      %v2648 = vadd.f32 %v2592, %v2646
      %v2649 = vadd.f32 %v2593, %v2647
      %v2650 = vadd.f32 %v2648, %v2620
      %v2651 = vadd.f32 %v2649, %v2621
      %v2652 = vld [vmem:[%s3 + $0x70] sm:$0xff]
      %v2653 = vld [vmem:[%s3 + $0x78] sm:$0xff]
      %2655 = vset.pattern.permute.xlu0 0
      %2656 = vperm.xlu0 %2655, %v2653
      %v2657 = vpop.permute.xlu0 %2656
      %v2660 = vsel %vm231, %v2652, 0
      %2662 = vmatprep.subr.mxu0 0.0
      %2663 = vmatpush1.msra.mxu0 0.0
      %2664 = vmatprep.subr.mxu0 0.0
      %2665 = vmatpush1.msra.mxu0 0.0
      %2666 = vmatprep.subr.mxu0 0.0
      %2667 = vmatpush1.msra.mxu0 0.0
      %2668 = vmatprep.subr.mxu0 0.0
      %2669 = vmatpush1.msra.mxu0 0.0
      %2670 = vmatprep.subr.mxu0 0.0
      %2671 = vmatpush1.msra.mxu0 0.0
      %2672 = vmatprep.subr.mxu0 0.0
      %2673 = vmatpush1.msra.mxu0 0.0
      %2674 = vmatprep.subr.mxu0 0.0
      %2675 = vmatpush1.msra.mxu0 0.0
      %2676 = vmatprep.subr.mxu0 0.0
      %2677 = vmatpush1.msra.mxu0 0.0
      %2678 = vmatprep.subr.mxu0 0.0
      %2679 = vmatpush1.msra.mxu0 0.0
      %2680 = vmatprep.subr.mxu0 0.0
      %2681 = vmatpush1.msra.mxu0 0.0
      %2682 = vmatprep.subr.mxu0 0.0
      %2683 = vmatpush1.msra.mxu0 0.0
      %2684 = vmatprep.subr.mxu0 0.0
      %2685 = vmatpush1.msra.mxu0 0.0
      %2686 = vmatprep.subr.mxu0 0.0
      %2687 = vmatpush1.msra.mxu0 0.0
      %2688 = vmatprep.subr.mxu0 0.0
      %2689 = vmatpush1.msra.mxu0 0.0
      %2690 = vmatprep.subr.mxu0 0.0
      %2691 = vmatpush1.msra.mxu0 0.0
      %2692 = vmatprep.subr.mxu0 %v2651
      %2693 = vmatpush1.msra.mxu0 %v2650
      %2694 = vmatprep.subr.mxu0 0.0
      %2695 = vmatpush2.msra.mxu0 0.0
      %2696 = vmatprep.subr.mxu0 0.0
      %2697 = vmatpush2.msra.mxu0 0.0
      %2698 = vmatprep.subr.mxu0 0.0
      %2699 = vmatpush2.msra.mxu0 0.0
      %2700 = vmatprep.subr.mxu0 0.0
      %2701 = vmatpush2.msra.mxu0 0.0
      %2702 = vmatprep.subr.mxu0 0.0
      %2703 = vmatpush2.msra.mxu0 0.0
      %2704 = vmatprep.subr.mxu0 0.0
      %2705 = vmatpush2.msra.mxu0 0.0
      %2706 = vmatprep.subr.mxu0 0.0
      %2707 = vmatpush2.msra.mxu0 0.0
      %2708 = vmatprep.subr.mxu0 0.0
      %2709 = vmatpush2.msra.mxu0 0.0
      %2710 = vmatprep.subr.mxu0 0.0
      %2711 = vmatpush2.msra.mxu0 0.0
      %2712 = vmatprep.subr.mxu0 0.0
      %2713 = vmatpush2.msra.mxu0 0.0
      %2714 = vmatprep.subr.mxu0 0.0
      %2715 = vmatpush2.msra.mxu0 0.0
      %2716 = vmatprep.subr.mxu0 0.0
      %2717 = vmatpush2.msra.mxu0 0.0
      %2718 = vmatprep.subr.mxu0 0.0
      %2719 = vmatpush2.msra.mxu0 0.0
      %2720 = vmatprep.subr.mxu0 0.0
      %2721 = vmatpush2.msra.mxu0 0.0
      %2722 = vmatprep.subr.mxu0 0.0
      %2723 = vmatpush2.msra.mxu0 0.0
      %2724 = vmatprep.subr.mxu0 0.0
      %2725 = vmatpush2.msra.mxu0 0.0
      %2726 = vmatprep.mubr.f32.mxu0 0.0
      %2727 = vmatmul.mubr.f32.gmra.mxu0 %v2660
      %v2728 = vpop.f32.mrf.mxu0
      %v2729 = vadd.f32 %v2657, %v2728
      %v2730 = vpop.f32.mrf.mxu0
      %v2731 = vadd.f32 %v2657, %v2730
      %2732 = vdwg.mxu0
      %v2733 = vadd.f32 %v1277, %v1245
      %v2734 = vadd.f32 %v1278, %v1246
      %v2735 = vld [vmem:[%s3 + $0x88] sm:$0xff]
      %v2736 = vld [vmem:[%s3 + $0x90] sm:$0xff]
      %2738 = vset.pattern.permute.xlu0 0
      %2739 = vperm.xlu0 %2738, %v2736
      %v2740 = vpop.permute.xlu0 %2739
      %v2743 = vsel %vm231, %v2735, 0
      %2745 = vmatprep.subr.mxu0 0.0
      %2746 = vmatpush1.msra.mxu0 0.0
      %2747 = vmatprep.subr.mxu0 0.0
      %2748 = vmatpush1.msra.mxu0 0.0
      %2749 = vmatprep.subr.mxu0 0.0
      %2750 = vmatpush1.msra.mxu0 0.0
      %2751 = vmatprep.subr.mxu0 0.0
      %2752 = vmatpush1.msra.mxu0 0.0
      %2753 = vmatprep.subr.mxu0 0.0
      %2754 = vmatpush1.msra.mxu0 0.0
      %2755 = vmatprep.subr.mxu0 0.0
      %2756 = vmatpush1.msra.mxu0 0.0
      %2757 = vmatprep.subr.mxu0 0.0
      %2758 = vmatpush1.msra.mxu0 0.0
      %2759 = vmatprep.subr.mxu0 0.0
      %2760 = vmatpush1.msra.mxu0 0.0
      %2761 = vmatprep.subr.mxu0 0.0
      %2762 = vmatpush1.msra.mxu0 0.0
      %2763 = vmatprep.subr.mxu0 0.0
      %2764 = vmatpush1.msra.mxu0 0.0
      %2765 = vmatprep.subr.mxu0 0.0
      %2766 = vmatpush1.msra.mxu0 0.0
      %2767 = vmatprep.subr.mxu0 0.0
      %2768 = vmatpush1.msra.mxu0 0.0
      %2769 = vmatprep.subr.mxu0 0.0
      %2770 = vmatpush1.msra.mxu0 0.0
      %2771 = vmatprep.subr.mxu0 0.0
      %2772 = vmatpush1.msra.mxu0 0.0
      %2773 = vmatprep.subr.mxu0 0.0
      %2774 = vmatpush1.msra.mxu0 0.0
      %2775 = vmatprep.subr.mxu0 %v2734
      %2776 = vmatpush1.msra.mxu0 %v2733
      %2777 = vmatprep.subr.mxu0 0.0
      %2778 = vmatpush2.msra.mxu0 0.0
      %2779 = vmatprep.subr.mxu0 0.0
      %2780 = vmatpush2.msra.mxu0 0.0
      %2781 = vmatprep.subr.mxu0 0.0
      %2782 = vmatpush2.msra.mxu0 0.0
      %2783 = vmatprep.subr.mxu0 0.0
      %2784 = vmatpush2.msra.mxu0 0.0
      %2785 = vmatprep.subr.mxu0 0.0
      %2786 = vmatpush2.msra.mxu0 0.0
      %2787 = vmatprep.subr.mxu0 0.0
      %2788 = vmatpush2.msra.mxu0 0.0
      %2789 = vmatprep.subr.mxu0 0.0
      %2790 = vmatpush2.msra.mxu0 0.0
      %2791 = vmatprep.subr.mxu0 0.0
      %2792 = vmatpush2.msra.mxu0 0.0
      %2793 = vmatprep.subr.mxu0 0.0
      %2794 = vmatpush2.msra.mxu0 0.0
      %2795 = vmatprep.subr.mxu0 0.0
      %2796 = vmatpush2.msra.mxu0 0.0
      %2797 = vmatprep.subr.mxu0 0.0
      %2798 = vmatpush2.msra.mxu0 0.0
      %2799 = vmatprep.subr.mxu0 0.0
      %2800 = vmatpush2.msra.mxu0 0.0
      %2801 = vmatprep.subr.mxu0 0.0
      %2802 = vmatpush2.msra.mxu0 0.0
      %2803 = vmatprep.subr.mxu0 0.0
      %2804 = vmatpush2.msra.mxu0 0.0
      %2805 = vmatprep.subr.mxu0 0.0
      %2806 = vmatpush2.msra.mxu0 0.0
      %2807 = vmatprep.subr.mxu0 0.0
      %2808 = vmatpush2.msra.mxu0 0.0
      %2809 = vmatprep.mubr.f32.mxu0 0.0
      %2810 = vmatmul.mubr.f32.gmra.mxu0 %v2743
      %v2811 = vpop.f32.mrf.mxu0
      %v2812 = vadd.f32 %v2740, %v2811
      %v2813 = vpop.f32.mrf.mxu0
      %v2814 = vadd.f32 %v2740, %v2813
      %2815 = vdwg.mxu0
      %v2816 = vld [vmem:[%s3 + $0x98] sm:$0xff]
      %v2817 = vmax.f32 %v2812, 0.0
      %v2818 = vmax.f32 %v2814, 0.0
      %2819 = vrot.lane.b32.xlu0 %v2817, 34
      %v2820 = vpop.permute.xlu0 %2819
      %2821 = vrot.lane.b32.xlu0 %v2818, 34
      %v2822 = vpop.permute.xlu0 %2821
      %v2823 = vsel %vm399, %v2820, %v2822
      %v2824 = vsel %vm399, %v2822, %v2820
      %v2825 = vld [vmem:[%s2] ss:$8 sm:$0x3]
      %v2827 = vlaneseq
      %v2828 = vshrl.u32 %v2827, 7
      %v2829 = vsub.s32 0, %v2828
      %v2830 = vrot.slane %v2825, %v2829
      %v2831 = vlaneseq
      %v2832 = vshrl.u32 %v2831, 7
      %v2833 = vsub.s32 1, %v2832
      %v2834 = vrot.slane %v2825, %v2833
      %v2837 = vmul.f32 %v2824, %v2830
      %v2838 = vmul.f32 %v2823, %v2834
      %2840 = vset.pattern.permute.xlu0 0
      %2841 = vperm.xlu0 %2840, %v2816
      %v2842 = vpop.permute.xlu0 %2841
      %v2844 = vmul.f32 %v2837, %v2842
      %v2845 = vmul.f32 %v2838, %v2842
      %v2846 = vadd.f32 %v2844, 0.0
      %v2847 = vadd.f32 %v2845, 0.0
      %2848 = vrot.lane.b32.xlu0 %v2817, 33
      %v2849 = vpop.permute.xlu0 %2848
      %2850 = vrot.lane.b32.xlu0 %v2818, 33
      %v2851 = vpop.permute.xlu0 %2850
      %v2852 = vsel %vm431, %v2849, %v2851
      %v2853 = vsel %vm431, %v2851, %v2849
      %v2854 = vld [vmem:[%s434] ss:$8 sm:$0x3]
      %v2856 = vlaneseq
      %v2857 = vshrl.u32 %v2856, 7
      %v2858 = vsub.s32 0, %v2857
      %v2859 = vrot.slane %v2854, %v2858
      %v2860 = vlaneseq
      %v2861 = vshrl.u32 %v2860, 7
      %v2862 = vsub.s32 1, %v2861
      %v2863 = vrot.slane %v2854, %v2862
      %v2866 = vmul.f32 %v2853, %v2859
      %v2867 = vmul.f32 %v2852, %v2863
      %2868 = vset.pattern.permute.xlu0 1
      %2869 = vperm.xlu0 %2868, %v2816
      %v2870 = vpop.permute.xlu0 %2869
      %v2872 = vmul.f32 %v2866, %v2870
      %v2873 = vmul.f32 %v2867, %v2870
      %v2874 = vadd.f32 %v2872, 0.0
      %v2875 = vadd.f32 %v2873, 0.0
      %2876 = vrot.lane.b32.xlu0 %v2817, 32
      %v2877 = vpop.permute.xlu0 %2876
      %2878 = vrot.lane.b32.xlu0 %v2818, 32
      %v2879 = vpop.permute.xlu0 %2878
      %v2880 = vsel %vm463, %v2877, %v2879
      %v2881 = vsel %vm463, %v2879, %v2877
      %v2882 = vld [vmem:[%s466] ss:$8 sm:$0x3]
      %v2884 = vlaneseq
      %v2885 = vshrl.u32 %v2884, 7
      %v2886 = vsub.s32 0, %v2885
      %v2887 = vrot.slane %v2882, %v2886
      %v2888 = vlaneseq
      %v2889 = vshrl.u32 %v2888, 7
      %v2890 = vsub.s32 1, %v2889
      %v2891 = vrot.slane %v2882, %v2890
      %v2894 = vmul.f32 %v2881, %v2887
      %v2895 = vmul.f32 %v2880, %v2891
      %2896 = vset.pattern.permute.xlu0 2
      %2897 = vperm.xlu0 %2896, %v2816
      %v2898 = vpop.permute.xlu0 %2897
      %v2900 = vmul.f32 %v2894, %v2898
      %v2901 = vmul.f32 %v2895, %v2898
      %v2902 = vadd.f32 %v2846, %v2900
      %v2903 = vadd.f32 %v2847, %v2901
      %2904 = vrot.lane.b32.xlu0 %v2817, 31
      %v2905 = vpop.permute.xlu0 %2904
      %2906 = vrot.lane.b32.xlu0 %v2818, 31
      %v2907 = vpop.permute.xlu0 %2906
      %v2908 = vsel %vm495, %v2905, %v2907
      %v2909 = vsel %vm495, %v2907, %v2905
      %v2910 = vld [vmem:[%s498] ss:$8 sm:$0x3]
      %v2912 = vlaneseq
      %v2913 = vshrl.u32 %v2912, 7
      %v2914 = vsub.s32 0, %v2913
      %v2915 = vrot.slane %v2910, %v2914
      %v2916 = vlaneseq
      %v2917 = vshrl.u32 %v2916, 7
      %v2918 = vsub.s32 1, %v2917
      %v2919 = vrot.slane %v2910, %v2918
      %v2922 = vmul.f32 %v2909, %v2915
      %v2923 = vmul.f32 %v2908, %v2919
      %2924 = vset.pattern.permute.xlu0 3
      %2925 = vperm.xlu0 %2924, %v2816
      %v2926 = vpop.permute.xlu0 %2925
      %v2928 = vmul.f32 %v2922, %v2926
      %v2929 = vmul.f32 %v2923, %v2926
      %v2930 = vadd.f32 %v2874, %v2928
      %v2931 = vadd.f32 %v2875, %v2929
      %2932 = vrot.lane.b32.xlu0 %v2817, 30
      %v2933 = vpop.permute.xlu0 %2932
      %2934 = vrot.lane.b32.xlu0 %v2818, 30
      %v2935 = vpop.permute.xlu0 %2934
      %v2936 = vsel %vm527, %v2933, %v2935
      %v2937 = vsel %vm527, %v2935, %v2933
      %v2938 = vld [vmem:[%s530] ss:$8 sm:$0x3]
      %v2940 = vlaneseq
      %v2941 = vshrl.u32 %v2940, 7
      %v2942 = vsub.s32 0, %v2941
      %v2943 = vrot.slane %v2938, %v2942
      %v2944 = vlaneseq
      %v2945 = vshrl.u32 %v2944, 7
      %v2946 = vsub.s32 1, %v2945
      %v2947 = vrot.slane %v2938, %v2946
      %v2950 = vmul.f32 %v2937, %v2943
      %v2951 = vmul.f32 %v2936, %v2947
      %2952 = vset.pattern.permute.xlu0 4
      %2953 = vperm.xlu0 %2952, %v2816
      %v2954 = vpop.permute.xlu0 %2953
      %v2956 = vmul.f32 %v2950, %v2954
      %v2957 = vmul.f32 %v2951, %v2954
      %v2958 = vadd.f32 %v2902, %v2956
      %v2959 = vadd.f32 %v2903, %v2957
      %2960 = vrot.lane.b32.xlu0 %v2817, 18
      %v2961 = vpop.permute.xlu0 %2960
      %2962 = vrot.lane.b32.xlu0 %v2818, 18
      %v2963 = vpop.permute.xlu0 %2962
      %v2964 = vsel %vm559, %v2961, %v2963
      %v2965 = vsel %vm559, %v2963, %v2961
      %v2966 = vld [vmem:[%s562] ss:$8 sm:$0x3]
      %v2968 = vlaneseq
      %v2969 = vshrl.u32 %v2968, 7
      %v2970 = vsub.s32 0, %v2969
      %v2971 = vrot.slane %v2966, %v2970
      %v2972 = vlaneseq
      %v2973 = vshrl.u32 %v2972, 7
      %v2974 = vsub.s32 1, %v2973
      %v2975 = vrot.slane %v2966, %v2974
      %v2978 = vmul.f32 %v2965, %v2971
      %v2979 = vmul.f32 %v2964, %v2975
      %2980 = vset.pattern.permute.xlu0 5
      %2981 = vperm.xlu0 %2980, %v2816
      %v2982 = vpop.permute.xlu0 %2981
      %v2984 = vmul.f32 %v2978, %v2982
      %v2985 = vmul.f32 %v2979, %v2982
      %v2986 = vadd.f32 %v2930, %v2984
      %v2987 = vadd.f32 %v2931, %v2985
      %2988 = vrot.lane.b32.xlu0 %v2817, 17
      %v2989 = vpop.permute.xlu0 %2988
      %2990 = vrot.lane.b32.xlu0 %v2818, 17
      %v2991 = vpop.permute.xlu0 %2990
      %v2992 = vsel %vm591, %v2989, %v2991
      %v2993 = vsel %vm591, %v2991, %v2989
      %v2994 = vmul.f32 %v2993, %v2414
      %v2995 = vmul.f32 %v2992, %v2418
      %2996 = vset.pattern.permute.xlu0 6
      %2997 = vperm.xlu0 %2996, %v2816
      %v2998 = vpop.permute.xlu0 %2997
      %v3000 = vmul.f32 %v2994, %v2998
      %v3001 = vmul.f32 %v2995, %v2998
      %v3002 = vadd.f32 %v2958, %v3000
      %v3003 = vadd.f32 %v2959, %v3001
      %3004 = vrot.lane.b32.xlu0 %v2817, 16
      %v3005 = vpop.permute.xlu0 %3004
      %3006 = vrot.lane.b32.xlu0 %v2818, 16
      %v3007 = vpop.permute.xlu0 %3006
      %v3008 = vsel %vm634, %v3005, %v3007
      %v3009 = vsel %vm634, %v3007, %v3005
      %v3010 = vmul.f32 %v3009, %v2443
      %v3011 = vmul.f32 %v3008, %v2447
      %3012 = vset.pattern.permute.xlu0 7
      %3013 = vperm.xlu0 %3012, %v2816
      %v3014 = vpop.permute.xlu0 %3013
      %v3016 = vmul.f32 %v3010, %v3014
      %v3017 = vmul.f32 %v3011, %v3014
      %v3018 = vadd.f32 %v2986, %v3016
      %v3019 = vadd.f32 %v2987, %v3017
      %3020 = vrot.lane.b32.xlu0 %v2817, 15
      %v3021 = vpop.permute.xlu0 %3020
      %3022 = vrot.lane.b32.xlu0 %v2818, 15
      %v3023 = vpop.permute.xlu0 %3022
      %v3024 = vsel %vm676, %v3021, %v3023
      %v3025 = vsel %vm676, %v3023, %v3021
      %v3026 = vmul.f32 %v3025, %v2471
      %v3027 = vmul.f32 %v3024, %v2475
      %3028 = vset.pattern.permute.xlu0 8
      %3029 = vperm.xlu0 %3028, %v2816
      %v3030 = vpop.permute.xlu0 %3029
      %v3032 = vmul.f32 %v3026, %v3030
      %v3033 = vmul.f32 %v3027, %v3030
      %v3034 = vadd.f32 %v3002, %v3032
      %v3035 = vadd.f32 %v3003, %v3033
      %3036 = vrot.lane.b32.xlu0 %v2817, 14
      %v3037 = vpop.permute.xlu0 %3036
      %3038 = vrot.lane.b32.xlu0 %v2818, 14
      %v3039 = vpop.permute.xlu0 %3038
      %v3040 = vsel %vm718, %v3037, %v3039
      %v3041 = vsel %vm718, %v3039, %v3037
      %v3042 = vld [vmem:[%s721] ss:$8 sm:$0x3]
      %v3044 = vlaneseq
      %v3045 = vshrl.u32 %v3044, 7
      %v3046 = vsub.s32 0, %v3045
      %v3047 = vrot.slane %v3042, %v3046
      %v3048 = vlaneseq
      %v3049 = vshrl.u32 %v3048, 7
      %v3050 = vsub.s32 1, %v3049
      %v3051 = vrot.slane %v3042, %v3050
      %v3054 = vmul.f32 %v3041, %v3047
      %v3055 = vmul.f32 %v3040, %v3051
      %3056 = vset.pattern.permute.xlu0 9
      %3057 = vperm.xlu0 %3056, %v2816
      %v3058 = vpop.permute.xlu0 %3057
      %v3060 = vmul.f32 %v3054, %v3058
      %v3061 = vmul.f32 %v3055, %v3058
      %v3062 = vadd.f32 %v3018, %v3060
      %v3063 = vadd.f32 %v3019, %v3061
      %3064 = vrot.lane.b32.xlu0 %v2817, 2
      %v3065 = vpop.permute.xlu0 %3064
      %3066 = vrot.lane.b32.xlu0 %v2818, 2
      %v3067 = vpop.permute.xlu0 %3066
      %v3068 = vsel %vm750, %v3065, %v3067
      %v3069 = vsel %vm750, %v3067, %v3065
      %v3070 = vld [vmem:[%s753] ss:$8 sm:$0x3]
      %v3072 = vlaneseq
      %v3073 = vshrl.u32 %v3072, 7
      %v3074 = vsub.s32 0, %v3073
      %v3075 = vrot.slane %v3070, %v3074
      %v3076 = vlaneseq
      %v3077 = vshrl.u32 %v3076, 7
      %v3078 = vsub.s32 1, %v3077
      %v3079 = vrot.slane %v3070, %v3078
      %v3082 = vmul.f32 %v3069, %v3075
      %v3083 = vmul.f32 %v3068, %v3079
      %3084 = vset.pattern.permute.xlu0 10
      %3085 = vperm.xlu0 %3084, %v2816
      %v3086 = vpop.permute.xlu0 %3085
      %v3088 = vmul.f32 %v3082, %v3086
      %v3089 = vmul.f32 %v3083, %v3086
      %v3090 = vadd.f32 %v3034, %v3088
      %v3091 = vadd.f32 %v3035, %v3089
      %3092 = vrot.lane.b32.xlu0 %v2817, 1
      %v3093 = vpop.permute.xlu0 %3092
      %3094 = vrot.lane.b32.xlu0 %v2818, 1
      %v3095 = vpop.permute.xlu0 %3094
      %v3096 = vsel %vm782, %v3093, %v3095
      %v3097 = vsel %vm782, %v3095, %v3093
      %v3098 = vmul.f32 %v3097, %v2499
      %v3099 = vmul.f32 %v3096, %v2503
      %3100 = vset.pattern.permute.xlu0 11
      %3101 = vperm.xlu0 %3100, %v2816
      %v3102 = vpop.permute.xlu0 %3101
      %v3104 = vmul.f32 %v3098, %v3102
      %v3105 = vmul.f32 %v3099, %v3102
      %v3106 = vadd.f32 %v3062, %v3104
      %v3107 = vadd.f32 %v3063, %v3105
      %v3108 = vmul.f32 %v2817, %v2521
      %v3109 = vmul.f32 %v2818, %v2525
      %3110 = vset.pattern.permute.xlu0 12
      %3111 = vperm.xlu0 %3110, %v2816
      %v3112 = vpop.permute.xlu0 %3111
      %v3114 = vmul.f32 %v3108, %v3112
      %v3115 = vmul.f32 %v3109, %v3112
      %v3116 = vadd.f32 %v3090, %v3114
      %v3117 = vadd.f32 %v3091, %v3115
      %3118 = vrot.lane.b32.xlu0 %v2817, 127
      %v3119 = vpop.permute.xlu0 %3118
      %3120 = vrot.lane.b32.xlu0 %v2818, 127
      %v3121 = vpop.permute.xlu0 %3120
      %v3122 = vsel %vm859, %v3119, %v3121
      %v3123 = vsel %vm859, %v3121, %v3119
      %v3124 = vmul.f32 %v3122, %v2549
      %v3125 = vmul.f32 %v3123, %v2553
      %3126 = vset.pattern.permute.xlu0 13
      %3127 = vperm.xlu0 %3126, %v2816
      %v3128 = vpop.permute.xlu0 %3127
      %v3130 = vmul.f32 %v3124, %v3128
      %v3131 = vmul.f32 %v3125, %v3128
      %v3132 = vadd.f32 %v3106, %v3130
      %v3133 = vadd.f32 %v3107, %v3131
      %3134 = vrot.lane.b32.xlu0 %v2817, 126
      %v3135 = vpop.permute.xlu0 %3134
      %3136 = vrot.lane.b32.xlu0 %v2818, 126
      %v3137 = vpop.permute.xlu0 %3136
      %v3138 = vsel %vm901, %v3135, %v3137
      %v3139 = vsel %vm901, %v3137, %v3135
      %v3140 = vld [vmem:[%s904] ss:$8 sm:$0x3]
      %v3142 = vlaneseq
      %v3143 = vshrl.u32 %v3142, 7
      %v3144 = vsub.s32 0, %v3143
      %v3145 = vrot.slane %v3140, %v3144
      %v3146 = vlaneseq
      %v3147 = vshrl.u32 %v3146, 7
      %v3148 = vsub.s32 1, %v3147
      %v3149 = vrot.slane %v3140, %v3148
      %v3152 = vmul.f32 %v3138, %v3145
      %v3153 = vmul.f32 %v3139, %v3149
      %3154 = vset.pattern.permute.xlu0 14
      %3155 = vperm.xlu0 %3154, %v2816
      %v3156 = vpop.permute.xlu0 %3155
      %v3158 = vmul.f32 %v3152, %v3156
      %v3159 = vmul.f32 %v3153, %v3156
      %v3160 = vadd.f32 %v3116, %v3158
      %v3161 = vadd.f32 %v3117, %v3159
      %3162 = vrot.lane.b32.xlu0 %v2817, 114
      %v3163 = vpop.permute.xlu0 %3162
      %3164 = vrot.lane.b32.xlu0 %v2818, 114
      %v3165 = vpop.permute.xlu0 %3164
      %v3166 = vsel %vm933, %v3163, %v3165
      %v3167 = vsel %vm933, %v3165, %v3163
      %v3168 = vld [vmem:[%s936] ss:$8 sm:$0x3]
      %v3170 = vlaneseq
      %v3171 = vshrl.u32 %v3170, 7
      %v3172 = vsub.s32 0, %v3171
      %v3173 = vrot.slane %v3168, %v3172
      %v3174 = vlaneseq
      %v3175 = vshrl.u32 %v3174, 7
      %v3176 = vsub.s32 1, %v3175
      %v3177 = vrot.slane %v3168, %v3176
      %v3180 = vmul.f32 %v3166, %v3173
      %v3181 = vmul.f32 %v3167, %v3177
      %3182 = vset.pattern.permute.xlu0 15
      %3183 = vperm.xlu0 %3182, %v2816
      %v3184 = vpop.permute.xlu0 %3183
      %v3186 = vmul.f32 %v3180, %v3184
      %v3187 = vmul.f32 %v3181, %v3184
      %v3188 = vadd.f32 %v3132, %v3186
      %v3189 = vadd.f32 %v3133, %v3187
      %3190 = vrot.lane.b32.xlu0 %v2817, 113
      %v3191 = vpop.permute.xlu0 %3190
      %3192 = vrot.lane.b32.xlu0 %v2818, 113
      %v3193 = vpop.permute.xlu0 %3192
      %v3194 = vsel %vm965, %v3191, %v3193
      %v3195 = vsel %vm965, %v3193, %v3191
      %v3196 = vmul.f32 %v3194, %v2577
      %v3197 = vmul.f32 %v3195, %v2581
      %3198 = vset.pattern.permute.xlu0 16
      %3199 = vperm.xlu0 %3198, %v2816
      %v3200 = vpop.permute.xlu0 %3199
      %v3202 = vmul.f32 %v3196, %v3200
      %v3203 = vmul.f32 %v3197, %v3200
      %v3204 = vadd.f32 %v3160, %v3202
      %v3205 = vadd.f32 %v3161, %v3203
      %3206 = vrot.lane.b32.xlu0 %v2817, 112
      %v3207 = vpop.permute.xlu0 %3206
      %3208 = vrot.lane.b32.xlu0 %v2818, 112
      %v3209 = vpop.permute.xlu0 %3208
      %v3210 = vsel %vm1007, %v3207, %v3209
      %v3211 = vsel %vm1007, %v3209, %v3207
      %v3212 = vmul.f32 %v3210, %v2605
      %v3213 = vmul.f32 %v3211, %v2609
      %3214 = vset.pattern.permute.xlu0 17
      %3215 = vperm.xlu0 %3214, %v2816
      %v3216 = vpop.permute.xlu0 %3215
      %v3218 = vmul.f32 %v3212, %v3216
      %v3219 = vmul.f32 %v3213, %v3216
      %v3220 = vadd.f32 %v3188, %v3218
      %v3221 = vadd.f32 %v3189, %v3219
      %3222 = vrot.lane.b32.xlu0 %v2817, 111
      %v3223 = vpop.permute.xlu0 %3222
      %3224 = vrot.lane.b32.xlu0 %v2818, 111
      %v3225 = vpop.permute.xlu0 %3224
      %v3226 = vsel %vm1049, %v3223, %v3225
      %v3227 = vsel %vm1049, %v3225, %v3223
      %v3228 = vmul.f32 %v3226, %v2633
      %v3229 = vmul.f32 %v3227, %v2637
      %3230 = vset.pattern.permute.xlu0 18
      %3231 = vperm.xlu0 %3230, %v2816
      %v3232 = vpop.permute.xlu0 %3231
      %v3234 = vmul.f32 %v3228, %v3232
      %v3235 = vmul.f32 %v3229, %v3232
      %v3236 = vadd.f32 %v3204, %v3234
      %v3237 = vadd.f32 %v3205, %v3235
      %3238 = vrot.lane.b32.xlu0 %v2817, 110
      %v3239 = vpop.permute.xlu0 %3238
      %3240 = vrot.lane.b32.xlu0 %v2818, 110
      %v3241 = vpop.permute.xlu0 %3240
      %v3242 = vsel %vm1091, %v3239, %v3241
      %v3243 = vsel %vm1091, %v3241, %v3239
      %v3244 = vld [vmem:[%s1094] ss:$8 sm:$0x3]
      %v3246 = vlaneseq
      %v3247 = vshrl.u32 %v3246, 7
      %v3248 = vsub.s32 0, %v3247
      %v3249 = vrot.slane %v3244, %v3248
      %v3250 = vlaneseq
      %v3251 = vshrl.u32 %v3250, 7
      %v3252 = vsub.s32 1, %v3251
      %v3253 = vrot.slane %v3244, %v3252
      %v3256 = vmul.f32 %v3242, %v3249
      %v3257 = vmul.f32 %v3243, %v3253
      %3258 = vset.pattern.permute.xlu0 19
      %3259 = vperm.xlu0 %3258, %v2816
      %v3260 = vpop.permute.xlu0 %3259
      %v3262 = vmul.f32 %v3256, %v3260
      %v3263 = vmul.f32 %v3257, %v3260
      %v3264 = vadd.f32 %v3220, %v3262
      %v3265 = vadd.f32 %v3221, %v3263
      %3266 = vrot.lane.b32.xlu0 %v2817, 98
      %v3267 = vpop.permute.xlu0 %3266
      %3268 = vrot.lane.b32.xlu0 %v2818, 98
      %v3269 = vpop.permute.xlu0 %3268
      %v3270 = vsel %vm1123, %v3267, %v3269
      %v3271 = vsel %vm1123, %v3269, %v3267
      %v3272 = vld [vmem:[%s1126] ss:$8 sm:$0x3]
      %v3274 = vlaneseq
      %v3275 = vshrl.u32 %v3274, 7
      %v3276 = vsub.s32 0, %v3275
      %v3277 = vrot.slane %v3272, %v3276
      %v3278 = vlaneseq
      %v3279 = vshrl.u32 %v3278, 7
      %v3280 = vsub.s32 1, %v3279
      %v3281 = vrot.slane %v3272, %v3280
      %v3284 = vmul.f32 %v3270, %v3277
      %v3285 = vmul.f32 %v3271, %v3281
      %3286 = vset.pattern.permute.xlu0 20
      %3287 = vperm.xlu0 %3286, %v2816
      %v3288 = vpop.permute.xlu0 %3287
      %v3290 = vmul.f32 %v3284, %v3288
      %v3291 = vmul.f32 %v3285, %v3288
      %v3292 = vadd.f32 %v3236, %v3290
      %v3293 = vadd.f32 %v3237, %v3291
      %3294 = vrot.lane.b32.xlu0 %v2817, 97
      %v3295 = vpop.permute.xlu0 %3294
      %3296 = vrot.lane.b32.xlu0 %v2818, 97
      %v3297 = vpop.permute.xlu0 %3296
      %v3298 = vsel %vm1155, %v3295, %v3297
      %v3299 = vsel %vm1155, %v3297, %v3295
      %v3300 = vld [vmem:[%s1158] ss:$8 sm:$0x3]
      %v3302 = vlaneseq
      %v3303 = vshrl.u32 %v3302, 7
      %v3304 = vsub.s32 0, %v3303
      %v3305 = vrot.slane %v3300, %v3304
      %v3306 = vlaneseq
      %v3307 = vshrl.u32 %v3306, 7
      %v3308 = vsub.s32 1, %v3307
      %v3309 = vrot.slane %v3300, %v3308
      %v3312 = vmul.f32 %v3298, %v3305
      %v3313 = vmul.f32 %v3299, %v3309
      %3314 = vset.pattern.permute.xlu0 21
      %3315 = vperm.xlu0 %3314, %v2816
      %v3316 = vpop.permute.xlu0 %3315
      %v3318 = vmul.f32 %v3312, %v3316
      %v3319 = vmul.f32 %v3313, %v3316
      %v3320 = vadd.f32 %v3264, %v3318
      %v3321 = vadd.f32 %v3265, %v3319
      %3322 = vrot.lane.b32.xlu0 %v2817, 96
      %v3323 = vpop.permute.xlu0 %3322
      %3324 = vrot.lane.b32.xlu0 %v2818, 96
      %v3325 = vpop.permute.xlu0 %3324
      %v3326 = vsel %vm1187, %v3323, %v3325
      %v3327 = vsel %vm1187, %v3325, %v3323
      %v3328 = vld [vmem:[%s1190] ss:$8 sm:$0x3]
      %v3330 = vlaneseq
      %v3331 = vshrl.u32 %v3330, 7
      %v3332 = vsub.s32 0, %v3331
      %v3333 = vrot.slane %v3328, %v3332
      %v3334 = vlaneseq
      %v3335 = vshrl.u32 %v3334, 7
      %v3336 = vsub.s32 1, %v3335
      %v3337 = vrot.slane %v3328, %v3336
      %v3340 = vmul.f32 %v3326, %v3333
      %v3341 = vmul.f32 %v3327, %v3337
      %3342 = vset.pattern.permute.xlu0 22
      %3343 = vperm.xlu0 %3342, %v2816
      %v3344 = vpop.permute.xlu0 %3343
      %v3346 = vmul.f32 %v3340, %v3344
      %v3347 = vmul.f32 %v3341, %v3344
      %v3348 = vadd.f32 %v3292, %v3346
      %v3349 = vadd.f32 %v3293, %v3347
      %3350 = vrot.lane.b32.xlu0 %v2817, 95
      %v3351 = vpop.permute.xlu0 %3350
      %3352 = vrot.lane.b32.xlu0 %v2818, 95
      %v3353 = vpop.permute.xlu0 %3352
      %v3354 = vsel %vm1219, %v3351, %v3353
      %v3355 = vsel %vm1219, %v3353, %v3351
      %v3356 = vld [vmem:[%s1222] ss:$8 sm:$0x3]
      %v3358 = vlaneseq
      %v3359 = vshrl.u32 %v3358, 7
      %v3360 = vsub.s32 0, %v3359
      %v3361 = vrot.slane %v3356, %v3360
      %v3362 = vlaneseq
      %v3363 = vshrl.u32 %v3362, 7
      %v3364 = vsub.s32 1, %v3363
      %v3365 = vrot.slane %v3356, %v3364
      %v3368 = vmul.f32 %v3354, %v3361
      %v3369 = vmul.f32 %v3355, %v3365
      %3370 = vset.pattern.permute.xlu0 23
      %3371 = vperm.xlu0 %3370, %v2816
      %v3372 = vpop.permute.xlu0 %3371
      %v3374 = vmul.f32 %v3368, %v3372
      %v3375 = vmul.f32 %v3369, %v3372
      %v3376 = vadd.f32 %v3320, %v3374
      %v3377 = vadd.f32 %v3321, %v3375
      %3378 = vrot.lane.b32.xlu0 %v2817, 94
      %v3379 = vpop.permute.xlu0 %3378
      %3380 = vrot.lane.b32.xlu0 %v2818, 94
      %v3381 = vpop.permute.xlu0 %3380
      %v3382 = vsel %vm1251, %v3379, %v3381
      %v3383 = vsel %vm1251, %v3381, %v3379
      %v3384 = vld [vmem:[%s1254] ss:$8 sm:$0x3]
      %v3386 = vlaneseq
      %v3387 = vshrl.u32 %v3386, 7
      %v3388 = vsub.s32 0, %v3387
      %v3389 = vrot.slane %v3384, %v3388
      %v3390 = vlaneseq
      %v3391 = vshrl.u32 %v3390, 7
      %v3392 = vsub.s32 1, %v3391
      %v3393 = vrot.slane %v3384, %v3392
      %v3396 = vmul.f32 %v3382, %v3389
      %v3397 = vmul.f32 %v3383, %v3393
      %3398 = vset.pattern.permute.xlu0 24
      %3399 = vperm.xlu0 %3398, %v2816
      %v3400 = vpop.permute.xlu0 %3399
      %v3402 = vmul.f32 %v3396, %v3400
      %v3403 = vmul.f32 %v3397, %v3400
      %v3404 = vadd.f32 %v3348, %v3402
      %v3405 = vadd.f32 %v3349, %v3403
      %v3406 = vadd.f32 %v3404, %v3376
      %v3407 = vadd.f32 %v3405, %v3377
      %v3408 = vld [vmem:[%s3 + $0xa0] sm:$0xff]
      %v3409 = vld [vmem:[%s3 + $0xa8] sm:$0xff]
      %3411 = vset.pattern.permute.xlu0 0
      %3412 = vperm.xlu0 %3411, %v3409
      %v3413 = vpop.permute.xlu0 %3412
      %v3416 = vsel %vm231, %v3408, 0
      %3418 = vmatprep.subr.mxu0 0.0
      %3419 = vmatpush1.msra.mxu0 0.0
      %3420 = vmatprep.subr.mxu0 0.0
      %3421 = vmatpush1.msra.mxu0 0.0
      %3422 = vmatprep.subr.mxu0 0.0
      %3423 = vmatpush1.msra.mxu0 0.0
      %3424 = vmatprep.subr.mxu0 0.0
      %3425 = vmatpush1.msra.mxu0 0.0
      %3426 = vmatprep.subr.mxu0 0.0
      %3427 = vmatpush1.msra.mxu0 0.0
      %3428 = vmatprep.subr.mxu0 0.0
      %3429 = vmatpush1.msra.mxu0 0.0
      %3430 = vmatprep.subr.mxu0 0.0
      %3431 = vmatpush1.msra.mxu0 0.0
      %3432 = vmatprep.subr.mxu0 0.0
      %3433 = vmatpush1.msra.mxu0 0.0
      %3434 = vmatprep.subr.mxu0 0.0
      %3435 = vmatpush1.msra.mxu0 0.0
      %3436 = vmatprep.subr.mxu0 0.0
      %3437 = vmatpush1.msra.mxu0 0.0
      %3438 = vmatprep.subr.mxu0 0.0
      %3439 = vmatpush1.msra.mxu0 0.0
      %3440 = vmatprep.subr.mxu0 0.0
      %3441 = vmatpush1.msra.mxu0 0.0
      %3442 = vmatprep.subr.mxu0 0.0
      %3443 = vmatpush1.msra.mxu0 0.0
      %3444 = vmatprep.subr.mxu0 0.0
      %3445 = vmatpush1.msra.mxu0 0.0
      %3446 = vmatprep.subr.mxu0 0.0
      %3447 = vmatpush1.msra.mxu0 0.0
      %3448 = vmatprep.subr.mxu0 %v3407
      %3449 = vmatpush1.msra.mxu0 %v3406
      %3450 = vmatprep.subr.mxu0 0.0
      %3451 = vmatpush2.msra.mxu0 0.0
      %3452 = vmatprep.subr.mxu0 0.0
      %3453 = vmatpush2.msra.mxu0 0.0
      %3454 = vmatprep.subr.mxu0 0.0
      %3455 = vmatpush2.msra.mxu0 0.0
      %3456 = vmatprep.subr.mxu0 0.0
      %3457 = vmatpush2.msra.mxu0 0.0
      %3458 = vmatprep.subr.mxu0 0.0
      %3459 = vmatpush2.msra.mxu0 0.0
      %3460 = vmatprep.subr.mxu0 0.0
      %3461 = vmatpush2.msra.mxu0 0.0
      %3462 = vmatprep.subr.mxu0 0.0
      %3463 = vmatpush2.msra.mxu0 0.0
      %3464 = vmatprep.subr.mxu0 0.0
      %3465 = vmatpush2.msra.mxu0 0.0
      %3466 = vmatprep.subr.mxu0 0.0
      %3467 = vmatpush2.msra.mxu0 0.0
      %3468 = vmatprep.subr.mxu0 0.0
      %3469 = vmatpush2.msra.mxu0 0.0
      %3470 = vmatprep.subr.mxu0 0.0
      %3471 = vmatpush2.msra.mxu0 0.0
      %3472 = vmatprep.subr.mxu0 0.0
      %3473 = vmatpush2.msra.mxu0 0.0
      %3474 = vmatprep.subr.mxu0 0.0
      %3475 = vmatpush2.msra.mxu0 0.0
      %3476 = vmatprep.subr.mxu0 0.0
      %3477 = vmatpush2.msra.mxu0 0.0
      %3478 = vmatprep.subr.mxu0 0.0
      %3479 = vmatpush2.msra.mxu0 0.0
      %3480 = vmatprep.subr.mxu0 0.0
      %3481 = vmatpush2.msra.mxu0 0.0
      %3482 = vmatprep.mubr.f32.mxu0 0.0
      %3483 = vmatmul.mubr.f32.gmra.mxu0 %v3416
      %v3484 = vpop.f32.mrf.mxu0
      %v3485 = vadd.f32 %v3413, %v3484
      %v3486 = vpop.f32.mrf.mxu0
      %v3487 = vadd.f32 %v3413, %v3486
      %3488 = vdwg.mxu0
      %v3489 = vadd.f32 %v2729, %v3485
      %v3490 = vadd.f32 %v2731, %v3487
      %3491 = vst [vmem:[%s217 + $0x20] sm:$0xff] %v3489
      %3492 = vst [vmem:[%s217 + $0x28] sm:$0xff] %v3490
      %v3493 = vadd.f32 %v1889, %v1871
      %v3494 = vadd.f32 %v1890, %v1872
      %v3495 = vld [vmem:[%s3 + $0xb8] sm:$0xff]
      %v3496 = vld [vmem:[%s3 + $0xc0] sm:$0xff]
      %3498 = vset.pattern.permute.xlu0 0
      %3499 = vperm.xlu0 %3498, %v3496
      %v3500 = vpop.permute.xlu0 %3499
      %v3503 = vsel %vm231, %v3495, 0
      %3505 = vmatprep.subr.mxu0 0.0
      %3506 = vmatpush1.msra.mxu0 0.0
      %3507 = vmatprep.subr.mxu0 0.0
      %3508 = vmatpush1.msra.mxu0 0.0
      %3509 = vmatprep.subr.mxu0 0.0
      %3510 = vmatpush1.msra.mxu0 0.0
      %3511 = vmatprep.subr.mxu0 0.0
      %3512 = vmatpush1.msra.mxu0 0.0
      %3513 = vmatprep.subr.mxu0 0.0
      %3514 = vmatpush1.msra.mxu0 0.0
      %3515 = vmatprep.subr.mxu0 0.0
      %3516 = vmatpush1.msra.mxu0 0.0
      %3517 = vmatprep.subr.mxu0 0.0
      %3518 = vmatpush1.msra.mxu0 0.0
      %3519 = vmatprep.subr.mxu0 0.0
      %3520 = vmatpush1.msra.mxu0 0.0
      %3521 = vmatprep.subr.mxu0 0.0
      %3522 = vmatpush1.msra.mxu0 0.0
      %3523 = vmatprep.subr.mxu0 0.0
      %3524 = vmatpush1.msra.mxu0 0.0
      %3525 = vmatprep.subr.mxu0 0.0
      %3526 = vmatpush1.msra.mxu0 0.0
      %3527 = vmatprep.subr.mxu0 0.0
      %3528 = vmatpush1.msra.mxu0 0.0
      %3529 = vmatprep.subr.mxu0 0.0
      %3530 = vmatpush1.msra.mxu0 0.0
      %3531 = vmatprep.subr.mxu0 0.0
      %3532 = vmatpush1.msra.mxu0 0.0
      %3533 = vmatprep.subr.mxu0 0.0
      %3534 = vmatpush1.msra.mxu0 0.0
      %3535 = vmatprep.subr.mxu0 %v3494
      %3536 = vmatpush1.msra.mxu0 %v3493
      %3537 = vmatprep.subr.mxu0 0.0
      %3538 = vmatpush2.msra.mxu0 0.0
      %3539 = vmatprep.subr.mxu0 0.0
      %3540 = vmatpush2.msra.mxu0 0.0
      %3541 = vmatprep.subr.mxu0 0.0
      %3542 = vmatpush2.msra.mxu0 0.0
      %3543 = vmatprep.subr.mxu0 0.0
      %3544 = vmatpush2.msra.mxu0 0.0
      %3545 = vmatprep.subr.mxu0 0.0
      %3546 = vmatpush2.msra.mxu0 0.0
      %3547 = vmatprep.subr.mxu0 0.0
      %3548 = vmatpush2.msra.mxu0 0.0
      %3549 = vmatprep.subr.mxu0 0.0
      %3550 = vmatpush2.msra.mxu0 0.0
      %3551 = vmatprep.subr.mxu0 0.0
      %3552 = vmatpush2.msra.mxu0 0.0
      %3553 = vmatprep.subr.mxu0 0.0
      %3554 = vmatpush2.msra.mxu0 0.0
      %3555 = vmatprep.subr.mxu0 0.0
      %3556 = vmatpush2.msra.mxu0 0.0
      %3557 = vmatprep.subr.mxu0 0.0
      %3558 = vmatpush2.msra.mxu0 0.0
      %3559 = vmatprep.subr.mxu0 0.0
      %3560 = vmatpush2.msra.mxu0 0.0
      %3561 = vmatprep.subr.mxu0 0.0
      %3562 = vmatpush2.msra.mxu0 0.0
      %3563 = vmatprep.subr.mxu0 0.0
      %3564 = vmatpush2.msra.mxu0 0.0
      %3565 = vmatprep.subr.mxu0 0.0
      %3566 = vmatpush2.msra.mxu0 0.0
      %3567 = vmatprep.subr.mxu0 0.0
      %3568 = vmatpush2.msra.mxu0 0.0
      %3569 = vmatprep.mubr.f32.mxu0 0.0
      %3570 = vmatmul.mubr.f32.gmra.mxu0 %v3503
      %v3571 = vpop.f32.mrf.mxu0
      %v3572 = vadd.f32 %v3500, %v3571
      %v3573 = vpop.f32.mrf.mxu0
      %v3574 = vadd.f32 %v3500, %v3573
      %3575 = vdwg.mxu0
      %v3576 = vld [vmem:[%s3 + $0xc8] sm:$0xff]
      %v3577 = vmax.f32 %v3572, 0.0
      %v3578 = vmax.f32 %v3574, 0.0
      %3579 = vrot.lane.b32.xlu0 %v3577, 34
      %v3580 = vpop.permute.xlu0 %3579
      %3581 = vrot.lane.b32.xlu0 %v3578, 34
      %v3582 = vpop.permute.xlu0 %3581
      %v3583 = vsel %vm399, %v3580, %v3582
      %v3584 = vsel %vm399, %v3582, %v3580
      %v3585 = vld [vmem:[%s2] ss:$8 sm:$0x3]
      %v3587 = vlaneseq
      %v3588 = vshrl.u32 %v3587, 7
      %v3589 = vsub.s32 0, %v3588
      %v3590 = vrot.slane %v3585, %v3589
      %v3591 = vlaneseq
      %v3592 = vshrl.u32 %v3591, 7
      %v3593 = vsub.s32 1, %v3592
      %v3594 = vrot.slane %v3585, %v3593
      %v3597 = vmul.f32 %v3584, %v3590
      %v3598 = vmul.f32 %v3583, %v3594
      %3600 = vset.pattern.permute.xlu0 0
      %3601 = vperm.xlu0 %3600, %v3576
      %v3602 = vpop.permute.xlu0 %3601
      %v3604 = vmul.f32 %v3597, %v3602
      %v3605 = vmul.f32 %v3598, %v3602
      %v3606 = vadd.f32 %v3604, 0.0
      %v3607 = vadd.f32 %v3605, 0.0
      %3608 = vrot.lane.b32.xlu0 %v3577, 33
      %v3609 = vpop.permute.xlu0 %3608
      %3610 = vrot.lane.b32.xlu0 %v3578, 33
      %v3611 = vpop.permute.xlu0 %3610
      %v3612 = vsel %vm431, %v3609, %v3611
      %v3613 = vsel %vm431, %v3611, %v3609
      %v3614 = vld [vmem:[%s434] ss:$8 sm:$0x3]
      %v3616 = vlaneseq
      %v3617 = vshrl.u32 %v3616, 7
      %v3618 = vsub.s32 0, %v3617
      %v3619 = vrot.slane %v3614, %v3618
      %v3620 = vlaneseq
      %v3621 = vshrl.u32 %v3620, 7
      %v3622 = vsub.s32 1, %v3621
      %v3623 = vrot.slane %v3614, %v3622
      %v3626 = vmul.f32 %v3613, %v3619
      %v3627 = vmul.f32 %v3612, %v3623
      %3628 = vset.pattern.permute.xlu0 1
      %3629 = vperm.xlu0 %3628, %v3576
      %v3630 = vpop.permute.xlu0 %3629
      %v3632 = vmul.f32 %v3626, %v3630
      %v3633 = vmul.f32 %v3627, %v3630
      %v3634 = vadd.f32 %v3632, 0.0
      %v3635 = vadd.f32 %v3633, 0.0
      %3636 = vrot.lane.b32.xlu0 %v3577, 32
      %v3637 = vpop.permute.xlu0 %3636
      %3638 = vrot.lane.b32.xlu0 %v3578, 32
      %v3639 = vpop.permute.xlu0 %3638
      %v3640 = vsel %vm463, %v3637, %v3639
      %v3641 = vsel %vm463, %v3639, %v3637
      %v3642 = vld [vmem:[%s466] ss:$8 sm:$0x3]
      %v3644 = vlaneseq
      %v3645 = vshrl.u32 %v3644, 7
      %v3646 = vsub.s32 0, %v3645
      %v3647 = vrot.slane %v3642, %v3646
      %v3648 = vlaneseq
      %v3649 = vshrl.u32 %v3648, 7
      %v3650 = vsub.s32 1, %v3649
      %v3651 = vrot.slane %v3642, %v3650
      %v3654 = vmul.f32 %v3641, %v3647
      %v3655 = vmul.f32 %v3640, %v3651
      %3656 = vset.pattern.permute.xlu0 2
      %3657 = vperm.xlu0 %3656, %v3576
      %v3658 = vpop.permute.xlu0 %3657
      %v3660 = vmul.f32 %v3654, %v3658
      %v3661 = vmul.f32 %v3655, %v3658
      %v3662 = vadd.f32 %v3606, %v3660
      %v3663 = vadd.f32 %v3607, %v3661
      %3664 = vrot.lane.b32.xlu0 %v3577, 31
      %v3665 = vpop.permute.xlu0 %3664
      %3666 = vrot.lane.b32.xlu0 %v3578, 31
      %v3667 = vpop.permute.xlu0 %3666
      %v3668 = vsel %vm495, %v3665, %v3667
      %v3669 = vsel %vm495, %v3667, %v3665
      %v3670 = vld [vmem:[%s498] ss:$8 sm:$0x3]
      %v3672 = vlaneseq
      %v3673 = vshrl.u32 %v3672, 7
      %v3674 = vsub.s32 0, %v3673
      %v3675 = vrot.slane %v3670, %v3674
      %v3676 = vlaneseq
      %v3677 = vshrl.u32 %v3676, 7
      %v3678 = vsub.s32 1, %v3677
      %v3679 = vrot.slane %v3670, %v3678
      %v3682 = vmul.f32 %v3669, %v3675
      %v3683 = vmul.f32 %v3668, %v3679
      %3684 = vset.pattern.permute.xlu0 3
      %3685 = vperm.xlu0 %3684, %v3576
      %v3686 = vpop.permute.xlu0 %3685
      %v3688 = vmul.f32 %v3682, %v3686
      %v3689 = vmul.f32 %v3683, %v3686
      %v3690 = vadd.f32 %v3634, %v3688
      %v3691 = vadd.f32 %v3635, %v3689
      %3692 = vrot.lane.b32.xlu0 %v3577, 30
      %v3693 = vpop.permute.xlu0 %3692
      %3694 = vrot.lane.b32.xlu0 %v3578, 30
      %v3695 = vpop.permute.xlu0 %3694
      %v3696 = vsel %vm527, %v3693, %v3695
      %v3697 = vsel %vm527, %v3695, %v3693
      %v3698 = vld [vmem:[%s530] ss:$8 sm:$0x3]
      %v3700 = vlaneseq
      %v3701 = vshrl.u32 %v3700, 7
      %v3702 = vsub.s32 0, %v3701
      %v3703 = vrot.slane %v3698, %v3702
      %v3704 = vlaneseq
      %v3705 = vshrl.u32 %v3704, 7
      %v3706 = vsub.s32 1, %v3705
      %v3707 = vrot.slane %v3698, %v3706
      %v3710 = vmul.f32 %v3697, %v3703
      %v3711 = vmul.f32 %v3696, %v3707
      %3712 = vset.pattern.permute.xlu0 4
      %3713 = vperm.xlu0 %3712, %v3576
      %v3714 = vpop.permute.xlu0 %3713
      %v3716 = vmul.f32 %v3710, %v3714
      %v3717 = vmul.f32 %v3711, %v3714
      %v3718 = vadd.f32 %v3662, %v3716
      %v3719 = vadd.f32 %v3663, %v3717
      %3720 = vrot.lane.b32.xlu0 %v3577, 18
      %v3721 = vpop.permute.xlu0 %3720
      %3722 = vrot.lane.b32.xlu0 %v3578, 18
      %v3723 = vpop.permute.xlu0 %3722
      %v3724 = vsel %vm559, %v3721, %v3723
      %v3725 = vsel %vm559, %v3723, %v3721
      %v3726 = vld [vmem:[%s562] ss:$8 sm:$0x3]
      %v3728 = vlaneseq
      %v3729 = vshrl.u32 %v3728, 7
      %v3730 = vsub.s32 0, %v3729
      %v3731 = vrot.slane %v3726, %v3730
      %v3732 = vlaneseq
      %v3733 = vshrl.u32 %v3732, 7
      %v3734 = vsub.s32 1, %v3733
      %v3735 = vrot.slane %v3726, %v3734
      %v3738 = vmul.f32 %v3725, %v3731
      %v3739 = vmul.f32 %v3724, %v3735
      %3740 = vset.pattern.permute.xlu0 5
      %3741 = vperm.xlu0 %3740, %v3576
      %v3742 = vpop.permute.xlu0 %3741
      %v3744 = vmul.f32 %v3738, %v3742
      %v3745 = vmul.f32 %v3739, %v3742
      %v3746 = vadd.f32 %v3690, %v3744
      %v3747 = vadd.f32 %v3691, %v3745
      %3748 = vrot.lane.b32.xlu0 %v3577, 17
      %v3749 = vpop.permute.xlu0 %3748
      %3750 = vrot.lane.b32.xlu0 %v3578, 17
      %v3751 = vpop.permute.xlu0 %3750
      %v3752 = vsel %vm591, %v3749, %v3751
      %v3753 = vsel %vm591, %v3751, %v3749
      %v3754 = vld [vmem:[%s594] ss:$8 sm:$0x3]
      %v3756 = vlaneseq
      %v3757 = vshrl.u32 %v3756, 7
      %v3758 = vsub.s32 0, %v3757
      %v3759 = vrot.slane %v3754, %v3758
      %v3760 = vlaneseq
      %v3761 = vshrl.u32 %v3760, 7
      %v3762 = vsub.s32 1, %v3761
      %v3763 = vrot.slane %v3754, %v3762
      %v3766 = vmul.f32 %v3753, %v3759
      %v3767 = vmul.f32 %v3752, %v3763
      %3768 = vset.pattern.permute.xlu0 6
      %3769 = vperm.xlu0 %3768, %v3576
      %v3770 = vpop.permute.xlu0 %3769
      %v3772 = vmul.f32 %v3766, %v3770
      %v3773 = vmul.f32 %v3767, %v3770
      %v3774 = vadd.f32 %v3718, %v3772
      %v3775 = vadd.f32 %v3719, %v3773
      %3776 = vrot.lane.b32.xlu0 %v3577, 16
      %v3777 = vpop.permute.xlu0 %3776
      %3778 = vrot.lane.b32.xlu0 %v3578, 16
      %v3779 = vpop.permute.xlu0 %3778
      %v3780 = vsel %vm634, %v3777, %v3779
      %v3781 = vsel %vm634, %v3779, %v3777
      %v3782 = vld [vmem:[%s637] ss:$8 sm:$0x3]
      %v3784 = vlaneseq
      %v3785 = vshrl.u32 %v3784, 7
      %v3786 = vsub.s32 0, %v3785
      %v3787 = vrot.slane %v3782, %v3786
      %v3788 = vlaneseq
      %v3789 = vshrl.u32 %v3788, 7
      %v3790 = vsub.s32 1, %v3789
      %v3791 = vrot.slane %v3782, %v3790
      %v3794 = vmul.f32 %v3781, %v3787
      %v3795 = vmul.f32 %v3780, %v3791
      %3796 = vset.pattern.permute.xlu0 7
      %3797 = vperm.xlu0 %3796, %v3576
      %v3798 = vpop.permute.xlu0 %3797
      %v3800 = vmul.f32 %v3794, %v3798
      %v3801 = vmul.f32 %v3795, %v3798
      %v3802 = vadd.f32 %v3746, %v3800
      %v3803 = vadd.f32 %v3747, %v3801
      %3804 = vrot.lane.b32.xlu0 %v3577, 15
      %v3805 = vpop.permute.xlu0 %3804
      %3806 = vrot.lane.b32.xlu0 %v3578, 15
      %v3807 = vpop.permute.xlu0 %3806
      %v3808 = vsel %vm676, %v3805, %v3807
      %v3809 = vsel %vm676, %v3807, %v3805
      %v3810 = vld [vmem:[%s679] ss:$8 sm:$0x3]
      %v3812 = vlaneseq
      %v3813 = vshrl.u32 %v3812, 7
      %v3814 = vsub.s32 0, %v3813
      %v3815 = vrot.slane %v3810, %v3814
      %v3816 = vlaneseq
      %v3817 = vshrl.u32 %v3816, 7
      %v3818 = vsub.s32 1, %v3817
      %v3819 = vrot.slane %v3810, %v3818
      %v3822 = vmul.f32 %v3809, %v3815
      %v3823 = vmul.f32 %v3808, %v3819
      %3824 = vset.pattern.permute.xlu0 8
      %3825 = vperm.xlu0 %3824, %v3576
      %v3826 = vpop.permute.xlu0 %3825
      %v3828 = vmul.f32 %v3822, %v3826
      %v3829 = vmul.f32 %v3823, %v3826
      %v3830 = vadd.f32 %v3774, %v3828
      %v3831 = vadd.f32 %v3775, %v3829
      %3832 = vrot.lane.b32.xlu0 %v3577, 14
      %v3833 = vpop.permute.xlu0 %3832
      %3834 = vrot.lane.b32.xlu0 %v3578, 14
      %v3835 = vpop.permute.xlu0 %3834
      %v3836 = vsel %vm718, %v3833, %v3835
      %v3837 = vsel %vm718, %v3835, %v3833
      %v3838 = vld [vmem:[%s721] ss:$8 sm:$0x3]
      %v3840 = vlaneseq
      %v3841 = vshrl.u32 %v3840, 7
      %v3842 = vsub.s32 0, %v3841
      %v3843 = vrot.slane %v3838, %v3842
      %v3844 = vlaneseq
      %v3845 = vshrl.u32 %v3844, 7
      %v3846 = vsub.s32 1, %v3845
      %v3847 = vrot.slane %v3838, %v3846
      %v3850 = vmul.f32 %v3837, %v3843
      %v3851 = vmul.f32 %v3836, %v3847
      %3852 = vset.pattern.permute.xlu0 9
      %3853 = vperm.xlu0 %3852, %v3576
      %v3854 = vpop.permute.xlu0 %3853
      %v3856 = vmul.f32 %v3850, %v3854
      %v3857 = vmul.f32 %v3851, %v3854
      %v3858 = vadd.f32 %v3802, %v3856
      %v3859 = vadd.f32 %v3803, %v3857
      %3860 = vrot.lane.b32.xlu0 %v3577, 2
      %v3861 = vpop.permute.xlu0 %3860
      %3862 = vrot.lane.b32.xlu0 %v3578, 2
      %v3863 = vpop.permute.xlu0 %3862
      %v3864 = vsel %vm750, %v3861, %v3863
      %v3865 = vsel %vm750, %v3863, %v3861
      %v3866 = vld [vmem:[%s753] ss:$8 sm:$0x3]
      %v3868 = vlaneseq
      %v3869 = vshrl.u32 %v3868, 7
      %v3870 = vsub.s32 0, %v3869
      %v3871 = vrot.slane %v3866, %v3870
      %v3872 = vlaneseq
      %v3873 = vshrl.u32 %v3872, 7
      %v3874 = vsub.s32 1, %v3873
      %v3875 = vrot.slane %v3866, %v3874
      %v3878 = vmul.f32 %v3865, %v3871
      %v3879 = vmul.f32 %v3864, %v3875
      %3880 = vset.pattern.permute.xlu0 10
      %3881 = vperm.xlu0 %3880, %v3576
      %v3882 = vpop.permute.xlu0 %3881
      %v3884 = vmul.f32 %v3878, %v3882
      %v3885 = vmul.f32 %v3879, %v3882
      %v3886 = vadd.f32 %v3830, %v3884
      %v3887 = vadd.f32 %v3831, %v3885
      %3888 = vrot.lane.b32.xlu0 %v3577, 1
      %v3889 = vpop.permute.xlu0 %3888
      %3890 = vrot.lane.b32.xlu0 %v3578, 1
      %v3891 = vpop.permute.xlu0 %3890
      %v3892 = vsel %vm782, %v3889, %v3891
      %v3893 = vsel %vm782, %v3891, %v3889
      %v3894 = vld [vmem:[%s785] ss:$8 sm:$0x3]
      %v3896 = vlaneseq
      %v3897 = vshrl.u32 %v3896, 7
      %v3898 = vsub.s32 0, %v3897
      %v3899 = vrot.slane %v3894, %v3898
      %v3900 = vlaneseq
      %v3901 = vshrl.u32 %v3900, 7
      %v3902 = vsub.s32 1, %v3901
      %v3903 = vrot.slane %v3894, %v3902
      %v3906 = vmul.f32 %v3893, %v3899
      %v3907 = vmul.f32 %v3892, %v3903
      %3908 = vset.pattern.permute.xlu0 11
      %3909 = vperm.xlu0 %3908, %v3576
      %v3910 = vpop.permute.xlu0 %3909
      %v3912 = vmul.f32 %v3906, %v3910
      %v3913 = vmul.f32 %v3907, %v3910
      %v3914 = vadd.f32 %v3858, %v3912
      %v3915 = vadd.f32 %v3859, %v3913
      %v3916 = vld [vmem:[%s820] ss:$8 sm:$0x3]
      %v3918 = vlaneseq
      %v3919 = vshrl.u32 %v3918, 7
      %v3920 = vsub.s32 0, %v3919
      %v3921 = vrot.slane %v3916, %v3920
      %v3922 = vlaneseq
      %v3923 = vshrl.u32 %v3922, 7
      %v3924 = vsub.s32 1, %v3923
      %v3925 = vrot.slane %v3916, %v3924
      %v3928 = vmul.f32 %v3577, %v3921
      %v3929 = vmul.f32 %v3578, %v3925
      %3930 = vset.pattern.permute.xlu0 12
      %3931 = vperm.xlu0 %3930, %v3576
      %v3932 = vpop.permute.xlu0 %3931
      %v3934 = vmul.f32 %v3928, %v3932
      %v3935 = vmul.f32 %v3929, %v3932
      %v3936 = vadd.f32 %v3886, %v3934
      %v3937 = vadd.f32 %v3887, %v3935
      %3938 = vrot.lane.b32.xlu0 %v3577, 127
      %v3939 = vpop.permute.xlu0 %3938
      %3940 = vrot.lane.b32.xlu0 %v3578, 127
      %v3941 = vpop.permute.xlu0 %3940
      %v3942 = vsel %vm859, %v3939, %v3941
      %v3943 = vsel %vm859, %v3941, %v3939
      %v3944 = vld [vmem:[%s862] ss:$8 sm:$0x3]
      %v3946 = vlaneseq
      %v3947 = vshrl.u32 %v3946, 7
      %v3948 = vsub.s32 0, %v3947
      %v3949 = vrot.slane %v3944, %v3948
      %v3950 = vlaneseq
      %v3951 = vshrl.u32 %v3950, 7
      %v3952 = vsub.s32 1, %v3951
      %v3953 = vrot.slane %v3944, %v3952
      %v3956 = vmul.f32 %v3942, %v3949
      %v3957 = vmul.f32 %v3943, %v3953
      %3958 = vset.pattern.permute.xlu0 13
      %3959 = vperm.xlu0 %3958, %v3576
      %v3960 = vpop.permute.xlu0 %3959
      %v3962 = vmul.f32 %v3956, %v3960
      %v3963 = vmul.f32 %v3957, %v3960
      %v3964 = vadd.f32 %v3914, %v3962
      %v3965 = vadd.f32 %v3915, %v3963
      %3966 = vrot.lane.b32.xlu0 %v3577, 126
      %v3967 = vpop.permute.xlu0 %3966
      %3968 = vrot.lane.b32.xlu0 %v3578, 126
      %v3969 = vpop.permute.xlu0 %3968
      %v3970 = vsel %vm901, %v3967, %v3969
      %v3971 = vsel %vm901, %v3969, %v3967
      %v3972 = vld [vmem:[%s904] ss:$8 sm:$0x3]
      %v3974 = vlaneseq
      %v3975 = vshrl.u32 %v3974, 7
      %v3976 = vsub.s32 0, %v3975
      %v3977 = vrot.slane %v3972, %v3976
      %v3978 = vlaneseq
      %v3979 = vshrl.u32 %v3978, 7
      %v3980 = vsub.s32 1, %v3979
      %v3981 = vrot.slane %v3972, %v3980
      %v3984 = vmul.f32 %v3970, %v3977
      %v3985 = vmul.f32 %v3971, %v3981
      %3986 = vset.pattern.permute.xlu0 14
      %3987 = vperm.xlu0 %3986, %v3576
      %v3988 = vpop.permute.xlu0 %3987
      %v3990 = vmul.f32 %v3984, %v3988
      %v3991 = vmul.f32 %v3985, %v3988
      %v3992 = vadd.f32 %v3936, %v3990
      %v3993 = vadd.f32 %v3937, %v3991
      %3994 = vrot.lane.b32.xlu0 %v3577, 114
      %v3995 = vpop.permute.xlu0 %3994
      %3996 = vrot.lane.b32.xlu0 %v3578, 114
      %v3997 = vpop.permute.xlu0 %3996
      %v3998 = vsel %vm933, %v3995, %v3997
      %v3999 = vsel %vm933, %v3997, %v3995
      %v4000 = vld [vmem:[%s936] ss:$8 sm:$0x3]
      %v4002 = vlaneseq
      %v4003 = vshrl.u32 %v4002, 7
      %v4004 = vsub.s32 0, %v4003
      %v4005 = vrot.slane %v4000, %v4004
      %v4006 = vlaneseq
      %v4007 = vshrl.u32 %v4006, 7
      %v4008 = vsub.s32 1, %v4007
      %v4009 = vrot.slane %v4000, %v4008
      %v4012 = vmul.f32 %v3998, %v4005
      %v4013 = vmul.f32 %v3999, %v4009
      %4014 = vset.pattern.permute.xlu0 15
      %4015 = vperm.xlu0 %4014, %v3576
      %v4016 = vpop.permute.xlu0 %4015
      %v4018 = vmul.f32 %v4012, %v4016
      %v4019 = vmul.f32 %v4013, %v4016
      %v4020 = vadd.f32 %v3964, %v4018
      %v4021 = vadd.f32 %v3965, %v4019
      %4022 = vrot.lane.b32.xlu0 %v3577, 113
      %v4023 = vpop.permute.xlu0 %4022
      %4024 = vrot.lane.b32.xlu0 %v3578, 113
      %v4025 = vpop.permute.xlu0 %4024
      %v4026 = vsel %vm965, %v4023, %v4025
      %v4027 = vsel %vm965, %v4025, %v4023
      %v4028 = vld [vmem:[%s968] ss:$8 sm:$0x3]
      %v4030 = vlaneseq
      %v4031 = vshrl.u32 %v4030, 7
      %v4032 = vsub.s32 0, %v4031
      %v4033 = vrot.slane %v4028, %v4032
      %v4034 = vlaneseq
      %v4035 = vshrl.u32 %v4034, 7
      %v4036 = vsub.s32 1, %v4035
      %v4037 = vrot.slane %v4028, %v4036
      %v4040 = vmul.f32 %v4026, %v4033
      %v4041 = vmul.f32 %v4027, %v4037
      %4042 = vset.pattern.permute.xlu0 16
      %4043 = vperm.xlu0 %4042, %v3576
      %v4044 = vpop.permute.xlu0 %4043
      %v4046 = vmul.f32 %v4040, %v4044
      %v4047 = vmul.f32 %v4041, %v4044
      %v4048 = vadd.f32 %v3992, %v4046
      %v4049 = vadd.f32 %v3993, %v4047
      %4050 = vrot.lane.b32.xlu0 %v3577, 112
      %v4051 = vpop.permute.xlu0 %4050
      %4052 = vrot.lane.b32.xlu0 %v3578, 112
      %v4053 = vpop.permute.xlu0 %4052
      %v4054 = vsel %vm1007, %v4051, %v4053
      %v4055 = vsel %vm1007, %v4053, %v4051
      %v4056 = vld [vmem:[%s1010] ss:$8 sm:$0x3]
      %v4058 = vlaneseq
      %v4059 = vshrl.u32 %v4058, 7
      %v4060 = vsub.s32 0, %v4059
      %v4061 = vrot.slane %v4056, %v4060
      %v4062 = vlaneseq
      %v4063 = vshrl.u32 %v4062, 7
      %v4064 = vsub.s32 1, %v4063
      %v4065 = vrot.slane %v4056, %v4064
      %v4068 = vmul.f32 %v4054, %v4061
      %v4069 = vmul.f32 %v4055, %v4065
      %4070 = vset.pattern.permute.xlu0 17
      %4071 = vperm.xlu0 %4070, %v3576
      %v4072 = vpop.permute.xlu0 %4071
      %v4074 = vmul.f32 %v4068, %v4072
      %v4075 = vmul.f32 %v4069, %v4072
      %v4076 = vadd.f32 %v4020, %v4074
      %v4077 = vadd.f32 %v4021, %v4075
      %4078 = vrot.lane.b32.xlu0 %v3577, 111
      %v4079 = vpop.permute.xlu0 %4078
      %4080 = vrot.lane.b32.xlu0 %v3578, 111
      %v4081 = vpop.permute.xlu0 %4080
      %v4082 = vsel %vm1049, %v4079, %v4081
      %v4083 = vsel %vm1049, %v4081, %v4079
      %v4084 = vld [vmem:[%s1052] ss:$8 sm:$0x3]
      %v4086 = vlaneseq
      %v4087 = vshrl.u32 %v4086, 7
      %v4088 = vsub.s32 0, %v4087
      %v4089 = vrot.slane %v4084, %v4088
      %v4090 = vlaneseq
      %v4091 = vshrl.u32 %v4090, 7
      %v4092 = vsub.s32 1, %v4091
      %v4093 = vrot.slane %v4084, %v4092
      %v4096 = vmul.f32 %v4082, %v4089
      %v4097 = vmul.f32 %v4083, %v4093
      %4098 = vset.pattern.permute.xlu0 18
      %4099 = vperm.xlu0 %4098, %v3576
      %v4100 = vpop.permute.xlu0 %4099
      %v4102 = vmul.f32 %v4096, %v4100
      %v4103 = vmul.f32 %v4097, %v4100
      %v4104 = vadd.f32 %v4048, %v4102
      %v4105 = vadd.f32 %v4049, %v4103
      %4106 = vrot.lane.b32.xlu0 %v3577, 110
      %v4107 = vpop.permute.xlu0 %4106
      %4108 = vrot.lane.b32.xlu0 %v3578, 110
      %v4109 = vpop.permute.xlu0 %4108
      %v4110 = vsel %vm1091, %v4107, %v4109
      %v4111 = vsel %vm1091, %v4109, %v4107
      %v4112 = vld [vmem:[%s1094] ss:$8 sm:$0x3]
      %v4114 = vlaneseq
      %v4115 = vshrl.u32 %v4114, 7
      %v4116 = vsub.s32 0, %v4115
      %v4117 = vrot.slane %v4112, %v4116
      %v4118 = vlaneseq
      %v4119 = vshrl.u32 %v4118, 7
      %v4120 = vsub.s32 1, %v4119
      %v4121 = vrot.slane %v4112, %v4120
      %v4124 = vmul.f32 %v4110, %v4117
      %v4125 = vmul.f32 %v4111, %v4121
      %4126 = vset.pattern.permute.xlu0 19
      %4127 = vperm.xlu0 %4126, %v3576
      %v4128 = vpop.permute.xlu0 %4127
      %v4130 = vmul.f32 %v4124, %v4128
      %v4131 = vmul.f32 %v4125, %v4128
      %v4132 = vadd.f32 %v4076, %v4130
      %v4133 = vadd.f32 %v4077, %v4131
      %4134 = vrot.lane.b32.xlu0 %v3577, 98
      %v4135 = vpop.permute.xlu0 %4134
      %4136 = vrot.lane.b32.xlu0 %v3578, 98
      %v4137 = vpop.permute.xlu0 %4136
      %v4138 = vsel %vm1123, %v4135, %v4137
      %v4139 = vsel %vm1123, %v4137, %v4135
      %v4140 = vld [vmem:[%s1126] ss:$8 sm:$0x3]
      %v4142 = vlaneseq
      %v4143 = vshrl.u32 %v4142, 7
      %v4144 = vsub.s32 0, %v4143
      %v4145 = vrot.slane %v4140, %v4144
      %v4146 = vlaneseq
      %v4147 = vshrl.u32 %v4146, 7
      %v4148 = vsub.s32 1, %v4147
      %v4149 = vrot.slane %v4140, %v4148
      %v4152 = vmul.f32 %v4138, %v4145
      %v4153 = vmul.f32 %v4139, %v4149
      %4154 = vset.pattern.permute.xlu0 20
      %4155 = vperm.xlu0 %4154, %v3576
      %v4156 = vpop.permute.xlu0 %4155
      %v4158 = vmul.f32 %v4152, %v4156
      %v4159 = vmul.f32 %v4153, %v4156
      %v4160 = vadd.f32 %v4104, %v4158
      %v4161 = vadd.f32 %v4105, %v4159
      %4162 = vrot.lane.b32.xlu0 %v3577, 97
      %v4163 = vpop.permute.xlu0 %4162
      %4164 = vrot.lane.b32.xlu0 %v3578, 97
      %v4165 = vpop.permute.xlu0 %4164
      %v4166 = vsel %vm1155, %v4163, %v4165
      %v4167 = vsel %vm1155, %v4165, %v4163
      %v4168 = vld [vmem:[%s1158] ss:$8 sm:$0x3]
      %v4170 = vlaneseq
      %v4171 = vshrl.u32 %v4170, 7
      %v4172 = vsub.s32 0, %v4171
      %v4173 = vrot.slane %v4168, %v4172
      %v4174 = vlaneseq
      %v4175 = vshrl.u32 %v4174, 7
      %v4176 = vsub.s32 1, %v4175
      %v4177 = vrot.slane %v4168, %v4176
      %v4180 = vmul.f32 %v4166, %v4173
      %v4181 = vmul.f32 %v4167, %v4177
      %4182 = vset.pattern.permute.xlu0 21
      %4183 = vperm.xlu0 %4182, %v3576
      %v4184 = vpop.permute.xlu0 %4183
      %v4186 = vmul.f32 %v4180, %v4184
      %v4187 = vmul.f32 %v4181, %v4184
      %v4188 = vadd.f32 %v4132, %v4186
      %v4189 = vadd.f32 %v4133, %v4187
      %4190 = vrot.lane.b32.xlu0 %v3577, 96
      %v4191 = vpop.permute.xlu0 %4190
      %4192 = vrot.lane.b32.xlu0 %v3578, 96
      %v4193 = vpop.permute.xlu0 %4192
      %v4194 = vsel %vm1187, %v4191, %v4193
      %v4195 = vsel %vm1187, %v4193, %v4191
      %v4196 = vld [vmem:[%s1190] ss:$8 sm:$0x3]
      %v4198 = vlaneseq
      %v4199 = vshrl.u32 %v4198, 7
      %v4200 = vsub.s32 0, %v4199
      %v4201 = vrot.slane %v4196, %v4200
      %v4202 = vlaneseq
      %v4203 = vshrl.u32 %v4202, 7
      %v4204 = vsub.s32 1, %v4203
      %v4205 = vrot.slane %v4196, %v4204
      %v4208 = vmul.f32 %v4194, %v4201
      %v4209 = vmul.f32 %v4195, %v4205
      %4210 = vset.pattern.permute.xlu0 22
      %4211 = vperm.xlu0 %4210, %v3576
      %v4212 = vpop.permute.xlu0 %4211
      %v4214 = vmul.f32 %v4208, %v4212
      %v4215 = vmul.f32 %v4209, %v4212
      %v4216 = vadd.f32 %v4160, %v4214
      %v4217 = vadd.f32 %v4161, %v4215
      %4218 = vrot.lane.b32.xlu0 %v3577, 95
      %v4219 = vpop.permute.xlu0 %4218
      %4220 = vrot.lane.b32.xlu0 %v3578, 95
      %v4221 = vpop.permute.xlu0 %4220
      %v4222 = vsel %vm1219, %v4219, %v4221
      %v4223 = vsel %vm1219, %v4221, %v4219
      %v4224 = vld [vmem:[%s1222] ss:$8 sm:$0x3]
      %v4226 = vlaneseq
      %v4227 = vshrl.u32 %v4226, 7
      %v4228 = vsub.s32 0, %v4227
      %v4229 = vrot.slane %v4224, %v4228
      %v4230 = vlaneseq
      %v4231 = vshrl.u32 %v4230, 7
      %v4232 = vsub.s32 1, %v4231
      %v4233 = vrot.slane %v4224, %v4232
      %v4236 = vmul.f32 %v4222, %v4229
      %v4237 = vmul.f32 %v4223, %v4233
      %4238 = vset.pattern.permute.xlu0 23
      %4239 = vperm.xlu0 %4238, %v3576
      %v4240 = vpop.permute.xlu0 %4239
      %v4242 = vmul.f32 %v4236, %v4240
      %v4243 = vmul.f32 %v4237, %v4240
      %v4244 = vadd.f32 %v4188, %v4242
      %v4245 = vadd.f32 %v4189, %v4243
      %4246 = vrot.lane.b32.xlu0 %v3577, 94
      %v4247 = vpop.permute.xlu0 %4246
      %4248 = vrot.lane.b32.xlu0 %v3578, 94
      %v4249 = vpop.permute.xlu0 %4248
      %v4250 = vsel %vm1251, %v4247, %v4249
      %v4251 = vsel %vm1251, %v4249, %v4247
      %v4252 = vld [vmem:[%s1254] ss:$8 sm:$0x3]
      %v4254 = vlaneseq
      %v4255 = vshrl.u32 %v4254, 7
      %v4256 = vsub.s32 0, %v4255
      %v4257 = vrot.slane %v4252, %v4256
      %v4258 = vlaneseq
      %v4259 = vshrl.u32 %v4258, 7
      %v4260 = vsub.s32 1, %v4259
      %v4261 = vrot.slane %v4252, %v4260
      %v4264 = vmul.f32 %v4250, %v4257
      %v4265 = vmul.f32 %v4251, %v4261
      %4266 = vset.pattern.permute.xlu0 24
      %4267 = vperm.xlu0 %4266, %v3576
      %v4268 = vpop.permute.xlu0 %4267
      %v4270 = vmul.f32 %v4264, %v4268
      %v4271 = vmul.f32 %v4265, %v4268
      %v4272 = vadd.f32 %v4216, %v4270
      %v4273 = vadd.f32 %v4217, %v4271
      %v4274 = vadd.f32 %v4272, %v4244
      %v4275 = vadd.f32 %v4273, %v4245
      %v4276 = vld [vmem:[%s3 + $0xd0] sm:$0xff]
      %v4277 = vld [vmem:[%s3 + $0xd8] sm:$0xff]
      %4279 = vset.pattern.permute.xlu0 0
      %4280 = vperm.xlu0 %4279, %v4277
      %v4281 = vpop.permute.xlu0 %4280
      %v4284 = vsel %vm231, %v4276, 0
      %4286 = vmatprep.subr.mxu0 0.0
      %4287 = vmatpush1.msra.mxu0 0.0
      %4288 = vmatprep.subr.mxu0 0.0
      %4289 = vmatpush1.msra.mxu0 0.0
      %4290 = vmatprep.subr.mxu0 0.0
      %4291 = vmatpush1.msra.mxu0 0.0
      %4292 = vmatprep.subr.mxu0 0.0
      %4293 = vmatpush1.msra.mxu0 0.0
      %4294 = vmatprep.subr.mxu0 0.0
      %4295 = vmatpush1.msra.mxu0 0.0
      %4296 = vmatprep.subr.mxu0 0.0
      %4297 = vmatpush1.msra.mxu0 0.0
      %4298 = vmatprep.subr.mxu0 0.0
      %4299 = vmatpush1.msra.mxu0 0.0
      %4300 = vmatprep.subr.mxu0 0.0
      %4301 = vmatpush1.msra.mxu0 0.0
      %4302 = vmatprep.subr.mxu0 0.0
      %4303 = vmatpush1.msra.mxu0 0.0
      %4304 = vmatprep.subr.mxu0 0.0
      %4305 = vmatpush1.msra.mxu0 0.0
      %4306 = vmatprep.subr.mxu0 0.0
      %4307 = vmatpush1.msra.mxu0 0.0
      %4308 = vmatprep.subr.mxu0 0.0
      %4309 = vmatpush1.msra.mxu0 0.0
      %4310 = vmatprep.subr.mxu0 0.0
      %4311 = vmatpush1.msra.mxu0 0.0
      %4312 = vmatprep.subr.mxu0 0.0
      %4313 = vmatpush1.msra.mxu0 0.0
      %4314 = vmatprep.subr.mxu0 0.0
      %4315 = vmatpush1.msra.mxu0 0.0
      %4316 = vmatprep.subr.mxu0 %v4275
      %4317 = vmatpush1.msra.mxu0 %v4274
      %4318 = vmatprep.subr.mxu0 0.0
      %4319 = vmatpush2.msra.mxu0 0.0
      %4320 = vmatprep.subr.mxu0 0.0
      %4321 = vmatpush2.msra.mxu0 0.0
      %4322 = vmatprep.subr.mxu0 0.0
      %4323 = vmatpush2.msra.mxu0 0.0
      %4324 = vmatprep.subr.mxu0 0.0
      %4325 = vmatpush2.msra.mxu0 0.0
      %4326 = vmatprep.subr.mxu0 0.0
      %4327 = vmatpush2.msra.mxu0 0.0
      %4328 = vmatprep.subr.mxu0 0.0
      %4329 = vmatpush2.msra.mxu0 0.0
      %4330 = vmatprep.subr.mxu0 0.0
      %4331 = vmatpush2.msra.mxu0 0.0
      %4332 = vmatprep.subr.mxu0 0.0
      %4333 = vmatpush2.msra.mxu0 0.0
      %4334 = vmatprep.subr.mxu0 0.0
      %4335 = vmatpush2.msra.mxu0 0.0
      %4336 = vmatprep.subr.mxu0 0.0
      %4337 = vmatpush2.msra.mxu0 0.0
      %4338 = vmatprep.subr.mxu0 0.0
      %4339 = vmatpush2.msra.mxu0 0.0
      %4340 = vmatprep.subr.mxu0 0.0
      %4341 = vmatpush2.msra.mxu0 0.0
      %4342 = vmatprep.subr.mxu0 0.0
      %4343 = vmatpush2.msra.mxu0 0.0
      %4344 = vmatprep.subr.mxu0 0.0
      %4345 = vmatpush2.msra.mxu0 0.0
      %4346 = vmatprep.subr.mxu0 0.0
      %4347 = vmatpush2.msra.mxu0 0.0
      %4348 = vmatprep.subr.mxu0 0.0
      %4349 = vmatpush2.msra.mxu0 0.0
      %4350 = vmatprep.mubr.f32.mxu0 0.0
      %4351 = vmatmul.mubr.f32.gmra.mxu0 %v4284
      %v4352 = vpop.f32.mrf.mxu0
      %v4353 = vadd.f32 %v4281, %v4352
      %v4354 = vpop.f32.mrf.mxu0
      %v4355 = vadd.f32 %v4281, %v4354
      %4356 = vdwg.mxu0
      %v4357 = vld [vmem:[%s3 + $0xe8] sm:$0xff]
      %v4358 = vld [vmem:[%s3 + $0xf0] sm:$0xff]
      %4360 = vset.pattern.permute.xlu0 0
      %4361 = vperm.xlu0 %4360, %v4358
      %v4362 = vpop.permute.xlu0 %4361
      %v4365 = vsel %vm231, %v4357, 0
      %4367 = vmatprep.subr.mxu0 0.0
      %4368 = vmatpush1.msra.mxu0 0.0
      %4369 = vmatprep.subr.mxu0 0.0
      %4370 = vmatpush1.msra.mxu0 0.0
      %4371 = vmatprep.subr.mxu0 0.0
      %4372 = vmatpush1.msra.mxu0 0.0
      %4373 = vmatprep.subr.mxu0 0.0
      %4374 = vmatpush1.msra.mxu0 0.0
      %4375 = vmatprep.subr.mxu0 0.0
      %4376 = vmatpush1.msra.mxu0 0.0
      %4377 = vmatprep.subr.mxu0 0.0
      %4378 = vmatpush1.msra.mxu0 0.0
      %4379 = vmatprep.subr.mxu0 0.0
      %4380 = vmatpush1.msra.mxu0 0.0
      %4381 = vmatprep.subr.mxu0 0.0
      %4382 = vmatpush1.msra.mxu0 0.0
      %4383 = vmatprep.subr.mxu0 0.0
      %4384 = vmatpush1.msra.mxu0 0.0
      %4385 = vmatprep.subr.mxu0 0.0
      %4386 = vmatpush1.msra.mxu0 0.0
      %4387 = vmatprep.subr.mxu0 0.0
      %4388 = vmatpush1.msra.mxu0 0.0
      %4389 = vmatprep.subr.mxu0 0.0
      %4390 = vmatpush1.msra.mxu0 0.0
      %4391 = vmatprep.subr.mxu0 0.0
      %4392 = vmatpush1.msra.mxu0 0.0
      %4393 = vmatprep.subr.mxu0 0.0
      %4394 = vmatpush1.msra.mxu0 0.0
      %4395 = vmatprep.subr.mxu0 0.0
      %4396 = vmatpush1.msra.mxu0 0.0
      %4397 = vmatprep.subr.mxu0 %v1780
      %4398 = vmatpush1.msra.mxu0 %v1779
      %4399 = vmatprep.subr.mxu0 0.0
      %4400 = vmatpush2.msra.mxu0 0.0
      %4401 = vmatprep.subr.mxu0 0.0
      %4402 = vmatpush2.msra.mxu0 0.0
      %4403 = vmatprep.subr.mxu0 0.0
      %4404 = vmatpush2.msra.mxu0 0.0
      %4405 = vmatprep.subr.mxu0 0.0
      %4406 = vmatpush2.msra.mxu0 0.0
      %4407 = vmatprep.subr.mxu0 0.0
      %4408 = vmatpush2.msra.mxu0 0.0
      %4409 = vmatprep.subr.mxu0 0.0
      %4410 = vmatpush2.msra.mxu0 0.0
      %4411 = vmatprep.subr.mxu0 0.0
      %4412 = vmatpush2.msra.mxu0 0.0
      %4413 = vmatprep.subr.mxu0 0.0
      %4414 = vmatpush2.msra.mxu0 0.0
      %4415 = vmatprep.subr.mxu0 0.0
      %4416 = vmatpush2.msra.mxu0 0.0
      %4417 = vmatprep.subr.mxu0 0.0
      %4418 = vmatpush2.msra.mxu0 0.0
      %4419 = vmatprep.subr.mxu0 0.0
      %4420 = vmatpush2.msra.mxu0 0.0
      %4421 = vmatprep.subr.mxu0 0.0
      %4422 = vmatpush2.msra.mxu0 0.0
      %4423 = vmatprep.subr.mxu0 0.0
      %4424 = vmatpush2.msra.mxu0 0.0
      %4425 = vmatprep.subr.mxu0 0.0
      %4426 = vmatpush2.msra.mxu0 0.0
      %4427 = vmatprep.subr.mxu0 0.0
      %4428 = vmatpush2.msra.mxu0 0.0
      %4429 = vmatprep.subr.mxu0 0.0
      %4430 = vmatpush2.msra.mxu0 0.0
      %4431 = vmatprep.mubr.f32.mxu0 0.0
      %4432 = vmatmul.mubr.f32.gmra.mxu0 %v4365
      %v4433 = vpop.f32.mrf.mxu0
      %v4434 = vadd.f32 %v4362, %v4433
      %v4435 = vpop.f32.mrf.mxu0
      %v4436 = vadd.f32 %v4362, %v4435
      %4437 = vdwg.mxu0
      %v4438 = vld [vmem:[%s3 + $0xf8] sm:$0xff]
      %v4439 = vmax.f32 %v4434, 0.0
      %v4440 = vmax.f32 %v4436, 0.0
      %4441 = vrot.lane.b32.xlu0 %v4439, 17
      %v4442 = vpop.permute.xlu0 %4441
      %4443 = vrot.lane.b32.xlu0 %v4440, 17
      %v4444 = vpop.permute.xlu0 %4443
      %v4445 = vsel %vm591, %v4442, %v4444
      %v4446 = vsel %vm591, %v4444, %v4442
      %v4447 = vmul.f32 %v4446, %v3759
      %v4448 = vmul.f32 %v4445, %v3763
      %4450 = vset.pattern.permute.xlu0 0
      %4451 = vperm.xlu0 %4450, %v4438
      %v4452 = vpop.permute.xlu0 %4451
      %v4454 = vmul.f32 %v4447, %v4452
      %v4455 = vmul.f32 %v4448, %v4452
      %v4456 = vadd.f32 %v4454, 0.0
      %v4457 = vadd.f32 %v4455, 0.0
      %4458 = vrot.lane.b32.xlu0 %v4439, 16
      %v4459 = vpop.permute.xlu0 %4458
      %4460 = vrot.lane.b32.xlu0 %v4440, 16
      %v4461 = vpop.permute.xlu0 %4460
      %v4462 = vsel %vm634, %v4459, %v4461
      %v4463 = vsel %vm634, %v4461, %v4459
      %v4464 = vmul.f32 %v4463, %v3787
      %v4465 = vmul.f32 %v4462, %v3791
      %4466 = vset.pattern.permute.xlu0 1
      %4467 = vperm.xlu0 %4466, %v4438
      %v4468 = vpop.permute.xlu0 %4467
      %v4470 = vmul.f32 %v4464, %v4468
      %v4471 = vmul.f32 %v4465, %v4468
      %v4472 = vadd.f32 %v4470, 0.0
      %v4473 = vadd.f32 %v4471, 0.0
      %4474 = vrot.lane.b32.xlu0 %v4439, 15
      %v4475 = vpop.permute.xlu0 %4474
      %4476 = vrot.lane.b32.xlu0 %v4440, 15
      %v4477 = vpop.permute.xlu0 %4476
      %v4478 = vsel %vm676, %v4475, %v4477
      %v4479 = vsel %vm676, %v4477, %v4475
      %v4480 = vmul.f32 %v4479, %v3815
      %v4481 = vmul.f32 %v4478, %v3819
      %4482 = vset.pattern.permute.xlu0 2
      %4483 = vperm.xlu0 %4482, %v4438
      %v4484 = vpop.permute.xlu0 %4483
      %v4486 = vmul.f32 %v4480, %v4484
      %v4487 = vmul.f32 %v4481, %v4484
      %v4488 = vadd.f32 %v4456, %v4486
      %v4489 = vadd.f32 %v4457, %v4487
      %4490 = vrot.lane.b32.xlu0 %v4439, 1
      %v4491 = vpop.permute.xlu0 %4490
      %4492 = vrot.lane.b32.xlu0 %v4440, 1
      %v4493 = vpop.permute.xlu0 %4492
      %v4494 = vsel %vm782, %v4491, %v4493
      %v4495 = vsel %vm782, %v4493, %v4491
      %v4496 = vmul.f32 %v4495, %v3899
      %v4497 = vmul.f32 %v4494, %v3903
      %4498 = vset.pattern.permute.xlu0 3
      %4499 = vperm.xlu0 %4498, %v4438
      %v4500 = vpop.permute.xlu0 %4499
      %v4502 = vmul.f32 %v4496, %v4500
      %v4503 = vmul.f32 %v4497, %v4500
      %v4504 = vadd.f32 %v4472, %v4502
      %v4505 = vadd.f32 %v4473, %v4503
      %v4506 = vmul.f32 %v4439, %v3921
      %v4507 = vmul.f32 %v4440, %v3925
      %4508 = vset.pattern.permute.xlu0 4
      %4509 = vperm.xlu0 %4508, %v4438
      %v4510 = vpop.permute.xlu0 %4509
      %v4512 = vmul.f32 %v4506, %v4510
      %v4513 = vmul.f32 %v4507, %v4510
      %v4514 = vadd.f32 %v4488, %v4512
      %v4515 = vadd.f32 %v4489, %v4513
      %4516 = vrot.lane.b32.xlu0 %v4439, 127
      %v4517 = vpop.permute.xlu0 %4516
      %4518 = vrot.lane.b32.xlu0 %v4440, 127
      %v4519 = vpop.permute.xlu0 %4518
      %v4520 = vsel %vm859, %v4517, %v4519
      %v4521 = vsel %vm859, %v4519, %v4517
      %v4522 = vmul.f32 %v4520, %v3949
      %v4523 = vmul.f32 %v4521, %v3953
      %4524 = vset.pattern.permute.xlu0 5
      %4525 = vperm.xlu0 %4524, %v4438
      %v4526 = vpop.permute.xlu0 %4525
      %v4528 = vmul.f32 %v4522, %v4526
      %v4529 = vmul.f32 %v4523, %v4526
      %v4530 = vadd.f32 %v4504, %v4528
      %v4531 = vadd.f32 %v4505, %v4529
      %4532 = vrot.lane.b32.xlu0 %v4439, 113
      %v4533 = vpop.permute.xlu0 %4532
      %4534 = vrot.lane.b32.xlu0 %v4440, 113
      %v4535 = vpop.permute.xlu0 %4534
      %v4536 = vsel %vm965, %v4533, %v4535
      %v4537 = vsel %vm965, %v4535, %v4533
      %v4538 = vmul.f32 %v4536, %v4033
      %v4539 = vmul.f32 %v4537, %v4037
      %4540 = vset.pattern.permute.xlu0 6
      %4541 = vperm.xlu0 %4540, %v4438
      %v4542 = vpop.permute.xlu0 %4541
      %v4544 = vmul.f32 %v4538, %v4542
      %v4545 = vmul.f32 %v4539, %v4542
      %v4546 = vadd.f32 %v4514, %v4544
      %v4547 = vadd.f32 %v4515, %v4545
      %4548 = vrot.lane.b32.xlu0 %v4439, 112
      %v4549 = vpop.permute.xlu0 %4548
      %4550 = vrot.lane.b32.xlu0 %v4440, 112
      %v4551 = vpop.permute.xlu0 %4550
      %v4552 = vsel %vm1007, %v4549, %v4551
      %v4553 = vsel %vm1007, %v4551, %v4549
      %v4554 = vmul.f32 %v4552, %v4061
      %v4555 = vmul.f32 %v4553, %v4065
      %4556 = vset.pattern.permute.xlu0 7
      %4557 = vperm.xlu0 %4556, %v4438
      %v4558 = vpop.permute.xlu0 %4557
      %v4560 = vmul.f32 %v4554, %v4558
      %v4561 = vmul.f32 %v4555, %v4558
      %v4562 = vadd.f32 %v4530, %v4560
      %v4563 = vadd.f32 %v4531, %v4561
      %4564 = vrot.lane.b32.xlu0 %v4439, 111
      %v4565 = vpop.permute.xlu0 %4564
      %4566 = vrot.lane.b32.xlu0 %v4440, 111
      %v4567 = vpop.permute.xlu0 %4566
      %v4568 = vsel %vm1049, %v4565, %v4567
      %v4569 = vsel %vm1049, %v4567, %v4565
      %v4570 = vmul.f32 %v4568, %v4089
      %v4571 = vmul.f32 %v4569, %v4093
      %4572 = vset.pattern.permute.xlu0 8
      %4573 = vperm.xlu0 %4572, %v4438
      %v4574 = vpop.permute.xlu0 %4573
      %v4576 = vmul.f32 %v4570, %v4574
      %v4577 = vmul.f32 %v4571, %v4574
      %v4578 = vadd.f32 %v4546, %v4576
      %v4579 = vadd.f32 %v4547, %v4577
      %v4580 = vadd.f32 %v4578, %v4562
      %v4581 = vadd.f32 %v4579, %v4563
      %v4582 = vld [vmem:[%s3 + $0x100] sm:$0xff]
      %v4583 = vld [vmem:[%s3 + $0x108] sm:$0xff]
      %4585 = vset.pattern.permute.xlu0 0
      %4586 = vperm.xlu0 %4585, %v4583
      %v4587 = vpop.permute.xlu0 %4586
      %v4590 = vsel %vm231, %v4582, 0
      %4592 = vmatprep.subr.mxu0 0.0
      %4593 = vmatpush1.msra.mxu0 0.0
      %4594 = vmatprep.subr.mxu0 0.0
      %4595 = vmatpush1.msra.mxu0 0.0
      %4596 = vmatprep.subr.mxu0 0.0
      %4597 = vmatpush1.msra.mxu0 0.0
      %4598 = vmatprep.subr.mxu0 0.0
      %4599 = vmatpush1.msra.mxu0 0.0
      %4600 = vmatprep.subr.mxu0 0.0
      %4601 = vmatpush1.msra.mxu0 0.0
      %4602 = vmatprep.subr.mxu0 0.0
      %4603 = vmatpush1.msra.mxu0 0.0
      %4604 = vmatprep.subr.mxu0 0.0
      %4605 = vmatpush1.msra.mxu0 0.0
      %4606 = vmatprep.subr.mxu0 0.0
      %4607 = vmatpush1.msra.mxu0 0.0
      %4608 = vmatprep.subr.mxu0 0.0
      %4609 = vmatpush1.msra.mxu0 0.0
      %4610 = vmatprep.subr.mxu0 0.0
      %4611 = vmatpush1.msra.mxu0 0.0
      %4612 = vmatprep.subr.mxu0 0.0
      %4613 = vmatpush1.msra.mxu0 0.0
      %4614 = vmatprep.subr.mxu0 0.0
      %4615 = vmatpush1.msra.mxu0 0.0
      %4616 = vmatprep.subr.mxu0 0.0
      %4617 = vmatpush1.msra.mxu0 0.0
      %4618 = vmatprep.subr.mxu0 0.0
      %4619 = vmatpush1.msra.mxu0 0.0
      %4620 = vmatprep.subr.mxu0 0.0
      %4621 = vmatpush1.msra.mxu0 0.0
      %4622 = vmatprep.subr.mxu0 %v4581
      %4623 = vmatpush1.msra.mxu0 %v4580
      %4624 = vmatprep.subr.mxu0 0.0
      %4625 = vmatpush2.msra.mxu0 0.0
      %4626 = vmatprep.subr.mxu0 0.0
      %4627 = vmatpush2.msra.mxu0 0.0
      %4628 = vmatprep.subr.mxu0 0.0
      %4629 = vmatpush2.msra.mxu0 0.0
      %4630 = vmatprep.subr.mxu0 0.0
      %4631 = vmatpush2.msra.mxu0 0.0
      %4632 = vmatprep.subr.mxu0 0.0
      %4633 = vmatpush2.msra.mxu0 0.0
      %4634 = vmatprep.subr.mxu0 0.0
      %4635 = vmatpush2.msra.mxu0 0.0
      %4636 = vmatprep.subr.mxu0 0.0
      %4637 = vmatpush2.msra.mxu0 0.0
      %4638 = vmatprep.subr.mxu0 0.0
      %4639 = vmatpush2.msra.mxu0 0.0
      %4640 = vmatprep.subr.mxu0 0.0
      %4641 = vmatpush2.msra.mxu0 0.0
      %4642 = vmatprep.subr.mxu0 0.0
      %4643 = vmatpush2.msra.mxu0 0.0
      %4644 = vmatprep.subr.mxu0 0.0
      %4645 = vmatpush2.msra.mxu0 0.0
      %4646 = vmatprep.subr.mxu0 0.0
      %4647 = vmatpush2.msra.mxu0 0.0
      %4648 = vmatprep.subr.mxu0 0.0
      %4649 = vmatpush2.msra.mxu0 0.0
      %4650 = vmatprep.subr.mxu0 0.0
      %4651 = vmatpush2.msra.mxu0 0.0
      %4652 = vmatprep.subr.mxu0 0.0
      %4653 = vmatpush2.msra.mxu0 0.0
      %4654 = vmatprep.subr.mxu0 0.0
      %4655 = vmatpush2.msra.mxu0 0.0
      %4656 = vmatprep.mubr.f32.mxu0 0.0
      %4657 = vmatmul.mubr.f32.gmra.mxu0 %v4590
      %v4658 = vpop.f32.mrf.mxu0
      %v4659 = vadd.f32 %v4587, %v4658
      %v4660 = vpop.f32.mrf.mxu0
      %v4661 = vadd.f32 %v4587, %v4660
      %4662 = vdwg.mxu0
      %v4663 = vadd.f32 %v4353, %v4659
      %v4664 = vadd.f32 %v4355, %v4661
      %4665 = vst [vmem:[%s217 + $0x50] sm:$0xff] %v4663
      %4666 = vst [vmem:[%s217 + $0x58] sm:$0xff] %v4664
      %p4667 = scmp.lt.s32.totalorder %s15, 1
      %s4668 = scalar_select %p4667, %s15, 1
      %s4669 = smul.addr %s4668, 12
      %s4670 = smul.addr %s4669, 8
      %s4671 = scalar_lea.vmem %s4, %s4670
      // Predicated region
      $region37: #{normal_cell_forward.1} parent=35 // pred_check
        %p4672 = pneg %p127
      $region38: #{normal_cell_forward.1} parent=35 // pred_check_branch
        %4674 = sbr.rel (%p4672) target = $region40
      $region39: #{normal_cell_forward.1} parent=35 // pred_region
        _
      $region40: #{normal_cell_forward.1} parent=35 // pred_fallthru
        _
    $region36: #{normal_cell_forward.1} parent=5 // pred_fallthru
      _
    %p4675 = scmp.le.s32.totalorder 2, %s10
    // Predicated region
    $region41: #{normal_cell_forward.1} parent=5 // pred_check
      %p4676 = pneg %p4675
    $region42: #{normal_cell_forward.1} parent=5 // pred_check_branch
      %4678 = sbr.rel (%p4676) target = $region44
    $region43: #{normal_cell_forward.1} parent=5 // pred_region
      %s4679 = ssub.s32 %s10, 2
      // Predicated region
      $region45: #{normal_cell_forward.1} parent=43 // pred_check
        %p4680 = pneg %p133
      $region46: #{normal_cell_forward.1} parent=43 // pred_check_branch
        %4682 = sbr.rel (%p4680) target = $region48
      $region47: #{normal_cell_forward.1} parent=43 // pred_region
        %p4683 = scmp.lt.s32.totalorder %s16, 1
        %s4684 = scalar_select %p4683, %s16, 1
        %s4685 = smul.addr %s4684, 12
        %s4686 = smul.addr %s4685, 8
        %s4687 = scalar_lea.vmem %s4, %s4686
      $region48: #{normal_cell_forward.1} parent=43 // pred_fallthru
        _
    $region44: #{normal_cell_forward.1} parent=5 // pred_fallthru
      _
  $region6: #{normal_cell_forward.1} parent=0 // loop_footer
    %s14 = sadd.s32 1, %s10
  $region7: #{normal_cell_forward.1} parent=0 // loop_footer_branch
    %9 = sbr.rel target = $region3
  $region8: #{normal_cell_forward.1} parent=0 // loop_exit
    _

</llo_original>
